<compile_context>
chip_gen: v5e
topology: v5e:2x2
jax: 0.10.0
libtpu: 0.0.40
codegen_flags: <defaults>
</compile_context>

<pallas_src>
import jax
import jax.numpy as jnp
from jax.experimental import pallas as pl
from jax.experimental.pallas import tpu as pltpu

LANE = 128


def _round_up(x, m):
    return ((x + m - 1) // m) * m


def _pick_tile_m(m, target=512):
    """Largest row-tile <= target that divides m and is a multiple of 8 (else m)."""
    if m <= target:
        return m
    t = (target // 8) * 8
    while t >= 8:
        if m % t == 0:
            return t
        t -= 8
    return m


# ----------------------------- Pallas kernels ------------------------------

def _matmul_bias_relu_kernel(a_ref, b_ref, bias_ref, o_ref):
    acc = jnp.dot(a_ref[...], b_ref[...], preferred_element_type=jnp.float32)
    o_ref[...] = jnp.maximum(acc + bias_ref[...], 0.0).astype(o_ref.dtype)


def matmul_bias_relu(a, b, bias_row, *, out_dtype=jnp.bfloat16, target_tile_m=512):
    """relu(a @ b + bias). a: (M, K) bf16, b: (K, N) bf16, bias_row: (1, N) f32.

    K and N must already be multiples of 128 (lane-dense)."""
    M, K = a.shape
    K2, N = b.shape
    assert K == K2 and K % LANE == 0 and N % LANE == 0
    tm = _pick_tile_m(M, target_tile_m)
    grid = (M // tm,)
    return pl.pallas_call(
        _matmul_bias_relu_kernel,
        out_shape=jax.ShapeDtypeStruct((M, N), out_dtype),
        grid_spec=pltpu.PrefetchScalarGridSpec(
            num_scalar_prefetch=0,
            grid=grid,
            in_specs=[
                pl.BlockSpec((tm, K), lambda i: (i, 0)),
                pl.BlockSpec((K, N), lambda i: (0, 0)),
                pl.BlockSpec((1, N), lambda i: (0, 0)),
            ],
            out_specs=pl.BlockSpec((tm, N), lambda i: (i, 0)),
        ),
        compiler_params=pltpu.CompilerParams(
            dimension_semantics=("parallel",)),
    )(a, b, bias_row)


def _max4_kernel(a_ref, b_ref, c_ref, d_ref, o_ref):
    o_ref[...] = jnp.maximum(
        jnp.maximum(a_ref[...], b_ref[...]),
        jnp.maximum(c_ref[...], d_ref[...]),
    )


def maxpool2x2_nhwc(x, *, target_tile_m=512):
    """MaxPool2d(2, 2) on NHWC with a lane-dense channel dim (C % 128 == 0)."""
    n, h, w, c = x.shape
    assert c % LANE == 0 and h % 2 == 0 and w % 2 == 0
    hp, wp = h // 2, w // 2
    x5 = x.reshape(n, hp, 2, wp, 2, c)
    views = [x5[:, :, di, :, dj, :].reshape(n * hp * wp, c)
             for di in range(2) for dj in range(2)]
    M = n * hp * wp
    tm = _pick_tile_m(M, target_tile_m)
    spec = pl.BlockSpec((tm, c), lambda i: (i, 0))
    out = pl.pallas_call(
        _max4_kernel,
        out_shape=jax.ShapeDtypeStruct((M, c), x.dtype),
        grid_spec=pltpu.PrefetchScalarGridSpec(
            num_scalar_prefetch=0,
            grid=(M // tm,),
            in_specs=[spec, spec, spec, spec],
            out_specs=spec,
        ),
        compiler_params=pltpu.CompilerParams(
            dimension_semantics=("parallel",)),
    )(*views)
    return out.reshape(n, hp, wp, c)


def _fc_fused_kernel(x_ref, w1_ref, b1_ref, w2_ref, b2_ref, o_ref):
    h = jnp.dot(x_ref[...], w1_ref[...], preferred_element_type=jnp.float32)
    h = jnp.maximum(h + b1_ref[...], 0.0)
    o = jnp.dot(h.astype(w2_ref.dtype), w2_ref[...],
                preferred_element_type=jnp.float32)
    o_ref[...] = jnp.maximum(o + b2_ref[...], 0.0).astype(o_ref.dtype)


def fc1_fc2_fused(x, w1, b1, w2, b2, *, out_dtype=jnp.float32, target_tile_m=256):
    """relu(relu(x @ w1 + b1) @ w2 + b2); intermediate stays in VMEM."""
    M, K = x.shape
    H = w1.shape[1]
    N = w2.shape[1]
    assert K % LANE == 0 and H % LANE == 0 and N % LANE == 0
    tm = _pick_tile_m(M, target_tile_m)
    return pl.pallas_call(
        _fc_fused_kernel,
        out_shape=jax.ShapeDtypeStruct((M, N), out_dtype),
        grid_spec=pltpu.PrefetchScalarGridSpec(
            num_scalar_prefetch=0,
            grid=(M // tm,),
            in_specs=[
                pl.BlockSpec((tm, K), lambda i: (i, 0)),
                pl.BlockSpec((K, H), lambda i: (0, 0)),
                pl.BlockSpec((1, H), lambda i: (0, 0)),
                pl.BlockSpec((H, N), lambda i: (0, 0)),
                pl.BlockSpec((1, N), lambda i: (0, 0)),
            ],
            out_specs=pl.BlockSpec((tm, N), lambda i: (i, 0)),
        ),
        compiler_params=pltpu.CompilerParams(
            dimension_semantics=("parallel",)),
    )(x, w1, b1, w2, b2)


# ------------------------------ JAX glue ----------------------------------

def im2col_nhwc(x, k):
    """x: (N, H, W, C) -> (N*Ho*Wo, k*k*C), feature order (kh, kw, c)."""
    n, h, w, c = x.shape
    ho, wo = h - k + 1, w - k + 1
    cols = [x[:, di:di + ho, dj:dj + wo, :] for di in range(k) for dj in range(k)]
    p = jnp.stack(cols, axis=3)                 # (N, Ho, Wo, k*k, C)
    return p.reshape(n * ho * wo, k * k * c), ho, wo


def conv2d_bias_relu_nhwc(x, w_mat, bias_row, k):
    """x: (N, H, W, C) bf16; w_mat: (Kpad, Cout_pad) bf16; bias_row: (1, Cout_pad) f32."""
    n = x.shape[0]
    patches, ho, wo = im2col_nhwc(x, k)         # (N*Ho*Wo, k*k*C)
    kdim = patches.shape[1]
    kpad = _round_up(kdim, LANE)
    if kpad != kdim:
        patches = jnp.pad(patches, ((0, 0), (0, kpad - kdim)))
    assert kpad == w_mat.shape[0]
    y = matmul_bias_relu(patches.astype(jnp.bfloat16), w_mat, bias_row)
    return y.reshape(n, ho, wo, w_mat.shape[1])  # (N, Ho, Wo, Cout_pad)


def init_params(key, num_classes=10):
    """PyTorch-layout parameters (same init scheme as nn.Conv2d / nn.Linear)."""
    ks = jax.random.split(key, 8)

    def uniform(k, shape, fan_in):
        bound = 1.0 / jnp.sqrt(jnp.float32(fan_in))
        return jax.random.uniform(k, shape, jnp.float32, -bound, bound)

    return {
        "conv1_w": uniform(ks[0], (6, 3, 5, 5), 3 * 5 * 5),
        "conv1_b": uniform(ks[1], (6,), 3 * 5 * 5),
        "conv2_w": uniform(ks[2], (16, 6, 5, 5), 6 * 5 * 5),
        "conv2_b": uniform(ks[3], (16,), 6 * 5 * 5),
        "fc1_w": uniform(ks[4], (128, 400), 400),
        "fc1_b": uniform(ks[5], (128,), 400),
        "fc2_w": uniform(ks[6], (num_classes, 128), 128),
        "fc2_b": uniform(ks[7], (128 if False else num_classes,), 128),
    }


def prepare_params(params, num_classes=10):
    """One-time conversion to padded, GEMM-ready (K, N) bf16 weights + f32 bias rows.

    Internal activation layout is NHWC with channels zero-padded to 128, so
    padded channels stay exactly zero through every layer."""
    def pad2(m, rows, cols):
        r, c = m.shape
        return jnp.pad(m, ((0, rows - r), (0, cols - c)))

    # conv1: (6,3,5,5) -> (kh,kw,cin,cout) -> (75, 6) -> (128, 128)
    w1 = jnp.transpose(params["conv1_w"], (2, 3, 1, 0)).reshape(75, 6)
    w1 = pad2(w1, LANE, LANE).astype(jnp.bfloat16)
    b1 = jnp.pad(params["conv1_b"], (0, LANE - 6)).reshape(1, LANE).astype(jnp.float32)

    # conv2: (16,6,5,5) -> (kh,kw,cin_pad=128,cout) -> (3200, 128)
    w2 = jnp.transpose(params["conv2_w"], (2, 3, 1, 0))        # (5,5,6,16)
    w2 = jnp.pad(w2, ((0, 0), (0, 0), (0, LANE - 6), (0, 0)))  # (5,5,128,16)
    w2 = pad2(w2.reshape(5 * 5 * LANE, 16), 5 * 5 * LANE, LANE).astype(jnp.bfloat16)
    b2 = jnp.pad(params["conv2_b"], (0, LANE - 16)).reshape(1, LANE).astype(jnp.float32)

    # fc1: (128, 400) with 400 = (cin=16,h=5,w=5); activation flatten is (h,w,cin_pad=128)
    wf1 = params["fc1_w"].reshape(128, 16, 5, 5)
    wf1 = jnp.transpose(wf1, (2, 3, 1, 0))                      # (5,5,16,128)
    wf1 = jnp.pad(wf1, ((0, 0), (0, 0), (0, LANE - 16), (0, 0)))  # (5,5,128,128)
    wf1 = wf1.reshape(5 * 5 * LANE, 128).astype(jnp.bfloat16)
    bf1 = params["fc1_b"].reshape(1, 128).astype(jnp.float32)

    # fc2: (num_classes, 128) -> (128, 128) padded
    wf2 = pad2(params["fc2_w"].T, 128, LANE).astype(jnp.bfloat16)
    bf2 = jnp.pad(params["fc2_b"], (0, LANE - num_classes)).reshape(1, LANE).astype(jnp.float32)

    return {"conv1_w": w1, "conv1_b": b1,
            "conv2_w": w2, "conv2_b": b2,
            "fc1_w": wf1, "fc1_b": bf1,
            "fc2_w": wf2, "fc2_b": bf2}


def my_cnn_forward(pp, x, num_classes=10):
    """x: (N, 3, 32, 32) f32 (NCHW, PyTorch layout). Returns (N, num_classes) f32."""
    n = x.shape[0]
    xh = jnp.transpose(x, (0, 2, 3, 1)).astype(jnp.bfloat16)            # NHWC
    out = conv2d_bias_relu_nhwc(xh, pp["conv1_w"], pp["conv1_b"], 5)    # (N,28,28,128)
    out = maxpool2x2_nhwc(out)                                          # (N,14,14,128)
    out = conv2d_bias_relu_nhwc(out, pp["conv2_w"], pp["conv2_b"], 5)   # (N,10,10,128)
    out = maxpool2x2_nhwc(out)                                          # (N, 5, 5,128)
    out = out.reshape(n, 5 * 5 * LANE)                                  # (N, 3200), free
    logits = fc1_fc2_fused(out, pp["fc1_w"], pp["fc1_b"],
                           pp["fc2_w"], pp["fc2_b"])                    # (N, 128) f32
    return logits[:, :num_classes]


if __name__ == "__main__":
    key = jax.random.PRNGKey(0)
    kx, kp = jax.random.split(key)
    x = jax.random.normal(kx, (2, 3, 32, 32), jnp.float32)
    params = init_params(kp, num_classes=10)
    prepped = prepare_params(params, num_classes=10)   # one-time weight prep
    y = jax.jit(my_cnn_forward)(prepped, x)
    jax.block_until_ready(y)
    assert y.shape == (2, 10) and y.dtype == jnp.float32
    print("KERNEL_OK")
</pallas_src>

<mosaic_0001>
module attributes {stable_mosaic.version = 11 : i64} {
  func.func @_matmul_bias_relu_kernel(%arg0: i32, %arg1: memref<392x128xbf16, #tpu.memory_space<vmem>>, %arg2: memref<128x128xbf16, #tpu.memory_space<vmem>>, %arg3: memref<1x128xf32, #tpu.memory_space<vmem>>, %arg4: memref<392x128xbf16, #tpu.memory_space<vmem>>) attributes {dimension_semantics = [#tpu.dimension_semantics<parallel>], iteration_bounds = array<i64: 4>, scalar_prefetch = 0 : i64, scratch_operands = 0 : i64, tpu.core_type = #tpu.core_type<tc>, window_params = [{transform_indices = @transform_0, window_bounds = array<i64: 392, 128>}, {pipeline_mode = #tpu.pipeline_mode<synchronous>, transform_indices = @transform_1, window_bounds = array<i64: 128, 128>}, {pipeline_mode = #tpu.pipeline_mode<synchronous>, transform_indices = @transform_2, window_bounds = array<i64: 1, 128>}, {transform_indices = @transform_3, window_bounds = array<i64: 392, 128>}]} {
    %c0 = arith.constant 0 : index
    %c0_0 = arith.constant 0 : index
    %0 = vector.load %arg1[%c0, %c0_0] : memref<392x128xbf16, #tpu.memory_space<vmem>>, vector<392x128xbf16>
    %c0_1 = arith.constant 0 : index
    %c0_2 = arith.constant 0 : index
    %1 = vector.load %arg2[%c0_1, %c0_2] : memref<128x128xbf16, #tpu.memory_space<vmem>>, vector<128x128xbf16>
    %cst = arith.constant dense<0.000000e+00> : vector<392x128xf32>
    %2 = tpu.matmul %0, %1, %cst {dimension_numbers = #tpu.dot_dimension_numbers<[1], [0], [0], [1], [0, 0, 1, 1], [], []>} : vector<392x128xbf16>, vector<128x128xbf16>, vector<392x128xf32> -> vector<392x128xf32>
    %c0_3 = arith.constant 0 : index
    %c0_4 = arith.constant 0 : index
    %3 = vector.load %arg3[%c0_3, %c0_4] : memref<1x128xf32, #tpu.memory_space<vmem>>, vector<1x128xf32>
    %4 = vector.broadcast %3 : vector<1x128xf32> to vector<392x128xf32>
    %5 = arith.addf %2, %4 : vector<392x128xf32>
    %cst_5 = arith.constant 0.000000e+00 : f32
    %6 = vector.broadcast %cst_5 : f32 to vector<392x128xf32>
    %7 = arith.maximumf %5, %6 : vector<392x128xf32>
    %8 = arith.truncf %7 : vector<392x128xf32> to vector<392x128xbf16>
    %c0_6 = arith.constant 0 : index
    %c0_7 = arith.constant 0 : index
    %9 = vector.load %arg4[%c0_6, %c0_7] : memref<392x128xbf16, #tpu.memory_space<vmem>>, vector<392x128xbf16>
    tpu.vector_store %arg4[%c0_6, %c0_7], %8 {strides = array<i32>} : memref<392x128xbf16, #tpu.memory_space<vmem>>, vector<392x128xbf16>,
    return
  }
  func.func @transform_0(%arg0: i32) -> (i32, i32) {
    %c0_i32 = arith.constant 0 : i32
    %c0_i32_0 = arith.constant 0 : i32
    return %arg0, %c0_i32 : i32, i32
  }
  func.func @transform_1(%arg0: i32) -> (i32, i32) {
    %c0_i32 = arith.constant 0 : i32
    %c0_i32_0 = arith.constant 0 : i32
    %c0_i32_1 = arith.constant 0 : i32
    return %c0_i32, %c0_i32_0 : i32, i32
  }
  func.func @transform_2(%arg0: i32) -> (i32, i32) {
    %c0_i32 = arith.constant 0 : i32
    %c0_i32_0 = arith.constant 0 : i32
    %c0_i32_1 = arith.constant 0 : i32
    return %c0_i32, %c0_i32_0 : i32, i32
  }
  func.func @transform_3(%arg0: i32) -> (i32, i32) {
    %c0_i32 = arith.constant 0 : i32
    %c0_i32_0 = arith.constant 0 : i32
    return %arg0, %c0_i32 : i32, i32
  }
}

module attributes {stable_mosaic.version = 11 : i64} {
  func.func @_max4_kernel(%arg0: i32, %arg1: memref<392x128xbf16, #tpu.memory_space<vmem>>, %arg2: memref<392x128xbf16, #tpu.memory_space<vmem>>, %arg3: memref<392x128xbf16, #tpu.memory_space<vmem>>, %arg4: memref<392x128xbf16, #tpu.memory_space<vmem>>, %arg5: memref<392x128xbf16, #tpu.memory_space<vmem>>) attributes {dimension_semantics = [#tpu.dimension_semantics<parallel>], iteration_bounds = array<i64: 1>, scalar_prefetch = 0 : i64, scratch_operands = 0 : i64, tpu.core_type = #tpu.core_type<tc>, window_params = [{transform_indices = @transform_0, window_bounds = array<i64: 392, 128>}, {transform_indices = @transform_1, window_bounds = array<i64: 392, 128>}, {transform_indices = @transform_2, window_bounds = array<i64: 392, 128>}, {transform_indices = @transform_3, window_bounds = array<i64: 392, 128>}, {transform_indices = @transform_4, window_bounds = array<i64: 392, 128>}]} {
    %c0 = arith.constant 0 : index
    %c0_0 = arith.constant 0 : index
    %0 = vector.load %arg1[%c0, %c0_0] : memref<392x128xbf16, #tpu.memory_space<vmem>>, vector<392x128xbf16>
    %c0_1 = arith.constant 0 : index
    %c0_2 = arith.constant 0 : index
    %1 = vector.load %arg2[%c0_1, %c0_2] : memref<392x128xbf16, #tpu.memory_space<vmem>>, vector<392x128xbf16>
    %2 = arith.maximumf %0, %1 : vector<392x128xbf16>
    %c0_3 = arith.constant 0 : index
    %c0_4 = arith.constant 0 : index
    %3 = vector.load %arg3[%c0_3, %c0_4] : memref<392x128xbf16, #tpu.memory_space<vmem>>, vector<392x128xbf16>
    %c0_5 = arith.constant 0 : index
    %c0_6 = arith.constant 0 : index
    %4 = vector.load %arg4[%c0_5, %c0_6] : memref<392x128xbf16, #tpu.memory_space<vmem>>, vector<392x128xbf16>
    %5 = arith.maximumf %3, %4 : vector<392x128xbf16>
    %6 = arith.maximumf %2, %5 : vector<392x128xbf16>
    %c0_7 = arith.constant 0 : index
    %c0_8 = arith.constant 0 : index
    %7 = vector.load %arg5[%c0_7, %c0_8] : memref<392x128xbf16, #tpu.memory_space<vmem>>, vector<392x128xbf16>
    tpu.vector_store %arg5[%c0_7, %c0_8], %6 {strides = array<i32>} : memref<392x128xbf16, #tpu.memory_space<vmem>>, vector<392x128xbf16>,
    return
  }
  func.func @transform_0(%arg0: i32) -> (i32, i32) {
    %c0_i32 = arith.constant 0 : i32
    %c0_i32_0 = arith.constant 0 : i32
    return %arg0, %c0_i32 : i32, i32
  }
  func.func @transform_1(%arg0: i32) -> (i32, i32) {
    %c0_i32 = arith.constant 0 : i32
    %c0_i32_0 = arith.constant 0 : i32
    return %arg0, %c0_i32 : i32, i32
  }
  func.func @transform_2(%arg0: i32) -> (i32, i32) {
    %c0_i32 = arith.constant 0 : i32
    %c0_i32_0 = arith.constant 0 : i32
    return %arg0, %c0_i32 : i32, i32
  }
  func.func @transform_3(%arg0: i32) -> (i32, i32) {
    %c0_i32 = arith.constant 0 : i32
    %c0_i32_0 = arith.constant 0 : i32
    return %arg0, %c0_i32 : i32, i32
  }
  func.func @transform_4(%arg0: i32) -> (i32, i32) {
    %c0_i32 = arith.constant 0 : i32
    %c0_i32_0 = arith.constant 0 : i32
    return %arg0, %c0_i32 : i32, i32
  }
}

module attributes {stable_mosaic.version = 11 : i64} {
  func.func @_matmul_bias_relu_kernel(%arg0: i32, %arg1: memref<200x3200xbf16, #tpu.memory_space<vmem>>, %arg2: memref<3200x128xbf16, #tpu.memory_space<vmem>>, %arg3: memref<1x128xf32, #tpu.memory_space<vmem>>, %arg4: memref<200x128xbf16, #tpu.memory_space<vmem>>) attributes {dimension_semantics = [#tpu.dimension_semantics<parallel>], iteration_bounds = array<i64: 1>, scalar_prefetch = 0 : i64, scratch_operands = 0 : i64, tpu.core_type = #tpu.core_type<tc>, window_params = [{transform_indices = @transform_0, window_bounds = array<i64: 200, 3200>}, {pipeline_mode = #tpu.pipeline_mode<synchronous>, transform_indices = @transform_1, window_bounds = array<i64: 3200, 128>}, {pipeline_mode = #tpu.pipeline_mode<synchronous>, transform_indices = @transform_2, window_bounds = array<i64: 1, 128>}, {transform_indices = @transform_3, window_bounds = array<i64: 200, 128>}]} {
    %c0 = arith.constant 0 : index
    %c0_0 = arith.constant 0 : index
    %0 = vector.load %arg1[%c0, %c0_0] : memref<200x3200xbf16, #tpu.memory_space<vmem>>, vector<200x3200xbf16>
    %c0_1 = arith.constant 0 : index
    %c0_2 = arith.constant 0 : index
    %1 = vector.load %arg2[%c0_1, %c0_2] : memref<3200x128xbf16, #tpu.memory_space<vmem>>, vector<3200x128xbf16>
    %cst = arith.constant dense<0.000000e+00> : vector<200x128xf32>
    %2 = tpu.matmul %0, %1, %cst {dimension_numbers = #tpu.dot_dimension_numbers<[1], [0], [0], [1], [0, 0, 1, 1], [], []>} : vector<200x3200xbf16>, vector<3200x128xbf16>, vector<200x128xf32> -> vector<200x128xf32>
    %c0_3 = arith.constant 0 : index
    %c0_4 = arith.constant 0 : index
    %3 = vector.load %arg3[%c0_3, %c0_4] : memref<1x128xf32, #tpu.memory_space<vmem>>, vector<1x128xf32>
    %4 = vector.broadcast %3 : vector<1x128xf32> to vector<200x128xf32>
    %5 = arith.addf %2, %4 : vector<200x128xf32>
    %cst_5 = arith.constant 0.000000e+00 : f32
    %6 = vector.broadcast %cst_5 : f32 to vector<200x128xf32>
    %7 = arith.maximumf %5, %6 : vector<200x128xf32>
    %8 = arith.truncf %7 : vector<200x128xf32> to vector<200x128xbf16>
    %c0_6 = arith.constant 0 : index
    %c0_7 = arith.constant 0 : index
    %9 = vector.load %arg4[%c0_6, %c0_7] : memref<200x128xbf16, #tpu.memory_space<vmem>>, vector<200x128xbf16>
    tpu.vector_store %arg4[%c0_6, %c0_7], %8 {strides = array<i32>} : memref<200x128xbf16, #tpu.memory_space<vmem>>, vector<200x128xbf16>,
    return
  }
  func.func @transform_0(%arg0: i32) -> (i32, i32) {
    %c0_i32 = arith.constant 0 : i32
    %c0_i32_0 = arith.constant 0 : i32
    return %arg0, %c0_i32 : i32, i32
  }
  func.func @transform_1(%arg0: i32) -> (i32, i32) {
    %c0_i32 = arith.constant 0 : i32
    %c0_i32_0 = arith.constant 0 : i32
    %c0_i32_1 = arith.constant 0 : i32
    return %c0_i32, %c0_i32_0 : i32, i32
  }
  func.func @transform_2(%arg0: i32) -> (i32, i32) {
    %c0_i32 = arith.constant 0 : i32
    %c0_i32_0 = arith.constant 0 : i32
    %c0_i32_1 = arith.constant 0 : i32
    return %c0_i32, %c0_i32_0 : i32, i32
  }
  func.func @transform_3(%arg0: i32) -> (i32, i32) {
    %c0_i32 = arith.constant 0 : i32
    %c0_i32_0 = arith.constant 0 : i32
    return %arg0, %c0_i32 : i32, i32
  }
}

module attributes {stable_mosaic.version = 11 : i64} {
  func.func @_max4_kernel(%arg0: i32, %arg1: memref<50x128xbf16, #tpu.memory_space<vmem>>, %arg2: memref<50x128xbf16, #tpu.memory_space<vmem>>, %arg3: memref<50x128xbf16, #tpu.memory_space<vmem>>, %arg4: memref<50x128xbf16, #tpu.memory_space<vmem>>, %arg5: memref<50x128xbf16, #tpu.memory_space<vmem>>) attributes {dimension_semantics = [#tpu.dimension_semantics<parallel>], iteration_bounds = array<i64: 1>, scalar_prefetch = 0 : i64, scratch_operands = 0 : i64, tpu.core_type = #tpu.core_type<tc>, window_params = [{transform_indices = @transform_0, window_bounds = array<i64: 50, 128>}, {transform_indices = @transform_1, window_bounds = array<i64: 50, 128>}, {transform_indices = @transform_2, window_bounds = array<i64: 50, 128>}, {transform_indices = @transform_3, window_bounds = array<i64: 50, 128>}, {transform_indices = @transform_4, window_bounds = array<i64: 50, 128>}]} {
    %c0 = arith.constant 0 : index
    %c0_0 = arith.constant 0 : index
    %0 = vector.load %arg1[%c0, %c0_0] : memref<50x128xbf16, #tpu.memory_space<vmem>>, vector<50x128xbf16>
    %c0_1 = arith.constant 0 : index
    %c0_2 = arith.constant 0 : index
    %1 = vector.load %arg2[%c0_1, %c0_2] : memref<50x128xbf16, #tpu.memory_space<vmem>>, vector<50x128xbf16>
    %2 = arith.maximumf %0, %1 : vector<50x128xbf16>
    %c0_3 = arith.constant 0 : index
    %c0_4 = arith.constant 0 : index
    %3 = vector.load %arg3[%c0_3, %c0_4] : memref<50x128xbf16, #tpu.memory_space<vmem>>, vector<50x128xbf16>
    %c0_5 = arith.constant 0 : index
    %c0_6 = arith.constant 0 : index
    %4 = vector.load %arg4[%c0_5, %c0_6] : memref<50x128xbf16, #tpu.memory_space<vmem>>, vector<50x128xbf16>
    %5 = arith.maximumf %3, %4 : vector<50x128xbf16>
    %6 = arith.maximumf %2, %5 : vector<50x128xbf16>
    %c0_7 = arith.constant 0 : index
    %c0_8 = arith.constant 0 : index
    %7 = vector.load %arg5[%c0_7, %c0_8] : memref<50x128xbf16, #tpu.memory_space<vmem>>, vector<50x128xbf16>
    tpu.vector_store %arg5[%c0_7, %c0_8], %6 {strides = array<i32>} : memref<50x128xbf16, #tpu.memory_space<vmem>>, vector<50x128xbf16>,
    return
  }
  func.func @transform_0(%arg0: i32) -> (i32, i32) {
    %c0_i32 = arith.constant 0 : i32
    %c0_i32_0 = arith.constant 0 : i32
    return %arg0, %c0_i32 : i32, i32
  }
  func.func @transform_1(%arg0: i32) -> (i32, i32) {
    %c0_i32 = arith.constant 0 : i32
    %c0_i32_0 = arith.constant 0 : i32
    return %arg0, %c0_i32 : i32, i32
  }
  func.func @transform_2(%arg0: i32) -> (i32, i32) {
    %c0_i32 = arith.constant 0 : i32
    %c0_i32_0 = arith.constant 0 : i32
    return %arg0, %c0_i32 : i32, i32
  }
  func.func @transform_3(%arg0: i32) -> (i32, i32) {
    %c0_i32 = arith.constant 0 : i32
    %c0_i32_0 = arith.constant 0 : i32
    return %arg0, %c0_i32 : i32, i32
  }
  func.func @transform_4(%arg0: i32) -> (i32, i32) {
    %c0_i32 = arith.constant 0 : i32
    %c0_i32_0 = arith.constant 0 : i32
    return %arg0, %c0_i32 : i32, i32
  }
}

module attributes {stable_mosaic.version = 11 : i64} {
  func.func @_fc_fused_kernel(%arg0: i32, %arg1: memref<2x3200xbf16, #tpu.memory_space<vmem>>, %arg2: memref<3200x128xbf16, #tpu.memory_space<vmem>>, %arg3: memref<1x128xf32, #tpu.memory_space<vmem>>, %arg4: memref<128x128xbf16, #tpu.memory_space<vmem>>, %arg5: memref<1x128xf32, #tpu.memory_space<vmem>>, %arg6: memref<2x128xf32, #tpu.memory_space<vmem>>) attributes {dimension_semantics = [#tpu.dimension_semantics<parallel>], iteration_bounds = array<i64: 1>, scalar_prefetch = 0 : i64, scratch_operands = 0 : i64, tpu.core_type = #tpu.core_type<tc>, window_params = [{transform_indices = @transform_0, window_bounds = array<i64: 2, 3200>}, {pipeline_mode = #tpu.pipeline_mode<synchronous>, transform_indices = @transform_1, window_bounds = array<i64: 3200, 128>}, {pipeline_mode = #tpu.pipeline_mode<synchronous>, transform_indices = @transform_2, window_bounds = array<i64: 1, 128>}, {pipeline_mode = #tpu.pipeline_mode<synchronous>, transform_indices = @transform_3, window_bounds = array<i64: 128, 128>}, {pipeline_mode = #tpu.pipeline_mode<synchronous>, transform_indices = @transform_4, window_bounds = array<i64: 1, 128>}, {transform_indices = @transform_5, window_bounds = array<i64: 2, 128>}]} {
    %c0 = arith.constant 0 : index
    %c0_0 = arith.constant 0 : index
    %0 = vector.load %arg1[%c0, %c0_0] : memref<2x3200xbf16, #tpu.memory_space<vmem>>, vector<2x3200xbf16>
    %c0_1 = arith.constant 0 : index
    %c0_2 = arith.constant 0 : index
    %1 = vector.load %arg2[%c0_1, %c0_2] : memref<3200x128xbf16, #tpu.memory_space<vmem>>, vector<3200x128xbf16>
    %cst = arith.constant dense<0.000000e+00> : vector<2x128xf32>
    %2 = tpu.matmul %0, %1, %cst {dimension_numbers = #tpu.dot_dimension_numbers<[1], [0], [0], [1], [0, 0, 1, 1], [], []>} : vector<2x3200xbf16>, vector<3200x128xbf16>, vector<2x128xf32> -> vector<2x128xf32>
    %c0_3 = arith.constant 0 : index
    %c0_4 = arith.constant 0 : index
    %3 = vector.load %arg3[%c0_3, %c0_4] : memref<1x128xf32, #tpu.memory_space<vmem>>, vector<1x128xf32>
    %4 = vector.broadcast %3 : vector<1x128xf32> to vector<2x128xf32>
    %5 = arith.addf %2, %4 : vector<2x128xf32>
    %cst_5 = arith.constant 0.000000e+00 : f32
    %6 = vector.broadcast %cst_5 : f32 to vector<2x128xf32>
    %7 = arith.maximumf %5, %6 : vector<2x128xf32>
    %8 = arith.truncf %7 : vector<2x128xf32> to vector<2x128xbf16>
    %c0_6 = arith.constant 0 : index
    %c0_7 = arith.constant 0 : index
    %9 = vector.load %arg4[%c0_6, %c0_7] : memref<128x128xbf16, #tpu.memory_space<vmem>>, vector<128x128xbf16>
    %cst_8 = arith.constant dense<0.000000e+00> : vector<2x128xf32>
    %10 = tpu.matmul %8, %9, %cst_8 {dimension_numbers = #tpu.dot_dimension_numbers<[1], [0], [0], [1], [0, 0, 1, 1], [], []>} : vector<2x128xbf16>, vector<128x128xbf16>, vector<2x128xf32> -> vector<2x128xf32>
    %c0_9 = arith.constant 0 : index
    %c0_10 = arith.constant 0 : index
    %11 = vector.load %arg5[%c0_9, %c0_10] : memref<1x128xf32, #tpu.memory_space<vmem>>, vector<1x128xf32>
    %12 = vector.broadcast %11 : vector<1x128xf32> to vector<2x128xf32>
    %13 = arith.addf %10, %12 : vector<2x128xf32>
    %cst_11 = arith.constant 0.000000e+00 : f32
    %14 = vector.broadcast %cst_11 : f32 to vector<2x128xf32>
    %15 = arith.maximumf %13, %14 : vector<2x128xf32>
    %c0_12 = arith.constant 0 : index
    %c0_13 = arith.constant 0 : index
    %16 = vector.load %arg6[%c0_12, %c0_13] : memref<2x128xf32, #tpu.memory_space<vmem>>, vector<2x128xf32>
    tpu.vector_store %arg6[%c0_12, %c0_13], %15 {strides = array<i32>} : memref<2x128xf32, #tpu.memory_space<vmem>>, vector<2x128xf32>,
    return
  }
  func.func @transform_0(%arg0: i32) -> (i32, i32) {
    %c0_i32 = arith.constant 0 : i32
    %c0_i32_0 = arith.constant 0 : i32
    return %arg0, %c0_i32 : i32, i32
  }
  func.func @transform_1(%arg0: i32) -> (i32, i32) {
    %c0_i32 = arith.constant 0 : i32
    %c0_i32_0 = arith.constant 0 : i32
    %c0_i32_1 = arith.constant 0 : i32
    return %c0_i32, %c0_i32_0 : i32, i32
  }
  func.func @transform_2(%arg0: i32) -> (i32, i32) {
    %c0_i32 = arith.constant 0 : i32
    %c0_i32_0 = arith.constant 0 : i32
    %c0_i32_1 = arith.constant 0 : i32
    return %c0_i32, %c0_i32_0 : i32, i32
  }
  func.func @transform_3(%arg0: i32) -> (i32, i32) {
    %c0_i32 = arith.constant 0 : i32
    %c0_i32_0 = arith.constant 0 : i32
    %c0_i32_1 = arith.constant 0 : i32
    return %c0_i32, %c0_i32_0 : i32, i32
  }
  func.func @transform_4(%arg0: i32) -> (i32, i32) {
    %c0_i32 = arith.constant 0 : i32
    %c0_i32_0 = arith.constant 0 : i32
    %c0_i32_1 = arith.constant 0 : i32
    return %c0_i32, %c0_i32_0 : i32, i32
  }
  func.func @transform_5(%arg0: i32) -> (i32, i32) {
    %c0_i32 = arith.constant 0 : i32
    %c0_i32_0 = arith.constant 0 : i32
    return %arg0, %c0_i32 : i32, i32
  }
}

</mosaic_0001>

<llo_original>
// kernel: squeeze.11
$region0: #{squeeze.11}
  %s0 = inlined_call_operand.vmem [shape: bf16[2,14,1,14,1,128], index: 0, kind: input, shape index: {}]
  %s1 = inlined_call_operand.vmem [shape: bf16[392,128], index: 1, kind: output, shape index: {}]
  $region1: #{squeeze.11} parent=0
    #allocation0 [shape = 'u8[200704]{0}', space=vmem, size = 0x31000, scoped, tag = 'scoped mem for output reshape']
    #allocation1 [shape = 'u8[229376]{0}', space=vmem, size = 0x38000, scoped, tag = 'scoped mem for input reshape']
    %s3 = ssub.s32 256, 1
    %s4 = scalar_lea.vmem %s0, 220
    %s5 = sshrl.u32 %s3, 1
    %s6 = sor.u32 %s3, %s5
    %s7 = sand.u32 %s6, 85
    %s8 = sshrl.u32 %s7, 1
    %s9 = sor.u32 %s7, %s8
    %s10 = sand.u32 51, %s9
    %s11 = sshrl.u32 %s10, 2
    %s12 = sor.u32 %s10, %s11
    %s13 = sand.u32 15, %s12
    %v14 = vld [vmem:[%s4] sm:%s13]
    %v15 = vunpack.c.l.bf16 %v14
    %v16 = vunpack.c.h.bf16 %v14
    %s17 = scalar_lea.vmem [#allocation1], 440
    %18 = vst [vmem:[%s17] sm:%s3] %v15
    %s19 = scalar_lea.vmem %s0, 216
    %s20 = sshrl.u32 %s3, 1
    %s21 = sor.u32 %s3, %s20
    %s22 = sand.u32 %s21, 85
    %s23 = sshrl.u32 %s22, 1
    %s24 = sor.u32 %s22, %s23
    %s25 = sand.u32 51, %s24
    %s26 = sshrl.u32 %s25, 2
    %s27 = sor.u32 %s25, %s26
    %s28 = sand.u32 15, %s27
    %v29 = vld [vmem:[%s19] sm:%s28]
    %v30 = vunpack.c.l.bf16 %v29
    %v31 = vunpack.c.h.bf16 %v29
    %s32 = scalar_lea.vmem [#allocation1], 432
    %33 = vst [vmem:[%s32] sm:%s3] %v30
    %s34 = scalar_lea.vmem %s0, 212
    %s35 = sshrl.u32 %s3, 1
    %s36 = sor.u32 %s3, %s35
    %s37 = sand.u32 %s36, 85
    %s38 = sshrl.u32 %s37, 1
    %s39 = sor.u32 %s37, %s38
    %s40 = sand.u32 51, %s39
    %s41 = sshrl.u32 %s40, 2
    %s42 = sor.u32 %s40, %s41
    %s43 = sand.u32 15, %s42
    %v44 = vld [vmem:[%s34] sm:%s43]
    %v45 = vunpack.c.l.bf16 %v44
    %v46 = vunpack.c.h.bf16 %v44
    %s47 = scalar_lea.vmem [#allocation1], 424
    %48 = vst [vmem:[%s47] sm:%s3] %v45
    %s49 = scalar_lea.vmem %s0, 208
    %s50 = sshrl.u32 %s3, 1
    %s51 = sor.u32 %s3, %s50
    %s52 = sand.u32 %s51, 85
    %s53 = sshrl.u32 %s52, 1
    %s54 = sor.u32 %s52, %s53
    %s55 = sand.u32 51, %s54
    %s56 = sshrl.u32 %s55, 2
    %s57 = sor.u32 %s55, %s56
    %s58 = sand.u32 15, %s57
    %v59 = vld [vmem:[%s49] sm:%s58]
    %v60 = vunpack.c.l.bf16 %v59
    %v61 = vunpack.c.h.bf16 %v59
    %s62 = scalar_lea.vmem [#allocation1], 416
    %63 = vst [vmem:[%s62] sm:%s3] %v60
    %s64 = scalar_lea.vmem %s0, 204
    %s65 = sshrl.u32 %s3, 1
    %s66 = sor.u32 %s3, %s65
    %s67 = sand.u32 %s66, 85
    %s68 = sshrl.u32 %s67, 1
    %s69 = sor.u32 %s67, %s68
    %s70 = sand.u32 51, %s69
    %s71 = sshrl.u32 %s70, 2
    %s72 = sor.u32 %s70, %s71
    %s73 = sand.u32 15, %s72
    %v74 = vld [vmem:[%s64] sm:%s73]
    %v75 = vunpack.c.l.bf16 %v74
    %v76 = vunpack.c.h.bf16 %v74
    %s77 = scalar_lea.vmem [#allocation1], 408
    %78 = vst [vmem:[%s77] sm:%s3] %v75
    %s79 = scalar_lea.vmem %s0, 200
    %s80 = sshrl.u32 %s3, 1
    %s81 = sor.u32 %s3, %s80
    %s82 = sand.u32 %s81, 85
    %s83 = sshrl.u32 %s82, 1
    %s84 = sor.u32 %s82, %s83
    %s85 = sand.u32 51, %s84
    %s86 = sshrl.u32 %s85, 2
    %s87 = sor.u32 %s85, %s86
    %s88 = sand.u32 15, %s87
    %v89 = vld [vmem:[%s79] sm:%s88]
    %v90 = vunpack.c.l.bf16 %v89
    %v91 = vunpack.c.h.bf16 %v89
    %s92 = scalar_lea.vmem [#allocation1], 400
    %93 = vst [vmem:[%s92] sm:%s3] %v90
    %s94 = scalar_lea.vmem %s0, 196
    %s95 = sshrl.u32 %s3, 1
    %s96 = sor.u32 %s3, %s95
    %s97 = sand.u32 %s96, 85
    %s98 = sshrl.u32 %s97, 1
    %s99 = sor.u32 %s97, %s98
    %s100 = sand.u32 51, %s99
    %s101 = sshrl.u32 %s100, 2
    %s102 = sor.u32 %s100, %s101
    %s103 = sand.u32 15, %s102
    %v104 = vld [vmem:[%s94] sm:%s103]
    %v105 = vunpack.c.l.bf16 %v104
    %v106 = vunpack.c.h.bf16 %v104
    %s107 = scalar_lea.vmem [#allocation1], 392
    %108 = vst [vmem:[%s107] sm:%s3] %v105
    %s109 = scalar_lea.vmem %s0, 192
    %s110 = sshrl.u32 %s3, 1
    %s111 = sor.u32 %s3, %s110
    %s112 = sand.u32 %s111, 85
    %s113 = sshrl.u32 %s112, 1
    %s114 = sor.u32 %s112, %s113
    %s115 = sand.u32 51, %s114
    %s116 = sshrl.u32 %s115, 2
    %s117 = sor.u32 %s115, %s116
    %s118 = sand.u32 15, %s117
    %v119 = vld [vmem:[%s109] sm:%s118]
    %v120 = vunpack.c.l.bf16 %v119
    %v121 = vunpack.c.h.bf16 %v119
    %s122 = scalar_lea.vmem [#allocation1], 384
    %123 = vst [vmem:[%s122] sm:%s3] %v120
    %s124 = scalar_lea.vmem %s0, 188
    %s125 = sshrl.u32 %s3, 1
    %s126 = sor.u32 %s3, %s125
    %s127 = sand.u32 %s126, 85
    %s128 = sshrl.u32 %s127, 1
    %s129 = sor.u32 %s127, %s128
    %s130 = sand.u32 51, %s129
    %s131 = sshrl.u32 %s130, 2
    %s132 = sor.u32 %s130, %s131
    %s133 = sand.u32 15, %s132
    %v134 = vld [vmem:[%s124] sm:%s133]
    %v135 = vunpack.c.l.bf16 %v134
    %v136 = vunpack.c.h.bf16 %v134
    %s137 = scalar_lea.vmem [#allocation1], 376
    %138 = vst [vmem:[%s137] sm:%s3] %v135
    %s139 = scalar_lea.vmem %s0, 184
    %s140 = sshrl.u32 %s3, 1
    %s141 = sor.u32 %s3, %s140
    %s142 = sand.u32 %s141, 85
    %s143 = sshrl.u32 %s142, 1
    %s144 = sor.u32 %s142, %s143
    %s145 = sand.u32 51, %s144
    %s146 = sshrl.u32 %s145, 2
    %s147 = sor.u32 %s145, %s146
    %s148 = sand.u32 15, %s147
    %v149 = vld [vmem:[%s139] sm:%s148]
    %v150 = vunpack.c.l.bf16 %v149
    %v151 = vunpack.c.h.bf16 %v149
    %s152 = scalar_lea.vmem [#allocation1], 368
    %153 = vst [vmem:[%s152] sm:%s3] %v150
    %s154 = scalar_lea.vmem %s0, 180
    %s155 = sshrl.u32 %s3, 1
    %s156 = sor.u32 %s3, %s155
    %s157 = sand.u32 %s156, 85
    %s158 = sshrl.u32 %s157, 1
    %s159 = sor.u32 %s157, %s158
    %s160 = sand.u32 51, %s159
    %s161 = sshrl.u32 %s160, 2
    %s162 = sor.u32 %s160, %s161
    %s163 = sand.u32 15, %s162
    %v164 = vld [vmem:[%s154] sm:%s163]
    %v165 = vunpack.c.l.bf16 %v164
    %v166 = vunpack.c.h.bf16 %v164
    %s167 = scalar_lea.vmem [#allocation1], 360
    %168 = vst [vmem:[%s167] sm:%s3] %v165
    %s169 = scalar_lea.vmem %s0, 176
    %s170 = sshrl.u32 %s3, 1
    %s171 = sor.u32 %s3, %s170
    %s172 = sand.u32 %s171, 85
    %s173 = sshrl.u32 %s172, 1
    %s174 = sor.u32 %s172, %s173
    %s175 = sand.u32 51, %s174
    %s176 = sshrl.u32 %s175, 2
    %s177 = sor.u32 %s175, %s176
    %s178 = sand.u32 15, %s177
    %v179 = vld [vmem:[%s169] sm:%s178]
    %v180 = vunpack.c.l.bf16 %v179
    %v181 = vunpack.c.h.bf16 %v179
    %s182 = scalar_lea.vmem [#allocation1], 352
    %183 = vst [vmem:[%s182] sm:%s3] %v180
    %s184 = scalar_lea.vmem %s0, 172
    %s185 = sshrl.u32 %s3, 1
    %s186 = sor.u32 %s3, %s185
    %s187 = sand.u32 %s186, 85
    %s188 = sshrl.u32 %s187, 1
    %s189 = sor.u32 %s187, %s188
    %s190 = sand.u32 51, %s189
    %s191 = sshrl.u32 %s190, 2
    %s192 = sor.u32 %s190, %s191
    %s193 = sand.u32 15, %s192
    %v194 = vld [vmem:[%s184] sm:%s193]
    %v195 = vunpack.c.l.bf16 %v194
    %v196 = vunpack.c.h.bf16 %v194
    %s197 = scalar_lea.vmem [#allocation1], 344
    %198 = vst [vmem:[%s197] sm:%s3] %v195
    %s199 = scalar_lea.vmem %s0, 168
    %s200 = sshrl.u32 %s3, 1
    %s201 = sor.u32 %s3, %s200
    %s202 = sand.u32 %s201, 85
    %s203 = sshrl.u32 %s202, 1
    %s204 = sor.u32 %s202, %s203
    %s205 = sand.u32 51, %s204
    %s206 = sshrl.u32 %s205, 2
    %s207 = sor.u32 %s205, %s206
    %s208 = sand.u32 15, %s207
    %v209 = vld [vmem:[%s199] sm:%s208]
    %v210 = vunpack.c.l.bf16 %v209
    %v211 = vunpack.c.h.bf16 %v209
    %s212 = scalar_lea.vmem [#allocation1], 336
    %213 = vst [vmem:[%s212] sm:%s3] %v210
    %s214 = scalar_lea.vmem %s0, 164
    %s215 = sshrl.u32 %s3, 1
    %s216 = sor.u32 %s3, %s215
    %s217 = sand.u32 %s216, 85
    %s218 = sshrl.u32 %s217, 1
    %s219 = sor.u32 %s217, %s218
    %s220 = sand.u32 51, %s219
    %s221 = sshrl.u32 %s220, 2
    %s222 = sor.u32 %s220, %s221
    %s223 = sand.u32 15, %s222
    %v224 = vld [vmem:[%s214] sm:%s223]
    %v225 = vunpack.c.l.bf16 %v224
    %v226 = vunpack.c.h.bf16 %v224
    %s227 = scalar_lea.vmem [#allocation1], 328
    %228 = vst [vmem:[%s227] sm:%s3] %v225
    %s229 = scalar_lea.vmem %s0, 160
    %s230 = sshrl.u32 %s3, 1
    %s231 = sor.u32 %s3, %s230
    %s232 = sand.u32 %s231, 85
    %s233 = sshrl.u32 %s232, 1
    %s234 = sor.u32 %s232, %s233
    %s235 = sand.u32 51, %s234
    %s236 = sshrl.u32 %s235, 2
    %s237 = sor.u32 %s235, %s236
    %s238 = sand.u32 15, %s237
    %v239 = vld [vmem:[%s229] sm:%s238]
    %v240 = vunpack.c.l.bf16 %v239
    %v241 = vunpack.c.h.bf16 %v239
    %s242 = scalar_lea.vmem [#allocation1], 320
    %243 = vst [vmem:[%s242] sm:%s3] %v240
    %s244 = scalar_lea.vmem %s0, 156
    %s245 = sshrl.u32 %s3, 1
    %s246 = sor.u32 %s3, %s245
    %s247 = sand.u32 %s246, 85
    %s248 = sshrl.u32 %s247, 1
    %s249 = sor.u32 %s247, %s248
    %s250 = sand.u32 51, %s249
    %s251 = sshrl.u32 %s250, 2
    %s252 = sor.u32 %s250, %s251
    %s253 = sand.u32 15, %s252
    %v254 = vld [vmem:[%s244] sm:%s253]
    %v255 = vunpack.c.l.bf16 %v254
    %v256 = vunpack.c.h.bf16 %v254
    %s257 = scalar_lea.vmem [#allocation1], 312
    %258 = vst [vmem:[%s257] sm:%s3] %v255
    %s259 = scalar_lea.vmem %s0, 152
    %s260 = sshrl.u32 %s3, 1
    %s261 = sor.u32 %s3, %s260
    %s262 = sand.u32 %s261, 85
    %s263 = sshrl.u32 %s262, 1
    %s264 = sor.u32 %s262, %s263
    %s265 = sand.u32 51, %s264
    %s266 = sshrl.u32 %s265, 2
    %s267 = sor.u32 %s265, %s266
    %s268 = sand.u32 15, %s267
    %v269 = vld [vmem:[%s259] sm:%s268]
    %v270 = vunpack.c.l.bf16 %v269
    %v271 = vunpack.c.h.bf16 %v269
    %s272 = scalar_lea.vmem [#allocation1], 304
    %273 = vst [vmem:[%s272] sm:%s3] %v270
    %s274 = scalar_lea.vmem %s0, 148
    %s275 = sshrl.u32 %s3, 1
    %s276 = sor.u32 %s3, %s275
    %s277 = sand.u32 %s276, 85
    %s278 = sshrl.u32 %s277, 1
    %s279 = sor.u32 %s277, %s278
    %s280 = sand.u32 51, %s279
    %s281 = sshrl.u32 %s280, 2
    %s282 = sor.u32 %s280, %s281
    %s283 = sand.u32 15, %s282
    %v284 = vld [vmem:[%s274] sm:%s283]
    %v285 = vunpack.c.l.bf16 %v284
    %v286 = vunpack.c.h.bf16 %v284
    %s287 = scalar_lea.vmem [#allocation1], 296
    %288 = vst [vmem:[%s287] sm:%s3] %v285
    %s289 = scalar_lea.vmem %s0, 144
    %s290 = sshrl.u32 %s3, 1
    %s291 = sor.u32 %s3, %s290
    %s292 = sand.u32 %s291, 85
    %s293 = sshrl.u32 %s292, 1
    %s294 = sor.u32 %s292, %s293
    %s295 = sand.u32 51, %s294
    %s296 = sshrl.u32 %s295, 2
    %s297 = sor.u32 %s295, %s296
    %s298 = sand.u32 15, %s297
    %v299 = vld [vmem:[%s289] sm:%s298]
    %v300 = vunpack.c.l.bf16 %v299
    %v301 = vunpack.c.h.bf16 %v299
    %s302 = scalar_lea.vmem [#allocation1], 288
    %303 = vst [vmem:[%s302] sm:%s3] %v300
    %s304 = scalar_lea.vmem %s0, 140
    %s305 = sshrl.u32 %s3, 1
    %s306 = sor.u32 %s3, %s305
    %s307 = sand.u32 %s306, 85
    %s308 = sshrl.u32 %s307, 1
    %s309 = sor.u32 %s307, %s308
    %s310 = sand.u32 51, %s309
    %s311 = sshrl.u32 %s310, 2
    %s312 = sor.u32 %s310, %s311
    %s313 = sand.u32 15, %s312
    %v314 = vld [vmem:[%s304] sm:%s313]
    %v315 = vunpack.c.l.bf16 %v314
    %v316 = vunpack.c.h.bf16 %v314
    %s317 = scalar_lea.vmem [#allocation1], 280
    %318 = vst [vmem:[%s317] sm:%s3] %v315
    %s319 = scalar_lea.vmem %s0, 136
    %s320 = sshrl.u32 %s3, 1
    %s321 = sor.u32 %s3, %s320
    %s322 = sand.u32 %s321, 85
    %s323 = sshrl.u32 %s322, 1
    %s324 = sor.u32 %s322, %s323
    %s325 = sand.u32 51, %s324
    %s326 = sshrl.u32 %s325, 2
    %s327 = sor.u32 %s325, %s326
    %s328 = sand.u32 15, %s327
    %v329 = vld [vmem:[%s319] sm:%s328]
    %v330 = vunpack.c.l.bf16 %v329
    %v331 = vunpack.c.h.bf16 %v329
    %s332 = scalar_lea.vmem [#allocation1], 272
    %333 = vst [vmem:[%s332] sm:%s3] %v330
    %s334 = scalar_lea.vmem %s0, 132
    %s335 = sshrl.u32 %s3, 1
    %s336 = sor.u32 %s3, %s335
    %s337 = sand.u32 %s336, 85
    %s338 = sshrl.u32 %s337, 1
    %s339 = sor.u32 %s337, %s338
    %s340 = sand.u32 51, %s339
    %s341 = sshrl.u32 %s340, 2
    %s342 = sor.u32 %s340, %s341
    %s343 = sand.u32 15, %s342
    %v344 = vld [vmem:[%s334] sm:%s343]
    %v345 = vunpack.c.l.bf16 %v344
    %v346 = vunpack.c.h.bf16 %v344
    %s347 = scalar_lea.vmem [#allocation1], 264
    %348 = vst [vmem:[%s347] sm:%s3] %v345
    %s349 = scalar_lea.vmem %s0, 128
    %s350 = sshrl.u32 %s3, 1
    %s351 = sor.u32 %s3, %s350
    %s352 = sand.u32 %s351, 85
    %s353 = sshrl.u32 %s352, 1
    %s354 = sor.u32 %s352, %s353
    %s355 = sand.u32 51, %s354
    %s356 = sshrl.u32 %s355, 2
    %s357 = sor.u32 %s355, %s356
    %s358 = sand.u32 15, %s357
    %v359 = vld [vmem:[%s349] sm:%s358]
    %v360 = vunpack.c.l.bf16 %v359
    %v361 = vunpack.c.h.bf16 %v359
    %s362 = scalar_lea.vmem [#allocation1], 256
    %363 = vst [vmem:[%s362] sm:%s3] %v360
    %s364 = scalar_lea.vmem %s0, 124
    %s365 = sshrl.u32 %s3, 1
    %s366 = sor.u32 %s3, %s365
    %s367 = sand.u32 %s366, 85
    %s368 = sshrl.u32 %s367, 1
    %s369 = sor.u32 %s367, %s368
    %s370 = sand.u32 51, %s369
    %s371 = sshrl.u32 %s370, 2
    %s372 = sor.u32 %s370, %s371
    %s373 = sand.u32 15, %s372
    %v374 = vld [vmem:[%s364] sm:%s373]
    %v375 = vunpack.c.l.bf16 %v374
    %v376 = vunpack.c.h.bf16 %v374
    %s377 = scalar_lea.vmem [#allocation1], 248
    %378 = vst [vmem:[%s377] sm:%s3] %v375
    %s379 = scalar_lea.vmem %s0, 120
    %s380 = sshrl.u32 %s3, 1
    %s381 = sor.u32 %s3, %s380
    %s382 = sand.u32 %s381, 85
    %s383 = sshrl.u32 %s382, 1
    %s384 = sor.u32 %s382, %s383
    %s385 = sand.u32 51, %s384
    %s386 = sshrl.u32 %s385, 2
    %s387 = sor.u32 %s385, %s386
    %s388 = sand.u32 15, %s387
    %v389 = vld [vmem:[%s379] sm:%s388]
    %v390 = vunpack.c.l.bf16 %v389
    %v391 = vunpack.c.h.bf16 %v389
    %s392 = scalar_lea.vmem [#allocation1], 240
    %393 = vst [vmem:[%s392] sm:%s3] %v390
    %s394 = scalar_lea.vmem %s0, 116
    %s395 = sshrl.u32 %s3, 1
    %s396 = sor.u32 %s3, %s395
    %s397 = sand.u32 %s396, 85
    %s398 = sshrl.u32 %s397, 1
    %s399 = sor.u32 %s397, %s398
    %s400 = sand.u32 51, %s399
    %s401 = sshrl.u32 %s400, 2
    %s402 = sor.u32 %s400, %s401
    %s403 = sand.u32 15, %s402
    %v404 = vld [vmem:[%s394] sm:%s403]
    %v405 = vunpack.c.l.bf16 %v404
    %v406 = vunpack.c.h.bf16 %v404
    %s407 = scalar_lea.vmem [#allocation1], 232
    %408 = vst [vmem:[%s407] sm:%s3] %v405
    %s409 = scalar_lea.vmem %s0, 112
    %s410 = sshrl.u32 %s3, 1
    %s411 = sor.u32 %s3, %s410
    %s412 = sand.u32 %s411, 85
    %s413 = sshrl.u32 %s412, 1
    %s414 = sor.u32 %s412, %s413
    %s415 = sand.u32 51, %s414
    %s416 = sshrl.u32 %s415, 2
    %s417 = sor.u32 %s415, %s416
    %s418 = sand.u32 15, %s417
    %v419 = vld [vmem:[%s409] sm:%s418]
    %v420 = vunpack.c.l.bf16 %v419
    %v421 = vunpack.c.h.bf16 %v419
    %s422 = scalar_lea.vmem [#allocation1], 224
    %423 = vst [vmem:[%s422] sm:%s3] %v420
    %s424 = scalar_lea.vmem %s0, 108
    %s425 = sshrl.u32 %s3, 1
    %s426 = sor.u32 %s3, %s425
    %s427 = sand.u32 %s426, 85
    %s428 = sshrl.u32 %s427, 1
    %s429 = sor.u32 %s427, %s428
    %s430 = sand.u32 51, %s429
    %s431 = sshrl.u32 %s430, 2
    %s432 = sor.u32 %s430, %s431
    %s433 = sand.u32 15, %s432
    %v434 = vld [vmem:[%s424] sm:%s433]
    %v435 = vunpack.c.l.bf16 %v434
    %v436 = vunpack.c.h.bf16 %v434
    %s437 = scalar_lea.vmem [#allocation1], 216
    %438 = vst [vmem:[%s437] sm:%s3] %v435
    %s439 = scalar_lea.vmem %s0, 104
    %s440 = sshrl.u32 %s3, 1
    %s441 = sor.u32 %s3, %s440
    %s442 = sand.u32 %s441, 85
    %s443 = sshrl.u32 %s442, 1
    %s444 = sor.u32 %s442, %s443
    %s445 = sand.u32 51, %s444
    %s446 = sshrl.u32 %s445, 2
    %s447 = sor.u32 %s445, %s446
    %s448 = sand.u32 15, %s447
    %v449 = vld [vmem:[%s439] sm:%s448]
    %v450 = vunpack.c.l.bf16 %v449
    %v451 = vunpack.c.h.bf16 %v449
    %s452 = scalar_lea.vmem [#allocation1], 208
    %453 = vst [vmem:[%s452] sm:%s3] %v450
    %s454 = scalar_lea.vmem %s0, 100
    %s455 = sshrl.u32 %s3, 1
    %s456 = sor.u32 %s3, %s455
    %s457 = sand.u32 %s456, 85
    %s458 = sshrl.u32 %s457, 1
    %s459 = sor.u32 %s457, %s458
    %s460 = sand.u32 51, %s459
    %s461 = sshrl.u32 %s460, 2
    %s462 = sor.u32 %s460, %s461
    %s463 = sand.u32 15, %s462
    %v464 = vld [vmem:[%s454] sm:%s463]
    %v465 = vunpack.c.l.bf16 %v464
    %v466 = vunpack.c.h.bf16 %v464
    %s467 = scalar_lea.vmem [#allocation1], 200
    %468 = vst [vmem:[%s467] sm:%s3] %v465
    %s469 = scalar_lea.vmem %s0, 96
    %s470 = sshrl.u32 %s3, 1
    %s471 = sor.u32 %s3, %s470
    %s472 = sand.u32 %s471, 85
    %s473 = sshrl.u32 %s472, 1
    %s474 = sor.u32 %s472, %s473
    %s475 = sand.u32 51, %s474
    %s476 = sshrl.u32 %s475, 2
    %s477 = sor.u32 %s475, %s476
    %s478 = sand.u32 15, %s477
    %v479 = vld [vmem:[%s469] sm:%s478]
    %v480 = vunpack.c.l.bf16 %v479
    %v481 = vunpack.c.h.bf16 %v479
    %s482 = scalar_lea.vmem [#allocation1], 192
    %483 = vst [vmem:[%s482] sm:%s3] %v480
    %s484 = scalar_lea.vmem %s0, 92
    %s485 = sshrl.u32 %s3, 1
    %s486 = sor.u32 %s3, %s485
    %s487 = sand.u32 %s486, 85
    %s488 = sshrl.u32 %s487, 1
    %s489 = sor.u32 %s487, %s488
    %s490 = sand.u32 51, %s489
    %s491 = sshrl.u32 %s490, 2
    %s492 = sor.u32 %s490, %s491
    %s493 = sand.u32 15, %s492
    %v494 = vld [vmem:[%s484] sm:%s493]
    %v495 = vunpack.c.l.bf16 %v494
    %v496 = vunpack.c.h.bf16 %v494
    %s497 = scalar_lea.vmem [#allocation1], 184
    %498 = vst [vmem:[%s497] sm:%s3] %v495
    %s499 = scalar_lea.vmem %s0, 88
    %s500 = sshrl.u32 %s3, 1
    %s501 = sor.u32 %s3, %s500
    %s502 = sand.u32 %s501, 85
    %s503 = sshrl.u32 %s502, 1
    %s504 = sor.u32 %s502, %s503
    %s505 = sand.u32 51, %s504
    %s506 = sshrl.u32 %s505, 2
    %s507 = sor.u32 %s505, %s506
    %s508 = sand.u32 15, %s507
    %v509 = vld [vmem:[%s499] sm:%s508]
    %v510 = vunpack.c.l.bf16 %v509
    %v511 = vunpack.c.h.bf16 %v509
    %s512 = scalar_lea.vmem [#allocation1], 176
    %513 = vst [vmem:[%s512] sm:%s3] %v510
    %s514 = scalar_lea.vmem %s0, 84
    %s515 = sshrl.u32 %s3, 1
    %s516 = sor.u32 %s3, %s515
    %s517 = sand.u32 %s516, 85
    %s518 = sshrl.u32 %s517, 1
    %s519 = sor.u32 %s517, %s518
    %s520 = sand.u32 51, %s519
    %s521 = sshrl.u32 %s520, 2
    %s522 = sor.u32 %s520, %s521
    %s523 = sand.u32 15, %s522
    %v524 = vld [vmem:[%s514] sm:%s523]
    %v525 = vunpack.c.l.bf16 %v524
    %v526 = vunpack.c.h.bf16 %v524
    %s527 = scalar_lea.vmem [#allocation1], 168
    %528 = vst [vmem:[%s527] sm:%s3] %v525
    %s529 = scalar_lea.vmem %s0, 80
    %s530 = sshrl.u32 %s3, 1
    %s531 = sor.u32 %s3, %s530
    %s532 = sand.u32 %s531, 85
    %s533 = sshrl.u32 %s532, 1
    %s534 = sor.u32 %s532, %s533
    %s535 = sand.u32 51, %s534
    %s536 = sshrl.u32 %s535, 2
    %s537 = sor.u32 %s535, %s536
    %s538 = sand.u32 15, %s537
    %v539 = vld [vmem:[%s529] sm:%s538]
    %v540 = vunpack.c.l.bf16 %v539
    %v541 = vunpack.c.h.bf16 %v539
    %s542 = scalar_lea.vmem [#allocation1], 160
    %543 = vst [vmem:[%s542] sm:%s3] %v540
    %s544 = scalar_lea.vmem %s0, 76
    %s545 = sshrl.u32 %s3, 1
    %s546 = sor.u32 %s3, %s545
    %s547 = sand.u32 %s546, 85
    %s548 = sshrl.u32 %s547, 1
    %s549 = sor.u32 %s547, %s548
    %s550 = sand.u32 51, %s549
    %s551 = sshrl.u32 %s550, 2
    %s552 = sor.u32 %s550, %s551
    %s553 = sand.u32 15, %s552
    %v554 = vld [vmem:[%s544] sm:%s553]
    %v555 = vunpack.c.l.bf16 %v554
    %v556 = vunpack.c.h.bf16 %v554
    %s557 = scalar_lea.vmem [#allocation1], 152
    %558 = vst [vmem:[%s557] sm:%s3] %v555
    %s559 = scalar_lea.vmem %s0, 72
    %s560 = sshrl.u32 %s3, 1
    %s561 = sor.u32 %s3, %s560
    %s562 = sand.u32 %s561, 85
    %s563 = sshrl.u32 %s562, 1
    %s564 = sor.u32 %s562, %s563
    %s565 = sand.u32 51, %s564
    %s566 = sshrl.u32 %s565, 2
    %s567 = sor.u32 %s565, %s566
    %s568 = sand.u32 15, %s567
    %v569 = vld [vmem:[%s559] sm:%s568]
    %v570 = vunpack.c.l.bf16 %v569
    %v571 = vunpack.c.h.bf16 %v569
    %s572 = scalar_lea.vmem [#allocation1], 144
    %573 = vst [vmem:[%s572] sm:%s3] %v570
    %s574 = scalar_lea.vmem %s0, 68
    %s575 = sshrl.u32 %s3, 1
    %s576 = sor.u32 %s3, %s575
    %s577 = sand.u32 %s576, 85
    %s578 = sshrl.u32 %s577, 1
    %s579 = sor.u32 %s577, %s578
    %s580 = sand.u32 51, %s579
    %s581 = sshrl.u32 %s580, 2
    %s582 = sor.u32 %s580, %s581
    %s583 = sand.u32 15, %s582
    %v584 = vld [vmem:[%s574] sm:%s583]
    %v585 = vunpack.c.l.bf16 %v584
    %v586 = vunpack.c.h.bf16 %v584
    %s587 = scalar_lea.vmem [#allocation1], 136
    %588 = vst [vmem:[%s587] sm:%s3] %v585
    %s589 = scalar_lea.vmem %s0, 64
    %s590 = sshrl.u32 %s3, 1
    %s591 = sor.u32 %s3, %s590
    %s592 = sand.u32 %s591, 85
    %s593 = sshrl.u32 %s592, 1
    %s594 = sor.u32 %s592, %s593
    %s595 = sand.u32 51, %s594
    %s596 = sshrl.u32 %s595, 2
    %s597 = sor.u32 %s595, %s596
    %s598 = sand.u32 15, %s597
    %v599 = vld [vmem:[%s589] sm:%s598]
    %v600 = vunpack.c.l.bf16 %v599
    %v601 = vunpack.c.h.bf16 %v599
    %s602 = scalar_lea.vmem [#allocation1], 128
    %603 = vst [vmem:[%s602] sm:%s3] %v600
    %s604 = scalar_lea.vmem %s0, 60
    %s605 = sshrl.u32 %s3, 1
    %s606 = sor.u32 %s3, %s605
    %s607 = sand.u32 %s606, 85
    %s608 = sshrl.u32 %s607, 1
    %s609 = sor.u32 %s607, %s608
    %s610 = sand.u32 51, %s609
    %s611 = sshrl.u32 %s610, 2
    %s612 = sor.u32 %s610, %s611
    %s613 = sand.u32 15, %s612
    %v614 = vld [vmem:[%s604] sm:%s613]
    %v615 = vunpack.c.l.bf16 %v614
    %v616 = vunpack.c.h.bf16 %v614
    %s617 = scalar_lea.vmem [#allocation1], 120
    %618 = vst [vmem:[%s617] sm:%s3] %v615
    %s619 = scalar_lea.vmem %s0, 56
    %s620 = sshrl.u32 %s3, 1
    %s621 = sor.u32 %s3, %s620
    %s622 = sand.u32 %s621, 85
    %s623 = sshrl.u32 %s622, 1
    %s624 = sor.u32 %s622, %s623
    %s625 = sand.u32 51, %s624
    %s626 = sshrl.u32 %s625, 2
    %s627 = sor.u32 %s625, %s626
    %s628 = sand.u32 15, %s627
    %v629 = vld [vmem:[%s619] sm:%s628]
    %v630 = vunpack.c.l.bf16 %v629
    %v631 = vunpack.c.h.bf16 %v629
    %s632 = scalar_lea.vmem [#allocation1], 112
    %633 = vst [vmem:[%s632] sm:%s3] %v630
    %s634 = scalar_lea.vmem %s0, 52
    %s635 = sshrl.u32 %s3, 1
    %s636 = sor.u32 %s3, %s635
    %s637 = sand.u32 %s636, 85
    %s638 = sshrl.u32 %s637, 1
    %s639 = sor.u32 %s637, %s638
    %s640 = sand.u32 51, %s639
    %s641 = sshrl.u32 %s640, 2
    %s642 = sor.u32 %s640, %s641
    %s643 = sand.u32 15, %s642
    %v644 = vld [vmem:[%s634] sm:%s643]
    %v645 = vunpack.c.l.bf16 %v644
    %v646 = vunpack.c.h.bf16 %v644
    %s647 = scalar_lea.vmem [#allocation1], 104
    %648 = vst [vmem:[%s647] sm:%s3] %v645
    %s649 = scalar_lea.vmem %s0, 48
    %s650 = sshrl.u32 %s3, 1
    %s651 = sor.u32 %s3, %s650
    %s652 = sand.u32 %s651, 85
    %s653 = sshrl.u32 %s652, 1
    %s654 = sor.u32 %s652, %s653
    %s655 = sand.u32 51, %s654
    %s656 = sshrl.u32 %s655, 2
    %s657 = sor.u32 %s655, %s656
    %s658 = sand.u32 15, %s657
    %v659 = vld [vmem:[%s649] sm:%s658]
    %v660 = vunpack.c.l.bf16 %v659
    %v661 = vunpack.c.h.bf16 %v659
    %s662 = scalar_lea.vmem [#allocation1], 96
    %663 = vst [vmem:[%s662] sm:%s3] %v660
    %s664 = scalar_lea.vmem %s0, 44
    %s665 = sshrl.u32 %s3, 1
    %s666 = sor.u32 %s3, %s665
    %s667 = sand.u32 %s666, 85
    %s668 = sshrl.u32 %s667, 1
    %s669 = sor.u32 %s667, %s668
    %s670 = sand.u32 51, %s669
    %s671 = sshrl.u32 %s670, 2
    %s672 = sor.u32 %s670, %s671
    %s673 = sand.u32 15, %s672
    %v674 = vld [vmem:[%s664] sm:%s673]
    %v675 = vunpack.c.l.bf16 %v674
    %v676 = vunpack.c.h.bf16 %v674
    %s677 = scalar_lea.vmem [#allocation1], 88
    %678 = vst [vmem:[%s677] sm:%s3] %v675
    %s679 = scalar_lea.vmem %s0, 40
    %s680 = sshrl.u32 %s3, 1
    %s681 = sor.u32 %s3, %s680
    %s682 = sand.u32 %s681, 85
    %s683 = sshrl.u32 %s682, 1
    %s684 = sor.u32 %s682, %s683
    %s685 = sand.u32 51, %s684
    %s686 = sshrl.u32 %s685, 2
    %s687 = sor.u32 %s685, %s686
    %s688 = sand.u32 15, %s687
    %v689 = vld [vmem:[%s679] sm:%s688]
    %v690 = vunpack.c.l.bf16 %v689
    %v691 = vunpack.c.h.bf16 %v689
    %s692 = scalar_lea.vmem [#allocation1], 80
    %693 = vst [vmem:[%s692] sm:%s3] %v690
    %s694 = scalar_lea.vmem %s0, 36
    %s695 = sshrl.u32 %s3, 1
    %s696 = sor.u32 %s3, %s695
    %s697 = sand.u32 %s696, 85
    %s698 = sshrl.u32 %s697, 1
    %s699 = sor.u32 %s697, %s698
    %s700 = sand.u32 51, %s699
    %s701 = sshrl.u32 %s700, 2
    %s702 = sor.u32 %s700, %s701
    %s703 = sand.u32 15, %s702
    %v704 = vld [vmem:[%s694] sm:%s703]
    %v705 = vunpack.c.l.bf16 %v704
    %v706 = vunpack.c.h.bf16 %v704
    %s707 = scalar_lea.vmem [#allocation1], 72
    %708 = vst [vmem:[%s707] sm:%s3] %v705
    %s709 = scalar_lea.vmem %s0, 32
    %s710 = sshrl.u32 %s3, 1
    %s711 = sor.u32 %s3, %s710
    %s712 = sand.u32 %s711, 85
    %s713 = sshrl.u32 %s712, 1
    %s714 = sor.u32 %s712, %s713
    %s715 = sand.u32 51, %s714
    %s716 = sshrl.u32 %s715, 2
    %s717 = sor.u32 %s715, %s716
    %s718 = sand.u32 15, %s717
    %v719 = vld [vmem:[%s709] sm:%s718]
    %v720 = vunpack.c.l.bf16 %v719
    %v721 = vunpack.c.h.bf16 %v719
    %s722 = scalar_lea.vmem [#allocation1], 64
    %723 = vst [vmem:[%s722] sm:%s3] %v720
    %s724 = scalar_lea.vmem %s0, 28
    %s725 = sshrl.u32 %s3, 1
    %s726 = sor.u32 %s3, %s725
    %s727 = sand.u32 %s726, 85
    %s728 = sshrl.u32 %s727, 1
    %s729 = sor.u32 %s727, %s728
    %s730 = sand.u32 51, %s729
    %s731 = sshrl.u32 %s730, 2
    %s732 = sor.u32 %s730, %s731
    %s733 = sand.u32 15, %s732
    %v734 = vld [vmem:[%s724] sm:%s733]
    %v735 = vunpack.c.l.bf16 %v734
    %v736 = vunpack.c.h.bf16 %v734
    %s737 = scalar_lea.vmem [#allocation1], 56
    %738 = vst [vmem:[%s737] sm:%s3] %v735
    %s739 = scalar_lea.vmem %s0, 24
    %s740 = sshrl.u32 %s3, 1
    %s741 = sor.u32 %s3, %s740
    %s742 = sand.u32 %s741, 85
    %s743 = sshrl.u32 %s742, 1
    %s744 = sor.u32 %s742, %s743
    %s745 = sand.u32 51, %s744
    %s746 = sshrl.u32 %s745, 2
    %s747 = sor.u32 %s745, %s746
    %s748 = sand.u32 15, %s747
    %v749 = vld [vmem:[%s739] sm:%s748]
    %v750 = vunpack.c.l.bf16 %v749
    %v751 = vunpack.c.h.bf16 %v749
    %s752 = scalar_lea.vmem [#allocation1], 48
    %753 = vst [vmem:[%s752] sm:%s3] %v750
    %s754 = scalar_lea.vmem %s0, 20
    %s755 = sshrl.u32 %s3, 1
    %s756 = sor.u32 %s3, %s755
    %s757 = sand.u32 %s756, 85
    %s758 = sshrl.u32 %s757, 1
    %s759 = sor.u32 %s757, %s758
    %s760 = sand.u32 51, %s759
    %s761 = sshrl.u32 %s760, 2
    %s762 = sor.u32 %s760, %s761
    %s763 = sand.u32 15, %s762
    %v764 = vld [vmem:[%s754] sm:%s763]
    %v765 = vunpack.c.l.bf16 %v764
    %v766 = vunpack.c.h.bf16 %v764
    %s767 = scalar_lea.vmem [#allocation1], 40
    %768 = vst [vmem:[%s767] sm:%s3] %v765
    %s769 = scalar_lea.vmem %s0, 16
    %s770 = sshrl.u32 %s3, 1
    %s771 = sor.u32 %s3, %s770
    %s772 = sand.u32 %s771, 85
    %s773 = sshrl.u32 %s772, 1
    %s774 = sor.u32 %s772, %s773
    %s775 = sand.u32 51, %s774
    %s776 = sshrl.u32 %s775, 2
    %s777 = sor.u32 %s775, %s776
    %s778 = sand.u32 15, %s777
    %v779 = vld [vmem:[%s769] sm:%s778]
    %v780 = vunpack.c.l.bf16 %v779
    %v781 = vunpack.c.h.bf16 %v779
    %s782 = scalar_lea.vmem [#allocation1], 32
    %783 = vst [vmem:[%s782] sm:%s3] %v780
    %s784 = scalar_lea.vmem %s0, 12
    %s785 = sshrl.u32 %s3, 1
    %s786 = sor.u32 %s3, %s785
    %s787 = sand.u32 %s786, 85
    %s788 = sshrl.u32 %s787, 1
    %s789 = sor.u32 %s787, %s788
    %s790 = sand.u32 51, %s789
    %s791 = sshrl.u32 %s790, 2
    %s792 = sor.u32 %s790, %s791
    %s793 = sand.u32 15, %s792
    %v794 = vld [vmem:[%s784] sm:%s793]
    %v795 = vunpack.c.l.bf16 %v794
    %v796 = vunpack.c.h.bf16 %v794
    %s797 = scalar_lea.vmem [#allocation1], 24
    %798 = vst [vmem:[%s797] sm:%s3] %v795
    %s799 = scalar_lea.vmem %s0, 8
    %s800 = sshrl.u32 %s3, 1
    %s801 = sor.u32 %s3, %s800
    %s802 = sand.u32 %s801, 85
    %s803 = sshrl.u32 %s802, 1
    %s804 = sor.u32 %s802, %s803
    %s805 = sand.u32 51, %s804
    %s806 = sshrl.u32 %s805, 2
    %s807 = sor.u32 %s805, %s806
    %s808 = sand.u32 15, %s807
    %v809 = vld [vmem:[%s799] sm:%s808]
    %v810 = vunpack.c.l.bf16 %v809
    %v811 = vunpack.c.h.bf16 %v809
    %s812 = scalar_lea.vmem [#allocation1], 16
    %813 = vst [vmem:[%s812] sm:%s3] %v810
    %s814 = scalar_lea.vmem %s0, 4
    %s815 = sshrl.u32 %s3, 1
    %s816 = sor.u32 %s3, %s815
    %s817 = sand.u32 %s816, 85
    %s818 = sshrl.u32 %s817, 1
    %s819 = sor.u32 %s817, %s818
    %s820 = sand.u32 51, %s819
    %s821 = sshrl.u32 %s820, 2
    %s822 = sor.u32 %s820, %s821
    %s823 = sand.u32 15, %s822
    %v824 = vld [vmem:[%s814] sm:%s823]
    %v825 = vunpack.c.l.bf16 %v824
    %v826 = vunpack.c.h.bf16 %v824
    %s827 = scalar_lea.vmem [#allocation1], 8
    %828 = vst [vmem:[%s827] sm:%s3] %v825
    %s829 = sshrl.u32 %s3, 1
    %s830 = sor.u32 %s3, %s829
    %s831 = sand.u32 %s830, 85
    %s832 = sshrl.u32 %s831, 1
    %s833 = sor.u32 %s831, %s832
    %s834 = sand.u32 51, %s833
    %s835 = sshrl.u32 %s834, 2
    %s836 = sor.u32 %s834, %s835
    %s837 = sand.u32 15, %s836
    %v838 = vld [vmem:[%s0] sm:%s837]
    %v839 = vunpack.c.l.bf16 %v838
    %v840 = vunpack.c.h.bf16 %v838
    %841 = vst [vmem:[#allocation1] sm:%s3] %v839
    %v842 = vld [vmem:[#allocation1] sm:$0xff]
    %843 = vst [vmem:[#allocation0] sm:$0xff] %v842
    %s844 = scalar_lea.vmem [#allocation1], 8
    %v845 = vld [vmem:[%s844] sm:$0x3f]
    %s846 = scalar_lea.vmem [#allocation0], 8
    %847 = vst [vmem:[%s846] sm:$0x3f] %v845
    %s848 = scalar_lea.vmem [#allocation1], 16
    %v849 = vld [vmem:[%s848] sm:$0xff]
    %s850 = scalar_lea.vmem [#allocation0], 14
    %851 = vst [vmem:[%s850] sm:$0xff] %v849
    %s852 = scalar_lea.vmem [#allocation1], 24
    %v853 = vld [vmem:[%s852] sm:$0x3f]
    %s854 = scalar_lea.vmem [#allocation0], 22
    %855 = vst [vmem:[%s854] sm:$0x3f] %v853
    %s856 = scalar_lea.vmem [#allocation1], 32
    %v857 = vld [vmem:[%s856] sm:$0xff]
    %s858 = scalar_lea.vmem [#allocation0], 28
    %859 = vst [vmem:[%s858] sm:$0xff] %v857
    %s860 = scalar_lea.vmem [#allocation1], 40
    %v861 = vld [vmem:[%s860] sm:$0x3f]
    %s862 = scalar_lea.vmem [#allocation0], 36
    %863 = vst [vmem:[%s862] sm:$0x3f] %v861
    %s864 = scalar_lea.vmem [#allocation1], 48
    %v865 = vld [vmem:[%s864] sm:$0xff]
    %s866 = scalar_lea.vmem [#allocation0], 42
    %867 = vst [vmem:[%s866] sm:$0xff] %v865
    %s868 = scalar_lea.vmem [#allocation1], 56
    %v869 = vld [vmem:[%s868] sm:$0x3f]
    %s870 = scalar_lea.vmem [#allocation0], 50
    %871 = vst [vmem:[%s870] sm:$0x3f] %v869
    %s872 = scalar_lea.vmem [#allocation1], 64
    %v873 = vld [vmem:[%s872] sm:$0xff]
    %s874 = scalar_lea.vmem [#allocation0], 56
    %875 = vst [vmem:[%s874] sm:$0xff] %v873
    %s876 = scalar_lea.vmem [#allocation1], 72
    %v877 = vld [vmem:[%s876] sm:$0x3f]
    %s878 = scalar_lea.vmem [#allocation0], 64
    %879 = vst [vmem:[%s878] sm:$0x3f] %v877
    %s880 = scalar_lea.vmem [#allocation1], 80
    %v881 = vld [vmem:[%s880] sm:$0xff]
    %s882 = scalar_lea.vmem [#allocation0], 70
    %883 = vst [vmem:[%s882] sm:$0xff] %v881
    %s884 = scalar_lea.vmem [#allocation1], 88
    %v885 = vld [vmem:[%s884] sm:$0x3f]
    %s886 = scalar_lea.vmem [#allocation0], 78
    %887 = vst [vmem:[%s886] sm:$0x3f] %v885
    %s888 = scalar_lea.vmem [#allocation1], 96
    %v889 = vld [vmem:[%s888] sm:$0xff]
    %s890 = scalar_lea.vmem [#allocation0], 84
    %891 = vst [vmem:[%s890] sm:$0xff] %v889
    %s892 = scalar_lea.vmem [#allocation1], 104
    %v893 = vld [vmem:[%s892] sm:$0x3f]
    %s894 = scalar_lea.vmem [#allocation0], 92
    %895 = vst [vmem:[%s894] sm:$0x3f] %v893
    %s896 = scalar_lea.vmem [#allocation1], 112
    %v897 = vld [vmem:[%s896] sm:$0xff]
    %s898 = scalar_lea.vmem [#allocation0], 98
    %899 = vst [vmem:[%s898] sm:$0xff] %v897
    %s900 = scalar_lea.vmem [#allocation1], 120
    %v901 = vld [vmem:[%s900] sm:$0x3f]
    %s902 = scalar_lea.vmem [#allocation0], 106
    %903 = vst [vmem:[%s902] sm:$0x3f] %v901
    %s904 = scalar_lea.vmem [#allocation1], 128
    %v905 = vld [vmem:[%s904] sm:$0xff]
    %s906 = scalar_lea.vmem [#allocation0], 112
    %907 = vst [vmem:[%s906] sm:$0xff] %v905
    %s908 = scalar_lea.vmem [#allocation1], 136
    %v909 = vld [vmem:[%s908] sm:$0x3f]
    %s910 = scalar_lea.vmem [#allocation0], 120
    %911 = vst [vmem:[%s910] sm:$0x3f] %v909
    %s912 = scalar_lea.vmem [#allocation1], 144
    %v913 = vld [vmem:[%s912] sm:$0xff]
    %s914 = scalar_lea.vmem [#allocation0], 126
    %915 = vst [vmem:[%s914] sm:$0xff] %v913
    %s916 = scalar_lea.vmem [#allocation1], 152
    %v917 = vld [vmem:[%s916] sm:$0x3f]
    %s918 = scalar_lea.vmem [#allocation0], 134
    %919 = vst [vmem:[%s918] sm:$0x3f] %v917
    %s920 = scalar_lea.vmem [#allocation1], 160
    %v921 = vld [vmem:[%s920] sm:$0xff]
    %s922 = scalar_lea.vmem [#allocation0], 140
    %923 = vst [vmem:[%s922] sm:$0xff] %v921
    %s924 = scalar_lea.vmem [#allocation1], 168
    %v925 = vld [vmem:[%s924] sm:$0x3f]
    %s926 = scalar_lea.vmem [#allocation0], 148
    %927 = vst [vmem:[%s926] sm:$0x3f] %v925
    %s928 = scalar_lea.vmem [#allocation1], 176
    %v929 = vld [vmem:[%s928] sm:$0xff]
    %s930 = scalar_lea.vmem [#allocation0], 154
    %931 = vst [vmem:[%s930] sm:$0xff] %v929
    %s932 = scalar_lea.vmem [#allocation1], 184
    %v933 = vld [vmem:[%s932] sm:$0x3f]
    %s934 = scalar_lea.vmem [#allocation0], 162
    %935 = vst [vmem:[%s934] sm:$0x3f] %v933
    %s936 = scalar_lea.vmem [#allocation1], 192
    %v937 = vld [vmem:[%s936] sm:$0xff]
    %s938 = scalar_lea.vmem [#allocation0], 168
    %939 = vst [vmem:[%s938] sm:$0xff] %v937
    %s940 = scalar_lea.vmem [#allocation1], 200
    %v941 = vld [vmem:[%s940] sm:$0x3f]
    %s942 = scalar_lea.vmem [#allocation0], 176
    %943 = vst [vmem:[%s942] sm:$0x3f] %v941
    %s944 = scalar_lea.vmem [#allocation1], 208
    %v945 = vld [vmem:[%s944] sm:$0xff]
    %s946 = scalar_lea.vmem [#allocation0], 182
    %947 = vst [vmem:[%s946] sm:$0xff] %v945
    %s948 = scalar_lea.vmem [#allocation1], 216
    %v949 = vld [vmem:[%s948] sm:$0x3f]
    %s950 = scalar_lea.vmem [#allocation0], 190
    %951 = vst [vmem:[%s950] sm:$0x3f] %v949
    %s952 = scalar_lea.vmem [#allocation1], 224
    %v953 = vld [vmem:[%s952] sm:$0xff]
    %s954 = scalar_lea.vmem [#allocation0], 196
    %955 = vst [vmem:[%s954] sm:$0xff] %v953
    %s956 = scalar_lea.vmem [#allocation1], 232
    %v957 = vld [vmem:[%s956] sm:$0x3f]
    %s958 = scalar_lea.vmem [#allocation0], 204
    %959 = vst [vmem:[%s958] sm:$0x3f] %v957
    %s960 = scalar_lea.vmem [#allocation1], 240
    %v961 = vld [vmem:[%s960] sm:$0xff]
    %s962 = scalar_lea.vmem [#allocation0], 210
    %963 = vst [vmem:[%s962] sm:$0xff] %v961
    %s964 = scalar_lea.vmem [#allocation1], 248
    %v965 = vld [vmem:[%s964] sm:$0x3f]
    %s966 = scalar_lea.vmem [#allocation0], 218
    %967 = vst [vmem:[%s966] sm:$0x3f] %v965
    %s968 = scalar_lea.vmem [#allocation1], 256
    %v969 = vld [vmem:[%s968] sm:$0xff]
    %s970 = scalar_lea.vmem [#allocation0], 224
    %971 = vst [vmem:[%s970] sm:$0xff] %v969
    %s972 = scalar_lea.vmem [#allocation1], 264
    %v973 = vld [vmem:[%s972] sm:$0x3f]
    %s974 = scalar_lea.vmem [#allocation0], 232
    %975 = vst [vmem:[%s974] sm:$0x3f] %v973
    %s976 = scalar_lea.vmem [#allocation1], 272
    %v977 = vld [vmem:[%s976] sm:$0xff]
    %s978 = scalar_lea.vmem [#allocation0], 238
    %979 = vst [vmem:[%s978] sm:$0xff] %v977
    %s980 = scalar_lea.vmem [#allocation1], 280
    %v981 = vld [vmem:[%s980] sm:$0x3f]
    %s982 = scalar_lea.vmem [#allocation0], 246
    %983 = vst [vmem:[%s982] sm:$0x3f] %v981
    %s984 = scalar_lea.vmem [#allocation1], 288
    %v985 = vld [vmem:[%s984] sm:$0xff]
    %s986 = scalar_lea.vmem [#allocation0], 252
    %987 = vst [vmem:[%s986] sm:$0xff] %v985
    %s988 = scalar_lea.vmem [#allocation1], 296
    %v989 = vld [vmem:[%s988] sm:$0x3f]
    %s990 = scalar_lea.vmem [#allocation0], 260
    %991 = vst [vmem:[%s990] sm:$0x3f] %v989
    %s992 = scalar_lea.vmem [#allocation1], 304
    %v993 = vld [vmem:[%s992] sm:$0xff]
    %s994 = scalar_lea.vmem [#allocation0], 266
    %995 = vst [vmem:[%s994] sm:$0xff] %v993
    %s996 = scalar_lea.vmem [#allocation1], 312
    %v997 = vld [vmem:[%s996] sm:$0x3f]
    %s998 = scalar_lea.vmem [#allocation0], 274
    %999 = vst [vmem:[%s998] sm:$0x3f] %v997
    %s1000 = scalar_lea.vmem [#allocation1], 320
    %v1001 = vld [vmem:[%s1000] sm:$0xff]
    %s1002 = scalar_lea.vmem [#allocation0], 280
    %1003 = vst [vmem:[%s1002] sm:$0xff] %v1001
    %s1004 = scalar_lea.vmem [#allocation1], 328
    %v1005 = vld [vmem:[%s1004] sm:$0x3f]
    %s1006 = scalar_lea.vmem [#allocation0], 288
    %1007 = vst [vmem:[%s1006] sm:$0x3f] %v1005
    %s1008 = scalar_lea.vmem [#allocation1], 336
    %v1009 = vld [vmem:[%s1008] sm:$0xff]
    %s1010 = scalar_lea.vmem [#allocation0], 294
    %1011 = vst [vmem:[%s1010] sm:$0xff] %v1009
    %s1012 = scalar_lea.vmem [#allocation1], 344
    %v1013 = vld [vmem:[%s1012] sm:$0x3f]
    %s1014 = scalar_lea.vmem [#allocation0], 302
    %1015 = vst [vmem:[%s1014] sm:$0x3f] %v1013
    %s1016 = scalar_lea.vmem [#allocation1], 352
    %v1017 = vld [vmem:[%s1016] sm:$0xff]
    %s1018 = scalar_lea.vmem [#allocation0], 308
    %1019 = vst [vmem:[%s1018] sm:$0xff] %v1017
    %s1020 = scalar_lea.vmem [#allocation1], 360
    %v1021 = vld [vmem:[%s1020] sm:$0x3f]
    %s1022 = scalar_lea.vmem [#allocation0], 316
    %1023 = vst [vmem:[%s1022] sm:$0x3f] %v1021
    %s1024 = scalar_lea.vmem [#allocation1], 368
    %v1025 = vld [vmem:[%s1024] sm:$0xff]
    %s1026 = scalar_lea.vmem [#allocation0], 322
    %1027 = vst [vmem:[%s1026] sm:$0xff] %v1025
    %s1028 = scalar_lea.vmem [#allocation1], 376
    %v1029 = vld [vmem:[%s1028] sm:$0x3f]
    %s1030 = scalar_lea.vmem [#allocation0], 330
    %1031 = vst [vmem:[%s1030] sm:$0x3f] %v1029
    %s1032 = scalar_lea.vmem [#allocation1], 384
    %v1033 = vld [vmem:[%s1032] sm:$0xff]
    %s1034 = scalar_lea.vmem [#allocation0], 336
    %1035 = vst [vmem:[%s1034] sm:$0xff] %v1033
    %s1036 = scalar_lea.vmem [#allocation1], 392
    %v1037 = vld [vmem:[%s1036] sm:$0x3f]
    %s1038 = scalar_lea.vmem [#allocation0], 344
    %1039 = vst [vmem:[%s1038] sm:$0x3f] %v1037
    %s1040 = scalar_lea.vmem [#allocation1], 400
    %v1041 = vld [vmem:[%s1040] sm:$0xff]
    %s1042 = scalar_lea.vmem [#allocation0], 350
    %1043 = vst [vmem:[%s1042] sm:$0xff] %v1041
    %s1044 = scalar_lea.vmem [#allocation1], 408
    %v1045 = vld [vmem:[%s1044] sm:$0x3f]
    %s1046 = scalar_lea.vmem [#allocation0], 358
    %1047 = vst [vmem:[%s1046] sm:$0x3f] %v1045
    %s1048 = scalar_lea.vmem [#allocation1], 416
    %v1049 = vld [vmem:[%s1048] sm:$0xff]
    %s1050 = scalar_lea.vmem [#allocation0], 364
    %1051 = vst [vmem:[%s1050] sm:$0xff] %v1049
    %s1052 = scalar_lea.vmem [#allocation1], 424
    %v1053 = vld [vmem:[%s1052] sm:$0x3f]
    %s1054 = scalar_lea.vmem [#allocation0], 372
    %1055 = vst [vmem:[%s1054] sm:$0x3f] %v1053
    %s1056 = scalar_lea.vmem [#allocation1], 432
    %v1057 = vld [vmem:[%s1056] sm:$0xff]
    %s1058 = scalar_lea.vmem [#allocation0], 378
    %1059 = vst [vmem:[%s1058] sm:$0xff] %v1057
    %s1060 = scalar_lea.vmem [#allocation1], 440
    %v1061 = vld [vmem:[%s1060] sm:$0x3f]
    %s1062 = scalar_lea.vmem [#allocation0], 386
    %1063 = vst [vmem:[%s1062] sm:$0x3f] %v1061
    %s1065 = ssub.s32 256, 1
    %v1066 = vld [vmem:[#allocation0] sm:%s1065]
    %v1067 = vpack.c.bf16 0.0, %v1066
    %s1069 = ssub.s32 16, 1
    %1070 = vst [vmem:[%s1] sm:%s1069] %v1067
    %s1071 = scalar_lea.vmem [#allocation0], 8
    %v1072 = vld [vmem:[%s1071] sm:%s1065]
    %v1073 = vpack.c.bf16 0.0, %v1072
    %s1075 = ssub.s32 16, 1
    %s1076 = scalar_lea.vmem %s1, 4
    %1077 = vst [vmem:[%s1076] sm:%s1075] %v1073
    %s1078 = scalar_lea.vmem [#allocation0], 16
    %v1079 = vld [vmem:[%s1078] sm:%s1065]
    %v1080 = vpack.c.bf16 0.0, %v1079
    %s1082 = ssub.s32 16, 1
    %s1083 = scalar_lea.vmem %s1, 8
    %1084 = vst [vmem:[%s1083] sm:%s1082] %v1080
    %s1085 = scalar_lea.vmem [#allocation0], 24
    %v1086 = vld [vmem:[%s1085] sm:%s1065]
    %v1087 = vpack.c.bf16 0.0, %v1086
    %s1089 = ssub.s32 16, 1
    %s1090 = scalar_lea.vmem %s1, 12
    %1091 = vst [vmem:[%s1090] sm:%s1089] %v1087
    %s1092 = scalar_lea.vmem [#allocation0], 32
    %v1093 = vld [vmem:[%s1092] sm:%s1065]
    %v1094 = vpack.c.bf16 0.0, %v1093
    %s1096 = ssub.s32 16, 1
    %s1097 = scalar_lea.vmem %s1, 16
    %1098 = vst [vmem:[%s1097] sm:%s1096] %v1094
    %s1099 = scalar_lea.vmem [#allocation0], 40
    %v1100 = vld [vmem:[%s1099] sm:%s1065]
    %v1101 = vpack.c.bf16 0.0, %v1100
    %s1103 = ssub.s32 16, 1
    %s1104 = scalar_lea.vmem %s1, 20
    %1105 = vst [vmem:[%s1104] sm:%s1103] %v1101
    %s1106 = scalar_lea.vmem [#allocation0], 48
    %v1107 = vld [vmem:[%s1106] sm:%s1065]
    %v1108 = vpack.c.bf16 0.0, %v1107
    %s1110 = ssub.s32 16, 1
    %s1111 = scalar_lea.vmem %s1, 24
    %1112 = vst [vmem:[%s1111] sm:%s1110] %v1108
    %s1113 = scalar_lea.vmem [#allocation0], 56
    %v1114 = vld [vmem:[%s1113] sm:%s1065]
    %v1115 = vpack.c.bf16 0.0, %v1114
    %s1117 = ssub.s32 16, 1
    %s1118 = scalar_lea.vmem %s1, 28
    %1119 = vst [vmem:[%s1118] sm:%s1117] %v1115
    %s1120 = scalar_lea.vmem [#allocation0], 64
    %v1121 = vld [vmem:[%s1120] sm:%s1065]
    %v1122 = vpack.c.bf16 0.0, %v1121
    %s1124 = ssub.s32 16, 1
    %s1125 = scalar_lea.vmem %s1, 32
    %1126 = vst [vmem:[%s1125] sm:%s1124] %v1122
    %s1127 = scalar_lea.vmem [#allocation0], 72
    %v1128 = vld [vmem:[%s1127] sm:%s1065]
    %v1129 = vpack.c.bf16 0.0, %v1128
    %s1131 = ssub.s32 16, 1
    %s1132 = scalar_lea.vmem %s1, 36
    %1133 = vst [vmem:[%s1132] sm:%s1131] %v1129
    %s1134 = scalar_lea.vmem [#allocation0], 80
    %v1135 = vld [vmem:[%s1134] sm:%s1065]
    %v1136 = vpack.c.bf16 0.0, %v1135
    %s1138 = ssub.s32 16, 1
    %s1139 = scalar_lea.vmem %s1, 40
    %1140 = vst [vmem:[%s1139] sm:%s1138] %v1136
    %s1141 = scalar_lea.vmem [#allocation0], 88
    %v1142 = vld [vmem:[%s1141] sm:%s1065]
    %v1143 = vpack.c.bf16 0.0, %v1142
    %s1145 = ssub.s32 16, 1
    %s1146 = scalar_lea.vmem %s1, 44
    %1147 = vst [vmem:[%s1146] sm:%s1145] %v1143
    %s1148 = scalar_lea.vmem [#allocation0], 96
    %v1149 = vld [vmem:[%s1148] sm:%s1065]
    %v1150 = vpack.c.bf16 0.0, %v1149
    %s1152 = ssub.s32 16, 1
    %s1153 = scalar_lea.vmem %s1, 48
    %1154 = vst [vmem:[%s1153] sm:%s1152] %v1150
    %s1155 = scalar_lea.vmem [#allocation0], 104
    %v1156 = vld [vmem:[%s1155] sm:%s1065]
    %v1157 = vpack.c.bf16 0.0, %v1156
    %s1159 = ssub.s32 16, 1
    %s1160 = scalar_lea.vmem %s1, 52
    %1161 = vst [vmem:[%s1160] sm:%s1159] %v1157
    %s1162 = scalar_lea.vmem [#allocation0], 112
    %v1163 = vld [vmem:[%s1162] sm:%s1065]
    %v1164 = vpack.c.bf16 0.0, %v1163
    %s1166 = ssub.s32 16, 1
    %s1167 = scalar_lea.vmem %s1, 56
    %1168 = vst [vmem:[%s1167] sm:%s1166] %v1164
    %s1169 = scalar_lea.vmem [#allocation0], 120
    %v1170 = vld [vmem:[%s1169] sm:%s1065]
    %v1171 = vpack.c.bf16 0.0, %v1170
    %s1173 = ssub.s32 16, 1
    %s1174 = scalar_lea.vmem %s1, 60
    %1175 = vst [vmem:[%s1174] sm:%s1173] %v1171
    %s1176 = scalar_lea.vmem [#allocation0], 128
    %v1177 = vld [vmem:[%s1176] sm:%s1065]
    %v1178 = vpack.c.bf16 0.0, %v1177
    %s1180 = ssub.s32 16, 1
    %s1181 = scalar_lea.vmem %s1, 64
    %1182 = vst [vmem:[%s1181] sm:%s1180] %v1178
    %s1183 = scalar_lea.vmem [#allocation0], 136
    %v1184 = vld [vmem:[%s1183] sm:%s1065]
    %v1185 = vpack.c.bf16 0.0, %v1184
    %s1187 = ssub.s32 16, 1
    %s1188 = scalar_lea.vmem %s1, 68
    %1189 = vst [vmem:[%s1188] sm:%s1187] %v1185
    %s1190 = scalar_lea.vmem [#allocation0], 144
    %v1191 = vld [vmem:[%s1190] sm:%s1065]
    %v1192 = vpack.c.bf16 0.0, %v1191
    %s1194 = ssub.s32 16, 1
    %s1195 = scalar_lea.vmem %s1, 72
    %1196 = vst [vmem:[%s1195] sm:%s1194] %v1192
    %s1197 = scalar_lea.vmem [#allocation0], 152
    %v1198 = vld [vmem:[%s1197] sm:%s1065]
    %v1199 = vpack.c.bf16 0.0, %v1198
    %s1201 = ssub.s32 16, 1
    %s1202 = scalar_lea.vmem %s1, 76
    %1203 = vst [vmem:[%s1202] sm:%s1201] %v1199
    %s1204 = scalar_lea.vmem [#allocation0], 160
    %v1205 = vld [vmem:[%s1204] sm:%s1065]
    %v1206 = vpack.c.bf16 0.0, %v1205
    %s1208 = ssub.s32 16, 1
    %s1209 = scalar_lea.vmem %s1, 80
    %1210 = vst [vmem:[%s1209] sm:%s1208] %v1206
    %s1211 = scalar_lea.vmem [#allocation0], 168
    %v1212 = vld [vmem:[%s1211] sm:%s1065]
    %v1213 = vpack.c.bf16 0.0, %v1212
    %s1215 = ssub.s32 16, 1
    %s1216 = scalar_lea.vmem %s1, 84
    %1217 = vst [vmem:[%s1216] sm:%s1215] %v1213
    %s1218 = scalar_lea.vmem [#allocation0], 176
    %v1219 = vld [vmem:[%s1218] sm:%s1065]
    %v1220 = vpack.c.bf16 0.0, %v1219
    %s1222 = ssub.s32 16, 1
    %s1223 = scalar_lea.vmem %s1, 88
    %1224 = vst [vmem:[%s1223] sm:%s1222] %v1220
    %s1225 = scalar_lea.vmem [#allocation0], 184
    %v1226 = vld [vmem:[%s1225] sm:%s1065]
    %v1227 = vpack.c.bf16 0.0, %v1226
    %s1229 = ssub.s32 16, 1
    %s1230 = scalar_lea.vmem %s1, 92
    %1231 = vst [vmem:[%s1230] sm:%s1229] %v1227
    %s1232 = scalar_lea.vmem [#allocation0], 192
    %v1233 = vld [vmem:[%s1232] sm:%s1065]
    %v1234 = vpack.c.bf16 0.0, %v1233
    %s1236 = ssub.s32 16, 1
    %s1237 = scalar_lea.vmem %s1, 96
    %1238 = vst [vmem:[%s1237] sm:%s1236] %v1234
    %s1239 = scalar_lea.vmem [#allocation0], 200
    %v1240 = vld [vmem:[%s1239] sm:%s1065]
    %v1241 = vpack.c.bf16 0.0, %v1240
    %s1243 = ssub.s32 16, 1
    %s1244 = scalar_lea.vmem %s1, 100
    %1245 = vst [vmem:[%s1244] sm:%s1243] %v1241
    %s1246 = scalar_lea.vmem [#allocation0], 208
    %v1247 = vld [vmem:[%s1246] sm:%s1065]
    %v1248 = vpack.c.bf16 0.0, %v1247
    %s1250 = ssub.s32 16, 1
    %s1251 = scalar_lea.vmem %s1, 104
    %1252 = vst [vmem:[%s1251] sm:%s1250] %v1248
    %s1253 = scalar_lea.vmem [#allocation0], 216
    %v1254 = vld [vmem:[%s1253] sm:%s1065]
    %v1255 = vpack.c.bf16 0.0, %v1254
    %s1257 = ssub.s32 16, 1
    %s1258 = scalar_lea.vmem %s1, 108
    %1259 = vst [vmem:[%s1258] sm:%s1257] %v1255
    %s1260 = scalar_lea.vmem [#allocation0], 224
    %v1261 = vld [vmem:[%s1260] sm:%s1065]
    %v1262 = vpack.c.bf16 0.0, %v1261
    %s1264 = ssub.s32 16, 1
    %s1265 = scalar_lea.vmem %s1, 112
    %1266 = vst [vmem:[%s1265] sm:%s1264] %v1262
    %s1267 = scalar_lea.vmem [#allocation0], 232
    %v1268 = vld [vmem:[%s1267] sm:%s1065]
    %v1269 = vpack.c.bf16 0.0, %v1268
    %s1271 = ssub.s32 16, 1
    %s1272 = scalar_lea.vmem %s1, 116
    %1273 = vst [vmem:[%s1272] sm:%s1271] %v1269
    %s1274 = scalar_lea.vmem [#allocation0], 240
    %v1275 = vld [vmem:[%s1274] sm:%s1065]
    %v1276 = vpack.c.bf16 0.0, %v1275
    %s1278 = ssub.s32 16, 1
    %s1279 = scalar_lea.vmem %s1, 120
    %1280 = vst [vmem:[%s1279] sm:%s1278] %v1276
    %s1281 = scalar_lea.vmem [#allocation0], 248
    %v1282 = vld [vmem:[%s1281] sm:%s1065]
    %v1283 = vpack.c.bf16 0.0, %v1282
    %s1285 = ssub.s32 16, 1
    %s1286 = scalar_lea.vmem %s1, 124
    %1287 = vst [vmem:[%s1286] sm:%s1285] %v1283
    %s1288 = scalar_lea.vmem [#allocation0], 256
    %v1289 = vld [vmem:[%s1288] sm:%s1065]
    %v1290 = vpack.c.bf16 0.0, %v1289
    %s1292 = ssub.s32 16, 1
    %s1293 = scalar_lea.vmem %s1, 128
    %1294 = vst [vmem:[%s1293] sm:%s1292] %v1290
    %s1295 = scalar_lea.vmem [#allocation0], 264
    %v1296 = vld [vmem:[%s1295] sm:%s1065]
    %v1297 = vpack.c.bf16 0.0, %v1296
    %s1299 = ssub.s32 16, 1
    %s1300 = scalar_lea.vmem %s1, 132
    %1301 = vst [vmem:[%s1300] sm:%s1299] %v1297
    %s1302 = scalar_lea.vmem [#allocation0], 272
    %v1303 = vld [vmem:[%s1302] sm:%s1065]
    %v1304 = vpack.c.bf16 0.0, %v1303
    %s1306 = ssub.s32 16, 1
    %s1307 = scalar_lea.vmem %s1, 136
    %1308 = vst [vmem:[%s1307] sm:%s1306] %v1304
    %s1309 = scalar_lea.vmem [#allocation0], 280
    %v1310 = vld [vmem:[%s1309] sm:%s1065]
    %v1311 = vpack.c.bf16 0.0, %v1310
    %s1313 = ssub.s32 16, 1
    %s1314 = scalar_lea.vmem %s1, 140
    %1315 = vst [vmem:[%s1314] sm:%s1313] %v1311
    %s1316 = scalar_lea.vmem [#allocation0], 288
    %v1317 = vld [vmem:[%s1316] sm:%s1065]
    %v1318 = vpack.c.bf16 0.0, %v1317
    %s1320 = ssub.s32 16, 1
    %s1321 = scalar_lea.vmem %s1, 144
    %1322 = vst [vmem:[%s1321] sm:%s1320] %v1318
    %s1323 = scalar_lea.vmem [#allocation0], 296
    %v1324 = vld [vmem:[%s1323] sm:%s1065]
    %v1325 = vpack.c.bf16 0.0, %v1324
    %s1327 = ssub.s32 16, 1
    %s1328 = scalar_lea.vmem %s1, 148
    %1329 = vst [vmem:[%s1328] sm:%s1327] %v1325
    %s1330 = scalar_lea.vmem [#allocation0], 304
    %v1331 = vld [vmem:[%s1330] sm:%s1065]
    %v1332 = vpack.c.bf16 0.0, %v1331
    %s1334 = ssub.s32 16, 1
    %s1335 = scalar_lea.vmem %s1, 152
    %1336 = vst [vmem:[%s1335] sm:%s1334] %v1332
    %s1337 = scalar_lea.vmem [#allocation0], 312
    %v1338 = vld [vmem:[%s1337] sm:%s1065]
    %v1339 = vpack.c.bf16 0.0, %v1338
    %s1341 = ssub.s32 16, 1
    %s1342 = scalar_lea.vmem %s1, 156
    %1343 = vst [vmem:[%s1342] sm:%s1341] %v1339
    %s1344 = scalar_lea.vmem [#allocation0], 320
    %v1345 = vld [vmem:[%s1344] sm:%s1065]
    %v1346 = vpack.c.bf16 0.0, %v1345
    %s1348 = ssub.s32 16, 1
    %s1349 = scalar_lea.vmem %s1, 160
    %1350 = vst [vmem:[%s1349] sm:%s1348] %v1346
    %s1351 = scalar_lea.vmem [#allocation0], 328
    %v1352 = vld [vmem:[%s1351] sm:%s1065]
    %v1353 = vpack.c.bf16 0.0, %v1352
    %s1355 = ssub.s32 16, 1
    %s1356 = scalar_lea.vmem %s1, 164
    %1357 = vst [vmem:[%s1356] sm:%s1355] %v1353
    %s1358 = scalar_lea.vmem [#allocation0], 336
    %v1359 = vld [vmem:[%s1358] sm:%s1065]
    %v1360 = vpack.c.bf16 0.0, %v1359
    %s1362 = ssub.s32 16, 1
    %s1363 = scalar_lea.vmem %s1, 168
    %1364 = vst [vmem:[%s1363] sm:%s1362] %v1360
    %s1365 = scalar_lea.vmem [#allocation0], 344
    %v1366 = vld [vmem:[%s1365] sm:%s1065]
    %v1367 = vpack.c.bf16 0.0, %v1366
    %s1369 = ssub.s32 16, 1
    %s1370 = scalar_lea.vmem %s1, 172
    %1371 = vst [vmem:[%s1370] sm:%s1369] %v1367
    %s1372 = scalar_lea.vmem [#allocation0], 352
    %v1373 = vld [vmem:[%s1372] sm:%s1065]
    %v1374 = vpack.c.bf16 0.0, %v1373
    %s1376 = ssub.s32 16, 1
    %s1377 = scalar_lea.vmem %s1, 176
    %1378 = vst [vmem:[%s1377] sm:%s1376] %v1374
    %s1379 = scalar_lea.vmem [#allocation0], 360
    %v1380 = vld [vmem:[%s1379] sm:%s1065]
    %v1381 = vpack.c.bf16 0.0, %v1380
    %s1383 = ssub.s32 16, 1
    %s1384 = scalar_lea.vmem %s1, 180
    %1385 = vst [vmem:[%s1384] sm:%s1383] %v1381
    %s1386 = scalar_lea.vmem [#allocation0], 368
    %v1387 = vld [vmem:[%s1386] sm:%s1065]
    %v1388 = vpack.c.bf16 0.0, %v1387
    %s1390 = ssub.s32 16, 1
    %s1391 = scalar_lea.vmem %s1, 184
    %1392 = vst [vmem:[%s1391] sm:%s1390] %v1388
    %s1393 = scalar_lea.vmem [#allocation0], 376
    %v1394 = vld [vmem:[%s1393] sm:%s1065]
    %v1395 = vpack.c.bf16 0.0, %v1394
    %s1397 = ssub.s32 16, 1
    %s1398 = scalar_lea.vmem %s1, 188
    %1399 = vst [vmem:[%s1398] sm:%s1397] %v1395
    %s1400 = scalar_lea.vmem [#allocation0], 384
    %v1401 = vld [vmem:[%s1400] sm:%s1065]
    %v1402 = vpack.c.bf16 0.0, %v1401
    %s1404 = ssub.s32 16, 1
    %s1405 = scalar_lea.vmem %s1, 192
    %1406 = vst [vmem:[%s1405] sm:%s1404] %v1402

// kernel: my_cnn_forward.5
$region0: #{my_cnn_forward.5}
  #allocation0 [shape = 'u32[]', space=smem, size = 0x4, offset = 0x4, fixed_abs, tag = 'smem constant byte address 0x4 - core index']
  #allocation1 [shape = 'u32[72,128]{1,0:T(1,128)}', space=vmem, size = 0x9000, scoped, tag = 'internal scratch']
  %s0 = inlined_call_operand.vmem [shape: bf16[1568,128], index: 0, kind: input, shape index: {}]
  %s1 = inlined_call_operand.vmem [shape: bf16[128,128], index: 1, kind: input, shape index: {}]
  %s2 = inlined_call_operand.vmem [shape: f32[1,128], index: 2, kind: input, shape index: {}]
  %s3 = inlined_call_operand.vmem [shape: bf16[1568,128], index: 3, kind: output, shape index: {}]
  %s4 = sld [smem:[#allocation0]]
  $region45: #{my_cnn_forward.5} parent=0
    _
  %s6 = ssub.s32 1, %s4
  %s7 = scalar_select 0, %s6, %s4
  loop: start=0, step=1, limit=6
  $region2: #{my_cnn_forward.5} parent=0 // loop_pre_header
    _
  $region3: #{my_cnn_forward.5} parent=0 // loop_header
    %s9 = sphi 0, %s13
    %p10 = scmp.ge.s32.totalorder %s9, 6
    %s19 = sphi 0, %s21
    %s22 = sphi 0, %s19
    %s23 = sphi 0, %s22
    %s39 = sphi 0, %s23
    %s43 = sphi 0, %s43
    %s45 = sphi 0, %s43
    %s46 = sphi 0, %s45
    %s60 = sphi 0, %s46
    %s64 = sphi 0, %s64
    %s66 = sphi 0, %s64
    %s67 = sphi 0, %s66
    %s81 = sphi 0, %s67
    %s87 = sphi 0, %s89
    %s90 = sphi 0, %s87
    %s91 = sphi 0, %s90
    %s107 = sphi 0, %s91
  $region4: #{my_cnn_forward.5} parent=0 // loop_header_branch
    %12 = sbr.rel (%p10) target = $region8
  $region5: #{my_cnn_forward.5} parent=0 // loop_body
    %s14 = ssub.s32 %s9, 1
    %s15 = ssub.s32 %s9, 2
    %s16 = sadd.s32 %s9, 1
    %s17 = ssub.s32 %s9, %s16
    %p18 = scmp.eq.s32.totalorder %s17, 0
    %s20 = sadd.s32 %s19, 1
    %s21 = scalar_select %p18, %s19, %s20
    %p24 = pneg %p18
    %p25 = scmp.eq.s32.totalorder %s9, 3
    %p26 = por %p24, %p25
    %p27 = scmp.ne.s32.totalorder %s19, %s22
    %p28 = scmp.eq.s32.totalorder %s9, 0
    %p29 = por %p27, %p28
    %p30 = scmp.ne.s32.totalorder %s19, %s22
    %p31 = scmp.eq.s32.totalorder %s14, 3
    %p32 = por %p30, %p31
    %p33 = scmp.ne.s32.totalorder %s22, %s23
    %p34 = scmp.eq.s32.totalorder %s14, 0
    %p35 = por %p33, %p34
    %p36 = scmp.ne.s32.totalorder %s22, %s23
    %p37 = scmp.eq.s32.totalorder %s15, 3
    %p38 = por %p36, %p37
    %p40 = scmp.ne.s32.totalorder %s23, %s39
    %p41 = scmp.eq.s32.totalorder %s15, 0
    %p42 = por %p40, %p41
    %s44 = sadd.s32 %s43, 1
    %p47 = scmp.eq.s32.totalorder %s9, 3
    %p48 = scmp.ne.s32.totalorder %s43, %s45
    %p49 = scmp.eq.s32.totalorder %s9, 0
    %p50 = por %p48, %p49
    %p51 = scmp.ne.s32.totalorder %s43, %s45
    %p52 = scmp.eq.s32.totalorder %s14, 3
    %p53 = por %p51, %p52
    %p54 = scmp.ne.s32.totalorder %s45, %s46
    %p55 = scmp.eq.s32.totalorder %s14, 0
    %p56 = por %p54, %p55
    %p57 = scmp.ne.s32.totalorder %s45, %s46
    %p58 = scmp.eq.s32.totalorder %s15, 3
    %p59 = por %p57, %p58
    %p61 = scmp.ne.s32.totalorder %s46, %s60
    %p62 = scmp.eq.s32.totalorder %s15, 0
    %p63 = por %p61, %p62
    %s65 = sadd.s32 %s64, 1
    %p68 = scmp.eq.s32.totalorder %s9, 3
    %p69 = scmp.ne.s32.totalorder %s64, %s66
    %p70 = scmp.eq.s32.totalorder %s9, 0
    %p71 = por %p69, %p70
    %p72 = scmp.ne.s32.totalorder %s64, %s66
    %p73 = scmp.eq.s32.totalorder %s14, 3
    %p74 = por %p72, %p73
    %p75 = scmp.ne.s32.totalorder %s66, %s67
    %p76 = scmp.eq.s32.totalorder %s14, 0
    %p77 = por %p75, %p76
    %p78 = scmp.ne.s32.totalorder %s66, %s67
    %p79 = scmp.eq.s32.totalorder %s15, 3
    %p80 = por %p78, %p79
    %p82 = scmp.ne.s32.totalorder %s67, %s81
    %p83 = scmp.eq.s32.totalorder %s15, 0
    %p84 = por %p82, %p83
    %s85 = ssub.s32 %s9, %s16
    %p86 = scmp.eq.s32.totalorder %s85, 0
    %s88 = sadd.s32 %s87, 1
    %s89 = scalar_select %p86, %s87, %s88
    %p92 = pneg %p86
    %p93 = scmp.eq.s32.totalorder %s9, 3
    %p94 = por %p92, %p93
    %p95 = scmp.ne.s32.totalorder %s87, %s90
    %p96 = scmp.eq.s32.totalorder %s9, 0
    %p97 = por %p95, %p96
    %p98 = scmp.ne.s32.totalorder %s87, %s90
    %p99 = scmp.eq.s32.totalorder %s14, 3
    %p100 = por %p98, %p99
    %p101 = scmp.ne.s32.totalorder %s90, %s91
    %p102 = scmp.eq.s32.totalorder %s14, 0
    %p103 = por %p101, %p102
    %p104 = scmp.ne.s32.totalorder %s90, %s91
    %p105 = scmp.eq.s32.totalorder %s15, 3
    %p106 = por %p104, %p105
    %p108 = scmp.ne.s32.totalorder %s91, %s107
    %p109 = scmp.eq.s32.totalorder %s15, 0
    %p110 = por %p108, %p109
    %p111 = scmp.le.s32.totalorder 1, %s9
    %p112 = scmp.lt.s32.totalorder %s9, 5
    %p113 = pnand %p111, %p112
    %p114 = pneg %p113
    // Predicated region
    $region9: #{my_cnn_forward.5} parent=5 // pred_check
      _
    $region10: #{my_cnn_forward.5} parent=5 // pred_check_branch
      %116 = sbr.rel (%p113) target = $region12
    $region11: #{my_cnn_forward.5} parent=5 // pred_region
      %s117 = ssub.s32 %s9, 1
      // Predicated region
      $region13: #{my_cnn_forward.5} parent=11 // pred_check
        %p118 = pneg %p56
      $region14: #{my_cnn_forward.5} parent=11 // pred_check_branch
        %120 = sbr.rel (%p118) target = $region16
      $region15: #{my_cnn_forward.5} parent=11 // pred_region
        _
      $region16: #{my_cnn_forward.5} parent=11 // pred_fallthru
        _
      // Predicated region
      $region17: #{my_cnn_forward.5} parent=11 // pred_check
        %p121 = pneg %p77
      $region18: #{my_cnn_forward.5} parent=11 // pred_check_branch
        %123 = sbr.rel (%p121) target = $region20
      $region19: #{my_cnn_forward.5} parent=11 // pred_region
        _
      $region20: #{my_cnn_forward.5} parent=11 // pred_fallthru
        _
    $region12: #{my_cnn_forward.5} parent=5 // pred_fallthru
      _
    %p124 = scmp.lt.s32.totalorder %s9, 4
    // Predicated region
    $region21: #{my_cnn_forward.5} parent=5 // pred_check
      %p125 = pneg %p124
    $region22: #{my_cnn_forward.5} parent=5 // pred_check_branch
      %127 = sbr.rel (%p125) target = $region24
    $region23: #{my_cnn_forward.5} parent=5 // pred_region
      // Predicated region
      $region25: #{my_cnn_forward.5} parent=23 // pred_check
        %p128 = pneg %p29
      $region26: #{my_cnn_forward.5} parent=23 // pred_check_branch
        %130 = sbr.rel (%p128) target = $region28
      $region27: #{my_cnn_forward.5} parent=23 // pred_region
        %s131 = smul.u32 49, %s9
        %p132 = scmp.lt.s32.totalorder %s131, 195
        %s133 = scalar_select %p132, %s131, 195
        %s134 = smul.addr %s133, 4
        %s135 = scalar_lea.vmem %s0, %s134
        %s136 = smul.u32 49, %s9
      $region28: #{my_cnn_forward.5} parent=23 // pred_fallthru
        _
    $region24: #{my_cnn_forward.5} parent=5 // pred_fallthru
      _
    %p137 = scmp.le.s32.totalorder 1, %s9
    %p138 = scmp.lt.s32.totalorder %s9, 5
    %p139 = pnand %p137, %p138
    %p140 = pneg %p139
    // Predicated region
    $region29: #{my_cnn_forward.5} parent=5 // pred_check
      _
    $region30: #{my_cnn_forward.5} parent=5 // pred_check_branch
      %142 = sbr.rel (%p139) target = $region32
    $region31: #{my_cnn_forward.5} parent=5 // pred_region
      %s143 = ssub.s32 %s9, 1
      %s144 = smul.u32 49, %s14
      %p145 = scmp.lt.s32.totalorder %s144, 195
      %s146 = scalar_select %p145, %s144, 195
      %s147 = smul.addr %s146, 4
      %s148 = scalar_lea.vmem %s0, %s147
      %p149 = pneg %p35
      %p150 = pneg %p32
      %p151 = pneg %p56
      %p152 = pneg %p53
      %p153 = pneg %p77
      %p154 = pneg %p74
      %p155 = pneg %p103
      %p156 = pneg %p100
      %s157 = smul.u32 49, %s14
      %p158 = scmp.lt.s32.totalorder %s157, 195
      %s159 = scalar_select %p158, %s157, 195
      %s160 = smul.addr %s159, 4
      %s161 = scalar_lea.vmem %s3, %s160
      %s162 = smul.u32 49, %s14
      %p163 = scmp.lt.s32.totalorder %s162, 195
      %s164 = scalar_select %p163, %s162, 195
      %s165 = smul.addr %s164, 4
      %s166 = scalar_lea.vmem %s0, %s165
      %s167 = smul.u32 49, %s14
      %s168 = smul.u32 49, %s14
      %p169 = scmp.lt.s32.totalorder %s168, 195
      %s170 = scalar_select %p169, %s168, 195
      %s171 = smul.addr %s170, 4
      %s172 = scalar_lea.vmem %s3, %s171
      %s173 = smul.u32 49, %s14
      %v174 = vld [vmem:[%s166] sm:$0xf]
      %v175 = vld [vmem:[%s166 + $0x4] sm:$0xf]
      %v176 = vld [vmem:[%s166 + $0x8] sm:$0xf]
      %v177 = vld [vmem:[%s166 + $0xc] sm:$0xf]
      %v178 = vld [vmem:[%s166 + $0x10] sm:$0xf]
      %v179 = vld [vmem:[%s166 + $0x14] sm:$0xf]
      %v180 = vld [vmem:[%s166 + $0x18] sm:$0xf]
      %v181 = vld [vmem:[%s166 + $0x1c] sm:$0xf]
      %v182 = vld [vmem:[%s166 + $0x20] sm:$0xf]
      %v183 = vld [vmem:[%s166 + $0x24] sm:$0xf]
      %v184 = vld [vmem:[%s166 + $0x28] sm:$0xf]
      %v185 = vld [vmem:[%s166 + $0x2c] sm:$0xf]
      %v186 = vld [vmem:[%s166 + $0x30] sm:$0xf]
      %v187 = vld [vmem:[%s166 + $0x34] sm:$0xf]
      %v188 = vld [vmem:[%s166 + $0x38] sm:$0xf]
      %v189 = vld [vmem:[%s166 + $0x3c] sm:$0xf]
      %v190 = vld [vmem:[%s166 + $0x40] sm:$0xf]
      %v191 = vld [vmem:[%s166 + $0x44] sm:$0xf]
      %v192 = vld [vmem:[%s166 + $0x48] sm:$0xf]
      %v193 = vld [vmem:[%s166 + $0x4c] sm:$0xf]
      %v194 = vld [vmem:[%s166 + $0x50] sm:$0xf]
      %v195 = vld [vmem:[%s166 + $0x54] sm:$0xf]
      %v196 = vld [vmem:[%s166 + $0x58] sm:$0xf]
      %v197 = vld [vmem:[%s166 + $0x5c] sm:$0xf]
      %v198 = vld [vmem:[%s166 + $0x60] sm:$0xf]
      %v199 = vld [vmem:[%s166 + $0x64] sm:$0xf]
      %v200 = vld [vmem:[%s166 + $0x68] sm:$0xf]
      %v201 = vld [vmem:[%s166 + $0x6c] sm:$0xf]
      %v202 = vld [vmem:[%s166 + $0x70] sm:$0xf]
      %v203 = vld [vmem:[%s166 + $0x74] sm:$0xf]
      %v204 = vld [vmem:[%s166 + $0x78] sm:$0xf]
      %v205 = vld [vmem:[%s166 + $0x7c] sm:$0xf]
      %v206 = vld [vmem:[%s166 + $0x80] sm:$0xf]
      %v207 = vld [vmem:[%s166 + $0x84] sm:$0xf]
      %v208 = vld [vmem:[%s166 + $0x88] sm:$0xf]
      %v209 = vld [vmem:[%s166 + $0x8c] sm:$0xf]
      %v210 = vld [vmem:[%s166 + $0x90] sm:$0xf]
      %v211 = vld [vmem:[%s166 + $0x94] sm:$0xf]
      %v212 = vld [vmem:[%s166 + $0x98] sm:$0xf]
      %v213 = vld [vmem:[%s166 + $0x9c] sm:$0xf]
      %v214 = vld [vmem:[%s166 + $0xa0] sm:$0xf]
      %v215 = vld [vmem:[%s166 + $0xa4] sm:$0xf]
      %v216 = vld [vmem:[%s166 + $0xa8] sm:$0xf]
      %v217 = vld [vmem:[%s166 + $0xac] sm:$0xf]
      %v218 = vld [vmem:[%s166 + $0xb0] sm:$0xf]
      %v219 = vld [vmem:[%s166 + $0xb4] sm:$0xf]
      %v220 = vld [vmem:[%s166 + $0xb8] sm:$0xf]
      %v221 = vld [vmem:[%s166 + $0xbc] sm:$0xf]
      %v222 = vld [vmem:[%s166 + $0xc0] sm:$0xf]
      %v223 = vld [vmem:[%s1] sm:$0xf]
      %v224 = vld [vmem:[%s1 + $0x4] sm:$0xf]
      %v225 = vld [vmem:[%s1 + $0x8] sm:$0xf]
      %v226 = vld [vmem:[%s1 + $0xc] sm:$0xf]
      %v227 = vld [vmem:[%s1 + $0x10] sm:$0xf]
      %v228 = vld [vmem:[%s1 + $0x14] sm:$0xf]
      %v229 = vld [vmem:[%s1 + $0x18] sm:$0xf]
      %v230 = vld [vmem:[%s1 + $0x1c] sm:$0xf]
      %v231 = vld [vmem:[%s1 + $0x20] sm:$0xf]
      %v232 = vld [vmem:[%s1 + $0x24] sm:$0xf]
      %v233 = vld [vmem:[%s1 + $0x28] sm:$0xf]
      %v234 = vld [vmem:[%s1 + $0x2c] sm:$0xf]
      %v235 = vld [vmem:[%s1 + $0x30] sm:$0xf]
      %v236 = vld [vmem:[%s1 + $0x34] sm:$0xf]
      %v237 = vld [vmem:[%s1 + $0x38] sm:$0xf]
      %v238 = vld [vmem:[%s1 + $0x3c] sm:$0xf]
      %v239 = vld [vmem:[%s2] sm:$0x1]
      %v241 = vperm.slane %v239, 0
      %v292 = vunpack.c.l.b16 %v174
      %v293 = vunpack.c.l.b16 %v175
      %v294 = vunpack.c.l.b16 %v176
      %v295 = vunpack.c.l.b16 %v177
      %v296 = vunpack.c.l.b16 %v178
      %v297 = vunpack.c.l.b16 %v179
      %v298 = vunpack.c.l.b16 %v180
      %v299 = vunpack.c.l.b16 %v181
      %v300 = vunpack.c.l.b16 %v182
      %v301 = vunpack.c.l.b16 %v183
      %v302 = vunpack.c.l.b16 %v184
      %v303 = vunpack.c.l.b16 %v185
      %v304 = vunpack.c.l.b16 %v186
      %v305 = vunpack.c.l.b16 %v187
      %v306 = vunpack.c.l.b16 %v188
      %v307 = vunpack.c.l.b16 %v189
      %v308 = vunpack.c.l.b16 %v190
      %v309 = vunpack.c.l.b16 %v191
      %v310 = vunpack.c.l.b16 %v192
      %v311 = vunpack.c.l.b16 %v193
      %v312 = vunpack.c.l.b16 %v194
      %v313 = vunpack.c.l.b16 %v195
      %v314 = vunpack.c.l.b16 %v196
      %v315 = vunpack.c.l.b16 %v197
      %v316 = vunpack.c.l.b16 %v198
      %v317 = vunpack.c.l.b16 %v199
      %v318 = vunpack.c.l.b16 %v200
      %v319 = vunpack.c.l.b16 %v201
      %v320 = vunpack.c.l.b16 %v202
      %v321 = vunpack.c.l.b16 %v203
      %v322 = vunpack.c.l.b16 %v204
      %v323 = vunpack.c.l.b16 %v205
      %v324 = vunpack.c.l.b16 %v206
      %v325 = vunpack.c.l.b16 %v207
      %v326 = vunpack.c.l.b16 %v208
      %v327 = vunpack.c.l.b16 %v209
      %v328 = vunpack.c.l.b16 %v210
      %v329 = vunpack.c.l.b16 %v211
      %v330 = vunpack.c.l.b16 %v212
      %v331 = vunpack.c.l.b16 %v213
      %v332 = vunpack.c.l.b16 %v214
      %v333 = vunpack.c.l.b16 %v215
      %v334 = vunpack.c.l.b16 %v216
      %v335 = vunpack.c.l.b16 %v217
      %v336 = vunpack.c.l.b16 %v218
      %v337 = vunpack.c.l.b16 %v219
      %v338 = vunpack.c.l.b16 %v220
      %v339 = vunpack.c.l.b16 %v221
      %v340 = vunpack.c.l.b16 %v222
      %v341 = vpack.c.b16 %v293, %v292
      %v342 = vpack.c.b16 %v295, %v294
      %v343 = vpack.c.b16 %v297, %v296
      %v344 = vpack.c.b16 %v299, %v298
      %v345 = vpack.c.b16 %v301, %v300
      %v346 = vpack.c.b16 %v303, %v302
      %v347 = vpack.c.b16 %v305, %v304
      %v348 = vpack.c.b16 %v307, %v306
      %v349 = vpack.c.b16 %v309, %v308
      %v350 = vpack.c.b16 %v311, %v310
      %v351 = vpack.c.b16 %v313, %v312
      %v352 = vpack.c.b16 %v315, %v314
      %v353 = vpack.c.b16 %v317, %v316
      %v354 = vpack.c.b16 %v319, %v318
      %v355 = vpack.c.b16 %v321, %v320
      %v356 = vpack.c.b16 %v323, %v322
      %v357 = vpack.c.b16 %v325, %v324
      %v358 = vpack.c.b16 %v327, %v326
      %v359 = vpack.c.b16 %v329, %v328
      %v360 = vpack.c.b16 %v331, %v330
      %v361 = vpack.c.b16 %v333, %v332
      %v362 = vpack.c.b16 %v335, %v334
      %v363 = vpack.c.b16 %v337, %v336
      %v364 = vpack.c.b16 %v339, %v338
      %v365 = vpack.c.b16 %v340, %v340
      %v407 = vunpack.c.l.b16 %v223
      %v408 = vunpack.c.l.b16 %v224
      %v409 = vunpack.c.l.b16 %v225
      %v410 = vunpack.c.l.b16 %v226
      %v411 = vunpack.c.l.b16 %v227
      %v412 = vunpack.c.l.b16 %v228
      %v413 = vunpack.c.l.b16 %v229
      %v414 = vunpack.c.l.b16 %v230
      %v415 = vunpack.c.l.b16 %v231
      %v416 = vunpack.c.l.b16 %v232
      %v417 = vunpack.c.l.b16 %v233
      %v418 = vunpack.c.l.b16 %v234
      %v419 = vunpack.c.l.b16 %v235
      %v420 = vunpack.c.l.b16 %v236
      %v421 = vunpack.c.l.b16 %v237
      %v422 = vunpack.c.l.b16 %v238
      %v423 = vpack.c.b16 %v408, %v407
      %v424 = vpack.c.b16 %v410, %v409
      %v425 = vpack.c.b16 %v412, %v411
      %v426 = vpack.c.b16 %v414, %v413
      %v427 = vpack.c.b16 %v416, %v415
      %v428 = vpack.c.b16 %v418, %v417
      %v429 = vpack.c.b16 %v420, %v419
      %v430 = vpack.c.b16 %v422, %v421
      %439 = vmatpush.bf16.msra.mxu0 %v430
      %440 = vmatpush.bf16.msra.mxu0 %v429
      %441 = vmatpush.bf16.msra.mxu0 %v428
      %442 = vmatpush.bf16.msra.mxu0 %v427
      %443 = vmatpush.bf16.msra.mxu0 %v426
      %444 = vmatpush.bf16.msra.mxu0 %v425
      %445 = vmatpush.bf16.msra.mxu0 %v424
      %446 = vmatpush.bf16.msra.mxu0 %v423
      %447 = vmatmul.bf16.gmra.mxu0 %v341
      %v448 = vpop.f32.mrf.mxu0
      %v449 = vadd.f32 %v241, %v448
      %v450 = vpop.f32.mrf.mxu0
      %v451 = vadd.f32 %v241, %v450
      %452 = vmatmul.bf16.gmra.mxu0 %v342
      %v453 = vpop.f32.mrf.mxu0
      %v454 = vadd.f32 %v241, %v453
      %v455 = vpop.f32.mrf.mxu0
      %v456 = vadd.f32 %v241, %v455
      %457 = vmatmul.bf16.gmra.mxu0 %v343
      %v458 = vpop.f32.mrf.mxu0
      %v459 = vadd.f32 %v241, %v458
      %v460 = vpop.f32.mrf.mxu0
      %v461 = vadd.f32 %v241, %v460
      %462 = vmatmul.bf16.gmra.mxu0 %v344
      %v463 = vpop.f32.mrf.mxu0
      %v464 = vadd.f32 %v241, %v463
      %v465 = vpop.f32.mrf.mxu0
      %v466 = vadd.f32 %v241, %v465
      %467 = vmatmul.bf16.gmra.mxu0 %v345
      %v468 = vpop.f32.mrf.mxu0
      %v469 = vadd.f32 %v241, %v468
      %v470 = vpop.f32.mrf.mxu0
      %v471 = vadd.f32 %v241, %v470
      %472 = vmatmul.bf16.gmra.mxu0 %v346
      %v473 = vpop.f32.mrf.mxu0
      %v474 = vadd.f32 %v241, %v473
      %v475 = vpop.f32.mrf.mxu0
      %v476 = vadd.f32 %v241, %v475
      %477 = vmatmul.bf16.gmra.mxu0 %v347
      %v478 = vpop.f32.mrf.mxu0
      %v479 = vadd.f32 %v241, %v478
      %v480 = vpop.f32.mrf.mxu0
      %v481 = vadd.f32 %v241, %v480
      %482 = vmatmul.bf16.gmra.mxu0 %v348
      %v483 = vpop.f32.mrf.mxu0
      %v484 = vadd.f32 %v241, %v483
      %v485 = vpop.f32.mrf.mxu0
      %v486 = vadd.f32 %v241, %v485
      %487 = vmatmul.bf16.gmra.mxu0 %v349
      %v488 = vpop.f32.mrf.mxu0
      %v489 = vadd.f32 %v241, %v488
      %v490 = vpop.f32.mrf.mxu0
      %v491 = vadd.f32 %v241, %v490
      %492 = vmatmul.bf16.gmra.mxu0 %v350
      %v493 = vpop.f32.mrf.mxu0
      %v494 = vadd.f32 %v241, %v493
      %v495 = vpop.f32.mrf.mxu0
      %v496 = vadd.f32 %v241, %v495
      %497 = vmatmul.bf16.gmra.mxu0 %v351
      %v498 = vpop.f32.mrf.mxu0
      %v499 = vadd.f32 %v241, %v498
      %v500 = vpop.f32.mrf.mxu0
      %v501 = vadd.f32 %v241, %v500
      %502 = vmatmul.bf16.gmra.mxu0 %v352
      %v503 = vpop.f32.mrf.mxu0
      %v504 = vadd.f32 %v241, %v503
      %v505 = vpop.f32.mrf.mxu0
      %v506 = vadd.f32 %v241, %v505
      %507 = vmatmul.bf16.gmra.mxu0 %v353
      %v508 = vpop.f32.mrf.mxu0
      %v509 = vadd.f32 %v241, %v508
      %v510 = vpop.f32.mrf.mxu0
      %v511 = vadd.f32 %v241, %v510
      %512 = vmatmul.bf16.gmra.mxu0 %v354
      %v513 = vpop.f32.mrf.mxu0
      %v514 = vadd.f32 %v241, %v513
      %v515 = vpop.f32.mrf.mxu0
      %v516 = vadd.f32 %v241, %v515
      %517 = vmatmul.bf16.gmra.mxu0 %v355
      %v518 = vpop.f32.mrf.mxu0
      %v519 = vadd.f32 %v241, %v518
      %v520 = vpop.f32.mrf.mxu0
      %v521 = vadd.f32 %v241, %v520
      %522 = vmatmul.bf16.gmra.mxu0 %v356
      %v523 = vpop.f32.mrf.mxu0
      %v524 = vadd.f32 %v241, %v523
      %v525 = vpop.f32.mrf.mxu0
      %v526 = vadd.f32 %v241, %v525
      %527 = vmatmul.bf16.gmra.mxu0 %v357
      %v528 = vpop.f32.mrf.mxu0
      %v529 = vadd.f32 %v241, %v528
      %v530 = vpop.f32.mrf.mxu0
      %v531 = vadd.f32 %v241, %v530
      %532 = vmatmul.bf16.gmra.mxu0 %v358
      %v533 = vpop.f32.mrf.mxu0
      %v534 = vadd.f32 %v241, %v533
      %v535 = vpop.f32.mrf.mxu0
      %v536 = vadd.f32 %v241, %v535
      %537 = vmatmul.bf16.gmra.mxu0 %v359
      %v538 = vpop.f32.mrf.mxu0
      %v539 = vadd.f32 %v241, %v538
      %v540 = vpop.f32.mrf.mxu0
      %v541 = vadd.f32 %v241, %v540
      %542 = vmatmul.bf16.gmra.mxu0 %v360
      %v543 = vpop.f32.mrf.mxu0
      %v544 = vadd.f32 %v241, %v543
      %v545 = vpop.f32.mrf.mxu0
      %v546 = vadd.f32 %v241, %v545
      %547 = vmatmul.bf16.gmra.mxu0 %v361
      %v548 = vpop.f32.mrf.mxu0
      %v549 = vadd.f32 %v241, %v548
      %v550 = vpop.f32.mrf.mxu0
      %v551 = vadd.f32 %v241, %v550
      %552 = vmatmul.bf16.gmra.mxu0 %v362
      %v553 = vpop.f32.mrf.mxu0
      %v554 = vadd.f32 %v241, %v553
      %v555 = vpop.f32.mrf.mxu0
      %v556 = vadd.f32 %v241, %v555
      %557 = vmatmul.bf16.gmra.mxu0 %v363
      %v558 = vpop.f32.mrf.mxu0
      %v559 = vadd.f32 %v241, %v558
      %v560 = vpop.f32.mrf.mxu0
      %v561 = vadd.f32 %v241, %v560
      %562 = vmatmul.bf16.gmra.mxu0 %v364
      %v563 = vpop.f32.mrf.mxu0
      %v564 = vadd.f32 %v241, %v563
      %v565 = vpop.f32.mrf.mxu0
      %v566 = vadd.f32 %v241, %v565
      %567 = vmatmul.bf16.gmra.mxu0 %v365
      %v568 = vpop.f32.mrf.mxu0
      %v569 = vadd.f32 %v241, %v568
      %v570 = vpop.f32.mrf.mxu0
      %571 = vdwg.mxu0
      %v572 = vmax.f32 %v449, 0.0
      %v573 = vmax.f32 %v451, 0.0
      %v574 = vmax.f32 %v454, 0.0
      %v575 = vmax.f32 %v456, 0.0
      %v576 = vmax.f32 %v459, 0.0
      %v577 = vmax.f32 %v461, 0.0
      %v578 = vmax.f32 %v464, 0.0
      %v579 = vmax.f32 %v466, 0.0
      %v580 = vmax.f32 %v469, 0.0
      %v581 = vmax.f32 %v471, 0.0
      %v582 = vmax.f32 %v474, 0.0
      %v583 = vmax.f32 %v476, 0.0
      %v584 = vmax.f32 %v479, 0.0
      %v585 = vmax.f32 %v481, 0.0
      %v586 = vmax.f32 %v484, 0.0
      %v587 = vmax.f32 %v486, 0.0
      %v588 = vmax.f32 %v489, 0.0
      %v589 = vmax.f32 %v491, 0.0
      %v590 = vmax.f32 %v494, 0.0
      %v591 = vmax.f32 %v496, 0.0
      %v592 = vmax.f32 %v499, 0.0
      %v593 = vmax.f32 %v501, 0.0
      %v594 = vmax.f32 %v504, 0.0
      %v595 = vmax.f32 %v506, 0.0
      %v596 = vmax.f32 %v509, 0.0
      %v597 = vmax.f32 %v511, 0.0
      %v598 = vmax.f32 %v514, 0.0
      %v599 = vmax.f32 %v516, 0.0
      %v600 = vmax.f32 %v519, 0.0
      %v601 = vmax.f32 %v521, 0.0
      %v602 = vmax.f32 %v524, 0.0
      %v603 = vmax.f32 %v526, 0.0
      %v604 = vmax.f32 %v529, 0.0
      %v605 = vmax.f32 %v531, 0.0
      %v606 = vmax.f32 %v534, 0.0
      %v607 = vmax.f32 %v536, 0.0
      %v608 = vmax.f32 %v539, 0.0
      %v609 = vmax.f32 %v541, 0.0
      %v610 = vmax.f32 %v544, 0.0
      %v611 = vmax.f32 %v546, 0.0
      %v612 = vmax.f32 %v549, 0.0
      %v613 = vmax.f32 %v551, 0.0
      %v614 = vmax.f32 %v554, 0.0
      %v615 = vmax.f32 %v556, 0.0
      %v616 = vmax.f32 %v559, 0.0
      %v617 = vmax.f32 %v561, 0.0
      %v618 = vmax.f32 %v564, 0.0
      %v619 = vmax.f32 %v566, 0.0
      %v620 = vmax.f32 %v569, 0.0
      %v621 = vpack.c.bf16 %v572, %v572
      %v622 = vpack.c.bf16 %v573, %v573
      %v623 = vpack.c.bf16 %v574, %v574
      %v624 = vpack.c.bf16 %v575, %v575
      %v625 = vpack.c.bf16 %v576, %v576
      %v626 = vpack.c.bf16 %v577, %v577
      %v627 = vpack.c.bf16 %v578, %v578
      %v628 = vpack.c.bf16 %v579, %v579
      %v629 = vpack.c.bf16 %v580, %v580
      %v630 = vpack.c.bf16 %v581, %v581
      %v631 = vpack.c.bf16 %v582, %v582
      %v632 = vpack.c.bf16 %v583, %v583
      %v633 = vpack.c.bf16 %v584, %v584
      %v634 = vpack.c.bf16 %v585, %v585
      %v635 = vpack.c.bf16 %v586, %v586
      %v636 = vpack.c.bf16 %v587, %v587
      %v637 = vpack.c.bf16 %v588, %v588
      %v638 = vpack.c.bf16 %v589, %v589
      %v639 = vpack.c.bf16 %v590, %v590
      %v640 = vpack.c.bf16 %v591, %v591
      %v641 = vpack.c.bf16 %v592, %v592
      %v642 = vpack.c.bf16 %v593, %v593
      %v643 = vpack.c.bf16 %v594, %v594
      %v644 = vpack.c.bf16 %v595, %v595
      %v645 = vpack.c.bf16 %v596, %v596
      %v646 = vpack.c.bf16 %v597, %v597
      %v647 = vpack.c.bf16 %v598, %v598
      %v648 = vpack.c.bf16 %v599, %v599
      %v649 = vpack.c.bf16 %v600, %v600
      %v650 = vpack.c.bf16 %v601, %v601
      %v651 = vpack.c.bf16 %v602, %v602
      %v652 = vpack.c.bf16 %v603, %v603
      %v653 = vpack.c.bf16 %v604, %v604
      %v654 = vpack.c.bf16 %v605, %v605
      %v655 = vpack.c.bf16 %v606, %v606
      %v656 = vpack.c.bf16 %v607, %v607
      %v657 = vpack.c.bf16 %v608, %v608
      %v658 = vpack.c.bf16 %v609, %v609
      %v659 = vpack.c.bf16 %v610, %v610
      %v660 = vpack.c.bf16 %v611, %v611
      %v661 = vpack.c.bf16 %v612, %v612
      %v662 = vpack.c.bf16 %v613, %v613
      %v663 = vpack.c.bf16 %v614, %v614
      %v664 = vpack.c.bf16 %v615, %v615
      %v665 = vpack.c.bf16 %v616, %v616
      %v666 = vpack.c.bf16 %v617, %v617
      %v667 = vpack.c.bf16 %v618, %v618
      %v668 = vpack.c.bf16 %v619, %v619
      %v669 = vpack.c.bf16 %v620, %v620
      %670 = vst [vmem:[%s172] sm:$0xf] %v621
      %671 = vst [vmem:[%s172 + $0x4] sm:$0xf] %v622
      %672 = vst [vmem:[%s172 + $0x8] sm:$0xf] %v623
      %673 = vst [vmem:[%s172 + $0xc] sm:$0xf] %v624
      %674 = vst [vmem:[%s172 + $0x10] sm:$0xf] %v625
      %675 = vst [vmem:[%s172 + $0x14] sm:$0xf] %v626
      %676 = vst [vmem:[%s172 + $0x18] sm:$0xf] %v627
      %677 = vst [vmem:[%s172 + $0x1c] sm:$0xf] %v628
      %678 = vst [vmem:[%s172 + $0x20] sm:$0xf] %v629
      %679 = vst [vmem:[%s172 + $0x24] sm:$0xf] %v630
      %680 = vst [vmem:[%s172 + $0x28] sm:$0xf] %v631
      %681 = vst [vmem:[%s172 + $0x2c] sm:$0xf] %v632
      %682 = vst [vmem:[%s172 + $0x30] sm:$0xf] %v633
      %683 = vst [vmem:[%s172 + $0x34] sm:$0xf] %v634
      %684 = vst [vmem:[%s172 + $0x38] sm:$0xf] %v635
      %685 = vst [vmem:[%s172 + $0x3c] sm:$0xf] %v636
      %686 = vst [vmem:[%s172 + $0x40] sm:$0xf] %v637
      %687 = vst [vmem:[%s172 + $0x44] sm:$0xf] %v638
      %688 = vst [vmem:[%s172 + $0x48] sm:$0xf] %v639
      %689 = vst [vmem:[%s172 + $0x4c] sm:$0xf] %v640
      %690 = vst [vmem:[%s172 + $0x50] sm:$0xf] %v641
      %691 = vst [vmem:[%s172 + $0x54] sm:$0xf] %v642
      %692 = vst [vmem:[%s172 + $0x58] sm:$0xf] %v643
      %693 = vst [vmem:[%s172 + $0x5c] sm:$0xf] %v644
      %694 = vst [vmem:[%s172 + $0x60] sm:$0xf] %v645
      %695 = vst [vmem:[%s172 + $0x64] sm:$0xf] %v646
      %696 = vst [vmem:[%s172 + $0x68] sm:$0xf] %v647
      %697 = vst [vmem:[%s172 + $0x6c] sm:$0xf] %v648
      %698 = vst [vmem:[%s172 + $0x70] sm:$0xf] %v649
      %699 = vst [vmem:[%s172 + $0x74] sm:$0xf] %v650
      %700 = vst [vmem:[%s172 + $0x78] sm:$0xf] %v651
      %701 = vst [vmem:[%s172 + $0x7c] sm:$0xf] %v652
      %702 = vst [vmem:[%s172 + $0x80] sm:$0xf] %v653
      %703 = vst [vmem:[%s172 + $0x84] sm:$0xf] %v654
      %704 = vst [vmem:[%s172 + $0x88] sm:$0xf] %v655
      %705 = vst [vmem:[%s172 + $0x8c] sm:$0xf] %v656
      %706 = vst [vmem:[%s172 + $0x90] sm:$0xf] %v657
      %707 = vst [vmem:[%s172 + $0x94] sm:$0xf] %v658
      %708 = vst [vmem:[%s172 + $0x98] sm:$0xf] %v659
      %709 = vst [vmem:[%s172 + $0x9c] sm:$0xf] %v660
      %710 = vst [vmem:[%s172 + $0xa0] sm:$0xf] %v661
      %711 = vst [vmem:[%s172 + $0xa4] sm:$0xf] %v662
      %712 = vst [vmem:[%s172 + $0xa8] sm:$0xf] %v663
      %713 = vst [vmem:[%s172 + $0xac] sm:$0xf] %v664
      %714 = vst [vmem:[%s172 + $0xb0] sm:$0xf] %v665
      %715 = vst [vmem:[%s172 + $0xb4] sm:$0xf] %v666
      %716 = vst [vmem:[%s172 + $0xb8] sm:$0xf] %v667
      %717 = vst [vmem:[%s172 + $0xbc] sm:$0xf] %v668
      %718 = vst [vmem:[%s172 + $0xc0] sm:$0xf] %v669
      %s719 = smul.u32 49, %s14
      %p720 = scmp.lt.s32.totalorder %s719, 195
      %s721 = scalar_select %p720, %s719, 195
      %s722 = smul.addr %s721, 4
      %s723 = scalar_lea.vmem %s3, %s722
      // Predicated region
      $region33: #{my_cnn_forward.5} parent=31 // pred_check
        %p724 = pneg %p100
      $region34: #{my_cnn_forward.5} parent=31 // pred_check_branch
        %726 = sbr.rel (%p724) target = $region36
      $region35: #{my_cnn_forward.5} parent=31 // pred_region
        %s727 = smul.u32 49, %s14
      $region36: #{my_cnn_forward.5} parent=31 // pred_fallthru
        _
    $region32: #{my_cnn_forward.5} parent=5 // pred_fallthru
      _
    %p728 = scmp.le.s32.totalorder 2, %s9
    // Predicated region
    $region37: #{my_cnn_forward.5} parent=5 // pred_check
      %p729 = pneg %p728
    $region38: #{my_cnn_forward.5} parent=5 // pred_check_branch
      %731 = sbr.rel (%p729) target = $region40
    $region39: #{my_cnn_forward.5} parent=5 // pred_region
      %s732 = ssub.s32 %s9, 2
      // Predicated region
      $region41: #{my_cnn_forward.5} parent=39 // pred_check
        %p733 = pneg %p106
      $region42: #{my_cnn_forward.5} parent=39 // pred_check_branch
        %735 = sbr.rel (%p733) target = $region44
      $region43: #{my_cnn_forward.5} parent=39 // pred_region
        %s736 = smul.u32 49, %s15
        %p737 = scmp.lt.s32.totalorder %s736, 195
        %s738 = scalar_select %p737, %s736, 195
        %s739 = smul.addr %s738, 4
        %s740 = scalar_lea.vmem %s3, %s739
      $region44: #{my_cnn_forward.5} parent=39 // pred_fallthru
        _
    $region40: #{my_cnn_forward.5} parent=5 // pred_fallthru
      _
  $region6: #{my_cnn_forward.5} parent=0 // loop_footer
    %s13 = sadd.s32 1, %s9
  $region7: #{my_cnn_forward.5} parent=0 // loop_footer_branch
    %8 = sbr.rel target = $region3
  $region8: #{my_cnn_forward.5} parent=0 // loop_exit
    _

// kernel: my_cnn_forward.6
$region0: #{my_cnn_forward.6}
  #allocation0 [shape = 'u32[]', space=smem, size = 0x4, offset = 0x4, fixed_abs, tag = 'smem constant byte address 0x4 - core index']
  #allocation1 [shape = 'u32[72,128]{1,0:T(1,128)}', space=vmem, size = 0x9000, scoped, tag = 'internal scratch']
  %s0 = inlined_call_operand.vmem [shape: bf16[392,128], index: 0, kind: input, shape index: {}]
  %s1 = inlined_call_operand.vmem [shape: bf16[392,128], index: 1, kind: input, shape index: {}]
  %s2 = inlined_call_operand.vmem [shape: bf16[392,128], index: 2, kind: input, shape index: {}]
  %s3 = inlined_call_operand.vmem [shape: bf16[392,128], index: 3, kind: input, shape index: {}]
  %s4 = inlined_call_operand.vmem [shape: bf16[392,128], index: 4, kind: output, shape index: {}]
  %s5 = sld [smem:[#allocation0]]
  $region26: #{my_cnn_forward.6} parent=0
    _
  %s7 = ssub.s32 1, %s5
  %s8 = scalar_select 0, %s7, %s5
  // Predicated region
  $region2: #{my_cnn_forward.6} parent=0 // pred_check
    _
  $region3: #{my_cnn_forward.6} parent=0 // pred_check_branch
    %10 = sbr.rel (0) target = $region5
  $region4: #{my_cnn_forward.6} parent=0 // pred_region
    _
  $region5: #{my_cnn_forward.6} parent=0 // pred_fallthru
    _
  // Predicated region
  $region6: #{my_cnn_forward.6} parent=0 // pred_check
    _
  $region7: #{my_cnn_forward.6} parent=0 // pred_check_branch
    %12 = sbr.rel (0) target = $region9
  $region8: #{my_cnn_forward.6} parent=0 // pred_region
    _
  $region9: #{my_cnn_forward.6} parent=0 // pred_fallthru
    _
  // Predicated region
  $region10: #{my_cnn_forward.6} parent=0 // pred_check
    _
  $region11: #{my_cnn_forward.6} parent=0 // pred_check_branch
    %14 = sbr.rel (0) target = $region13
  $region12: #{my_cnn_forward.6} parent=0 // pred_region
    _
  $region13: #{my_cnn_forward.6} parent=0 // pred_fallthru
    _
  // Predicated region
  $region14: #{my_cnn_forward.6} parent=0 // pred_check
    _
  $region15: #{my_cnn_forward.6} parent=0 // pred_check_branch
    %16 = sbr.rel (0) target = $region17
  $region16: #{my_cnn_forward.6} parent=0 // pred_region
    _
  $region17: #{my_cnn_forward.6} parent=0 // pred_fallthru
    _
  %v17 = vld [vmem:[%s0] sm:$0xf]
  %v18 = vld [vmem:[%s0 + $0x4] sm:$0xf]
  %v19 = vld [vmem:[%s0 + $0x8] sm:$0xf]
  %v20 = vld [vmem:[%s0 + $0xc] sm:$0xf]
  %v21 = vld [vmem:[%s0 + $0x10] sm:$0xf]
  %v22 = vld [vmem:[%s0 + $0x14] sm:$0xf]
  %v23 = vld [vmem:[%s0 + $0x18] sm:$0xf]
  %v24 = vld [vmem:[%s0 + $0x1c] sm:$0xf]
  %v25 = vld [vmem:[%s0 + $0x20] sm:$0xf]
  %v26 = vld [vmem:[%s0 + $0x24] sm:$0xf]
  %v27 = vld [vmem:[%s0 + $0x28] sm:$0xf]
  %v28 = vld [vmem:[%s0 + $0x2c] sm:$0xf]
  %v29 = vld [vmem:[%s0 + $0x30] sm:$0xf]
  %v30 = vld [vmem:[%s0 + $0x34] sm:$0xf]
  %v31 = vld [vmem:[%s0 + $0x38] sm:$0xf]
  %v32 = vld [vmem:[%s0 + $0x3c] sm:$0xf]
  %v33 = vld [vmem:[%s0 + $0x40] sm:$0xf]
  %v34 = vld [vmem:[%s0 + $0x44] sm:$0xf]
  %v35 = vld [vmem:[%s0 + $0x48] sm:$0xf]
  %v36 = vld [vmem:[%s0 + $0x4c] sm:$0xf]
  %v37 = vld [vmem:[%s0 + $0x50] sm:$0xf]
  %v38 = vld [vmem:[%s0 + $0x54] sm:$0xf]
  %v39 = vld [vmem:[%s0 + $0x58] sm:$0xf]
  %v40 = vld [vmem:[%s0 + $0x5c] sm:$0xf]
  %v41 = vld [vmem:[%s0 + $0x60] sm:$0xf]
  %v42 = vld [vmem:[%s0 + $0x64] sm:$0xf]
  %v43 = vld [vmem:[%s0 + $0x68] sm:$0xf]
  %v44 = vld [vmem:[%s0 + $0x6c] sm:$0xf]
  %v45 = vld [vmem:[%s0 + $0x70] sm:$0xf]
  %v46 = vld [vmem:[%s0 + $0x74] sm:$0xf]
  %v47 = vld [vmem:[%s0 + $0x78] sm:$0xf]
  %v48 = vld [vmem:[%s0 + $0x7c] sm:$0xf]
  %v49 = vld [vmem:[%s0 + $0x80] sm:$0xf]
  %v50 = vld [vmem:[%s0 + $0x84] sm:$0xf]
  %v51 = vld [vmem:[%s0 + $0x88] sm:$0xf]
  %v52 = vld [vmem:[%s0 + $0x8c] sm:$0xf]
  %v53 = vld [vmem:[%s0 + $0x90] sm:$0xf]
  %v54 = vld [vmem:[%s0 + $0x94] sm:$0xf]
  %v55 = vld [vmem:[%s0 + $0x98] sm:$0xf]
  %v56 = vld [vmem:[%s0 + $0x9c] sm:$0xf]
  %v57 = vld [vmem:[%s0 + $0xa0] sm:$0xf]
  %v58 = vld [vmem:[%s0 + $0xa4] sm:$0xf]
  %v59 = vld [vmem:[%s0 + $0xa8] sm:$0xf]
  %v60 = vld [vmem:[%s0 + $0xac] sm:$0xf]
  %v61 = vld [vmem:[%s0 + $0xb0] sm:$0xf]
  %v62 = vld [vmem:[%s0 + $0xb4] sm:$0xf]
  %v63 = vld [vmem:[%s0 + $0xb8] sm:$0xf]
  %v64 = vld [vmem:[%s0 + $0xbc] sm:$0xf]
  %v65 = vld [vmem:[%s0 + $0xc0] sm:$0xf]
  %v66 = vld [vmem:[%s1] sm:$0xf]
  %v67 = vld [vmem:[%s1 + $0x4] sm:$0xf]
  %v68 = vld [vmem:[%s1 + $0x8] sm:$0xf]
  %v69 = vld [vmem:[%s1 + $0xc] sm:$0xf]
  %v70 = vld [vmem:[%s1 + $0x10] sm:$0xf]
  %v71 = vld [vmem:[%s1 + $0x14] sm:$0xf]
  %v72 = vld [vmem:[%s1 + $0x18] sm:$0xf]
  %v73 = vld [vmem:[%s1 + $0x1c] sm:$0xf]
  %v74 = vld [vmem:[%s1 + $0x20] sm:$0xf]
  %v75 = vld [vmem:[%s1 + $0x24] sm:$0xf]
  %v76 = vld [vmem:[%s1 + $0x28] sm:$0xf]
  %v77 = vld [vmem:[%s1 + $0x2c] sm:$0xf]
  %v78 = vld [vmem:[%s1 + $0x30] sm:$0xf]
  %v79 = vld [vmem:[%s1 + $0x34] sm:$0xf]
  %v80 = vld [vmem:[%s1 + $0x38] sm:$0xf]
  %v81 = vld [vmem:[%s1 + $0x3c] sm:$0xf]
  %v82 = vld [vmem:[%s1 + $0x40] sm:$0xf]
  %v83 = vld [vmem:[%s1 + $0x44] sm:$0xf]
  %v84 = vld [vmem:[%s1 + $0x48] sm:$0xf]
  %v85 = vld [vmem:[%s1 + $0x4c] sm:$0xf]
  %v86 = vld [vmem:[%s1 + $0x50] sm:$0xf]
  %v87 = vld [vmem:[%s1 + $0x54] sm:$0xf]
  %v88 = vld [vmem:[%s1 + $0x58] sm:$0xf]
  %v89 = vld [vmem:[%s1 + $0x5c] sm:$0xf]
  %v90 = vld [vmem:[%s1 + $0x60] sm:$0xf]
  %v91 = vld [vmem:[%s1 + $0x64] sm:$0xf]
  %v92 = vld [vmem:[%s1 + $0x68] sm:$0xf]
  %v93 = vld [vmem:[%s1 + $0x6c] sm:$0xf]
  %v94 = vld [vmem:[%s1 + $0x70] sm:$0xf]
  %v95 = vld [vmem:[%s1 + $0x74] sm:$0xf]
  %v96 = vld [vmem:[%s1 + $0x78] sm:$0xf]
  %v97 = vld [vmem:[%s1 + $0x7c] sm:$0xf]
  %v98 = vld [vmem:[%s1 + $0x80] sm:$0xf]
  %v99 = vld [vmem:[%s1 + $0x84] sm:$0xf]
  %v100 = vld [vmem:[%s1 + $0x88] sm:$0xf]
  %v101 = vld [vmem:[%s1 + $0x8c] sm:$0xf]
  %v102 = vld [vmem:[%s1 + $0x90] sm:$0xf]
  %v103 = vld [vmem:[%s1 + $0x94] sm:$0xf]
  %v104 = vld [vmem:[%s1 + $0x98] sm:$0xf]
  %v105 = vld [vmem:[%s1 + $0x9c] sm:$0xf]
  %v106 = vld [vmem:[%s1 + $0xa0] sm:$0xf]
  %v107 = vld [vmem:[%s1 + $0xa4] sm:$0xf]
  %v108 = vld [vmem:[%s1 + $0xa8] sm:$0xf]
  %v109 = vld [vmem:[%s1 + $0xac] sm:$0xf]
  %v110 = vld [vmem:[%s1 + $0xb0] sm:$0xf]
  %v111 = vld [vmem:[%s1 + $0xb4] sm:$0xf]
  %v112 = vld [vmem:[%s1 + $0xb8] sm:$0xf]
  %v113 = vld [vmem:[%s1 + $0xbc] sm:$0xf]
  %v114 = vld [vmem:[%s1 + $0xc0] sm:$0xf]
  %v115 = vunpack.c.l.bf16 %v17
  %v116 = vunpack.c.l.bf16 %v18
  %v117 = vunpack.c.l.bf16 %v19
  %v118 = vunpack.c.l.bf16 %v20
  %v119 = vunpack.c.l.bf16 %v21
  %v120 = vunpack.c.l.bf16 %v22
  %v121 = vunpack.c.l.bf16 %v23
  %v122 = vunpack.c.l.bf16 %v24
  %v123 = vunpack.c.l.bf16 %v25
  %v124 = vunpack.c.l.bf16 %v26
  %v125 = vunpack.c.l.bf16 %v27
  %v126 = vunpack.c.l.bf16 %v28
  %v127 = vunpack.c.l.bf16 %v29
  %v128 = vunpack.c.l.bf16 %v30
  %v129 = vunpack.c.l.bf16 %v31
  %v130 = vunpack.c.l.bf16 %v32
  %v131 = vunpack.c.l.bf16 %v33
  %v132 = vunpack.c.l.bf16 %v34
  %v133 = vunpack.c.l.bf16 %v35
  %v134 = vunpack.c.l.bf16 %v36
  %v135 = vunpack.c.l.bf16 %v37
  %v136 = vunpack.c.l.bf16 %v38
  %v137 = vunpack.c.l.bf16 %v39
  %v138 = vunpack.c.l.bf16 %v40
  %v139 = vunpack.c.l.bf16 %v41
  %v140 = vunpack.c.l.bf16 %v42
  %v141 = vunpack.c.l.bf16 %v43
  %v142 = vunpack.c.l.bf16 %v44
  %v143 = vunpack.c.l.bf16 %v45
  %v144 = vunpack.c.l.bf16 %v46
  %v145 = vunpack.c.l.bf16 %v47
  %v146 = vunpack.c.l.bf16 %v48
  %v147 = vunpack.c.l.bf16 %v49
  %v148 = vunpack.c.l.bf16 %v50
  %v149 = vunpack.c.l.bf16 %v51
  %v150 = vunpack.c.l.bf16 %v52
  %v151 = vunpack.c.l.bf16 %v53
  %v152 = vunpack.c.l.bf16 %v54
  %v153 = vunpack.c.l.bf16 %v55
  %v154 = vunpack.c.l.bf16 %v56
  %v155 = vunpack.c.l.bf16 %v57
  %v156 = vunpack.c.l.bf16 %v58
  %v157 = vunpack.c.l.bf16 %v59
  %v158 = vunpack.c.l.bf16 %v60
  %v159 = vunpack.c.l.bf16 %v61
  %v160 = vunpack.c.l.bf16 %v62
  %v161 = vunpack.c.l.bf16 %v63
  %v162 = vunpack.c.l.bf16 %v64
  %v163 = vunpack.c.l.bf16 %v65
  %v164 = vunpack.c.l.bf16 %v66
  %v165 = vunpack.c.l.bf16 %v67
  %v166 = vunpack.c.l.bf16 %v68
  %v167 = vunpack.c.l.bf16 %v69
  %v168 = vunpack.c.l.bf16 %v70
  %v169 = vunpack.c.l.bf16 %v71
  %v170 = vunpack.c.l.bf16 %v72
  %v171 = vunpack.c.l.bf16 %v73
  %v172 = vunpack.c.l.bf16 %v74
  %v173 = vunpack.c.l.bf16 %v75
  %v174 = vunpack.c.l.bf16 %v76
  %v175 = vunpack.c.l.bf16 %v77
  %v176 = vunpack.c.l.bf16 %v78
  %v177 = vunpack.c.l.bf16 %v79
  %v178 = vunpack.c.l.bf16 %v80
  %v179 = vunpack.c.l.bf16 %v81
  %v180 = vunpack.c.l.bf16 %v82
  %v181 = vunpack.c.l.bf16 %v83
  %v182 = vunpack.c.l.bf16 %v84
  %v183 = vunpack.c.l.bf16 %v85
  %v184 = vunpack.c.l.bf16 %v86
  %v185 = vunpack.c.l.bf16 %v87
  %v186 = vunpack.c.l.bf16 %v88
  %v187 = vunpack.c.l.bf16 %v89
  %v188 = vunpack.c.l.bf16 %v90
  %v189 = vunpack.c.l.bf16 %v91
  %v190 = vunpack.c.l.bf16 %v92
  %v191 = vunpack.c.l.bf16 %v93
  %v192 = vunpack.c.l.bf16 %v94
  %v193 = vunpack.c.l.bf16 %v95
  %v194 = vunpack.c.l.bf16 %v96
  %v195 = vunpack.c.l.bf16 %v97
  %v196 = vunpack.c.l.bf16 %v98
  %v197 = vunpack.c.l.bf16 %v99
  %v198 = vunpack.c.l.bf16 %v100
  %v199 = vunpack.c.l.bf16 %v101
  %v200 = vunpack.c.l.bf16 %v102
  %v201 = vunpack.c.l.bf16 %v103
  %v202 = vunpack.c.l.bf16 %v104
  %v203 = vunpack.c.l.bf16 %v105
  %v204 = vunpack.c.l.bf16 %v106
  %v205 = vunpack.c.l.bf16 %v107
  %v206 = vunpack.c.l.bf16 %v108
  %v207 = vunpack.c.l.bf16 %v109
  %v208 = vunpack.c.l.bf16 %v110
  %v209 = vunpack.c.l.bf16 %v111
  %v210 = vunpack.c.l.bf16 %v112
  %v211 = vunpack.c.l.bf16 %v113
  %v212 = vunpack.c.l.bf16 %v114
  %v213 = vmax.f32 %v115, %v164
  %v214 = vmax.f32 %v116, %v165
  %v215 = vmax.f32 %v117, %v166
  %v216 = vmax.f32 %v118, %v167
  %v217 = vmax.f32 %v119, %v168
  %v218 = vmax.f32 %v120, %v169
  %v219 = vmax.f32 %v121, %v170
  %v220 = vmax.f32 %v122, %v171
  %v221 = vmax.f32 %v123, %v172
  %v222 = vmax.f32 %v124, %v173
  %v223 = vmax.f32 %v125, %v174
  %v224 = vmax.f32 %v126, %v175
  %v225 = vmax.f32 %v127, %v176
  %v226 = vmax.f32 %v128, %v177
  %v227 = vmax.f32 %v129, %v178
  %v228 = vmax.f32 %v130, %v179
  %v229 = vmax.f32 %v131, %v180
  %v230 = vmax.f32 %v132, %v181
  %v231 = vmax.f32 %v133, %v182
  %v232 = vmax.f32 %v134, %v183
  %v233 = vmax.f32 %v135, %v184
  %v234 = vmax.f32 %v136, %v185
  %v235 = vmax.f32 %v137, %v186
  %v236 = vmax.f32 %v138, %v187
  %v237 = vmax.f32 %v139, %v188
  %v238 = vmax.f32 %v140, %v189
  %v239 = vmax.f32 %v141, %v190
  %v240 = vmax.f32 %v142, %v191
  %v241 = vmax.f32 %v143, %v192
  %v242 = vmax.f32 %v144, %v193
  %v243 = vmax.f32 %v145, %v194
  %v244 = vmax.f32 %v146, %v195
  %v245 = vmax.f32 %v147, %v196
  %v246 = vmax.f32 %v148, %v197
  %v247 = vmax.f32 %v149, %v198
  %v248 = vmax.f32 %v150, %v199
  %v249 = vmax.f32 %v151, %v200
  %v250 = vmax.f32 %v152, %v201
  %v251 = vmax.f32 %v153, %v202
  %v252 = vmax.f32 %v154, %v203
  %v253 = vmax.f32 %v155, %v204
  %v254 = vmax.f32 %v156, %v205
  %v255 = vmax.f32 %v157, %v206
  %v256 = vmax.f32 %v158, %v207
  %v257 = vmax.f32 %v159, %v208
  %v258 = vmax.f32 %v160, %v209
  %v259 = vmax.f32 %v161, %v210
  %v260 = vmax.f32 %v162, %v211
  %v261 = vmax.f32 %v163, %v212
  %v262 = vpack.c.bf16 %v213, %v213
  %v263 = vpack.c.bf16 %v214, %v214
  %v264 = vpack.c.bf16 %v215, %v215
  %v265 = vpack.c.bf16 %v216, %v216
  %v266 = vpack.c.bf16 %v217, %v217
  %v267 = vpack.c.bf16 %v218, %v218
  %v268 = vpack.c.bf16 %v219, %v219
  %v269 = vpack.c.bf16 %v220, %v220
  %v270 = vpack.c.bf16 %v221, %v221
  %v271 = vpack.c.bf16 %v222, %v222
  %v272 = vpack.c.bf16 %v223, %v223
  %v273 = vpack.c.bf16 %v224, %v224
  %v274 = vpack.c.bf16 %v225, %v225
  %v275 = vpack.c.bf16 %v226, %v226
  %v276 = vpack.c.bf16 %v227, %v227
  %v277 = vpack.c.bf16 %v228, %v228
  %v278 = vpack.c.bf16 %v229, %v229
  %v279 = vpack.c.bf16 %v230, %v230
  %v280 = vpack.c.bf16 %v231, %v231
  %v281 = vpack.c.bf16 %v232, %v232
  %v282 = vpack.c.bf16 %v233, %v233
  %v283 = vpack.c.bf16 %v234, %v234
  %v284 = vpack.c.bf16 %v235, %v235
  %v285 = vpack.c.bf16 %v236, %v236
  %v286 = vpack.c.bf16 %v237, %v237
  %v287 = vpack.c.bf16 %v238, %v238
  %v288 = vpack.c.bf16 %v239, %v239
  %v289 = vpack.c.bf16 %v240, %v240
  %v290 = vpack.c.bf16 %v241, %v241
  %v291 = vpack.c.bf16 %v242, %v242
  %v292 = vpack.c.bf16 %v243, %v243
  %v293 = vpack.c.bf16 %v244, %v244
  %v294 = vpack.c.bf16 %v245, %v245
  %v295 = vpack.c.bf16 %v246, %v246
  %v296 = vpack.c.bf16 %v247, %v247
  %v297 = vpack.c.bf16 %v248, %v248
  %v298 = vpack.c.bf16 %v249, %v249
  %v299 = vpack.c.bf16 %v250, %v250
  %v300 = vpack.c.bf16 %v251, %v251
  %v301 = vpack.c.bf16 %v252, %v252
  %v302 = vpack.c.bf16 %v253, %v253
  %v303 = vpack.c.bf16 %v254, %v254
  %v304 = vpack.c.bf16 %v255, %v255
  %v305 = vpack.c.bf16 %v256, %v256
  %v306 = vpack.c.bf16 %v257, %v257
  %v307 = vpack.c.bf16 %v258, %v258
  %v308 = vpack.c.bf16 %v259, %v259
  %v309 = vpack.c.bf16 %v260, %v260
  %v310 = vpack.c.bf16 %v261, %v261
  %v311 = vld [vmem:[%s2] sm:$0xf]
  %v312 = vld [vmem:[%s2 + $0x4] sm:$0xf]
  %v313 = vld [vmem:[%s2 + $0x8] sm:$0xf]
  %v314 = vld [vmem:[%s2 + $0xc] sm:$0xf]
  %v315 = vld [vmem:[%s2 + $0x10] sm:$0xf]
  %v316 = vld [vmem:[%s2 + $0x14] sm:$0xf]
  %v317 = vld [vmem:[%s2 + $0x18] sm:$0xf]
  %v318 = vld [vmem:[%s2 + $0x1c] sm:$0xf]
  %v319 = vld [vmem:[%s2 + $0x20] sm:$0xf]
  %v320 = vld [vmem:[%s2 + $0x24] sm:$0xf]
  %v321 = vld [vmem:[%s2 + $0x28] sm:$0xf]
  %v322 = vld [vmem:[%s2 + $0x2c] sm:$0xf]
  %v323 = vld [vmem:[%s2 + $0x30] sm:$0xf]
  %v324 = vld [vmem:[%s2 + $0x34] sm:$0xf]
  %v325 = vld [vmem:[%s2 + $0x38] sm:$0xf]
  %v326 = vld [vmem:[%s2 + $0x3c] sm:$0xf]
  %v327 = vld [vmem:[%s2 + $0x40] sm:$0xf]
  %v328 = vld [vmem:[%s2 + $0x44] sm:$0xf]
  %v329 = vld [vmem:[%s2 + $0x48] sm:$0xf]
  %v330 = vld [vmem:[%s2 + $0x4c] sm:$0xf]
  %v331 = vld [vmem:[%s2 + $0x50] sm:$0xf]
  %v332 = vld [vmem:[%s2 + $0x54] sm:$0xf]
  %v333 = vld [vmem:[%s2 + $0x58] sm:$0xf]
  %v334 = vld [vmem:[%s2 + $0x5c] sm:$0xf]
  %v335 = vld [vmem:[%s2 + $0x60] sm:$0xf]
  %v336 = vld [vmem:[%s2 + $0x64] sm:$0xf]
  %v337 = vld [vmem:[%s2 + $0x68] sm:$0xf]
  %v338 = vld [vmem:[%s2 + $0x6c] sm:$0xf]
  %v339 = vld [vmem:[%s2 + $0x70] sm:$0xf]
  %v340 = vld [vmem:[%s2 + $0x74] sm:$0xf]
  %v341 = vld [vmem:[%s2 + $0x78] sm:$0xf]
  %v342 = vld [vmem:[%s2 + $0x7c] sm:$0xf]
  %v343 = vld [vmem:[%s2 + $0x80] sm:$0xf]
  %v344 = vld [vmem:[%s2 + $0x84] sm:$0xf]
  %v345 = vld [vmem:[%s2 + $0x88] sm:$0xf]
  %v346 = vld [vmem:[%s2 + $0x8c] sm:$0xf]
  %v347 = vld [vmem:[%s2 + $0x90] sm:$0xf]
  %v348 = vld [vmem:[%s2 + $0x94] sm:$0xf]
  %v349 = vld [vmem:[%s2 + $0x98] sm:$0xf]
  %v350 = vld [vmem:[%s2 + $0x9c] sm:$0xf]
  %v351 = vld [vmem:[%s2 + $0xa0] sm:$0xf]
  %v352 = vld [vmem:[%s2 + $0xa4] sm:$0xf]
  %v353 = vld [vmem:[%s2 + $0xa8] sm:$0xf]
  %v354 = vld [vmem:[%s2 + $0xac] sm:$0xf]
  %v355 = vld [vmem:[%s2 + $0xb0] sm:$0xf]
  %v356 = vld [vmem:[%s2 + $0xb4] sm:$0xf]
  %v357 = vld [vmem:[%s2 + $0xb8] sm:$0xf]
  %v358 = vld [vmem:[%s2 + $0xbc] sm:$0xf]
  %v359 = vld [vmem:[%s2 + $0xc0] sm:$0xf]
  %v360 = vld [vmem:[%s3] sm:$0xf]
  %v361 = vld [vmem:[%s3 + $0x4] sm:$0xf]
  %v362 = vld [vmem:[%s3 + $0x8] sm:$0xf]
  %v363 = vld [vmem:[%s3 + $0xc] sm:$0xf]
  %v364 = vld [vmem:[%s3 + $0x10] sm:$0xf]
  %v365 = vld [vmem:[%s3 + $0x14] sm:$0xf]
  %v366 = vld [vmem:[%s3 + $0x18] sm:$0xf]
  %v367 = vld [vmem:[%s3 + $0x1c] sm:$0xf]
  %v368 = vld [vmem:[%s3 + $0x20] sm:$0xf]
  %v369 = vld [vmem:[%s3 + $0x24] sm:$0xf]
  %v370 = vld [vmem:[%s3 + $0x28] sm:$0xf]
  %v371 = vld [vmem:[%s3 + $0x2c] sm:$0xf]
  %v372 = vld [vmem:[%s3 + $0x30] sm:$0xf]
  %v373 = vld [vmem:[%s3 + $0x34] sm:$0xf]
  %v374 = vld [vmem:[%s3 + $0x38] sm:$0xf]
  %v375 = vld [vmem:[%s3 + $0x3c] sm:$0xf]
  %v376 = vld [vmem:[%s3 + $0x40] sm:$0xf]
  %v377 = vld [vmem:[%s3 + $0x44] sm:$0xf]
  %v378 = vld [vmem:[%s3 + $0x48] sm:$0xf]
  %v379 = vld [vmem:[%s3 + $0x4c] sm:$0xf]
  %v380 = vld [vmem:[%s3 + $0x50] sm:$0xf]
  %v381 = vld [vmem:[%s3 + $0x54] sm:$0xf]
  %v382 = vld [vmem:[%s3 + $0x58] sm:$0xf]
  %v383 = vld [vmem:[%s3 + $0x5c] sm:$0xf]
  %v384 = vld [vmem:[%s3 + $0x60] sm:$0xf]
  %v385 = vld [vmem:[%s3 + $0x64] sm:$0xf]
  %v386 = vld [vmem:[%s3 + $0x68] sm:$0xf]
  %v387 = vld [vmem:[%s3 + $0x6c] sm:$0xf]
  %v388 = vld [vmem:[%s3 + $0x70] sm:$0xf]
  %v389 = vld [vmem:[%s3 + $0x74] sm:$0xf]
  %v390 = vld [vmem:[%s3 + $0x78] sm:$0xf]
  %v391 = vld [vmem:[%s3 + $0x7c] sm:$0xf]
  %v392 = vld [vmem:[%s3 + $0x80] sm:$0xf]
  %v393 = vld [vmem:[%s3 + $0x84] sm:$0xf]
  %v394 = vld [vmem:[%s3 + $0x88] sm:$0xf]
  %v395 = vld [vmem:[%s3 + $0x8c] sm:$0xf]
  %v396 = vld [vmem:[%s3 + $0x90] sm:$0xf]
  %v397 = vld [vmem:[%s3 + $0x94] sm:$0xf]
  %v398 = vld [vmem:[%s3 + $0x98] sm:$0xf]
  %v399 = vld [vmem:[%s3 + $0x9c] sm:$0xf]
  %v400 = vld [vmem:[%s3 + $0xa0] sm:$0xf]
  %v401 = vld [vmem:[%s3 + $0xa4] sm:$0xf]
  %v402 = vld [vmem:[%s3 + $0xa8] sm:$0xf]
  %v403 = vld [vmem:[%s3 + $0xac] sm:$0xf]
  %v404 = vld [vmem:[%s3 + $0xb0] sm:$0xf]
  %v405 = vld [vmem:[%s3 + $0xb4] sm:$0xf]
  %v406 = vld [vmem:[%s3 + $0xb8] sm:$0xf]
  %v407 = vld [vmem:[%s3 + $0xbc] sm:$0xf]
  %v408 = vld [vmem:[%s3 + $0xc0] sm:$0xf]
  %v409 = vunpack.c.l.bf16 %v311
  %v410 = vunpack.c.l.bf16 %v312
  %v411 = vunpack.c.l.bf16 %v313
  %v412 = vunpack.c.l.bf16 %v314
  %v413 = vunpack.c.l.bf16 %v315
  %v414 = vunpack.c.l.bf16 %v316
  %v415 = vunpack.c.l.bf16 %v317
  %v416 = vunpack.c.l.bf16 %v318
  %v417 = vunpack.c.l.bf16 %v319
  %v418 = vunpack.c.l.bf16 %v320
  %v419 = vunpack.c.l.bf16 %v321
  %v420 = vunpack.c.l.bf16 %v322
  %v421 = vunpack.c.l.bf16 %v323
  %v422 = vunpack.c.l.bf16 %v324
  %v423 = vunpack.c.l.bf16 %v325
  %v424 = vunpack.c.l.bf16 %v326
  %v425 = vunpack.c.l.bf16 %v327
  %v426 = vunpack.c.l.bf16 %v328
  %v427 = vunpack.c.l.bf16 %v329
  %v428 = vunpack.c.l.bf16 %v330
  %v429 = vunpack.c.l.bf16 %v331
  %v430 = vunpack.c.l.bf16 %v332
  %v431 = vunpack.c.l.bf16 %v333
  %v432 = vunpack.c.l.bf16 %v334
  %v433 = vunpack.c.l.bf16 %v335
  %v434 = vunpack.c.l.bf16 %v336
  %v435 = vunpack.c.l.bf16 %v337
  %v436 = vunpack.c.l.bf16 %v338
  %v437 = vunpack.c.l.bf16 %v339
  %v438 = vunpack.c.l.bf16 %v340
  %v439 = vunpack.c.l.bf16 %v341
  %v440 = vunpack.c.l.bf16 %v342
  %v441 = vunpack.c.l.bf16 %v343
  %v442 = vunpack.c.l.bf16 %v344
  %v443 = vunpack.c.l.bf16 %v345
  %v444 = vunpack.c.l.bf16 %v346
  %v445 = vunpack.c.l.bf16 %v347
  %v446 = vunpack.c.l.bf16 %v348
  %v447 = vunpack.c.l.bf16 %v349
  %v448 = vunpack.c.l.bf16 %v350
  %v449 = vunpack.c.l.bf16 %v351
  %v450 = vunpack.c.l.bf16 %v352
  %v451 = vunpack.c.l.bf16 %v353
  %v452 = vunpack.c.l.bf16 %v354
  %v453 = vunpack.c.l.bf16 %v355
  %v454 = vunpack.c.l.bf16 %v356
  %v455 = vunpack.c.l.bf16 %v357
  %v456 = vunpack.c.l.bf16 %v358
  %v457 = vunpack.c.l.bf16 %v359
  %v458 = vunpack.c.l.bf16 %v360
  %v459 = vunpack.c.l.bf16 %v361
  %v460 = vunpack.c.l.bf16 %v362
  %v461 = vunpack.c.l.bf16 %v363
  %v462 = vunpack.c.l.bf16 %v364
  %v463 = vunpack.c.l.bf16 %v365
  %v464 = vunpack.c.l.bf16 %v366
  %v465 = vunpack.c.l.bf16 %v367
  %v466 = vunpack.c.l.bf16 %v368
  %v467 = vunpack.c.l.bf16 %v369
  %v468 = vunpack.c.l.bf16 %v370
  %v469 = vunpack.c.l.bf16 %v371
  %v470 = vunpack.c.l.bf16 %v372
  %v471 = vunpack.c.l.bf16 %v373
  %v472 = vunpack.c.l.bf16 %v374
  %v473 = vunpack.c.l.bf16 %v375
  %v474 = vunpack.c.l.bf16 %v376
  %v475 = vunpack.c.l.bf16 %v377
  %v476 = vunpack.c.l.bf16 %v378
  %v477 = vunpack.c.l.bf16 %v379
  %v478 = vunpack.c.l.bf16 %v380
  %v479 = vunpack.c.l.bf16 %v381
  %v480 = vunpack.c.l.bf16 %v382
  %v481 = vunpack.c.l.bf16 %v383
  %v482 = vunpack.c.l.bf16 %v384
  %v483 = vunpack.c.l.bf16 %v385
  %v484 = vunpack.c.l.bf16 %v386
  %v485 = vunpack.c.l.bf16 %v387
  %v486 = vunpack.c.l.bf16 %v388
  %v487 = vunpack.c.l.bf16 %v389
  %v488 = vunpack.c.l.bf16 %v390
  %v489 = vunpack.c.l.bf16 %v391
  %v490 = vunpack.c.l.bf16 %v392
  %v491 = vunpack.c.l.bf16 %v393
  %v492 = vunpack.c.l.bf16 %v394
  %v493 = vunpack.c.l.bf16 %v395
  %v494 = vunpack.c.l.bf16 %v396
  %v495 = vunpack.c.l.bf16 %v397
  %v496 = vunpack.c.l.bf16 %v398
  %v497 = vunpack.c.l.bf16 %v399
  %v498 = vunpack.c.l.bf16 %v400
  %v499 = vunpack.c.l.bf16 %v401
  %v500 = vunpack.c.l.bf16 %v402
  %v501 = vunpack.c.l.bf16 %v403
  %v502 = vunpack.c.l.bf16 %v404
  %v503 = vunpack.c.l.bf16 %v405
  %v504 = vunpack.c.l.bf16 %v406
  %v505 = vunpack.c.l.bf16 %v407
  %v506 = vunpack.c.l.bf16 %v408
  %v507 = vmax.f32 %v409, %v458
  %v508 = vmax.f32 %v410, %v459
  %v509 = vmax.f32 %v411, %v460
  %v510 = vmax.f32 %v412, %v461
  %v511 = vmax.f32 %v413, %v462
  %v512 = vmax.f32 %v414, %v463
  %v513 = vmax.f32 %v415, %v464
  %v514 = vmax.f32 %v416, %v465
  %v515 = vmax.f32 %v417, %v466
  %v516 = vmax.f32 %v418, %v467
  %v517 = vmax.f32 %v419, %v468
  %v518 = vmax.f32 %v420, %v469
  %v519 = vmax.f32 %v421, %v470
  %v520 = vmax.f32 %v422, %v471
  %v521 = vmax.f32 %v423, %v472
  %v522 = vmax.f32 %v424, %v473
  %v523 = vmax.f32 %v425, %v474
  %v524 = vmax.f32 %v426, %v475
  %v525 = vmax.f32 %v427, %v476
  %v526 = vmax.f32 %v428, %v477
  %v527 = vmax.f32 %v429, %v478
  %v528 = vmax.f32 %v430, %v479
  %v529 = vmax.f32 %v431, %v480
  %v530 = vmax.f32 %v432, %v481
  %v531 = vmax.f32 %v433, %v482
  %v532 = vmax.f32 %v434, %v483
  %v533 = vmax.f32 %v435, %v484
  %v534 = vmax.f32 %v436, %v485
  %v535 = vmax.f32 %v437, %v486
  %v536 = vmax.f32 %v438, %v487
  %v537 = vmax.f32 %v439, %v488
  %v538 = vmax.f32 %v440, %v489
  %v539 = vmax.f32 %v441, %v490
  %v540 = vmax.f32 %v442, %v491
  %v541 = vmax.f32 %v443, %v492
  %v542 = vmax.f32 %v444, %v493
  %v543 = vmax.f32 %v445, %v494
  %v544 = vmax.f32 %v446, %v495
  %v545 = vmax.f32 %v447, %v496
  %v546 = vmax.f32 %v448, %v497
  %v547 = vmax.f32 %v449, %v498
  %v548 = vmax.f32 %v450, %v499
  %v549 = vmax.f32 %v451, %v500
  %v550 = vmax.f32 %v452, %v501
  %v551 = vmax.f32 %v453, %v502
  %v552 = vmax.f32 %v454, %v503
  %v553 = vmax.f32 %v455, %v504
  %v554 = vmax.f32 %v456, %v505
  %v555 = vmax.f32 %v457, %v506
  %v556 = vpack.c.bf16 %v507, %v507
  %v557 = vpack.c.bf16 %v508, %v508
  %v558 = vpack.c.bf16 %v509, %v509
  %v559 = vpack.c.bf16 %v510, %v510
  %v560 = vpack.c.bf16 %v511, %v511
  %v561 = vpack.c.bf16 %v512, %v512
  %v562 = vpack.c.bf16 %v513, %v513
  %v563 = vpack.c.bf16 %v514, %v514
  %v564 = vpack.c.bf16 %v515, %v515
  %v565 = vpack.c.bf16 %v516, %v516
  %v566 = vpack.c.bf16 %v517, %v517
  %v567 = vpack.c.bf16 %v518, %v518
  %v568 = vpack.c.bf16 %v519, %v519
  %v569 = vpack.c.bf16 %v520, %v520
  %v570 = vpack.c.bf16 %v521, %v521
  %v571 = vpack.c.bf16 %v522, %v522
  %v572 = vpack.c.bf16 %v523, %v523
  %v573 = vpack.c.bf16 %v524, %v524
  %v574 = vpack.c.bf16 %v525, %v525
  %v575 = vpack.c.bf16 %v526, %v526
  %v576 = vpack.c.bf16 %v527, %v527
  %v577 = vpack.c.bf16 %v528, %v528
  %v578 = vpack.c.bf16 %v529, %v529
  %v579 = vpack.c.bf16 %v530, %v530
  %v580 = vpack.c.bf16 %v531, %v531
  %v581 = vpack.c.bf16 %v532, %v532
  %v582 = vpack.c.bf16 %v533, %v533
  %v583 = vpack.c.bf16 %v534, %v534
  %v584 = vpack.c.bf16 %v535, %v535
  %v585 = vpack.c.bf16 %v536, %v536
  %v586 = vpack.c.bf16 %v537, %v537
  %v587 = vpack.c.bf16 %v538, %v538
  %v588 = vpack.c.bf16 %v539, %v539
  %v589 = vpack.c.bf16 %v540, %v540
  %v590 = vpack.c.bf16 %v541, %v541
  %v591 = vpack.c.bf16 %v542, %v542
  %v592 = vpack.c.bf16 %v543, %v543
  %v593 = vpack.c.bf16 %v544, %v544
  %v594 = vpack.c.bf16 %v545, %v545
  %v595 = vpack.c.bf16 %v546, %v546
  %v596 = vpack.c.bf16 %v547, %v547
  %v597 = vpack.c.bf16 %v548, %v548
  %v598 = vpack.c.bf16 %v549, %v549
  %v599 = vpack.c.bf16 %v550, %v550
  %v600 = vpack.c.bf16 %v551, %v551
  %v601 = vpack.c.bf16 %v552, %v552
  %v602 = vpack.c.bf16 %v553, %v553
  %v603 = vpack.c.bf16 %v554, %v554
  %v604 = vpack.c.bf16 %v555, %v555
  %v605 = vunpack.c.l.bf16 %v262
  %v606 = vunpack.c.l.bf16 %v263
  %v607 = vunpack.c.l.bf16 %v264
  %v608 = vunpack.c.l.bf16 %v265
  %v609 = vunpack.c.l.bf16 %v266
  %v610 = vunpack.c.l.bf16 %v267
  %v611 = vunpack.c.l.bf16 %v268
  %v612 = vunpack.c.l.bf16 %v269
  %v613 = vunpack.c.l.bf16 %v270
  %v614 = vunpack.c.l.bf16 %v271
  %v615 = vunpack.c.l.bf16 %v272
  %v616 = vunpack.c.l.bf16 %v273
  %v617 = vunpack.c.l.bf16 %v274
  %v618 = vunpack.c.l.bf16 %v275
  %v619 = vunpack.c.l.bf16 %v276
  %v620 = vunpack.c.l.bf16 %v277
  %v621 = vunpack.c.l.bf16 %v278
  %v622 = vunpack.c.l.bf16 %v279
  %v623 = vunpack.c.l.bf16 %v280
  %v624 = vunpack.c.l.bf16 %v281
  %v625 = vunpack.c.l.bf16 %v282
  %v626 = vunpack.c.l.bf16 %v283
  %v627 = vunpack.c.l.bf16 %v284
  %v628 = vunpack.c.l.bf16 %v285
  %v629 = vunpack.c.l.bf16 %v286
  %v630 = vunpack.c.l.bf16 %v287
  %v631 = vunpack.c.l.bf16 %v288
  %v632 = vunpack.c.l.bf16 %v289
  %v633 = vunpack.c.l.bf16 %v290
  %v634 = vunpack.c.l.bf16 %v291
  %v635 = vunpack.c.l.bf16 %v292
  %v636 = vunpack.c.l.bf16 %v293
  %v637 = vunpack.c.l.bf16 %v294
  %v638 = vunpack.c.l.bf16 %v295
  %v639 = vunpack.c.l.bf16 %v296
  %v640 = vunpack.c.l.bf16 %v297
  %v641 = vunpack.c.l.bf16 %v298
  %v642 = vunpack.c.l.bf16 %v299
  %v643 = vunpack.c.l.bf16 %v300
  %v644 = vunpack.c.l.bf16 %v301
  %v645 = vunpack.c.l.bf16 %v302
  %v646 = vunpack.c.l.bf16 %v303
  %v647 = vunpack.c.l.bf16 %v304
  %v648 = vunpack.c.l.bf16 %v305
  %v649 = vunpack.c.l.bf16 %v306
  %v650 = vunpack.c.l.bf16 %v307
  %v651 = vunpack.c.l.bf16 %v308
  %v652 = vunpack.c.l.bf16 %v309
  %v653 = vunpack.c.l.bf16 %v310
  %v654 = vunpack.c.l.bf16 %v556
  %v655 = vunpack.c.l.bf16 %v557
  %v656 = vunpack.c.l.bf16 %v558
  %v657 = vunpack.c.l.bf16 %v559
  %v658 = vunpack.c.l.bf16 %v560
  %v659 = vunpack.c.l.bf16 %v561
  %v660 = vunpack.c.l.bf16 %v562
  %v661 = vunpack.c.l.bf16 %v563
  %v662 = vunpack.c.l.bf16 %v564
  %v663 = vunpack.c.l.bf16 %v565
  %v664 = vunpack.c.l.bf16 %v566
  %v665 = vunpack.c.l.bf16 %v567
  %v666 = vunpack.c.l.bf16 %v568
  %v667 = vunpack.c.l.bf16 %v569
  %v668 = vunpack.c.l.bf16 %v570
  %v669 = vunpack.c.l.bf16 %v571
  %v670 = vunpack.c.l.bf16 %v572
  %v671 = vunpack.c.l.bf16 %v573
  %v672 = vunpack.c.l.bf16 %v574
  %v673 = vunpack.c.l.bf16 %v575
  %v674 = vunpack.c.l.bf16 %v576
  %v675 = vunpack.c.l.bf16 %v577
  %v676 = vunpack.c.l.bf16 %v578
  %v677 = vunpack.c.l.bf16 %v579
  %v678 = vunpack.c.l.bf16 %v580
  %v679 = vunpack.c.l.bf16 %v581
  %v680 = vunpack.c.l.bf16 %v582
  %v681 = vunpack.c.l.bf16 %v583
  %v682 = vunpack.c.l.bf16 %v584
  %v683 = vunpack.c.l.bf16 %v585
  %v684 = vunpack.c.l.bf16 %v586
  %v685 = vunpack.c.l.bf16 %v587
  %v686 = vunpack.c.l.bf16 %v588
  %v687 = vunpack.c.l.bf16 %v589
  %v688 = vunpack.c.l.bf16 %v590
  %v689 = vunpack.c.l.bf16 %v591
  %v690 = vunpack.c.l.bf16 %v592
  %v691 = vunpack.c.l.bf16 %v593
  %v692 = vunpack.c.l.bf16 %v594
  %v693 = vunpack.c.l.bf16 %v595
  %v694 = vunpack.c.l.bf16 %v596
  %v695 = vunpack.c.l.bf16 %v597
  %v696 = vunpack.c.l.bf16 %v598
  %v697 = vunpack.c.l.bf16 %v599
  %v698 = vunpack.c.l.bf16 %v600
  %v699 = vunpack.c.l.bf16 %v601
  %v700 = vunpack.c.l.bf16 %v602
  %v701 = vunpack.c.l.bf16 %v603
  %v702 = vunpack.c.l.bf16 %v604
  %v703 = vmax.f32 %v605, %v654
  %v704 = vmax.f32 %v606, %v655
  %v705 = vmax.f32 %v607, %v656
  %v706 = vmax.f32 %v608, %v657
  %v707 = vmax.f32 %v609, %v658
  %v708 = vmax.f32 %v610, %v659
  %v709 = vmax.f32 %v611, %v660
  %v710 = vmax.f32 %v612, %v661
  %v711 = vmax.f32 %v613, %v662
  %v712 = vmax.f32 %v614, %v663
  %v713 = vmax.f32 %v615, %v664
  %v714 = vmax.f32 %v616, %v665
  %v715 = vmax.f32 %v617, %v666
  %v716 = vmax.f32 %v618, %v667
  %v717 = vmax.f32 %v619, %v668
  %v718 = vmax.f32 %v620, %v669
  %v719 = vmax.f32 %v621, %v670
  %v720 = vmax.f32 %v622, %v671
  %v721 = vmax.f32 %v623, %v672
  %v722 = vmax.f32 %v624, %v673
  %v723 = vmax.f32 %v625, %v674
  %v724 = vmax.f32 %v626, %v675
  %v725 = vmax.f32 %v627, %v676
  %v726 = vmax.f32 %v628, %v677
  %v727 = vmax.f32 %v629, %v678
  %v728 = vmax.f32 %v630, %v679
  %v729 = vmax.f32 %v631, %v680
  %v730 = vmax.f32 %v632, %v681
  %v731 = vmax.f32 %v633, %v682
  %v732 = vmax.f32 %v634, %v683
  %v733 = vmax.f32 %v635, %v684
  %v734 = vmax.f32 %v636, %v685
  %v735 = vmax.f32 %v637, %v686
  %v736 = vmax.f32 %v638, %v687
  %v737 = vmax.f32 %v639, %v688
  %v738 = vmax.f32 %v640, %v689
  %v739 = vmax.f32 %v641, %v690
  %v740 = vmax.f32 %v642, %v691
  %v741 = vmax.f32 %v643, %v692
  %v742 = vmax.f32 %v644, %v693
  %v743 = vmax.f32 %v645, %v694
  %v744 = vmax.f32 %v646, %v695
  %v745 = vmax.f32 %v647, %v696
  %v746 = vmax.f32 %v648, %v697
  %v747 = vmax.f32 %v649, %v698
  %v748 = vmax.f32 %v650, %v699
  %v749 = vmax.f32 %v651, %v700
  %v750 = vmax.f32 %v652, %v701
  %v751 = vmax.f32 %v653, %v702
  %v752 = vpack.c.bf16 %v703, %v703
  %v753 = vpack.c.bf16 %v704, %v704
  %v754 = vpack.c.bf16 %v705, %v705
  %v755 = vpack.c.bf16 %v706, %v706
  %v756 = vpack.c.bf16 %v707, %v707
  %v757 = vpack.c.bf16 %v708, %v708
  %v758 = vpack.c.bf16 %v709, %v709
  %v759 = vpack.c.bf16 %v710, %v710
  %v760 = vpack.c.bf16 %v711, %v711
  %v761 = vpack.c.bf16 %v712, %v712
  %v762 = vpack.c.bf16 %v713, %v713
  %v763 = vpack.c.bf16 %v714, %v714
  %v764 = vpack.c.bf16 %v715, %v715
  %v765 = vpack.c.bf16 %v716, %v716
  %v766 = vpack.c.bf16 %v717, %v717
  %v767 = vpack.c.bf16 %v718, %v718
  %v768 = vpack.c.bf16 %v719, %v719
  %v769 = vpack.c.bf16 %v720, %v720
  %v770 = vpack.c.bf16 %v721, %v721
  %v771 = vpack.c.bf16 %v722, %v722
  %v772 = vpack.c.bf16 %v723, %v723
  %v773 = vpack.c.bf16 %v724, %v724
  %v774 = vpack.c.bf16 %v725, %v725
  %v775 = vpack.c.bf16 %v726, %v726
  %v776 = vpack.c.bf16 %v727, %v727
  %v777 = vpack.c.bf16 %v728, %v728
  %v778 = vpack.c.bf16 %v729, %v729
  %v779 = vpack.c.bf16 %v730, %v730
  %v780 = vpack.c.bf16 %v731, %v731
  %v781 = vpack.c.bf16 %v732, %v732
  %v782 = vpack.c.bf16 %v733, %v733
  %v783 = vpack.c.bf16 %v734, %v734
  %v784 = vpack.c.bf16 %v735, %v735
  %v785 = vpack.c.bf16 %v736, %v736
  %v786 = vpack.c.bf16 %v737, %v737
  %v787 = vpack.c.bf16 %v738, %v738
  %v788 = vpack.c.bf16 %v739, %v739
  %v789 = vpack.c.bf16 %v740, %v740
  %v790 = vpack.c.bf16 %v741, %v741
  %v791 = vpack.c.bf16 %v742, %v742
  %v792 = vpack.c.bf16 %v743, %v743
  %v793 = vpack.c.bf16 %v744, %v744
  %v794 = vpack.c.bf16 %v745, %v745
  %v795 = vpack.c.bf16 %v746, %v746
  %v796 = vpack.c.bf16 %v747, %v747
  %v797 = vpack.c.bf16 %v748, %v748
  %v798 = vpack.c.bf16 %v749, %v749
  %v799 = vpack.c.bf16 %v750, %v750
  %v800 = vpack.c.bf16 %v751, %v751
  %801 = vst [vmem:[%s4] sm:$0xf] %v752
  %802 = vst [vmem:[%s4 + $0x4] sm:$0xf] %v753
  %803 = vst [vmem:[%s4 + $0x8] sm:$0xf] %v754
  %804 = vst [vmem:[%s4 + $0xc] sm:$0xf] %v755
  %805 = vst [vmem:[%s4 + $0x10] sm:$0xf] %v756
  %806 = vst [vmem:[%s4 + $0x14] sm:$0xf] %v757
  %807 = vst [vmem:[%s4 + $0x18] sm:$0xf] %v758
  %808 = vst [vmem:[%s4 + $0x1c] sm:$0xf] %v759
  %809 = vst [vmem:[%s4 + $0x20] sm:$0xf] %v760
  %810 = vst [vmem:[%s4 + $0x24] sm:$0xf] %v761
  %811 = vst [vmem:[%s4 + $0x28] sm:$0xf] %v762
  %812 = vst [vmem:[%s4 + $0x2c] sm:$0xf] %v763
  %813 = vst [vmem:[%s4 + $0x30] sm:$0xf] %v764
  %814 = vst [vmem:[%s4 + $0x34] sm:$0xf] %v765
  %815 = vst [vmem:[%s4 + $0x38] sm:$0xf] %v766
  %816 = vst [vmem:[%s4 + $0x3c] sm:$0xf] %v767
  %817 = vst [vmem:[%s4 + $0x40] sm:$0xf] %v768
  %818 = vst [vmem:[%s4 + $0x44] sm:$0xf] %v769
  %819 = vst [vmem:[%s4 + $0x48] sm:$0xf] %v770
  %820 = vst [vmem:[%s4 + $0x4c] sm:$0xf] %v771
  %821 = vst [vmem:[%s4 + $0x50] sm:$0xf] %v772
  %822 = vst [vmem:[%s4 + $0x54] sm:$0xf] %v773
  %823 = vst [vmem:[%s4 + $0x58] sm:$0xf] %v774
  %824 = vst [vmem:[%s4 + $0x5c] sm:$0xf] %v775
  %825 = vst [vmem:[%s4 + $0x60] sm:$0xf] %v776
  %826 = vst [vmem:[%s4 + $0x64] sm:$0xf] %v777
  %827 = vst [vmem:[%s4 + $0x68] sm:$0xf] %v778
  %828 = vst [vmem:[%s4 + $0x6c] sm:$0xf] %v779
  %829 = vst [vmem:[%s4 + $0x70] sm:$0xf] %v780
  %830 = vst [vmem:[%s4 + $0x74] sm:$0xf] %v781
  %831 = vst [vmem:[%s4 + $0x78] sm:$0xf] %v782
  %832 = vst [vmem:[%s4 + $0x7c] sm:$0xf] %v783
  %833 = vst [vmem:[%s4 + $0x80] sm:$0xf] %v784
  %834 = vst [vmem:[%s4 + $0x84] sm:$0xf] %v785
  %835 = vst [vmem:[%s4 + $0x88] sm:$0xf] %v786
  %836 = vst [vmem:[%s4 + $0x8c] sm:$0xf] %v787
  %837 = vst [vmem:[%s4 + $0x90] sm:$0xf] %v788
  %838 = vst [vmem:[%s4 + $0x94] sm:$0xf] %v789
  %839 = vst [vmem:[%s4 + $0x98] sm:$0xf] %v790
  %840 = vst [vmem:[%s4 + $0x9c] sm:$0xf] %v791
  %841 = vst [vmem:[%s4 + $0xa0] sm:$0xf] %v792
  %842 = vst [vmem:[%s4 + $0xa4] sm:$0xf] %v793
  %843 = vst [vmem:[%s4 + $0xa8] sm:$0xf] %v794
  %844 = vst [vmem:[%s4 + $0xac] sm:$0xf] %v795
  %845 = vst [vmem:[%s4 + $0xb0] sm:$0xf] %v796
  %846 = vst [vmem:[%s4 + $0xb4] sm:$0xf] %v797
  %847 = vst [vmem:[%s4 + $0xb8] sm:$0xf] %v798
  %848 = vst [vmem:[%s4 + $0xbc] sm:$0xf] %v799
  %849 = vst [vmem:[%s4 + $0xc0] sm:$0xf] %v800
  // Predicated region
  $region18: #{my_cnn_forward.6} parent=0 // pred_check
    _
  $region19: #{my_cnn_forward.6} parent=0 // pred_check_branch
    %851 = sbr.rel (0) target = $region21
  $region20: #{my_cnn_forward.6} parent=0 // pred_region
    _
  $region21: #{my_cnn_forward.6} parent=0 // pred_fallthru
    _
  // Predicated region
  $region22: #{my_cnn_forward.6} parent=0 // pred_check
    _
  $region23: #{my_cnn_forward.6} parent=0 // pred_check_branch
    %853 = sbr.rel (0) target = $region25
  $region24: #{my_cnn_forward.6} parent=0 // pred_region
    _
  $region25: #{my_cnn_forward.6} parent=0 // pred_fallthru
    _

// kernel: my_cnn_forward.7
$region0: #{my_cnn_forward.7}
  #allocation0 [shape = 'u32[]', space=smem, size = 0x4, offset = 0x4, fixed_abs, tag = 'smem constant byte address 0x4 - core index']
  #allocation1 [shape = 'u32[72,128]{1,0:T(1,128)}', space=vmem, size = 0x9000, scoped, tag = 'internal scratch']
  %s0 = inlined_call_operand.vmem [shape: bf16[200,3200], index: 0, kind: input, shape index: {}]
  %s1 = inlined_call_operand.vmem [shape: bf16[3200,128], index: 1, kind: input, shape index: {}]
  %s2 = inlined_call_operand.vmem [shape: f32[1,128], index: 2, kind: input, shape index: {}]
  %s3 = inlined_call_operand.vmem [shape: bf16[200,128], index: 3, kind: output, shape index: {}]
  %s4 = sld [smem:[#allocation0]]
  $region22: #{my_cnn_forward.7} parent=0
    _
  %s6 = ssub.s32 1, %s4
  %s7 = scalar_select 0, %s6, %s4
  // Predicated region
  $region2: #{my_cnn_forward.7} parent=0 // pred_check
    _
  $region3: #{my_cnn_forward.7} parent=0 // pred_check_branch
    %9 = sbr.rel (0) target = $region5
  $region4: #{my_cnn_forward.7} parent=0 // pred_region
    _
  $region5: #{my_cnn_forward.7} parent=0 // pred_fallthru
    _
  // Predicated region
  $region6: #{my_cnn_forward.7} parent=0 // pred_check
    _
  $region7: #{my_cnn_forward.7} parent=0 // pred_check_branch
    %11 = sbr.rel (0) target = $region9
  $region8: #{my_cnn_forward.7} parent=0 // pred_region
    _
  $region9: #{my_cnn_forward.7} parent=0 // pred_fallthru
    _
  // Predicated region
  $region10: #{my_cnn_forward.7} parent=0 // pred_check
    _
  $region11: #{my_cnn_forward.7} parent=0 // pred_check_branch
    %13 = sbr.rel (0) target = $region13
  $region12: #{my_cnn_forward.7} parent=0 // pred_region
    _
  $region13: #{my_cnn_forward.7} parent=0 // pred_fallthru
    _
  %v14 = vld [vmem:[%s0] sm:$0xff]
  %v15 = vld [vmem:[%s0 + $0x8] sm:$0xff]
  %v16 = vld [vmem:[%s0 + $0x10] sm:$0xff]
  %v17 = vld [vmem:[%s0 + $0x18] sm:$0xff]
  %v18 = vld [vmem:[%s0 + $0x20] sm:$0xff]
  %v19 = vld [vmem:[%s0 + $0x28] sm:$0xff]
  %v20 = vld [vmem:[%s0 + $0x30] sm:$0xff]
  %v21 = vld [vmem:[%s0 + $0x38] sm:$0xff]
  %v22 = vld [vmem:[%s0 + $0x40] sm:$0xff]
  %v23 = vld [vmem:[%s0 + $0x48] sm:$0xff]
  %v24 = vld [vmem:[%s0 + $0x50] sm:$0xff]
  %v25 = vld [vmem:[%s0 + $0x58] sm:$0xff]
  %v26 = vld [vmem:[%s0 + $0x60] sm:$0xf]
  %v27 = vld [vmem:[%s0 + $0x64] sm:$0xff]
  %v28 = vld [vmem:[%s0 + $0x6c] sm:$0xff]
  %v29 = vld [vmem:[%s0 + $0x74] sm:$0xff]
  %v30 = vld [vmem:[%s0 + $0x7c] sm:$0xff]
  %v31 = vld [vmem:[%s0 + $0x84] sm:$0xff]
  %v32 = vld [vmem:[%s0 + $0x8c] sm:$0xff]
  %v33 = vld [vmem:[%s0 + $0x94] sm:$0xff]
  %v34 = vld [vmem:[%s0 + $0x9c] sm:$0xff]
  %v35 = vld [vmem:[%s0 + $0xa4] sm:$0xff]
  %v36 = vld [vmem:[%s0 + $0xac] sm:$0xff]
  %v37 = vld [vmem:[%s0 + $0xb4] sm:$0xff]
  %v38 = vld [vmem:[%s0 + $0xbc] sm:$0xff]
  %v39 = vld [vmem:[%s0 + $0xc4] sm:$0xf]
  %v40 = vld [vmem:[%s0 + $0xc8] sm:$0xff]
  %v41 = vld [vmem:[%s0 + $0xd0] sm:$0xff]
  %v42 = vld [vmem:[%s0 + $0xd8] sm:$0xff]
  %v43 = vld [vmem:[%s0 + $0xe0] sm:$0xff]
  %v44 = vld [vmem:[%s0 + $0xe8] sm:$0xff]
  %v45 = vld [vmem:[%s0 + $0xf0] sm:$0xff]
  %v46 = vld [vmem:[%s0 + $0xf8] sm:$0xff]
  %v47 = vld [vmem:[%s0 + $0x100] sm:$0xff]
  %v48 = vld [vmem:[%s0 + $0x108] sm:$0xff]
  %v49 = vld [vmem:[%s0 + $0x110] sm:$0xff]
  %v50 = vld [vmem:[%s0 + $0x118] sm:$0xff]
  %v51 = vld [vmem:[%s0 + $0x120] sm:$0xff]
  %v52 = vld [vmem:[%s0 + $0x128] sm:$0xf]
  %v53 = vld [vmem:[%s0 + $0x12c] sm:$0xff]
  %v54 = vld [vmem:[%s0 + $0x134] sm:$0xff]
  %v55 = vld [vmem:[%s0 + $0x13c] sm:$0xff]
  %v56 = vld [vmem:[%s0 + $0x144] sm:$0xff]
  %v57 = vld [vmem:[%s0 + $0x14c] sm:$0xff]
  %v58 = vld [vmem:[%s0 + $0x154] sm:$0xff]
  %v59 = vld [vmem:[%s0 + $0x15c] sm:$0xff]
  %v60 = vld [vmem:[%s0 + $0x164] sm:$0xff]
  %v61 = vld [vmem:[%s0 + $0x16c] sm:$0xff]
  %v62 = vld [vmem:[%s0 + $0x174] sm:$0xff]
  %v63 = vld [vmem:[%s0 + $0x17c] sm:$0xff]
  %v64 = vld [vmem:[%s0 + $0x184] sm:$0xff]
  %v65 = vld [vmem:[%s0 + $0x18c] sm:$0xf]
  %v66 = vld [vmem:[%s0 + $0x190] sm:$0xff]
  %v67 = vld [vmem:[%s0 + $0x198] sm:$0xff]
  %v68 = vld [vmem:[%s0 + $0x1a0] sm:$0xff]
  %v69 = vld [vmem:[%s0 + $0x1a8] sm:$0xff]
  %v70 = vld [vmem:[%s0 + $0x1b0] sm:$0xff]
  %v71 = vld [vmem:[%s0 + $0x1b8] sm:$0xff]
  %v72 = vld [vmem:[%s0 + $0x1c0] sm:$0xff]
  %v73 = vld [vmem:[%s0 + $0x1c8] sm:$0xff]
  %v74 = vld [vmem:[%s0 + $0x1d0] sm:$0xff]
  %v75 = vld [vmem:[%s0 + $0x1d8] sm:$0xff]
  %v76 = vld [vmem:[%s0 + $0x1e0] sm:$0xff]
  %v77 = vld [vmem:[%s0 + $0x1e8] sm:$0xff]
  %v78 = vld [vmem:[%s0 + $0x1f0] sm:$0xf]
  %v79 = vld [vmem:[%s0 + $0x1f4] sm:$0xff]
  %v80 = vld [vmem:[%s0 + $0x1fc] sm:$0xff]
  %v81 = vld [vmem:[%s0 + $0x204] sm:$0xff]
  %v82 = vld [vmem:[%s0 + $0x20c] sm:$0xff]
  %v83 = vld [vmem:[%s0 + $0x214] sm:$0xff]
  %v84 = vld [vmem:[%s0 + $0x21c] sm:$0xff]
  %v85 = vld [vmem:[%s0 + $0x224] sm:$0xff]
  %v86 = vld [vmem:[%s0 + $0x22c] sm:$0xff]
  %v87 = vld [vmem:[%s0 + $0x234] sm:$0xff]
  %v88 = vld [vmem:[%s0 + $0x23c] sm:$0xff]
  %v89 = vld [vmem:[%s0 + $0x244] sm:$0xff]
  %v90 = vld [vmem:[%s0 + $0x24c] sm:$0xff]
  %v91 = vld [vmem:[%s0 + $0x254] sm:$0xf]
  %v92 = vld [vmem:[%s0 + $0x258] sm:$0xff]
  %v93 = vld [vmem:[%s0 + $0x260] sm:$0xff]
  %v94 = vld [vmem:[%s0 + $0x268] sm:$0xff]
  %v95 = vld [vmem:[%s0 + $0x270] sm:$0xff]
  %v96 = vld [vmem:[%s0 + $0x278] sm:$0xff]
  %v97 = vld [vmem:[%s0 + $0x280] sm:$0xff]
  %v98 = vld [vmem:[%s0 + $0x288] sm:$0xff]
  %v99 = vld [vmem:[%s0 + $0x290] sm:$0xff]
  %v100 = vld [vmem:[%s0 + $0x298] sm:$0xff]
  %v101 = vld [vmem:[%s0 + $0x2a0] sm:$0xff]
  %v102 = vld [vmem:[%s0 + $0x2a8] sm:$0xff]
  %v103 = vld [vmem:[%s0 + $0x2b0] sm:$0xff]
  %v104 = vld [vmem:[%s0 + $0x2b8] sm:$0xf]
  %v105 = vld [vmem:[%s0 + $0x2bc] sm:$0xff]
  %v106 = vld [vmem:[%s0 + $0x2c4] sm:$0xff]
  %v107 = vld [vmem:[%s0 + $0x2cc] sm:$0xff]
  %v108 = vld [vmem:[%s0 + $0x2d4] sm:$0xff]
  %v109 = vld [vmem:[%s0 + $0x2dc] sm:$0xff]
  %v110 = vld [vmem:[%s0 + $0x2e4] sm:$0xff]
  %v111 = vld [vmem:[%s0 + $0x2ec] sm:$0xff]
  %v112 = vld [vmem:[%s0 + $0x2f4] sm:$0xff]
  %v113 = vld [vmem:[%s0 + $0x2fc] sm:$0xff]
  %v114 = vld [vmem:[%s0 + $0x304] sm:$0xff]
  %v115 = vld [vmem:[%s0 + $0x30c] sm:$0xff]
  %v116 = vld [vmem:[%s0 + $0x314] sm:$0xff]
  %v117 = vld [vmem:[%s0 + $0x31c] sm:$0xf]
  %v118 = vld [vmem:[%s0 + $0x320] sm:$0xff]
  %v119 = vld [vmem:[%s0 + $0x328] sm:$0xff]
  %v120 = vld [vmem:[%s0 + $0x330] sm:$0xff]
  %v121 = vld [vmem:[%s0 + $0x338] sm:$0xff]
  %v122 = vld [vmem:[%s0 + $0x340] sm:$0xff]
  %v123 = vld [vmem:[%s0 + $0x348] sm:$0xff]
  %v124 = vld [vmem:[%s0 + $0x350] sm:$0xff]
  %v125 = vld [vmem:[%s0 + $0x358] sm:$0xff]
  %v126 = vld [vmem:[%s0 + $0x360] sm:$0xff]
  %v127 = vld [vmem:[%s0 + $0x368] sm:$0xff]
  %v128 = vld [vmem:[%s0 + $0x370] sm:$0xff]
  %v129 = vld [vmem:[%s0 + $0x378] sm:$0xff]
  %v130 = vld [vmem:[%s0 + $0x380] sm:$0xf]
  %v131 = vld [vmem:[%s0 + $0x384] sm:$0xff]
  %v132 = vld [vmem:[%s0 + $0x38c] sm:$0xff]
  %v133 = vld [vmem:[%s0 + $0x394] sm:$0xff]
  %v134 = vld [vmem:[%s0 + $0x39c] sm:$0xff]
  %v135 = vld [vmem:[%s0 + $0x3a4] sm:$0xff]
  %v136 = vld [vmem:[%s0 + $0x3ac] sm:$0xff]
  %v137 = vld [vmem:[%s0 + $0x3b4] sm:$0xff]
  %v138 = vld [vmem:[%s0 + $0x3bc] sm:$0xff]
  %v139 = vld [vmem:[%s0 + $0x3c4] sm:$0xff]
  %v140 = vld [vmem:[%s0 + $0x3cc] sm:$0xff]
  %v141 = vld [vmem:[%s0 + $0x3d4] sm:$0xff]
  %v142 = vld [vmem:[%s0 + $0x3dc] sm:$0xff]
  %v143 = vld [vmem:[%s0 + $0x3e4] sm:$0xf]
  %v144 = vld [vmem:[%s0 + $0x3e8] sm:$0xff]
  %v145 = vld [vmem:[%s0 + $0x3f0] sm:$0xff]
  %v146 = vld [vmem:[%s0 + $0x3f8] sm:$0xff]
  %v147 = vld [vmem:[%s0 + $0x400] sm:$0xff]
  %v148 = vld [vmem:[%s0 + $0x408] sm:$0xff]
  %v149 = vld [vmem:[%s0 + $0x410] sm:$0xff]
  %v150 = vld [vmem:[%s0 + $0x418] sm:$0xff]
  %v151 = vld [vmem:[%s0 + $0x420] sm:$0xff]
  %v152 = vld [vmem:[%s0 + $0x428] sm:$0xff]
  %v153 = vld [vmem:[%s0 + $0x430] sm:$0xff]
  %v154 = vld [vmem:[%s0 + $0x438] sm:$0xff]
  %v155 = vld [vmem:[%s0 + $0x440] sm:$0xff]
  %v156 = vld [vmem:[%s0 + $0x448] sm:$0xf]
  %v157 = vld [vmem:[%s0 + $0x44c] sm:$0xff]
  %v158 = vld [vmem:[%s0 + $0x454] sm:$0xff]
  %v159 = vld [vmem:[%s0 + $0x45c] sm:$0xff]
  %v160 = vld [vmem:[%s0 + $0x464] sm:$0xff]
  %v161 = vld [vmem:[%s0 + $0x46c] sm:$0xff]
  %v162 = vld [vmem:[%s0 + $0x474] sm:$0xff]
  %v163 = vld [vmem:[%s0 + $0x47c] sm:$0xff]
  %v164 = vld [vmem:[%s0 + $0x484] sm:$0xff]
  %v165 = vld [vmem:[%s0 + $0x48c] sm:$0xff]
  %v166 = vld [vmem:[%s0 + $0x494] sm:$0xff]
  %v167 = vld [vmem:[%s0 + $0x49c] sm:$0xff]
  %v168 = vld [vmem:[%s0 + $0x4a4] sm:$0xff]
  %v169 = vld [vmem:[%s0 + $0x4ac] sm:$0xf]
  %v170 = vld [vmem:[%s0 + $0x4b0] sm:$0xff]
  %v171 = vld [vmem:[%s0 + $0x4b8] sm:$0xff]
  %v172 = vld [vmem:[%s0 + $0x4c0] sm:$0xff]
  %v173 = vld [vmem:[%s0 + $0x4c8] sm:$0xff]
  %v174 = vld [vmem:[%s0 + $0x4d0] sm:$0xff]
  %v175 = vld [vmem:[%s0 + $0x4d8] sm:$0xff]
  %v176 = vld [vmem:[%s0 + $0x4e0] sm:$0xff]
  %v177 = vld [vmem:[%s0 + $0x4e8] sm:$0xff]
  %v178 = vld [vmem:[%s0 + $0x4f0] sm:$0xff]
  %v179 = vld [vmem:[%s0 + $0x4f8] sm:$0xff]
  %v180 = vld [vmem:[%s0 + $0x500] sm:$0xff]
  %v181 = vld [vmem:[%s0 + $0x508] sm:$0xff]
  %v182 = vld [vmem:[%s0 + $0x510] sm:$0xf]
  %v183 = vld [vmem:[%s0 + $0x514] sm:$0xff]
  %v184 = vld [vmem:[%s0 + $0x51c] sm:$0xff]
  %v185 = vld [vmem:[%s0 + $0x524] sm:$0xff]
  %v186 = vld [vmem:[%s0 + $0x52c] sm:$0xff]
  %v187 = vld [vmem:[%s0 + $0x534] sm:$0xff]
  %v188 = vld [vmem:[%s0 + $0x53c] sm:$0xff]
  %v189 = vld [vmem:[%s0 + $0x544] sm:$0xff]
  %v190 = vld [vmem:[%s0 + $0x54c] sm:$0xff]
  %v191 = vld [vmem:[%s0 + $0x554] sm:$0xff]
  %v192 = vld [vmem:[%s0 + $0x55c] sm:$0xff]
  %v193 = vld [vmem:[%s0 + $0x564] sm:$0xff]
  %v194 = vld [vmem:[%s0 + $0x56c] sm:$0xff]
  %v195 = vld [vmem:[%s0 + $0x574] sm:$0xf]
  %v196 = vld [vmem:[%s0 + $0x578] sm:$0xff]
  %v197 = vld [vmem:[%s0 + $0x580] sm:$0xff]
  %v198 = vld [vmem:[%s0 + $0x588] sm:$0xff]
  %v199 = vld [vmem:[%s0 + $0x590] sm:$0xff]
  %v200 = vld [vmem:[%s0 + $0x598] sm:$0xff]
  %v201 = vld [vmem:[%s0 + $0x5a0] sm:$0xff]
  %v202 = vld [vmem:[%s0 + $0x5a8] sm:$0xff]
  %v203 = vld [vmem:[%s0 + $0x5b0] sm:$0xff]
  %v204 = vld [vmem:[%s0 + $0x5b8] sm:$0xff]
  %v205 = vld [vmem:[%s0 + $0x5c0] sm:$0xff]
  %v206 = vld [vmem:[%s0 + $0x5c8] sm:$0xff]
  %v207 = vld [vmem:[%s0 + $0x5d0] sm:$0xff]
  %v208 = vld [vmem:[%s0 + $0x5d8] sm:$0xf]
  %v209 = vld [vmem:[%s0 + $0x5dc] sm:$0xff]
  %v210 = vld [vmem:[%s0 + $0x5e4] sm:$0xff]
  %v211 = vld [vmem:[%s0 + $0x5ec] sm:$0xff]
  %v212 = vld [vmem:[%s0 + $0x5f4] sm:$0xff]
  %v213 = vld [vmem:[%s0 + $0x5fc] sm:$0xff]
  %v214 = vld [vmem:[%s0 + $0x604] sm:$0xff]
  %v215 = vld [vmem:[%s0 + $0x60c] sm:$0xff]
  %v216 = vld [vmem:[%s0 + $0x614] sm:$0xff]
  %v217 = vld [vmem:[%s0 + $0x61c] sm:$0xff]
  %v218 = vld [vmem:[%s0 + $0x624] sm:$0xff]
  %v219 = vld [vmem:[%s0 + $0x62c] sm:$0xff]
  %v220 = vld [vmem:[%s0 + $0x634] sm:$0xff]
  %v221 = vld [vmem:[%s0 + $0x63c] sm:$0xf]
  %v222 = vld [vmem:[%s0 + $0x640] sm:$0xff]
  %v223 = vld [vmem:[%s0 + $0x648] sm:$0xff]
  %v224 = vld [vmem:[%s0 + $0x650] sm:$0xff]
  %v225 = vld [vmem:[%s0 + $0x658] sm:$0xff]
  %v226 = vld [vmem:[%s0 + $0x660] sm:$0xff]
  %v227 = vld [vmem:[%s0 + $0x668] sm:$0xff]
  %v228 = vld [vmem:[%s0 + $0x670] sm:$0xff]
  %v229 = vld [vmem:[%s0 + $0x678] sm:$0xff]
  %v230 = vld [vmem:[%s0 + $0x680] sm:$0xff]
  %v231 = vld [vmem:[%s0 + $0x688] sm:$0xff]
  %v232 = vld [vmem:[%s0 + $0x690] sm:$0xff]
  %v233 = vld [vmem:[%s0 + $0x698] sm:$0xff]
  %v234 = vld [vmem:[%s0 + $0x6a0] sm:$0xf]
  %v235 = vld [vmem:[%s0 + $0x6a4] sm:$0xff]
  %v236 = vld [vmem:[%s0 + $0x6ac] sm:$0xff]
  %v237 = vld [vmem:[%s0 + $0x6b4] sm:$0xff]
  %v238 = vld [vmem:[%s0 + $0x6bc] sm:$0xff]
  %v239 = vld [vmem:[%s0 + $0x6c4] sm:$0xff]
  %v240 = vld [vmem:[%s0 + $0x6cc] sm:$0xff]
  %v241 = vld [vmem:[%s0 + $0x6d4] sm:$0xff]
  %v242 = vld [vmem:[%s0 + $0x6dc] sm:$0xff]
  %v243 = vld [vmem:[%s0 + $0x6e4] sm:$0xff]
  %v244 = vld [vmem:[%s0 + $0x6ec] sm:$0xff]
  %v245 = vld [vmem:[%s0 + $0x6f4] sm:$0xff]
  %v246 = vld [vmem:[%s0 + $0x6fc] sm:$0xff]
  %v247 = vld [vmem:[%s0 + $0x704] sm:$0xf]
  %v248 = vld [vmem:[%s0 + $0x708] sm:$0xff]
  %v249 = vld [vmem:[%s0 + $0x710] sm:$0xff]
  %v250 = vld [vmem:[%s0 + $0x718] sm:$0xff]
  %v251 = vld [vmem:[%s0 + $0x720] sm:$0xff]
  %v252 = vld [vmem:[%s0 + $0x728] sm:$0xff]
  %v253 = vld [vmem:[%s0 + $0x730] sm:$0xff]
  %v254 = vld [vmem:[%s0 + $0x738] sm:$0xff]
  %v255 = vld [vmem:[%s0 + $0x740] sm:$0xff]
  %v256 = vld [vmem:[%s0 + $0x748] sm:$0xff]
  %v257 = vld [vmem:[%s0 + $0x750] sm:$0xff]
  %v258 = vld [vmem:[%s0 + $0x758] sm:$0xff]
  %v259 = vld [vmem:[%s0 + $0x760] sm:$0xff]
  %v260 = vld [vmem:[%s0 + $0x768] sm:$0xf]
  %v261 = vld [vmem:[%s0 + $0x76c] sm:$0xff]
  %v262 = vld [vmem:[%s0 + $0x774] sm:$0xff]
  %v263 = vld [vmem:[%s0 + $0x77c] sm:$0xff]
  %v264 = vld [vmem:[%s0 + $0x784] sm:$0xff]
  %v265 = vld [vmem:[%s0 + $0x78c] sm:$0xff]
  %v266 = vld [vmem:[%s0 + $0x794] sm:$0xff]
  %v267 = vld [vmem:[%s0 + $0x79c] sm:$0xff]
  %v268 = vld [vmem:[%s0 + $0x7a4] sm:$0xff]
  %v269 = vld [vmem:[%s0 + $0x7ac] sm:$0xff]
  %v270 = vld [vmem:[%s0 + $0x7b4] sm:$0xff]
  %v271 = vld [vmem:[%s0 + $0x7bc] sm:$0xff]
  %v272 = vld [vmem:[%s0 + $0x7c4] sm:$0xff]
  %v273 = vld [vmem:[%s0 + $0x7cc] sm:$0xf]
  %v274 = vld [vmem:[%s0 + $0x7d0] sm:$0xff]
  %v275 = vld [vmem:[%s0 + $0x7d8] sm:$0xff]
  %v276 = vld [vmem:[%s0 + $0x7e0] sm:$0xff]
  %v277 = vld [vmem:[%s0 + $0x7e8] sm:$0xff]
  %v278 = vld [vmem:[%s0 + $0x7f0] sm:$0xff]
  %v279 = vld [vmem:[%s0 + $0x7f8] sm:$0xff]
  %v280 = vld [vmem:[%s0 + $0x800] sm:$0xff]
  %v281 = vld [vmem:[%s0 + $0x808] sm:$0xff]
  %v282 = vld [vmem:[%s0 + $0x810] sm:$0xff]
  %v283 = vld [vmem:[%s0 + $0x818] sm:$0xff]
  %v284 = vld [vmem:[%s0 + $0x820] sm:$0xff]
  %v285 = vld [vmem:[%s0 + $0x828] sm:$0xff]
  %v286 = vld [vmem:[%s0 + $0x830] sm:$0xf]
  %v287 = vld [vmem:[%s0 + $0x834] sm:$0xff]
  %v288 = vld [vmem:[%s0 + $0x83c] sm:$0xff]
  %v289 = vld [vmem:[%s0 + $0x844] sm:$0xff]
  %v290 = vld [vmem:[%s0 + $0x84c] sm:$0xff]
  %v291 = vld [vmem:[%s0 + $0x854] sm:$0xff]
  %v292 = vld [vmem:[%s0 + $0x85c] sm:$0xff]
  %v293 = vld [vmem:[%s0 + $0x864] sm:$0xff]
  %v294 = vld [vmem:[%s0 + $0x86c] sm:$0xff]
  %v295 = vld [vmem:[%s0 + $0x874] sm:$0xff]
  %v296 = vld [vmem:[%s0 + $0x87c] sm:$0xff]
  %v297 = vld [vmem:[%s0 + $0x884] sm:$0xff]
  %v298 = vld [vmem:[%s0 + $0x88c] sm:$0xff]
  %v299 = vld [vmem:[%s0 + $0x894] sm:$0xf]
  %v300 = vld [vmem:[%s0 + $0x898] sm:$0xff]
  %v301 = vld [vmem:[%s0 + $0x8a0] sm:$0xff]
  %v302 = vld [vmem:[%s0 + $0x8a8] sm:$0xff]
  %v303 = vld [vmem:[%s0 + $0x8b0] sm:$0xff]
  %v304 = vld [vmem:[%s0 + $0x8b8] sm:$0xff]
  %v305 = vld [vmem:[%s0 + $0x8c0] sm:$0xff]
  %v306 = vld [vmem:[%s0 + $0x8c8] sm:$0xff]
  %v307 = vld [vmem:[%s0 + $0x8d0] sm:$0xff]
  %v308 = vld [vmem:[%s0 + $0x8d8] sm:$0xff]
  %v309 = vld [vmem:[%s0 + $0x8e0] sm:$0xff]
  %v310 = vld [vmem:[%s0 + $0x8e8] sm:$0xff]
  %v311 = vld [vmem:[%s0 + $0x8f0] sm:$0xff]
  %v312 = vld [vmem:[%s0 + $0x8f8] sm:$0xf]
  %v313 = vld [vmem:[%s0 + $0x8fc] sm:$0xff]
  %v314 = vld [vmem:[%s0 + $0x904] sm:$0xff]
  %v315 = vld [vmem:[%s0 + $0x90c] sm:$0xff]
  %v316 = vld [vmem:[%s0 + $0x914] sm:$0xff]
  %v317 = vld [vmem:[%s0 + $0x91c] sm:$0xff]
  %v318 = vld [vmem:[%s0 + $0x924] sm:$0xff]
  %v319 = vld [vmem:[%s0 + $0x92c] sm:$0xff]
  %v320 = vld [vmem:[%s0 + $0x934] sm:$0xff]
  %v321 = vld [vmem:[%s0 + $0x93c] sm:$0xff]
  %v322 = vld [vmem:[%s0 + $0x944] sm:$0xff]
  %v323 = vld [vmem:[%s0 + $0x94c] sm:$0xff]
  %v324 = vld [vmem:[%s0 + $0x954] sm:$0xff]
  %v325 = vld [vmem:[%s0 + $0x95c] sm:$0xf]
  %v326 = vld [vmem:[%s0 + $0x960] sm:$0xff]
  %v327 = vld [vmem:[%s0 + $0x968] sm:$0xff]
  %v328 = vld [vmem:[%s0 + $0x970] sm:$0xff]
  %v329 = vld [vmem:[%s0 + $0x978] sm:$0xff]
  %v330 = vld [vmem:[%s0 + $0x980] sm:$0xff]
  %v331 = vld [vmem:[%s0 + $0x988] sm:$0xff]
  %v332 = vld [vmem:[%s0 + $0x990] sm:$0xff]
  %v333 = vld [vmem:[%s0 + $0x998] sm:$0xff]
  %v334 = vld [vmem:[%s0 + $0x9a0] sm:$0xff]
  %v335 = vld [vmem:[%s0 + $0x9a8] sm:$0xff]
  %v336 = vld [vmem:[%s0 + $0x9b0] sm:$0xff]
  %v337 = vld [vmem:[%s0 + $0x9b8] sm:$0xff]
  %v338 = vld [vmem:[%s0 + $0x9c0] sm:$0xf]
  %v339 = vld [vmem:[%s1] sm:$0xf]
  %v340 = vld [vmem:[%s1 + $0x4] sm:$0xf]
  %v341 = vld [vmem:[%s1 + $0x8] sm:$0xf]
  %v342 = vld [vmem:[%s1 + $0xc] sm:$0xf]
  %v343 = vld [vmem:[%s1 + $0x10] sm:$0xf]
  %v344 = vld [vmem:[%s1 + $0x14] sm:$0xf]
  %v345 = vld [vmem:[%s1 + $0x18] sm:$0xf]
  %v346 = vld [vmem:[%s1 + $0x1c] sm:$0xf]
  %v347 = vld [vmem:[%s1 + $0x20] sm:$0xf]
  %v348 = vld [vmem:[%s1 + $0x24] sm:$0xf]
  %v349 = vld [vmem:[%s1 + $0x28] sm:$0xf]
  %v350 = vld [vmem:[%s1 + $0x2c] sm:$0xf]
  %v351 = vld [vmem:[%s1 + $0x30] sm:$0xf]
  %v352 = vld [vmem:[%s1 + $0x34] sm:$0xf]
  %v353 = vld [vmem:[%s1 + $0x38] sm:$0xf]
  %v354 = vld [vmem:[%s1 + $0x3c] sm:$0xf]
  %v355 = vld [vmem:[%s1 + $0x40] sm:$0xf]
  %v356 = vld [vmem:[%s1 + $0x44] sm:$0xf]
  %v357 = vld [vmem:[%s1 + $0x48] sm:$0xf]
  %v358 = vld [vmem:[%s1 + $0x4c] sm:$0xf]
  %v359 = vld [vmem:[%s1 + $0x50] sm:$0xf]
  %v360 = vld [vmem:[%s1 + $0x54] sm:$0xf]
  %v361 = vld [vmem:[%s1 + $0x58] sm:$0xf]
  %v362 = vld [vmem:[%s1 + $0x5c] sm:$0xf]
  %v363 = vld [vmem:[%s1 + $0x60] sm:$0xf]
  %v364 = vld [vmem:[%s1 + $0x64] sm:$0xf]
  %v365 = vld [vmem:[%s1 + $0x68] sm:$0xf]
  %v366 = vld [vmem:[%s1 + $0x6c] sm:$0xf]
  %v367 = vld [vmem:[%s1 + $0x70] sm:$0xf]
  %v368 = vld [vmem:[%s1 + $0x74] sm:$0xf]
  %v369 = vld [vmem:[%s1 + $0x78] sm:$0xf]
  %v370 = vld [vmem:[%s1 + $0x7c] sm:$0xf]
  %v371 = vld [vmem:[%s1 + $0x80] sm:$0xf]
  %v372 = vld [vmem:[%s1 + $0x84] sm:$0xf]
  %v373 = vld [vmem:[%s1 + $0x88] sm:$0xf]
  %v374 = vld [vmem:[%s1 + $0x8c] sm:$0xf]
  %v375 = vld [vmem:[%s1 + $0x90] sm:$0xf]
  %v376 = vld [vmem:[%s1 + $0x94] sm:$0xf]
  %v377 = vld [vmem:[%s1 + $0x98] sm:$0xf]
  %v378 = vld [vmem:[%s1 + $0x9c] sm:$0xf]
  %v379 = vld [vmem:[%s1 + $0xa0] sm:$0xf]
  %v380 = vld [vmem:[%s1 + $0xa4] sm:$0xf]
  %v381 = vld [vmem:[%s1 + $0xa8] sm:$0xf]
  %v382 = vld [vmem:[%s1 + $0xac] sm:$0xf]
  %v383 = vld [vmem:[%s1 + $0xb0] sm:$0xf]
  %v384 = vld [vmem:[%s1 + $0xb4] sm:$0xf]
  %v385 = vld [vmem:[%s1 + $0xb8] sm:$0xf]
  %v386 = vld [vmem:[%s1 + $0xbc] sm:$0xf]
  %v387 = vld [vmem:[%s1 + $0xc0] sm:$0xf]
  %v388 = vld [vmem:[%s1 + $0xc4] sm:$0xf]
  %v389 = vld [vmem:[%s1 + $0xc8] sm:$0xf]
  %v390 = vld [vmem:[%s1 + $0xcc] sm:$0xf]
  %v391 = vld [vmem:[%s1 + $0xd0] sm:$0xf]
  %v392 = vld [vmem:[%s1 + $0xd4] sm:$0xf]
  %v393 = vld [vmem:[%s1 + $0xd8] sm:$0xf]
  %v394 = vld [vmem:[%s1 + $0xdc] sm:$0xf]
  %v395 = vld [vmem:[%s1 + $0xe0] sm:$0xf]
  %v396 = vld [vmem:[%s1 + $0xe4] sm:$0xf]
  %v397 = vld [vmem:[%s1 + $0xe8] sm:$0xf]
  %v398 = vld [vmem:[%s1 + $0xec] sm:$0xf]
  %v399 = vld [vmem:[%s1 + $0xf0] sm:$0xf]
  %v400 = vld [vmem:[%s1 + $0xf4] sm:$0xf]
  %v401 = vld [vmem:[%s1 + $0xf8] sm:$0xf]
  %v402 = vld [vmem:[%s1 + $0xfc] sm:$0xf]
  %v403 = vld [vmem:[%s1 + $0x100] sm:$0xf]
  %v404 = vld [vmem:[%s1 + $0x104] sm:$0xf]
  %v405 = vld [vmem:[%s1 + $0x108] sm:$0xf]
  %v406 = vld [vmem:[%s1 + $0x10c] sm:$0xf]
  %v407 = vld [vmem:[%s1 + $0x110] sm:$0xf]
  %v408 = vld [vmem:[%s1 + $0x114] sm:$0xf]
  %v409 = vld [vmem:[%s1 + $0x118] sm:$0xf]
  %v410 = vld [vmem:[%s1 + $0x11c] sm:$0xf]
  %v411 = vld [vmem:[%s1 + $0x120] sm:$0xf]
  %v412 = vld [vmem:[%s1 + $0x124] sm:$0xf]
  %v413 = vld [vmem:[%s1 + $0x128] sm:$0xf]
  %v414 = vld [vmem:[%s1 + $0x12c] sm:$0xf]
  %v415 = vld [vmem:[%s1 + $0x130] sm:$0xf]
  %v416 = vld [vmem:[%s1 + $0x134] sm:$0xf]
  %v417 = vld [vmem:[%s1 + $0x138] sm:$0xf]
  %v418 = vld [vmem:[%s1 + $0x13c] sm:$0xf]
  %v419 = vld [vmem:[%s1 + $0x140] sm:$0xf]
  %v420 = vld [vmem:[%s1 + $0x144] sm:$0xf]
  %v421 = vld [vmem:[%s1 + $0x148] sm:$0xf]
  %v422 = vld [vmem:[%s1 + $0x14c] sm:$0xf]
  %v423 = vld [vmem:[%s1 + $0x150] sm:$0xf]
  %v424 = vld [vmem:[%s1 + $0x154] sm:$0xf]
  %v425 = vld [vmem:[%s1 + $0x158] sm:$0xf]
  %v426 = vld [vmem:[%s1 + $0x15c] sm:$0xf]
  %v427 = vld [vmem:[%s1 + $0x160] sm:$0xf]
  %v428 = vld [vmem:[%s1 + $0x164] sm:$0xf]
  %v429 = vld [vmem:[%s1 + $0x168] sm:$0xf]
  %v430 = vld [vmem:[%s1 + $0x16c] sm:$0xf]
  %v431 = vld [vmem:[%s1 + $0x170] sm:$0xf]
  %v432 = vld [vmem:[%s1 + $0x174] sm:$0xf]
  %v433 = vld [vmem:[%s1 + $0x178] sm:$0xf]
  %v434 = vld [vmem:[%s1 + $0x17c] sm:$0xf]
  %v435 = vld [vmem:[%s1 + $0x180] sm:$0xf]
  %v436 = vld [vmem:[%s1 + $0x184] sm:$0xf]
  %v437 = vld [vmem:[%s1 + $0x188] sm:$0xf]
  %v438 = vld [vmem:[%s1 + $0x18c] sm:$0xf]
  %v439 = vld [vmem:[%s1 + $0x190] sm:$0xf]
  %v440 = vld [vmem:[%s1 + $0x194] sm:$0xf]
  %v441 = vld [vmem:[%s1 + $0x198] sm:$0xf]
  %v442 = vld [vmem:[%s1 + $0x19c] sm:$0xf]
  %v443 = vld [vmem:[%s1 + $0x1a0] sm:$0xf]
  %v444 = vld [vmem:[%s1 + $0x1a4] sm:$0xf]
  %v445 = vld [vmem:[%s1 + $0x1a8] sm:$0xf]
  %v446 = vld [vmem:[%s1 + $0x1ac] sm:$0xf]
  %v447 = vld [vmem:[%s1 + $0x1b0] sm:$0xf]
  %v448 = vld [vmem:[%s1 + $0x1b4] sm:$0xf]
  %v449 = vld [vmem:[%s1 + $0x1b8] sm:$0xf]
  %v450 = vld [vmem:[%s1 + $0x1bc] sm:$0xf]
  %v451 = vld [vmem:[%s1 + $0x1c0] sm:$0xf]
  %v452 = vld [vmem:[%s1 + $0x1c4] sm:$0xf]
  %v453 = vld [vmem:[%s1 + $0x1c8] sm:$0xf]
  %v454 = vld [vmem:[%s1 + $0x1cc] sm:$0xf]
  %v455 = vld [vmem:[%s1 + $0x1d0] sm:$0xf]
  %v456 = vld [vmem:[%s1 + $0x1d4] sm:$0xf]
  %v457 = vld [vmem:[%s1 + $0x1d8] sm:$0xf]
  %v458 = vld [vmem:[%s1 + $0x1dc] sm:$0xf]
  %v459 = vld [vmem:[%s1 + $0x1e0] sm:$0xf]
  %v460 = vld [vmem:[%s1 + $0x1e4] sm:$0xf]
  %v461 = vld [vmem:[%s1 + $0x1e8] sm:$0xf]
  %v462 = vld [vmem:[%s1 + $0x1ec] sm:$0xf]
  %v463 = vld [vmem:[%s1 + $0x1f0] sm:$0xf]
  %v464 = vld [vmem:[%s1 + $0x1f4] sm:$0xf]
  %v465 = vld [vmem:[%s1 + $0x1f8] sm:$0xf]
  %v466 = vld [vmem:[%s1 + $0x1fc] sm:$0xf]
  %v467 = vld [vmem:[%s1 + $0x200] sm:$0xf]
  %v468 = vld [vmem:[%s1 + $0x204] sm:$0xf]
  %v469 = vld [vmem:[%s1 + $0x208] sm:$0xf]
  %v470 = vld [vmem:[%s1 + $0x20c] sm:$0xf]
  %v471 = vld [vmem:[%s1 + $0x210] sm:$0xf]
  %v472 = vld [vmem:[%s1 + $0x214] sm:$0xf]
  %v473 = vld [vmem:[%s1 + $0x218] sm:$0xf]
  %v474 = vld [vmem:[%s1 + $0x21c] sm:$0xf]
  %v475 = vld [vmem:[%s1 + $0x220] sm:$0xf]
  %v476 = vld [vmem:[%s1 + $0x224] sm:$0xf]
  %v477 = vld [vmem:[%s1 + $0x228] sm:$0xf]
  %v478 = vld [vmem:[%s1 + $0x22c] sm:$0xf]
  %v479 = vld [vmem:[%s1 + $0x230] sm:$0xf]
  %v480 = vld [vmem:[%s1 + $0x234] sm:$0xf]
  %v481 = vld [vmem:[%s1 + $0x238] sm:$0xf]
  %v482 = vld [vmem:[%s1 + $0x23c] sm:$0xf]
  %v483 = vld [vmem:[%s1 + $0x240] sm:$0xf]
  %v484 = vld [vmem:[%s1 + $0x244] sm:$0xf]
  %v485 = vld [vmem:[%s1 + $0x248] sm:$0xf]
  %v486 = vld [vmem:[%s1 + $0x24c] sm:$0xf]
  %v487 = vld [vmem:[%s1 + $0x250] sm:$0xf]
  %v488 = vld [vmem:[%s1 + $0x254] sm:$0xf]
  %v489 = vld [vmem:[%s1 + $0x258] sm:$0xf]
  %v490 = vld [vmem:[%s1 + $0x25c] sm:$0xf]
  %v491 = vld [vmem:[%s1 + $0x260] sm:$0xf]
  %v492 = vld [vmem:[%s1 + $0x264] sm:$0xf]
  %v493 = vld [vmem:[%s1 + $0x268] sm:$0xf]
  %v494 = vld [vmem:[%s1 + $0x26c] sm:$0xf]
  %v495 = vld [vmem:[%s1 + $0x270] sm:$0xf]
  %v496 = vld [vmem:[%s1 + $0x274] sm:$0xf]
  %v497 = vld [vmem:[%s1 + $0x278] sm:$0xf]
  %v498 = vld [vmem:[%s1 + $0x27c] sm:$0xf]
  %v499 = vld [vmem:[%s1 + $0x280] sm:$0xf]
  %v500 = vld [vmem:[%s1 + $0x284] sm:$0xf]
  %v501 = vld [vmem:[%s1 + $0x288] sm:$0xf]
  %v502 = vld [vmem:[%s1 + $0x28c] sm:$0xf]
  %v503 = vld [vmem:[%s1 + $0x290] sm:$0xf]
  %v504 = vld [vmem:[%s1 + $0x294] sm:$0xf]
  %v505 = vld [vmem:[%s1 + $0x298] sm:$0xf]
  %v506 = vld [vmem:[%s1 + $0x29c] sm:$0xf]
  %v507 = vld [vmem:[%s1 + $0x2a0] sm:$0xf]
  %v508 = vld [vmem:[%s1 + $0x2a4] sm:$0xf]
  %v509 = vld [vmem:[%s1 + $0x2a8] sm:$0xf]
  %v510 = vld [vmem:[%s1 + $0x2ac] sm:$0xf]
  %v511 = vld [vmem:[%s1 + $0x2b0] sm:$0xf]
  %v512 = vld [vmem:[%s1 + $0x2b4] sm:$0xf]
  %v513 = vld [vmem:[%s1 + $0x2b8] sm:$0xf]
  %v514 = vld [vmem:[%s1 + $0x2bc] sm:$0xf]
  %v515 = vld [vmem:[%s1 + $0x2c0] sm:$0xf]
  %v516 = vld [vmem:[%s1 + $0x2c4] sm:$0xf]
  %v517 = vld [vmem:[%s1 + $0x2c8] sm:$0xf]
  %v518 = vld [vmem:[%s1 + $0x2cc] sm:$0xf]
  %v519 = vld [vmem:[%s1 + $0x2d0] sm:$0xf]
  %v520 = vld [vmem:[%s1 + $0x2d4] sm:$0xf]
  %v521 = vld [vmem:[%s1 + $0x2d8] sm:$0xf]
  %v522 = vld [vmem:[%s1 + $0x2dc] sm:$0xf]
  %v523 = vld [vmem:[%s1 + $0x2e0] sm:$0xf]
  %v524 = vld [vmem:[%s1 + $0x2e4] sm:$0xf]
  %v525 = vld [vmem:[%s1 + $0x2e8] sm:$0xf]
  %v526 = vld [vmem:[%s1 + $0x2ec] sm:$0xf]
  %v527 = vld [vmem:[%s1 + $0x2f0] sm:$0xf]
  %v528 = vld [vmem:[%s1 + $0x2f4] sm:$0xf]
  %v529 = vld [vmem:[%s1 + $0x2f8] sm:$0xf]
  %v530 = vld [vmem:[%s1 + $0x2fc] sm:$0xf]
  %v531 = vld [vmem:[%s1 + $0x300] sm:$0xf]
  %v532 = vld [vmem:[%s1 + $0x304] sm:$0xf]
  %v533 = vld [vmem:[%s1 + $0x308] sm:$0xf]
  %v534 = vld [vmem:[%s1 + $0x30c] sm:$0xf]
  %v535 = vld [vmem:[%s1 + $0x310] sm:$0xf]
  %v536 = vld [vmem:[%s1 + $0x314] sm:$0xf]
  %v537 = vld [vmem:[%s1 + $0x318] sm:$0xf]
  %v538 = vld [vmem:[%s1 + $0x31c] sm:$0xf]
  %v539 = vld [vmem:[%s1 + $0x320] sm:$0xf]
  %v540 = vld [vmem:[%s1 + $0x324] sm:$0xf]
  %v541 = vld [vmem:[%s1 + $0x328] sm:$0xf]
  %v542 = vld [vmem:[%s1 + $0x32c] sm:$0xf]
  %v543 = vld [vmem:[%s1 + $0x330] sm:$0xf]
  %v544 = vld [vmem:[%s1 + $0x334] sm:$0xf]
  %v545 = vld [vmem:[%s1 + $0x338] sm:$0xf]
  %v546 = vld [vmem:[%s1 + $0x33c] sm:$0xf]
  %v547 = vld [vmem:[%s1 + $0x340] sm:$0xf]
  %v548 = vld [vmem:[%s1 + $0x344] sm:$0xf]
  %v549 = vld [vmem:[%s1 + $0x348] sm:$0xf]
  %v550 = vld [vmem:[%s1 + $0x34c] sm:$0xf]
  %v551 = vld [vmem:[%s1 + $0x350] sm:$0xf]
  %v552 = vld [vmem:[%s1 + $0x354] sm:$0xf]
  %v553 = vld [vmem:[%s1 + $0x358] sm:$0xf]
  %v554 = vld [vmem:[%s1 + $0x35c] sm:$0xf]
  %v555 = vld [vmem:[%s1 + $0x360] sm:$0xf]
  %v556 = vld [vmem:[%s1 + $0x364] sm:$0xf]
  %v557 = vld [vmem:[%s1 + $0x368] sm:$0xf]
  %v558 = vld [vmem:[%s1 + $0x36c] sm:$0xf]
  %v559 = vld [vmem:[%s1 + $0x370] sm:$0xf]
  %v560 = vld [vmem:[%s1 + $0x374] sm:$0xf]
  %v561 = vld [vmem:[%s1 + $0x378] sm:$0xf]
  %v562 = vld [vmem:[%s1 + $0x37c] sm:$0xf]
  %v563 = vld [vmem:[%s1 + $0x380] sm:$0xf]
  %v564 = vld [vmem:[%s1 + $0x384] sm:$0xf]
  %v565 = vld [vmem:[%s1 + $0x388] sm:$0xf]
  %v566 = vld [vmem:[%s1 + $0x38c] sm:$0xf]
  %v567 = vld [vmem:[%s1 + $0x390] sm:$0xf]
  %v568 = vld [vmem:[%s1 + $0x394] sm:$0xf]
  %v569 = vld [vmem:[%s1 + $0x398] sm:$0xf]
  %v570 = vld [vmem:[%s1 + $0x39c] sm:$0xf]
  %v571 = vld [vmem:[%s1 + $0x3a0] sm:$0xf]
  %v572 = vld [vmem:[%s1 + $0x3a4] sm:$0xf]
  %v573 = vld [vmem:[%s1 + $0x3a8] sm:$0xf]
  %v574 = vld [vmem:[%s1 + $0x3ac] sm:$0xf]
  %v575 = vld [vmem:[%s1 + $0x3b0] sm:$0xf]
  %v576 = vld [vmem:[%s1 + $0x3b4] sm:$0xf]
  %v577 = vld [vmem:[%s1 + $0x3b8] sm:$0xf]
  %v578 = vld [vmem:[%s1 + $0x3bc] sm:$0xf]
  %v579 = vld [vmem:[%s1 + $0x3c0] sm:$0xf]
  %v580 = vld [vmem:[%s1 + $0x3c4] sm:$0xf]
  %v581 = vld [vmem:[%s1 + $0x3c8] sm:$0xf]
  %v582 = vld [vmem:[%s1 + $0x3cc] sm:$0xf]
  %v583 = vld [vmem:[%s1 + $0x3d0] sm:$0xf]
  %v584 = vld [vmem:[%s1 + $0x3d4] sm:$0xf]
  %v585 = vld [vmem:[%s1 + $0x3d8] sm:$0xf]
  %v586 = vld [vmem:[%s1 + $0x3dc] sm:$0xf]
  %v587 = vld [vmem:[%s1 + $0x3e0] sm:$0xf]
  %v588 = vld [vmem:[%s1 + $0x3e4] sm:$0xf]
  %v589 = vld [vmem:[%s1 + $0x3e8] sm:$0xf]
  %v590 = vld [vmem:[%s1 + $0x3ec] sm:$0xf]
  %v591 = vld [vmem:[%s1 + $0x3f0] sm:$0xf]
  %v592 = vld [vmem:[%s1 + $0x3f4] sm:$0xf]
  %v593 = vld [vmem:[%s1 + $0x3f8] sm:$0xf]
  %v594 = vld [vmem:[%s1 + $0x3fc] sm:$0xf]
  %v595 = vld [vmem:[%s1 + $0x400] sm:$0xf]
  %v596 = vld [vmem:[%s1 + $0x404] sm:$0xf]
  %v597 = vld [vmem:[%s1 + $0x408] sm:$0xf]
  %v598 = vld [vmem:[%s1 + $0x40c] sm:$0xf]
  %v599 = vld [vmem:[%s1 + $0x410] sm:$0xf]
  %v600 = vld [vmem:[%s1 + $0x414] sm:$0xf]
  %v601 = vld [vmem:[%s1 + $0x418] sm:$0xf]
  %v602 = vld [vmem:[%s1 + $0x41c] sm:$0xf]
  %v603 = vld [vmem:[%s1 + $0x420] sm:$0xf]
  %v604 = vld [vmem:[%s1 + $0x424] sm:$0xf]
  %v605 = vld [vmem:[%s1 + $0x428] sm:$0xf]
  %v606 = vld [vmem:[%s1 + $0x42c] sm:$0xf]
  %v607 = vld [vmem:[%s1 + $0x430] sm:$0xf]
  %v608 = vld [vmem:[%s1 + $0x434] sm:$0xf]
  %v609 = vld [vmem:[%s1 + $0x438] sm:$0xf]
  %v610 = vld [vmem:[%s1 + $0x43c] sm:$0xf]
  %v611 = vld [vmem:[%s1 + $0x440] sm:$0xf]
  %v612 = vld [vmem:[%s1 + $0x444] sm:$0xf]
  %v613 = vld [vmem:[%s1 + $0x448] sm:$0xf]
  %v614 = vld [vmem:[%s1 + $0x44c] sm:$0xf]
  %v615 = vld [vmem:[%s1 + $0x450] sm:$0xf]
  %v616 = vld [vmem:[%s1 + $0x454] sm:$0xf]
  %v617 = vld [vmem:[%s1 + $0x458] sm:$0xf]
  %v618 = vld [vmem:[%s1 + $0x45c] sm:$0xf]
  %v619 = vld [vmem:[%s1 + $0x460] sm:$0xf]
  %v620 = vld [vmem:[%s1 + $0x464] sm:$0xf]
  %v621 = vld [vmem:[%s1 + $0x468] sm:$0xf]
  %v622 = vld [vmem:[%s1 + $0x46c] sm:$0xf]
  %v623 = vld [vmem:[%s1 + $0x470] sm:$0xf]
  %v624 = vld [vmem:[%s1 + $0x474] sm:$0xf]
  %v625 = vld [vmem:[%s1 + $0x478] sm:$0xf]
  %v626 = vld [vmem:[%s1 + $0x47c] sm:$0xf]
  %v627 = vld [vmem:[%s1 + $0x480] sm:$0xf]
  %v628 = vld [vmem:[%s1 + $0x484] sm:$0xf]
  %v629 = vld [vmem:[%s1 + $0x488] sm:$0xf]
  %v630 = vld [vmem:[%s1 + $0x48c] sm:$0xf]
  %v631 = vld [vmem:[%s1 + $0x490] sm:$0xf]
  %v632 = vld [vmem:[%s1 + $0x494] sm:$0xf]
  %v633 = vld [vmem:[%s1 + $0x498] sm:$0xf]
  %v634 = vld [vmem:[%s1 + $0x49c] sm:$0xf]
  %v635 = vld [vmem:[%s1 + $0x4a0] sm:$0xf]
  %v636 = vld [vmem:[%s1 + $0x4a4] sm:$0xf]
  %v637 = vld [vmem:[%s1 + $0x4a8] sm:$0xf]
  %v638 = vld [vmem:[%s1 + $0x4ac] sm:$0xf]
  %v639 = vld [vmem:[%s1 + $0x4b0] sm:$0xf]
  %v640 = vld [vmem:[%s1 + $0x4b4] sm:$0xf]
  %v641 = vld [vmem:[%s1 + $0x4b8] sm:$0xf]
  %v642 = vld [vmem:[%s1 + $0x4bc] sm:$0xf]
  %v643 = vld [vmem:[%s1 + $0x4c0] sm:$0xf]
  %v644 = vld [vmem:[%s1 + $0x4c4] sm:$0xf]
  %v645 = vld [vmem:[%s1 + $0x4c8] sm:$0xf]
  %v646 = vld [vmem:[%s1 + $0x4cc] sm:$0xf]
  %v647 = vld [vmem:[%s1 + $0x4d0] sm:$0xf]
  %v648 = vld [vmem:[%s1 + $0x4d4] sm:$0xf]
  %v649 = vld [vmem:[%s1 + $0x4d8] sm:$0xf]
  %v650 = vld [vmem:[%s1 + $0x4dc] sm:$0xf]
  %v651 = vld [vmem:[%s1 + $0x4e0] sm:$0xf]
  %v652 = vld [vmem:[%s1 + $0x4e4] sm:$0xf]
  %v653 = vld [vmem:[%s1 + $0x4e8] sm:$0xf]
  %v654 = vld [vmem:[%s1 + $0x4ec] sm:$0xf]
  %v655 = vld [vmem:[%s1 + $0x4f0] sm:$0xf]
  %v656 = vld [vmem:[%s1 + $0x4f4] sm:$0xf]
  %v657 = vld [vmem:[%s1 + $0x4f8] sm:$0xf]
  %v658 = vld [vmem:[%s1 + $0x4fc] sm:$0xf]
  %v659 = vld [vmem:[%s1 + $0x500] sm:$0xf]
  %v660 = vld [vmem:[%s1 + $0x504] sm:$0xf]
  %v661 = vld [vmem:[%s1 + $0x508] sm:$0xf]
  %v662 = vld [vmem:[%s1 + $0x50c] sm:$0xf]
  %v663 = vld [vmem:[%s1 + $0x510] sm:$0xf]
  %v664 = vld [vmem:[%s1 + $0x514] sm:$0xf]
  %v665 = vld [vmem:[%s1 + $0x518] sm:$0xf]
  %v666 = vld [vmem:[%s1 + $0x51c] sm:$0xf]
  %v667 = vld [vmem:[%s1 + $0x520] sm:$0xf]
  %v668 = vld [vmem:[%s1 + $0x524] sm:$0xf]
  %v669 = vld [vmem:[%s1 + $0x528] sm:$0xf]
  %v670 = vld [vmem:[%s1 + $0x52c] sm:$0xf]
  %v671 = vld [vmem:[%s1 + $0x530] sm:$0xf]
  %v672 = vld [vmem:[%s1 + $0x534] sm:$0xf]
  %v673 = vld [vmem:[%s1 + $0x538] sm:$0xf]
  %v674 = vld [vmem:[%s1 + $0x53c] sm:$0xf]
  %v675 = vld [vmem:[%s1 + $0x540] sm:$0xf]
  %v676 = vld [vmem:[%s1 + $0x544] sm:$0xf]
  %v677 = vld [vmem:[%s1 + $0x548] sm:$0xf]
  %v678 = vld [vmem:[%s1 + $0x54c] sm:$0xf]
  %v679 = vld [vmem:[%s1 + $0x550] sm:$0xf]
  %v680 = vld [vmem:[%s1 + $0x554] sm:$0xf]
  %v681 = vld [vmem:[%s1 + $0x558] sm:$0xf]
  %v682 = vld [vmem:[%s1 + $0x55c] sm:$0xf]
  %v683 = vld [vmem:[%s1 + $0x560] sm:$0xf]
  %v684 = vld [vmem:[%s1 + $0x564] sm:$0xf]
  %v685 = vld [vmem:[%s1 + $0x568] sm:$0xf]
  %v686 = vld [vmem:[%s1 + $0x56c] sm:$0xf]
  %v687 = vld [vmem:[%s1 + $0x570] sm:$0xf]
  %v688 = vld [vmem:[%s1 + $0x574] sm:$0xf]
  %v689 = vld [vmem:[%s1 + $0x578] sm:$0xf]
  %v690 = vld [vmem:[%s1 + $0x57c] sm:$0xf]
  %v691 = vld [vmem:[%s1 + $0x580] sm:$0xf]
  %v692 = vld [vmem:[%s1 + $0x584] sm:$0xf]
  %v693 = vld [vmem:[%s1 + $0x588] sm:$0xf]
  %v694 = vld [vmem:[%s1 + $0x58c] sm:$0xf]
  %v695 = vld [vmem:[%s1 + $0x590] sm:$0xf]
  %v696 = vld [vmem:[%s1 + $0x594] sm:$0xf]
  %v697 = vld [vmem:[%s1 + $0x598] sm:$0xf]
  %v698 = vld [vmem:[%s1 + $0x59c] sm:$0xf]
  %v699 = vld [vmem:[%s1 + $0x5a0] sm:$0xf]
  %v700 = vld [vmem:[%s1 + $0x5a4] sm:$0xf]
  %v701 = vld [vmem:[%s1 + $0x5a8] sm:$0xf]
  %v702 = vld [vmem:[%s1 + $0x5ac] sm:$0xf]
  %v703 = vld [vmem:[%s1 + $0x5b0] sm:$0xf]
  %v704 = vld [vmem:[%s1 + $0x5b4] sm:$0xf]
  %v705 = vld [vmem:[%s1 + $0x5b8] sm:$0xf]
  %v706 = vld [vmem:[%s1 + $0x5bc] sm:$0xf]
  %v707 = vld [vmem:[%s1 + $0x5c0] sm:$0xf]
  %v708 = vld [vmem:[%s1 + $0x5c4] sm:$0xf]
  %v709 = vld [vmem:[%s1 + $0x5c8] sm:$0xf]
  %v710 = vld [vmem:[%s1 + $0x5cc] sm:$0xf]
  %v711 = vld [vmem:[%s1 + $0x5d0] sm:$0xf]
  %v712 = vld [vmem:[%s1 + $0x5d4] sm:$0xf]
  %v713 = vld [vmem:[%s1 + $0x5d8] sm:$0xf]
  %v714 = vld [vmem:[%s1 + $0x5dc] sm:$0xf]
  %v715 = vld [vmem:[%s1 + $0x5e0] sm:$0xf]
  %v716 = vld [vmem:[%s1 + $0x5e4] sm:$0xf]
  %v717 = vld [vmem:[%s1 + $0x5e8] sm:$0xf]
  %v718 = vld [vmem:[%s1 + $0x5ec] sm:$0xf]
  %v719 = vld [vmem:[%s1 + $0x5f0] sm:$0xf]
  %v720 = vld [vmem:[%s1 + $0x5f4] sm:$0xf]
  %v721 = vld [vmem:[%s1 + $0x5f8] sm:$0xf]
  %v722 = vld [vmem:[%s1 + $0x5fc] sm:$0xf]
  %v723 = vld [vmem:[%s1 + $0x600] sm:$0xf]
  %v724 = vld [vmem:[%s1 + $0x604] sm:$0xf]
  %v725 = vld [vmem:[%s1 + $0x608] sm:$0xf]
  %v726 = vld [vmem:[%s1 + $0x60c] sm:$0xf]
  %v727 = vld [vmem:[%s1 + $0x610] sm:$0xf]
  %v728 = vld [vmem:[%s1 + $0x614] sm:$0xf]
  %v729 = vld [vmem:[%s1 + $0x618] sm:$0xf]
  %v730 = vld [vmem:[%s1 + $0x61c] sm:$0xf]
  %v731 = vld [vmem:[%s1 + $0x620] sm:$0xf]
  %v732 = vld [vmem:[%s1 + $0x624] sm:$0xf]
  %v733 = vld [vmem:[%s1 + $0x628] sm:$0xf]
  %v734 = vld [vmem:[%s1 + $0x62c] sm:$0xf]
  %v735 = vld [vmem:[%s1 + $0x630] sm:$0xf]
  %v736 = vld [vmem:[%s1 + $0x634] sm:$0xf]
  %v737 = vld [vmem:[%s1 + $0x638] sm:$0xf]
  %v738 = vld [vmem:[%s1 + $0x63c] sm:$0xf]
  %v739 = vld [vmem:[%s2] sm:$0x1]
  %v741 = vperm.slane %v739, 0
  %v1068 = vunpack.c.l.b16 %v14
  %v1069 = vunpack.c.h.b16 %v14
  %v1070 = vunpack.c.l.b16 %v15
  %v1071 = vunpack.c.h.b16 %v15
  %v1072 = vunpack.c.l.b16 %v16
  %v1073 = vunpack.c.h.b16 %v16
  %v1074 = vunpack.c.l.b16 %v17
  %v1075 = vunpack.c.h.b16 %v17
  %v1076 = vunpack.c.l.b16 %v18
  %v1077 = vunpack.c.h.b16 %v18
  %v1078 = vunpack.c.l.b16 %v19
  %v1079 = vunpack.c.h.b16 %v19
  %v1080 = vunpack.c.l.b16 %v20
  %v1081 = vunpack.c.h.b16 %v20
  %v1082 = vunpack.c.l.b16 %v21
  %v1083 = vunpack.c.h.b16 %v21
  %v1084 = vunpack.c.l.b16 %v22
  %v1085 = vunpack.c.h.b16 %v22
  %v1086 = vunpack.c.l.b16 %v23
  %v1087 = vunpack.c.h.b16 %v23
  %v1088 = vunpack.c.l.b16 %v24
  %v1089 = vunpack.c.h.b16 %v24
  %v1090 = vunpack.c.l.b16 %v25
  %v1091 = vunpack.c.h.b16 %v25
  %v1092 = vunpack.c.l.b16 %v26
  %v1093 = vunpack.c.l.b16 %v27
  %v1094 = vunpack.c.h.b16 %v27
  %v1095 = vunpack.c.l.b16 %v28
  %v1096 = vunpack.c.h.b16 %v28
  %v1097 = vunpack.c.l.b16 %v29
  %v1098 = vunpack.c.h.b16 %v29
  %v1099 = vunpack.c.l.b16 %v30
  %v1100 = vunpack.c.h.b16 %v30
  %v1101 = vunpack.c.l.b16 %v31
  %v1102 = vunpack.c.h.b16 %v31
  %v1103 = vunpack.c.l.b16 %v32
  %v1104 = vunpack.c.h.b16 %v32
  %v1105 = vunpack.c.l.b16 %v33
  %v1106 = vunpack.c.h.b16 %v33
  %v1107 = vunpack.c.l.b16 %v34
  %v1108 = vunpack.c.h.b16 %v34
  %v1109 = vunpack.c.l.b16 %v35
  %v1110 = vunpack.c.h.b16 %v35
  %v1111 = vunpack.c.l.b16 %v36
  %v1112 = vunpack.c.h.b16 %v36
  %v1113 = vunpack.c.l.b16 %v37
  %v1114 = vunpack.c.h.b16 %v37
  %v1115 = vunpack.c.l.b16 %v38
  %v1116 = vunpack.c.h.b16 %v38
  %v1117 = vunpack.c.l.b16 %v39
  %v1118 = vunpack.c.l.b16 %v40
  %v1119 = vunpack.c.h.b16 %v40
  %v1120 = vunpack.c.l.b16 %v41
  %v1121 = vunpack.c.h.b16 %v41
  %v1122 = vunpack.c.l.b16 %v42
  %v1123 = vunpack.c.h.b16 %v42
  %v1124 = vunpack.c.l.b16 %v43
  %v1125 = vunpack.c.h.b16 %v43
  %v1126 = vunpack.c.l.b16 %v44
  %v1127 = vunpack.c.h.b16 %v44
  %v1128 = vunpack.c.l.b16 %v45
  %v1129 = vunpack.c.h.b16 %v45
  %v1130 = vunpack.c.l.b16 %v46
  %v1131 = vunpack.c.h.b16 %v46
  %v1132 = vunpack.c.l.b16 %v47
  %v1133 = vunpack.c.h.b16 %v47
  %v1134 = vunpack.c.l.b16 %v48
  %v1135 = vunpack.c.h.b16 %v48
  %v1136 = vunpack.c.l.b16 %v49
  %v1137 = vunpack.c.h.b16 %v49
  %v1138 = vunpack.c.l.b16 %v50
  %v1139 = vunpack.c.h.b16 %v50
  %v1140 = vunpack.c.l.b16 %v51
  %v1141 = vunpack.c.h.b16 %v51
  %v1142 = vunpack.c.l.b16 %v52
  %v1143 = vunpack.c.l.b16 %v53
  %v1144 = vunpack.c.h.b16 %v53
  %v1145 = vunpack.c.l.b16 %v54
  %v1146 = vunpack.c.h.b16 %v54
  %v1147 = vunpack.c.l.b16 %v55
  %v1148 = vunpack.c.h.b16 %v55
  %v1149 = vunpack.c.l.b16 %v56
  %v1150 = vunpack.c.h.b16 %v56
  %v1151 = vunpack.c.l.b16 %v57
  %v1152 = vunpack.c.h.b16 %v57
  %v1153 = vunpack.c.l.b16 %v58
  %v1154 = vunpack.c.h.b16 %v58
  %v1155 = vunpack.c.l.b16 %v59
  %v1156 = vunpack.c.h.b16 %v59
  %v1157 = vunpack.c.l.b16 %v60
  %v1158 = vunpack.c.h.b16 %v60
  %v1159 = vunpack.c.l.b16 %v61
  %v1160 = vunpack.c.h.b16 %v61
  %v1161 = vunpack.c.l.b16 %v62
  %v1162 = vunpack.c.h.b16 %v62
  %v1163 = vunpack.c.l.b16 %v63
  %v1164 = vunpack.c.h.b16 %v63
  %v1165 = vunpack.c.l.b16 %v64
  %v1166 = vunpack.c.h.b16 %v64
  %v1167 = vunpack.c.l.b16 %v65
  %v1168 = vunpack.c.l.b16 %v66
  %v1169 = vunpack.c.h.b16 %v66
  %v1170 = vunpack.c.l.b16 %v67
  %v1171 = vunpack.c.h.b16 %v67
  %v1172 = vunpack.c.l.b16 %v68
  %v1173 = vunpack.c.h.b16 %v68
  %v1174 = vunpack.c.l.b16 %v69
  %v1175 = vunpack.c.h.b16 %v69
  %v1176 = vunpack.c.l.b16 %v70
  %v1177 = vunpack.c.h.b16 %v70
  %v1178 = vunpack.c.l.b16 %v71
  %v1179 = vunpack.c.h.b16 %v71
  %v1180 = vunpack.c.l.b16 %v72
  %v1181 = vunpack.c.h.b16 %v72
  %v1182 = vunpack.c.l.b16 %v73
  %v1183 = vunpack.c.h.b16 %v73
  %v1184 = vunpack.c.l.b16 %v74
  %v1185 = vunpack.c.h.b16 %v74
  %v1186 = vunpack.c.l.b16 %v75
  %v1187 = vunpack.c.h.b16 %v75
  %v1188 = vunpack.c.l.b16 %v76
  %v1189 = vunpack.c.h.b16 %v76
  %v1190 = vunpack.c.l.b16 %v77
  %v1191 = vunpack.c.h.b16 %v77
  %v1192 = vunpack.c.l.b16 %v78
  %v1193 = vunpack.c.l.b16 %v79
  %v1194 = vunpack.c.h.b16 %v79
  %v1195 = vunpack.c.l.b16 %v80
  %v1196 = vunpack.c.h.b16 %v80
  %v1197 = vunpack.c.l.b16 %v81
  %v1198 = vunpack.c.h.b16 %v81
  %v1199 = vunpack.c.l.b16 %v82
  %v1200 = vunpack.c.h.b16 %v82
  %v1201 = vunpack.c.l.b16 %v83
  %v1202 = vunpack.c.h.b16 %v83
  %v1203 = vunpack.c.l.b16 %v84
  %v1204 = vunpack.c.h.b16 %v84
  %v1205 = vunpack.c.l.b16 %v85
  %v1206 = vunpack.c.h.b16 %v85
  %v1207 = vunpack.c.l.b16 %v86
  %v1208 = vunpack.c.h.b16 %v86
  %v1209 = vunpack.c.l.b16 %v87
  %v1210 = vunpack.c.h.b16 %v87
  %v1211 = vunpack.c.l.b16 %v88
  %v1212 = vunpack.c.h.b16 %v88
  %v1213 = vunpack.c.l.b16 %v89
  %v1214 = vunpack.c.h.b16 %v89
  %v1215 = vunpack.c.l.b16 %v90
  %v1216 = vunpack.c.h.b16 %v90
  %v1217 = vunpack.c.l.b16 %v91
  %v1218 = vunpack.c.l.b16 %v92
  %v1219 = vunpack.c.h.b16 %v92
  %v1220 = vunpack.c.l.b16 %v93
  %v1221 = vunpack.c.h.b16 %v93
  %v1222 = vunpack.c.l.b16 %v94
  %v1223 = vunpack.c.h.b16 %v94
  %v1224 = vunpack.c.l.b16 %v95
  %v1225 = vunpack.c.h.b16 %v95
  %v1226 = vunpack.c.l.b16 %v96
  %v1227 = vunpack.c.h.b16 %v96
  %v1228 = vunpack.c.l.b16 %v97
  %v1229 = vunpack.c.h.b16 %v97
  %v1230 = vunpack.c.l.b16 %v98
  %v1231 = vunpack.c.h.b16 %v98
  %v1232 = vunpack.c.l.b16 %v99
  %v1233 = vunpack.c.h.b16 %v99
  %v1234 = vunpack.c.l.b16 %v100
  %v1235 = vunpack.c.h.b16 %v100
  %v1236 = vunpack.c.l.b16 %v101
  %v1237 = vunpack.c.h.b16 %v101
  %v1238 = vunpack.c.l.b16 %v102
  %v1239 = vunpack.c.h.b16 %v102
  %v1240 = vunpack.c.l.b16 %v103
  %v1241 = vunpack.c.h.b16 %v103
  %v1242 = vunpack.c.l.b16 %v104
  %v1243 = vunpack.c.l.b16 %v105
  %v1244 = vunpack.c.h.b16 %v105
  %v1245 = vunpack.c.l.b16 %v106
  %v1246 = vunpack.c.h.b16 %v106
  %v1247 = vunpack.c.l.b16 %v107
  %v1248 = vunpack.c.h.b16 %v107
  %v1249 = vunpack.c.l.b16 %v108
  %v1250 = vunpack.c.h.b16 %v108
  %v1251 = vunpack.c.l.b16 %v109
  %v1252 = vunpack.c.h.b16 %v109
  %v1253 = vunpack.c.l.b16 %v110
  %v1254 = vunpack.c.h.b16 %v110
  %v1255 = vunpack.c.l.b16 %v111
  %v1256 = vunpack.c.h.b16 %v111
  %v1257 = vunpack.c.l.b16 %v112
  %v1258 = vunpack.c.h.b16 %v112
  %v1259 = vunpack.c.l.b16 %v113
  %v1260 = vunpack.c.h.b16 %v113
  %v1261 = vunpack.c.l.b16 %v114
  %v1262 = vunpack.c.h.b16 %v114
  %v1263 = vunpack.c.l.b16 %v115
  %v1264 = vunpack.c.h.b16 %v115
  %v1265 = vunpack.c.l.b16 %v116
  %v1266 = vunpack.c.h.b16 %v116
  %v1267 = vunpack.c.l.b16 %v117
  %v1268 = vunpack.c.l.b16 %v118
  %v1269 = vunpack.c.h.b16 %v118
  %v1270 = vunpack.c.l.b16 %v119
  %v1271 = vunpack.c.h.b16 %v119
  %v1272 = vunpack.c.l.b16 %v120
  %v1273 = vunpack.c.h.b16 %v120
  %v1274 = vunpack.c.l.b16 %v121
  %v1275 = vunpack.c.h.b16 %v121
  %v1276 = vunpack.c.l.b16 %v122
  %v1277 = vunpack.c.h.b16 %v122
  %v1278 = vunpack.c.l.b16 %v123
  %v1279 = vunpack.c.h.b16 %v123
  %v1280 = vunpack.c.l.b16 %v124
  %v1281 = vunpack.c.h.b16 %v124
  %v1282 = vunpack.c.l.b16 %v125
  %v1283 = vunpack.c.h.b16 %v125
  %v1284 = vunpack.c.l.b16 %v126
  %v1285 = vunpack.c.h.b16 %v126
  %v1286 = vunpack.c.l.b16 %v127
  %v1287 = vunpack.c.h.b16 %v127
  %v1288 = vunpack.c.l.b16 %v128
  %v1289 = vunpack.c.h.b16 %v128
  %v1290 = vunpack.c.l.b16 %v129
  %v1291 = vunpack.c.h.b16 %v129
  %v1292 = vunpack.c.l.b16 %v130
  %v1293 = vunpack.c.l.b16 %v131
  %v1294 = vunpack.c.h.b16 %v131
  %v1295 = vunpack.c.l.b16 %v132
  %v1296 = vunpack.c.h.b16 %v132
  %v1297 = vunpack.c.l.b16 %v133
  %v1298 = vunpack.c.h.b16 %v133
  %v1299 = vunpack.c.l.b16 %v134
  %v1300 = vunpack.c.h.b16 %v134
  %v1301 = vunpack.c.l.b16 %v135
  %v1302 = vunpack.c.h.b16 %v135
  %v1303 = vunpack.c.l.b16 %v136
  %v1304 = vunpack.c.h.b16 %v136
  %v1305 = vunpack.c.l.b16 %v137
  %v1306 = vunpack.c.h.b16 %v137
  %v1307 = vunpack.c.l.b16 %v138
  %v1308 = vunpack.c.h.b16 %v138
  %v1309 = vunpack.c.l.b16 %v139
  %v1310 = vunpack.c.h.b16 %v139
  %v1311 = vunpack.c.l.b16 %v140
  %v1312 = vunpack.c.h.b16 %v140
  %v1313 = vunpack.c.l.b16 %v141
  %v1314 = vunpack.c.h.b16 %v141
  %v1315 = vunpack.c.l.b16 %v142
  %v1316 = vunpack.c.h.b16 %v142
  %v1317 = vunpack.c.l.b16 %v143
  %v1318 = vunpack.c.l.b16 %v144
  %v1319 = vunpack.c.h.b16 %v144
  %v1320 = vunpack.c.l.b16 %v145
  %v1321 = vunpack.c.h.b16 %v145
  %v1322 = vunpack.c.l.b16 %v146
  %v1323 = vunpack.c.h.b16 %v146
  %v1324 = vunpack.c.l.b16 %v147
  %v1325 = vunpack.c.h.b16 %v147
  %v1326 = vunpack.c.l.b16 %v148
  %v1327 = vunpack.c.h.b16 %v148
  %v1328 = vunpack.c.l.b16 %v149
  %v1329 = vunpack.c.h.b16 %v149
  %v1330 = vunpack.c.l.b16 %v150
  %v1331 = vunpack.c.h.b16 %v150
  %v1332 = vunpack.c.l.b16 %v151
  %v1333 = vunpack.c.h.b16 %v151
  %v1334 = vunpack.c.l.b16 %v152
  %v1335 = vunpack.c.h.b16 %v152
  %v1336 = vunpack.c.l.b16 %v153
  %v1337 = vunpack.c.h.b16 %v153
  %v1338 = vunpack.c.l.b16 %v154
  %v1339 = vunpack.c.h.b16 %v154
  %v1340 = vunpack.c.l.b16 %v155
  %v1341 = vunpack.c.h.b16 %v155
  %v1342 = vunpack.c.l.b16 %v156
  %v1343 = vunpack.c.l.b16 %v157
  %v1344 = vunpack.c.h.b16 %v157
  %v1345 = vunpack.c.l.b16 %v158
  %v1346 = vunpack.c.h.b16 %v158
  %v1347 = vunpack.c.l.b16 %v159
  %v1348 = vunpack.c.h.b16 %v159
  %v1349 = vunpack.c.l.b16 %v160
  %v1350 = vunpack.c.h.b16 %v160
  %v1351 = vunpack.c.l.b16 %v161
  %v1352 = vunpack.c.h.b16 %v161
  %v1353 = vunpack.c.l.b16 %v162
  %v1354 = vunpack.c.h.b16 %v162
  %v1355 = vunpack.c.l.b16 %v163
  %v1356 = vunpack.c.h.b16 %v163
  %v1357 = vunpack.c.l.b16 %v164
  %v1358 = vunpack.c.h.b16 %v164
  %v1359 = vunpack.c.l.b16 %v165
  %v1360 = vunpack.c.h.b16 %v165
  %v1361 = vunpack.c.l.b16 %v166
  %v1362 = vunpack.c.h.b16 %v166
  %v1363 = vunpack.c.l.b16 %v167
  %v1364 = vunpack.c.h.b16 %v167
  %v1365 = vunpack.c.l.b16 %v168
  %v1366 = vunpack.c.h.b16 %v168
  %v1367 = vunpack.c.l.b16 %v169
  %v1368 = vunpack.c.l.b16 %v170
  %v1369 = vunpack.c.h.b16 %v170
  %v1370 = vunpack.c.l.b16 %v171
  %v1371 = vunpack.c.h.b16 %v171
  %v1372 = vunpack.c.l.b16 %v172
  %v1373 = vunpack.c.h.b16 %v172
  %v1374 = vunpack.c.l.b16 %v173
  %v1375 = vunpack.c.h.b16 %v173
  %v1376 = vunpack.c.l.b16 %v174
  %v1377 = vunpack.c.h.b16 %v174
  %v1378 = vunpack.c.l.b16 %v175
  %v1379 = vunpack.c.h.b16 %v175
  %v1380 = vunpack.c.l.b16 %v176
  %v1381 = vunpack.c.h.b16 %v176
  %v1382 = vunpack.c.l.b16 %v177
  %v1383 = vunpack.c.h.b16 %v177
  %v1384 = vunpack.c.l.b16 %v178
  %v1385 = vunpack.c.h.b16 %v178
  %v1386 = vunpack.c.l.b16 %v179
  %v1387 = vunpack.c.h.b16 %v179
  %v1388 = vunpack.c.l.b16 %v180
  %v1389 = vunpack.c.h.b16 %v180
  %v1390 = vunpack.c.l.b16 %v181
  %v1391 = vunpack.c.h.b16 %v181
  %v1392 = vunpack.c.l.b16 %v182
  %v1393 = vunpack.c.l.b16 %v183
  %v1394 = vunpack.c.h.b16 %v183
  %v1395 = vunpack.c.l.b16 %v184
  %v1396 = vunpack.c.h.b16 %v184
  %v1397 = vunpack.c.l.b16 %v185
  %v1398 = vunpack.c.h.b16 %v185
  %v1399 = vunpack.c.l.b16 %v186
  %v1400 = vunpack.c.h.b16 %v186
  %v1401 = vunpack.c.l.b16 %v187
  %v1402 = vunpack.c.h.b16 %v187
  %v1403 = vunpack.c.l.b16 %v188
  %v1404 = vunpack.c.h.b16 %v188
  %v1405 = vunpack.c.l.b16 %v189
  %v1406 = vunpack.c.h.b16 %v189
  %v1407 = vunpack.c.l.b16 %v190
  %v1408 = vunpack.c.h.b16 %v190
  %v1409 = vunpack.c.l.b16 %v191
  %v1410 = vunpack.c.h.b16 %v191
  %v1411 = vunpack.c.l.b16 %v192
  %v1412 = vunpack.c.h.b16 %v192
  %v1413 = vunpack.c.l.b16 %v193
  %v1414 = vunpack.c.h.b16 %v193
  %v1415 = vunpack.c.l.b16 %v194
  %v1416 = vunpack.c.h.b16 %v194
  %v1417 = vunpack.c.l.b16 %v195
  %v1418 = vunpack.c.l.b16 %v196
  %v1419 = vunpack.c.h.b16 %v196
  %v1420 = vunpack.c.l.b16 %v197
  %v1421 = vunpack.c.h.b16 %v197
  %v1422 = vunpack.c.l.b16 %v198
  %v1423 = vunpack.c.h.b16 %v198
  %v1424 = vunpack.c.l.b16 %v199
  %v1425 = vunpack.c.h.b16 %v199
  %v1426 = vunpack.c.l.b16 %v200
  %v1427 = vunpack.c.h.b16 %v200
  %v1428 = vunpack.c.l.b16 %v201
  %v1429 = vunpack.c.h.b16 %v201
  %v1430 = vunpack.c.l.b16 %v202
  %v1431 = vunpack.c.h.b16 %v202
  %v1432 = vunpack.c.l.b16 %v203
  %v1433 = vunpack.c.h.b16 %v203
  %v1434 = vunpack.c.l.b16 %v204
  %v1435 = vunpack.c.h.b16 %v204
  %v1436 = vunpack.c.l.b16 %v205
  %v1437 = vunpack.c.h.b16 %v205
  %v1438 = vunpack.c.l.b16 %v206
  %v1439 = vunpack.c.h.b16 %v206
  %v1440 = vunpack.c.l.b16 %v207
  %v1441 = vunpack.c.h.b16 %v207
  %v1442 = vunpack.c.l.b16 %v208
  %v1443 = vunpack.c.l.b16 %v209
  %v1444 = vunpack.c.h.b16 %v209
  %v1445 = vunpack.c.l.b16 %v210
  %v1446 = vunpack.c.h.b16 %v210
  %v1447 = vunpack.c.l.b16 %v211
  %v1448 = vunpack.c.h.b16 %v211
  %v1449 = vunpack.c.l.b16 %v212
  %v1450 = vunpack.c.h.b16 %v212
  %v1451 = vunpack.c.l.b16 %v213
  %v1452 = vunpack.c.h.b16 %v213
  %v1453 = vunpack.c.l.b16 %v214
  %v1454 = vunpack.c.h.b16 %v214
  %v1455 = vunpack.c.l.b16 %v215
  %v1456 = vunpack.c.h.b16 %v215
  %v1457 = vunpack.c.l.b16 %v216
  %v1458 = vunpack.c.h.b16 %v216
  %v1459 = vunpack.c.l.b16 %v217
  %v1460 = vunpack.c.h.b16 %v217
  %v1461 = vunpack.c.l.b16 %v218
  %v1462 = vunpack.c.h.b16 %v218
  %v1463 = vunpack.c.l.b16 %v219
  %v1464 = vunpack.c.h.b16 %v219
  %v1465 = vunpack.c.l.b16 %v220
  %v1466 = vunpack.c.h.b16 %v220
  %v1467 = vunpack.c.l.b16 %v221
  %v1468 = vunpack.c.l.b16 %v222
  %v1469 = vunpack.c.h.b16 %v222
  %v1470 = vunpack.c.l.b16 %v223
  %v1471 = vunpack.c.h.b16 %v223
  %v1472 = vunpack.c.l.b16 %v224
  %v1473 = vunpack.c.h.b16 %v224
  %v1474 = vunpack.c.l.b16 %v225
  %v1475 = vunpack.c.h.b16 %v225
  %v1476 = vunpack.c.l.b16 %v226
  %v1477 = vunpack.c.h.b16 %v226
  %v1478 = vunpack.c.l.b16 %v227
  %v1479 = vunpack.c.h.b16 %v227
  %v1480 = vunpack.c.l.b16 %v228
  %v1481 = vunpack.c.h.b16 %v228
  %v1482 = vunpack.c.l.b16 %v229
  %v1483 = vunpack.c.h.b16 %v229
  %v1484 = vunpack.c.l.b16 %v230
  %v1485 = vunpack.c.h.b16 %v230
  %v1486 = vunpack.c.l.b16 %v231
  %v1487 = vunpack.c.h.b16 %v231
  %v1488 = vunpack.c.l.b16 %v232
  %v1489 = vunpack.c.h.b16 %v232
  %v1490 = vunpack.c.l.b16 %v233
  %v1491 = vunpack.c.h.b16 %v233
  %v1492 = vunpack.c.l.b16 %v234
  %v1493 = vunpack.c.l.b16 %v235
  %v1494 = vunpack.c.h.b16 %v235
  %v1495 = vunpack.c.l.b16 %v236
  %v1496 = vunpack.c.h.b16 %v236
  %v1497 = vunpack.c.l.b16 %v237
  %v1498 = vunpack.c.h.b16 %v237
  %v1499 = vunpack.c.l.b16 %v238
  %v1500 = vunpack.c.h.b16 %v238
  %v1501 = vunpack.c.l.b16 %v239
  %v1502 = vunpack.c.h.b16 %v239
  %v1503 = vunpack.c.l.b16 %v240
  %v1504 = vunpack.c.h.b16 %v240
  %v1505 = vunpack.c.l.b16 %v241
  %v1506 = vunpack.c.h.b16 %v241
  %v1507 = vunpack.c.l.b16 %v242
  %v1508 = vunpack.c.h.b16 %v242
  %v1509 = vunpack.c.l.b16 %v243
  %v1510 = vunpack.c.h.b16 %v243
  %v1511 = vunpack.c.l.b16 %v244
  %v1512 = vunpack.c.h.b16 %v244
  %v1513 = vunpack.c.l.b16 %v245
  %v1514 = vunpack.c.h.b16 %v245
  %v1515 = vunpack.c.l.b16 %v246
  %v1516 = vunpack.c.h.b16 %v246
  %v1517 = vunpack.c.l.b16 %v247
  %v1518 = vunpack.c.l.b16 %v248
  %v1519 = vunpack.c.h.b16 %v248
  %v1520 = vunpack.c.l.b16 %v249
  %v1521 = vunpack.c.h.b16 %v249
  %v1522 = vunpack.c.l.b16 %v250
  %v1523 = vunpack.c.h.b16 %v250
  %v1524 = vunpack.c.l.b16 %v251
  %v1525 = vunpack.c.h.b16 %v251
  %v1526 = vunpack.c.l.b16 %v252
  %v1527 = vunpack.c.h.b16 %v252
  %v1528 = vunpack.c.l.b16 %v253
  %v1529 = vunpack.c.h.b16 %v253
  %v1530 = vunpack.c.l.b16 %v254
  %v1531 = vunpack.c.h.b16 %v254
  %v1532 = vunpack.c.l.b16 %v255
  %v1533 = vunpack.c.h.b16 %v255
  %v1534 = vunpack.c.l.b16 %v256
  %v1535 = vunpack.c.h.b16 %v256
  %v1536 = vunpack.c.l.b16 %v257
  %v1537 = vunpack.c.h.b16 %v257
  %v1538 = vunpack.c.l.b16 %v258
  %v1539 = vunpack.c.h.b16 %v258
  %v1540 = vunpack.c.l.b16 %v259
  %v1541 = vunpack.c.h.b16 %v259
  %v1542 = vunpack.c.l.b16 %v260
  %v1543 = vunpack.c.l.b16 %v261
  %v1544 = vunpack.c.h.b16 %v261
  %v1545 = vunpack.c.l.b16 %v262
  %v1546 = vunpack.c.h.b16 %v262
  %v1547 = vunpack.c.l.b16 %v263
  %v1548 = vunpack.c.h.b16 %v263
  %v1549 = vunpack.c.l.b16 %v264
  %v1550 = vunpack.c.h.b16 %v264
  %v1551 = vunpack.c.l.b16 %v265
  %v1552 = vunpack.c.h.b16 %v265
  %v1553 = vunpack.c.l.b16 %v266
  %v1554 = vunpack.c.h.b16 %v266
  %v1555 = vunpack.c.l.b16 %v267
  %v1556 = vunpack.c.h.b16 %v267
  %v1557 = vunpack.c.l.b16 %v268
  %v1558 = vunpack.c.h.b16 %v268
  %v1559 = vunpack.c.l.b16 %v269
  %v1560 = vunpack.c.h.b16 %v269
  %v1561 = vunpack.c.l.b16 %v270
  %v1562 = vunpack.c.h.b16 %v270
  %v1563 = vunpack.c.l.b16 %v271
  %v1564 = vunpack.c.h.b16 %v271
  %v1565 = vunpack.c.l.b16 %v272
  %v1566 = vunpack.c.h.b16 %v272
  %v1567 = vunpack.c.l.b16 %v273
  %v1568 = vunpack.c.l.b16 %v274
  %v1569 = vunpack.c.h.b16 %v274
  %v1570 = vunpack.c.l.b16 %v275
  %v1571 = vunpack.c.h.b16 %v275
  %v1572 = vunpack.c.l.b16 %v276
  %v1573 = vunpack.c.h.b16 %v276
  %v1574 = vunpack.c.l.b16 %v277
  %v1575 = vunpack.c.h.b16 %v277
  %v1576 = vunpack.c.l.b16 %v278
  %v1577 = vunpack.c.h.b16 %v278
  %v1578 = vunpack.c.l.b16 %v279
  %v1579 = vunpack.c.h.b16 %v279
  %v1580 = vunpack.c.l.b16 %v280
  %v1581 = vunpack.c.h.b16 %v280
  %v1582 = vunpack.c.l.b16 %v281
  %v1583 = vunpack.c.h.b16 %v281
  %v1584 = vunpack.c.l.b16 %v282
  %v1585 = vunpack.c.h.b16 %v282
  %v1586 = vunpack.c.l.b16 %v283
  %v1587 = vunpack.c.h.b16 %v283
  %v1588 = vunpack.c.l.b16 %v284
  %v1589 = vunpack.c.h.b16 %v284
  %v1590 = vunpack.c.l.b16 %v285
  %v1591 = vunpack.c.h.b16 %v285
  %v1592 = vunpack.c.l.b16 %v286
  %v1593 = vunpack.c.l.b16 %v287
  %v1594 = vunpack.c.h.b16 %v287
  %v1595 = vunpack.c.l.b16 %v288
  %v1596 = vunpack.c.h.b16 %v288
  %v1597 = vunpack.c.l.b16 %v289
  %v1598 = vunpack.c.h.b16 %v289
  %v1599 = vunpack.c.l.b16 %v290
  %v1600 = vunpack.c.h.b16 %v290
  %v1601 = vunpack.c.l.b16 %v291
  %v1602 = vunpack.c.h.b16 %v291
  %v1603 = vunpack.c.l.b16 %v292
  %v1604 = vunpack.c.h.b16 %v292
  %v1605 = vunpack.c.l.b16 %v293
  %v1606 = vunpack.c.h.b16 %v293
  %v1607 = vunpack.c.l.b16 %v294
  %v1608 = vunpack.c.h.b16 %v294
  %v1609 = vunpack.c.l.b16 %v295
  %v1610 = vunpack.c.h.b16 %v295
  %v1611 = vunpack.c.l.b16 %v296
  %v1612 = vunpack.c.h.b16 %v296
  %v1613 = vunpack.c.l.b16 %v297
  %v1614 = vunpack.c.h.b16 %v297
  %v1615 = vunpack.c.l.b16 %v298
  %v1616 = vunpack.c.h.b16 %v298
  %v1617 = vunpack.c.l.b16 %v299
  %v1618 = vunpack.c.l.b16 %v300
  %v1619 = vunpack.c.h.b16 %v300
  %v1620 = vunpack.c.l.b16 %v301
  %v1621 = vunpack.c.h.b16 %v301
  %v1622 = vunpack.c.l.b16 %v302
  %v1623 = vunpack.c.h.b16 %v302
  %v1624 = vunpack.c.l.b16 %v303
  %v1625 = vunpack.c.h.b16 %v303
  %v1626 = vunpack.c.l.b16 %v304
  %v1627 = vunpack.c.h.b16 %v304
  %v1628 = vunpack.c.l.b16 %v305
  %v1629 = vunpack.c.h.b16 %v305
  %v1630 = vunpack.c.l.b16 %v306
  %v1631 = vunpack.c.h.b16 %v306
  %v1632 = vunpack.c.l.b16 %v307
  %v1633 = vunpack.c.h.b16 %v307
  %v1634 = vunpack.c.l.b16 %v308
  %v1635 = vunpack.c.h.b16 %v308
  %v1636 = vunpack.c.l.b16 %v309
  %v1637 = vunpack.c.h.b16 %v309
  %v1638 = vunpack.c.l.b16 %v310
  %v1639 = vunpack.c.h.b16 %v310
  %v1640 = vunpack.c.l.b16 %v311
  %v1641 = vunpack.c.h.b16 %v311
  %v1642 = vunpack.c.l.b16 %v312
  %v1643 = vunpack.c.l.b16 %v313
  %v1644 = vunpack.c.h.b16 %v313
  %v1645 = vunpack.c.l.b16 %v314
  %v1646 = vunpack.c.h.b16 %v314
  %v1647 = vunpack.c.l.b16 %v315
  %v1648 = vunpack.c.h.b16 %v315
  %v1649 = vunpack.c.l.b16 %v316
  %v1650 = vunpack.c.h.b16 %v316
  %v1651 = vunpack.c.l.b16 %v317
  %v1652 = vunpack.c.h.b16 %v317
  %v1653 = vunpack.c.l.b16 %v318
  %v1654 = vunpack.c.h.b16 %v318
  %v1655 = vunpack.c.l.b16 %v319
  %v1656 = vunpack.c.h.b16 %v319
  %v1657 = vunpack.c.l.b16 %v320
  %v1658 = vunpack.c.h.b16 %v320
  %v1659 = vunpack.c.l.b16 %v321
  %v1660 = vunpack.c.h.b16 %v321
  %v1661 = vunpack.c.l.b16 %v322
  %v1662 = vunpack.c.h.b16 %v322
  %v1663 = vunpack.c.l.b16 %v323
  %v1664 = vunpack.c.h.b16 %v323
  %v1665 = vunpack.c.l.b16 %v324
  %v1666 = vunpack.c.h.b16 %v324
  %v1667 = vunpack.c.l.b16 %v325
  %v1668 = vunpack.c.l.b16 %v326
  %v1669 = vunpack.c.h.b16 %v326
  %v1670 = vunpack.c.l.b16 %v327
  %v1671 = vunpack.c.h.b16 %v327
  %v1672 = vunpack.c.l.b16 %v328
  %v1673 = vunpack.c.h.b16 %v328
  %v1674 = vunpack.c.l.b16 %v329
  %v1675 = vunpack.c.h.b16 %v329
  %v1676 = vunpack.c.l.b16 %v330
  %v1677 = vunpack.c.h.b16 %v330
  %v1678 = vunpack.c.l.b16 %v331
  %v1679 = vunpack.c.h.b16 %v331
  %v1680 = vunpack.c.l.b16 %v332
  %v1681 = vunpack.c.h.b16 %v332
  %v1682 = vunpack.c.l.b16 %v333
  %v1683 = vunpack.c.h.b16 %v333
  %v1684 = vunpack.c.l.b16 %v334
  %v1685 = vunpack.c.h.b16 %v334
  %v1686 = vunpack.c.l.b16 %v335
  %v1687 = vunpack.c.h.b16 %v335
  %v1688 = vunpack.c.l.b16 %v336
  %v1689 = vunpack.c.h.b16 %v336
  %v1690 = vunpack.c.l.b16 %v337
  %v1691 = vunpack.c.h.b16 %v337
  %v1692 = vunpack.c.l.b16 %v338
  %v1693 = vpack.c.b16 %v1093, %v1068
  %v1694 = vpack.c.b16 %v1094, %v1069
  %v1695 = vpack.c.b16 %v1095, %v1070
  %v1696 = vpack.c.b16 %v1096, %v1071
  %v1697 = vpack.c.b16 %v1097, %v1072
  %v1698 = vpack.c.b16 %v1098, %v1073
  %v1699 = vpack.c.b16 %v1099, %v1074
  %v1700 = vpack.c.b16 %v1100, %v1075
  %v1701 = vpack.c.b16 %v1101, %v1076
  %v1702 = vpack.c.b16 %v1102, %v1077
  %v1703 = vpack.c.b16 %v1103, %v1078
  %v1704 = vpack.c.b16 %v1104, %v1079
  %v1705 = vpack.c.b16 %v1105, %v1080
  %v1706 = vpack.c.b16 %v1106, %v1081
  %v1707 = vpack.c.b16 %v1107, %v1082
  %v1708 = vpack.c.b16 %v1108, %v1083
  %v1709 = vpack.c.b16 %v1109, %v1084
  %v1710 = vpack.c.b16 %v1110, %v1085
  %v1711 = vpack.c.b16 %v1111, %v1086
  %v1712 = vpack.c.b16 %v1112, %v1087
  %v1713 = vpack.c.b16 %v1113, %v1088
  %v1714 = vpack.c.b16 %v1114, %v1089
  %v1715 = vpack.c.b16 %v1115, %v1090
  %v1716 = vpack.c.b16 %v1116, %v1091
  %v1717 = vpack.c.b16 %v1117, %v1092
  %v1718 = vpack.c.b16 %v1143, %v1118
  %v1719 = vpack.c.b16 %v1144, %v1119
  %v1720 = vpack.c.b16 %v1145, %v1120
  %v1721 = vpack.c.b16 %v1146, %v1121
  %v1722 = vpack.c.b16 %v1147, %v1122
  %v1723 = vpack.c.b16 %v1148, %v1123
  %v1724 = vpack.c.b16 %v1149, %v1124
  %v1725 = vpack.c.b16 %v1150, %v1125
  %v1726 = vpack.c.b16 %v1151, %v1126
  %v1727 = vpack.c.b16 %v1152, %v1127
  %v1728 = vpack.c.b16 %v1153, %v1128
  %v1729 = vpack.c.b16 %v1154, %v1129
  %v1730 = vpack.c.b16 %v1155, %v1130
  %v1731 = vpack.c.b16 %v1156, %v1131
  %v1732 = vpack.c.b16 %v1157, %v1132
  %v1733 = vpack.c.b16 %v1158, %v1133
  %v1734 = vpack.c.b16 %v1159, %v1134
  %v1735 = vpack.c.b16 %v1160, %v1135
  %v1736 = vpack.c.b16 %v1161, %v1136
  %v1737 = vpack.c.b16 %v1162, %v1137
  %v1738 = vpack.c.b16 %v1163, %v1138
  %v1739 = vpack.c.b16 %v1164, %v1139
  %v1740 = vpack.c.b16 %v1165, %v1140
  %v1741 = vpack.c.b16 %v1166, %v1141
  %v1742 = vpack.c.b16 %v1167, %v1142
  %v1743 = vpack.c.b16 %v1193, %v1168
  %v1744 = vpack.c.b16 %v1194, %v1169
  %v1745 = vpack.c.b16 %v1195, %v1170
  %v1746 = vpack.c.b16 %v1196, %v1171
  %v1747 = vpack.c.b16 %v1197, %v1172
  %v1748 = vpack.c.b16 %v1198, %v1173
  %v1749 = vpack.c.b16 %v1199, %v1174
  %v1750 = vpack.c.b16 %v1200, %v1175
  %v1751 = vpack.c.b16 %v1201, %v1176
  %v1752 = vpack.c.b16 %v1202, %v1177
  %v1753 = vpack.c.b16 %v1203, %v1178
  %v1754 = vpack.c.b16 %v1204, %v1179
  %v1755 = vpack.c.b16 %v1205, %v1180
  %v1756 = vpack.c.b16 %v1206, %v1181
  %v1757 = vpack.c.b16 %v1207, %v1182
  %v1758 = vpack.c.b16 %v1208, %v1183
  %v1759 = vpack.c.b16 %v1209, %v1184
  %v1760 = vpack.c.b16 %v1210, %v1185
  %v1761 = vpack.c.b16 %v1211, %v1186
  %v1762 = vpack.c.b16 %v1212, %v1187
  %v1763 = vpack.c.b16 %v1213, %v1188
  %v1764 = vpack.c.b16 %v1214, %v1189
  %v1765 = vpack.c.b16 %v1215, %v1190
  %v1766 = vpack.c.b16 %v1216, %v1191
  %v1767 = vpack.c.b16 %v1217, %v1192
  %v1768 = vpack.c.b16 %v1243, %v1218
  %v1769 = vpack.c.b16 %v1244, %v1219
  %v1770 = vpack.c.b16 %v1245, %v1220
  %v1771 = vpack.c.b16 %v1246, %v1221
  %v1772 = vpack.c.b16 %v1247, %v1222
  %v1773 = vpack.c.b16 %v1248, %v1223
  %v1774 = vpack.c.b16 %v1249, %v1224
  %v1775 = vpack.c.b16 %v1250, %v1225
  %v1776 = vpack.c.b16 %v1251, %v1226
  %v1777 = vpack.c.b16 %v1252, %v1227
  %v1778 = vpack.c.b16 %v1253, %v1228
  %v1779 = vpack.c.b16 %v1254, %v1229
  %v1780 = vpack.c.b16 %v1255, %v1230
  %v1781 = vpack.c.b16 %v1256, %v1231
  %v1782 = vpack.c.b16 %v1257, %v1232
  %v1783 = vpack.c.b16 %v1258, %v1233
  %v1784 = vpack.c.b16 %v1259, %v1234
  %v1785 = vpack.c.b16 %v1260, %v1235
  %v1786 = vpack.c.b16 %v1261, %v1236
  %v1787 = vpack.c.b16 %v1262, %v1237
  %v1788 = vpack.c.b16 %v1263, %v1238
  %v1789 = vpack.c.b16 %v1264, %v1239
  %v1790 = vpack.c.b16 %v1265, %v1240
  %v1791 = vpack.c.b16 %v1266, %v1241
  %v1792 = vpack.c.b16 %v1267, %v1242
  %v1793 = vpack.c.b16 %v1293, %v1268
  %v1794 = vpack.c.b16 %v1294, %v1269
  %v1795 = vpack.c.b16 %v1295, %v1270
  %v1796 = vpack.c.b16 %v1296, %v1271
  %v1797 = vpack.c.b16 %v1297, %v1272
  %v1798 = vpack.c.b16 %v1298, %v1273
  %v1799 = vpack.c.b16 %v1299, %v1274
  %v1800 = vpack.c.b16 %v1300, %v1275
  %v1801 = vpack.c.b16 %v1301, %v1276
  %v1802 = vpack.c.b16 %v1302, %v1277
  %v1803 = vpack.c.b16 %v1303, %v1278
  %v1804 = vpack.c.b16 %v1304, %v1279
  %v1805 = vpack.c.b16 %v1305, %v1280
  %v1806 = vpack.c.b16 %v1306, %v1281
  %v1807 = vpack.c.b16 %v1307, %v1282
  %v1808 = vpack.c.b16 %v1308, %v1283
  %v1809 = vpack.c.b16 %v1309, %v1284
  %v1810 = vpack.c.b16 %v1310, %v1285
  %v1811 = vpack.c.b16 %v1311, %v1286
  %v1812 = vpack.c.b16 %v1312, %v1287
  %v1813 = vpack.c.b16 %v1313, %v1288
  %v1814 = vpack.c.b16 %v1314, %v1289
  %v1815 = vpack.c.b16 %v1315, %v1290
  %v1816 = vpack.c.b16 %v1316, %v1291
  %v1817 = vpack.c.b16 %v1317, %v1292
  %v1818 = vpack.c.b16 %v1343, %v1318
  %v1819 = vpack.c.b16 %v1344, %v1319
  %v1820 = vpack.c.b16 %v1345, %v1320
  %v1821 = vpack.c.b16 %v1346, %v1321
  %v1822 = vpack.c.b16 %v1347, %v1322
  %v1823 = vpack.c.b16 %v1348, %v1323
  %v1824 = vpack.c.b16 %v1349, %v1324
  %v1825 = vpack.c.b16 %v1350, %v1325
  %v1826 = vpack.c.b16 %v1351, %v1326
  %v1827 = vpack.c.b16 %v1352, %v1327
  %v1828 = vpack.c.b16 %v1353, %v1328
  %v1829 = vpack.c.b16 %v1354, %v1329
  %v1830 = vpack.c.b16 %v1355, %v1330
  %v1831 = vpack.c.b16 %v1356, %v1331
  %v1832 = vpack.c.b16 %v1357, %v1332
  %v1833 = vpack.c.b16 %v1358, %v1333
  %v1834 = vpack.c.b16 %v1359, %v1334
  %v1835 = vpack.c.b16 %v1360, %v1335
  %v1836 = vpack.c.b16 %v1361, %v1336
  %v1837 = vpack.c.b16 %v1362, %v1337
  %v1838 = vpack.c.b16 %v1363, %v1338
  %v1839 = vpack.c.b16 %v1364, %v1339
  %v1840 = vpack.c.b16 %v1365, %v1340
  %v1841 = vpack.c.b16 %v1366, %v1341
  %v1842 = vpack.c.b16 %v1367, %v1342
  %v1843 = vpack.c.b16 %v1393, %v1368
  %v1844 = vpack.c.b16 %v1394, %v1369
  %v1845 = vpack.c.b16 %v1395, %v1370
  %v1846 = vpack.c.b16 %v1396, %v1371
  %v1847 = vpack.c.b16 %v1397, %v1372
  %v1848 = vpack.c.b16 %v1398, %v1373
  %v1849 = vpack.c.b16 %v1399, %v1374
  %v1850 = vpack.c.b16 %v1400, %v1375
  %v1851 = vpack.c.b16 %v1401, %v1376
  %v1852 = vpack.c.b16 %v1402, %v1377
  %v1853 = vpack.c.b16 %v1403, %v1378
  %v1854 = vpack.c.b16 %v1404, %v1379
  %v1855 = vpack.c.b16 %v1405, %v1380
  %v1856 = vpack.c.b16 %v1406, %v1381
  %v1857 = vpack.c.b16 %v1407, %v1382
  %v1858 = vpack.c.b16 %v1408, %v1383
  %v1859 = vpack.c.b16 %v1409, %v1384
  %v1860 = vpack.c.b16 %v1410, %v1385
  %v1861 = vpack.c.b16 %v1411, %v1386
  %v1862 = vpack.c.b16 %v1412, %v1387
  %v1863 = vpack.c.b16 %v1413, %v1388
  %v1864 = vpack.c.b16 %v1414, %v1389
  %v1865 = vpack.c.b16 %v1415, %v1390
  %v1866 = vpack.c.b16 %v1416, %v1391
  %v1867 = vpack.c.b16 %v1417, %v1392
  %v1868 = vpack.c.b16 %v1443, %v1418
  %v1869 = vpack.c.b16 %v1444, %v1419
  %v1870 = vpack.c.b16 %v1445, %v1420
  %v1871 = vpack.c.b16 %v1446, %v1421
  %v1872 = vpack.c.b16 %v1447, %v1422
  %v1873 = vpack.c.b16 %v1448, %v1423
  %v1874 = vpack.c.b16 %v1449, %v1424
  %v1875 = vpack.c.b16 %v1450, %v1425
  %v1876 = vpack.c.b16 %v1451, %v1426
  %v1877 = vpack.c.b16 %v1452, %v1427
  %v1878 = vpack.c.b16 %v1453, %v1428
  %v1879 = vpack.c.b16 %v1454, %v1429
  %v1880 = vpack.c.b16 %v1455, %v1430
  %v1881 = vpack.c.b16 %v1456, %v1431
  %v1882 = vpack.c.b16 %v1457, %v1432
  %v1883 = vpack.c.b16 %v1458, %v1433
  %v1884 = vpack.c.b16 %v1459, %v1434
  %v1885 = vpack.c.b16 %v1460, %v1435
  %v1886 = vpack.c.b16 %v1461, %v1436
  %v1887 = vpack.c.b16 %v1462, %v1437
  %v1888 = vpack.c.b16 %v1463, %v1438
  %v1889 = vpack.c.b16 %v1464, %v1439
  %v1890 = vpack.c.b16 %v1465, %v1440
  %v1891 = vpack.c.b16 %v1466, %v1441
  %v1892 = vpack.c.b16 %v1467, %v1442
  %v1893 = vpack.c.b16 %v1493, %v1468
  %v1894 = vpack.c.b16 %v1494, %v1469
  %v1895 = vpack.c.b16 %v1495, %v1470
  %v1896 = vpack.c.b16 %v1496, %v1471
  %v1897 = vpack.c.b16 %v1497, %v1472
  %v1898 = vpack.c.b16 %v1498, %v1473
  %v1899 = vpack.c.b16 %v1499, %v1474
  %v1900 = vpack.c.b16 %v1500, %v1475
  %v1901 = vpack.c.b16 %v1501, %v1476
  %v1902 = vpack.c.b16 %v1502, %v1477
  %v1903 = vpack.c.b16 %v1503, %v1478
  %v1904 = vpack.c.b16 %v1504, %v1479
  %v1905 = vpack.c.b16 %v1505, %v1480
  %v1906 = vpack.c.b16 %v1506, %v1481
  %v1907 = vpack.c.b16 %v1507, %v1482
  %v1908 = vpack.c.b16 %v1508, %v1483
  %v1909 = vpack.c.b16 %v1509, %v1484
  %v1910 = vpack.c.b16 %v1510, %v1485
  %v1911 = vpack.c.b16 %v1511, %v1486
  %v1912 = vpack.c.b16 %v1512, %v1487
  %v1913 = vpack.c.b16 %v1513, %v1488
  %v1914 = vpack.c.b16 %v1514, %v1489
  %v1915 = vpack.c.b16 %v1515, %v1490
  %v1916 = vpack.c.b16 %v1516, %v1491
  %v1917 = vpack.c.b16 %v1517, %v1492
  %v1918 = vpack.c.b16 %v1543, %v1518
  %v1919 = vpack.c.b16 %v1544, %v1519
  %v1920 = vpack.c.b16 %v1545, %v1520
  %v1921 = vpack.c.b16 %v1546, %v1521
  %v1922 = vpack.c.b16 %v1547, %v1522
  %v1923 = vpack.c.b16 %v1548, %v1523
  %v1924 = vpack.c.b16 %v1549, %v1524
  %v1925 = vpack.c.b16 %v1550, %v1525
  %v1926 = vpack.c.b16 %v1551, %v1526
  %v1927 = vpack.c.b16 %v1552, %v1527
  %v1928 = vpack.c.b16 %v1553, %v1528
  %v1929 = vpack.c.b16 %v1554, %v1529
  %v1930 = vpack.c.b16 %v1555, %v1530
  %v1931 = vpack.c.b16 %v1556, %v1531
  %v1932 = vpack.c.b16 %v1557, %v1532
  %v1933 = vpack.c.b16 %v1558, %v1533
  %v1934 = vpack.c.b16 %v1559, %v1534
  %v1935 = vpack.c.b16 %v1560, %v1535
  %v1936 = vpack.c.b16 %v1561, %v1536
  %v1937 = vpack.c.b16 %v1562, %v1537
  %v1938 = vpack.c.b16 %v1563, %v1538
  %v1939 = vpack.c.b16 %v1564, %v1539
  %v1940 = vpack.c.b16 %v1565, %v1540
  %v1941 = vpack.c.b16 %v1566, %v1541
  %v1942 = vpack.c.b16 %v1567, %v1542
  %v1943 = vpack.c.b16 %v1593, %v1568
  %v1944 = vpack.c.b16 %v1594, %v1569
  %v1945 = vpack.c.b16 %v1595, %v1570
  %v1946 = vpack.c.b16 %v1596, %v1571
  %v1947 = vpack.c.b16 %v1597, %v1572
  %v1948 = vpack.c.b16 %v1598, %v1573
  %v1949 = vpack.c.b16 %v1599, %v1574
  %v1950 = vpack.c.b16 %v1600, %v1575
  %v1951 = vpack.c.b16 %v1601, %v1576
  %v1952 = vpack.c.b16 %v1602, %v1577
  %v1953 = vpack.c.b16 %v1603, %v1578
  %v1954 = vpack.c.b16 %v1604, %v1579
  %v1955 = vpack.c.b16 %v1605, %v1580
  %v1956 = vpack.c.b16 %v1606, %v1581
  %v1957 = vpack.c.b16 %v1607, %v1582
  %v1958 = vpack.c.b16 %v1608, %v1583
  %v1959 = vpack.c.b16 %v1609, %v1584
  %v1960 = vpack.c.b16 %v1610, %v1585
  %v1961 = vpack.c.b16 %v1611, %v1586
  %v1962 = vpack.c.b16 %v1612, %v1587
  %v1963 = vpack.c.b16 %v1613, %v1588
  %v1964 = vpack.c.b16 %v1614, %v1589
  %v1965 = vpack.c.b16 %v1615, %v1590
  %v1966 = vpack.c.b16 %v1616, %v1591
  %v1967 = vpack.c.b16 %v1617, %v1592
  %v1968 = vpack.c.b16 %v1643, %v1618
  %v1969 = vpack.c.b16 %v1644, %v1619
  %v1970 = vpack.c.b16 %v1645, %v1620
  %v1971 = vpack.c.b16 %v1646, %v1621
  %v1972 = vpack.c.b16 %v1647, %v1622
  %v1973 = vpack.c.b16 %v1648, %v1623
  %v1974 = vpack.c.b16 %v1649, %v1624
  %v1975 = vpack.c.b16 %v1650, %v1625
  %v1976 = vpack.c.b16 %v1651, %v1626
  %v1977 = vpack.c.b16 %v1652, %v1627
  %v1978 = vpack.c.b16 %v1653, %v1628
  %v1979 = vpack.c.b16 %v1654, %v1629
  %v1980 = vpack.c.b16 %v1655, %v1630
  %v1981 = vpack.c.b16 %v1656, %v1631
  %v1982 = vpack.c.b16 %v1657, %v1632
  %v1983 = vpack.c.b16 %v1658, %v1633
  %v1984 = vpack.c.b16 %v1659, %v1634
  %v1985 = vpack.c.b16 %v1660, %v1635
  %v1986 = vpack.c.b16 %v1661, %v1636
  %v1987 = vpack.c.b16 %v1662, %v1637
  %v1988 = vpack.c.b16 %v1663, %v1638
  %v1989 = vpack.c.b16 %v1664, %v1639
  %v1990 = vpack.c.b16 %v1665, %v1640
  %v1991 = vpack.c.b16 %v1666, %v1641
  %v1992 = vpack.c.b16 %v1667, %v1642
  %v1993 = vpack.c.b16 %v1668, %v1668
  %v1994 = vpack.c.b16 %v1669, %v1669
  %v1995 = vpack.c.b16 %v1670, %v1670
  %v1996 = vpack.c.b16 %v1671, %v1671
  %v1997 = vpack.c.b16 %v1672, %v1672
  %v1998 = vpack.c.b16 %v1673, %v1673
  %v1999 = vpack.c.b16 %v1674, %v1674
  %v2000 = vpack.c.b16 %v1675, %v1675
  %v2001 = vpack.c.b16 %v1676, %v1676
  %v2002 = vpack.c.b16 %v1677, %v1677
  %v2003 = vpack.c.b16 %v1678, %v1678
  %v2004 = vpack.c.b16 %v1679, %v1679
  %v2005 = vpack.c.b16 %v1680, %v1680
  %v2006 = vpack.c.b16 %v1681, %v1681
  %v2007 = vpack.c.b16 %v1682, %v1682
  %v2008 = vpack.c.b16 %v1683, %v1683
  %v2009 = vpack.c.b16 %v1684, %v1684
  %v2010 = vpack.c.b16 %v1685, %v1685
  %v2011 = vpack.c.b16 %v1686, %v1686
  %v2012 = vpack.c.b16 %v1687, %v1687
  %v2013 = vpack.c.b16 %v1688, %v1688
  %v2014 = vpack.c.b16 %v1689, %v1689
  %v2015 = vpack.c.b16 %v1690, %v1690
  %v2016 = vpack.c.b16 %v1691, %v1691
  %v2017 = vpack.c.b16 %v1692, %v1692
  %v2743 = vunpack.c.l.b16 %v339
  %v2744 = vunpack.c.l.b16 %v340
  %v2745 = vunpack.c.l.b16 %v341
  %v2746 = vunpack.c.l.b16 %v342
  %v2747 = vunpack.c.l.b16 %v343
  %v2748 = vunpack.c.l.b16 %v344
  %v2749 = vunpack.c.l.b16 %v345
  %v2750 = vunpack.c.l.b16 %v346
  %v2751 = vunpack.c.l.b16 %v347
  %v2752 = vunpack.c.l.b16 %v348
  %v2753 = vunpack.c.l.b16 %v349
  %v2754 = vunpack.c.l.b16 %v350
  %v2755 = vunpack.c.l.b16 %v351
  %v2756 = vunpack.c.l.b16 %v352
  %v2757 = vunpack.c.l.b16 %v353
  %v2758 = vunpack.c.l.b16 %v354
  %v2759 = vunpack.c.l.b16 %v355
  %v2760 = vunpack.c.l.b16 %v356
  %v2761 = vunpack.c.l.b16 %v357
  %v2762 = vunpack.c.l.b16 %v358
  %v2763 = vunpack.c.l.b16 %v359
  %v2764 = vunpack.c.l.b16 %v360
  %v2765 = vunpack.c.l.b16 %v361
  %v2766 = vunpack.c.l.b16 %v362
  %v2767 = vunpack.c.l.b16 %v363
  %v2768 = vunpack.c.l.b16 %v364
  %v2769 = vunpack.c.l.b16 %v365
  %v2770 = vunpack.c.l.b16 %v366
  %v2771 = vunpack.c.l.b16 %v367
  %v2772 = vunpack.c.l.b16 %v368
  %v2773 = vunpack.c.l.b16 %v369
  %v2774 = vunpack.c.l.b16 %v370
  %v2775 = vunpack.c.l.b16 %v371
  %v2776 = vunpack.c.l.b16 %v372
  %v2777 = vunpack.c.l.b16 %v373
  %v2778 = vunpack.c.l.b16 %v374
  %v2779 = vunpack.c.l.b16 %v375
  %v2780 = vunpack.c.l.b16 %v376
  %v2781 = vunpack.c.l.b16 %v377
  %v2782 = vunpack.c.l.b16 %v378
  %v2783 = vunpack.c.l.b16 %v379
  %v2784 = vunpack.c.l.b16 %v380
  %v2785 = vunpack.c.l.b16 %v381
  %v2786 = vunpack.c.l.b16 %v382
  %v2787 = vunpack.c.l.b16 %v383
  %v2788 = vunpack.c.l.b16 %v384
  %v2789 = vunpack.c.l.b16 %v385
  %v2790 = vunpack.c.l.b16 %v386
  %v2791 = vunpack.c.l.b16 %v387
  %v2792 = vunpack.c.l.b16 %v388
  %v2793 = vunpack.c.l.b16 %v389
  %v2794 = vunpack.c.l.b16 %v390
  %v2795 = vunpack.c.l.b16 %v391
  %v2796 = vunpack.c.l.b16 %v392
  %v2797 = vunpack.c.l.b16 %v393
  %v2798 = vunpack.c.l.b16 %v394
  %v2799 = vunpack.c.l.b16 %v395
  %v2800 = vunpack.c.l.b16 %v396
  %v2801 = vunpack.c.l.b16 %v397
  %v2802 = vunpack.c.l.b16 %v398
  %v2803 = vunpack.c.l.b16 %v399
  %v2804 = vunpack.c.l.b16 %v400
  %v2805 = vunpack.c.l.b16 %v401
  %v2806 = vunpack.c.l.b16 %v402
  %v2807 = vunpack.c.l.b16 %v403
  %v2808 = vunpack.c.l.b16 %v404
  %v2809 = vunpack.c.l.b16 %v405
  %v2810 = vunpack.c.l.b16 %v406
  %v2811 = vunpack.c.l.b16 %v407
  %v2812 = vunpack.c.l.b16 %v408
  %v2813 = vunpack.c.l.b16 %v409
  %v2814 = vunpack.c.l.b16 %v410
  %v2815 = vunpack.c.l.b16 %v411
  %v2816 = vunpack.c.l.b16 %v412
  %v2817 = vunpack.c.l.b16 %v413
  %v2818 = vunpack.c.l.b16 %v414
  %v2819 = vunpack.c.l.b16 %v415
  %v2820 = vunpack.c.l.b16 %v416
  %v2821 = vunpack.c.l.b16 %v417
  %v2822 = vunpack.c.l.b16 %v418
  %v2823 = vunpack.c.l.b16 %v419
  %v2824 = vunpack.c.l.b16 %v420
  %v2825 = vunpack.c.l.b16 %v421
  %v2826 = vunpack.c.l.b16 %v422
  %v2827 = vunpack.c.l.b16 %v423
  %v2828 = vunpack.c.l.b16 %v424
  %v2829 = vunpack.c.l.b16 %v425
  %v2830 = vunpack.c.l.b16 %v426
  %v2831 = vunpack.c.l.b16 %v427
  %v2832 = vunpack.c.l.b16 %v428
  %v2833 = vunpack.c.l.b16 %v429
  %v2834 = vunpack.c.l.b16 %v430
  %v2835 = vunpack.c.l.b16 %v431
  %v2836 = vunpack.c.l.b16 %v432
  %v2837 = vunpack.c.l.b16 %v433
  %v2838 = vunpack.c.l.b16 %v434
  %v2839 = vunpack.c.l.b16 %v435
  %v2840 = vunpack.c.l.b16 %v436
  %v2841 = vunpack.c.l.b16 %v437
  %v2842 = vunpack.c.l.b16 %v438
  %v2843 = vunpack.c.l.b16 %v439
  %v2844 = vunpack.c.l.b16 %v440
  %v2845 = vunpack.c.l.b16 %v441
  %v2846 = vunpack.c.l.b16 %v442
  %v2847 = vunpack.c.l.b16 %v443
  %v2848 = vunpack.c.l.b16 %v444
  %v2849 = vunpack.c.l.b16 %v445
  %v2850 = vunpack.c.l.b16 %v446
  %v2851 = vunpack.c.l.b16 %v447
  %v2852 = vunpack.c.l.b16 %v448
  %v2853 = vunpack.c.l.b16 %v449
  %v2854 = vunpack.c.l.b16 %v450
  %v2855 = vunpack.c.l.b16 %v451
  %v2856 = vunpack.c.l.b16 %v452
  %v2857 = vunpack.c.l.b16 %v453
  %v2858 = vunpack.c.l.b16 %v454
  %v2859 = vunpack.c.l.b16 %v455
  %v2860 = vunpack.c.l.b16 %v456
  %v2861 = vunpack.c.l.b16 %v457
  %v2862 = vunpack.c.l.b16 %v458
  %v2863 = vunpack.c.l.b16 %v459
  %v2864 = vunpack.c.l.b16 %v460
  %v2865 = vunpack.c.l.b16 %v461
  %v2866 = vunpack.c.l.b16 %v462
  %v2867 = vunpack.c.l.b16 %v463
  %v2868 = vunpack.c.l.b16 %v464
  %v2869 = vunpack.c.l.b16 %v465
  %v2870 = vunpack.c.l.b16 %v466
  %v2871 = vunpack.c.l.b16 %v467
  %v2872 = vunpack.c.l.b16 %v468
  %v2873 = vunpack.c.l.b16 %v469
  %v2874 = vunpack.c.l.b16 %v470
  %v2875 = vunpack.c.l.b16 %v471
  %v2876 = vunpack.c.l.b16 %v472
  %v2877 = vunpack.c.l.b16 %v473
  %v2878 = vunpack.c.l.b16 %v474
  %v2879 = vunpack.c.l.b16 %v475
  %v2880 = vunpack.c.l.b16 %v476
  %v2881 = vunpack.c.l.b16 %v477
  %v2882 = vunpack.c.l.b16 %v478
  %v2883 = vunpack.c.l.b16 %v479
  %v2884 = vunpack.c.l.b16 %v480
  %v2885 = vunpack.c.l.b16 %v481
  %v2886 = vunpack.c.l.b16 %v482
  %v2887 = vunpack.c.l.b16 %v483
  %v2888 = vunpack.c.l.b16 %v484
  %v2889 = vunpack.c.l.b16 %v485
  %v2890 = vunpack.c.l.b16 %v486
  %v2891 = vunpack.c.l.b16 %v487
  %v2892 = vunpack.c.l.b16 %v488
  %v2893 = vunpack.c.l.b16 %v489
  %v2894 = vunpack.c.l.b16 %v490
  %v2895 = vunpack.c.l.b16 %v491
  %v2896 = vunpack.c.l.b16 %v492
  %v2897 = vunpack.c.l.b16 %v493
  %v2898 = vunpack.c.l.b16 %v494
  %v2899 = vunpack.c.l.b16 %v495
  %v2900 = vunpack.c.l.b16 %v496
  %v2901 = vunpack.c.l.b16 %v497
  %v2902 = vunpack.c.l.b16 %v498
  %v2903 = vunpack.c.l.b16 %v499
  %v2904 = vunpack.c.l.b16 %v500
  %v2905 = vunpack.c.l.b16 %v501
  %v2906 = vunpack.c.l.b16 %v502
  %v2907 = vunpack.c.l.b16 %v503
  %v2908 = vunpack.c.l.b16 %v504
  %v2909 = vunpack.c.l.b16 %v505
  %v2910 = vunpack.c.l.b16 %v506
  %v2911 = vunpack.c.l.b16 %v507
  %v2912 = vunpack.c.l.b16 %v508
  %v2913 = vunpack.c.l.b16 %v509
  %v2914 = vunpack.c.l.b16 %v510
  %v2915 = vunpack.c.l.b16 %v511
  %v2916 = vunpack.c.l.b16 %v512
  %v2917 = vunpack.c.l.b16 %v513
  %v2918 = vunpack.c.l.b16 %v514
  %v2919 = vunpack.c.l.b16 %v515
  %v2920 = vunpack.c.l.b16 %v516
  %v2921 = vunpack.c.l.b16 %v517
  %v2922 = vunpack.c.l.b16 %v518
  %v2923 = vunpack.c.l.b16 %v519
  %v2924 = vunpack.c.l.b16 %v520
  %v2925 = vunpack.c.l.b16 %v521
  %v2926 = vunpack.c.l.b16 %v522
  %v2927 = vunpack.c.l.b16 %v523
  %v2928 = vunpack.c.l.b16 %v524
  %v2929 = vunpack.c.l.b16 %v525
  %v2930 = vunpack.c.l.b16 %v526
  %v2931 = vunpack.c.l.b16 %v527
  %v2932 = vunpack.c.l.b16 %v528
  %v2933 = vunpack.c.l.b16 %v529
  %v2934 = vunpack.c.l.b16 %v530
  %v2935 = vunpack.c.l.b16 %v531
  %v2936 = vunpack.c.l.b16 %v532
  %v2937 = vunpack.c.l.b16 %v533
  %v2938 = vunpack.c.l.b16 %v534
  %v2939 = vunpack.c.l.b16 %v535
  %v2940 = vunpack.c.l.b16 %v536
  %v2941 = vunpack.c.l.b16 %v537
  %v2942 = vunpack.c.l.b16 %v538
  %v2943 = vunpack.c.l.b16 %v539
  %v2944 = vunpack.c.l.b16 %v540
  %v2945 = vunpack.c.l.b16 %v541
  %v2946 = vunpack.c.l.b16 %v542
  %v2947 = vunpack.c.l.b16 %v543
  %v2948 = vunpack.c.l.b16 %v544
  %v2949 = vunpack.c.l.b16 %v545
  %v2950 = vunpack.c.l.b16 %v546
  %v2951 = vunpack.c.l.b16 %v547
  %v2952 = vunpack.c.l.b16 %v548
  %v2953 = vunpack.c.l.b16 %v549
  %v2954 = vunpack.c.l.b16 %v550
  %v2955 = vunpack.c.l.b16 %v551
  %v2956 = vunpack.c.l.b16 %v552
  %v2957 = vunpack.c.l.b16 %v553
  %v2958 = vunpack.c.l.b16 %v554
  %v2959 = vunpack.c.l.b16 %v555
  %v2960 = vunpack.c.l.b16 %v556
  %v2961 = vunpack.c.l.b16 %v557
  %v2962 = vunpack.c.l.b16 %v558
  %v2963 = vunpack.c.l.b16 %v559
  %v2964 = vunpack.c.l.b16 %v560
  %v2965 = vunpack.c.l.b16 %v561
  %v2966 = vunpack.c.l.b16 %v562
  %v2967 = vunpack.c.l.b16 %v563
  %v2968 = vunpack.c.l.b16 %v564
  %v2969 = vunpack.c.l.b16 %v565
  %v2970 = vunpack.c.l.b16 %v566
  %v2971 = vunpack.c.l.b16 %v567
  %v2972 = vunpack.c.l.b16 %v568
  %v2973 = vunpack.c.l.b16 %v569
  %v2974 = vunpack.c.l.b16 %v570
  %v2975 = vunpack.c.l.b16 %v571
  %v2976 = vunpack.c.l.b16 %v572
  %v2977 = vunpack.c.l.b16 %v573
  %v2978 = vunpack.c.l.b16 %v574
  %v2979 = vunpack.c.l.b16 %v575
  %v2980 = vunpack.c.l.b16 %v576
  %v2981 = vunpack.c.l.b16 %v577
  %v2982 = vunpack.c.l.b16 %v578
  %v2983 = vunpack.c.l.b16 %v579
  %v2984 = vunpack.c.l.b16 %v580
  %v2985 = vunpack.c.l.b16 %v581
  %v2986 = vunpack.c.l.b16 %v582
  %v2987 = vunpack.c.l.b16 %v583
  %v2988 = vunpack.c.l.b16 %v584
  %v2989 = vunpack.c.l.b16 %v585
  %v2990 = vunpack.c.l.b16 %v586
  %v2991 = vunpack.c.l.b16 %v587
  %v2992 = vunpack.c.l.b16 %v588
  %v2993 = vunpack.c.l.b16 %v589
  %v2994 = vunpack.c.l.b16 %v590
  %v2995 = vunpack.c.l.b16 %v591
  %v2996 = vunpack.c.l.b16 %v592
  %v2997 = vunpack.c.l.b16 %v593
  %v2998 = vunpack.c.l.b16 %v594
  %v2999 = vunpack.c.l.b16 %v595
  %v3000 = vunpack.c.l.b16 %v596
  %v3001 = vunpack.c.l.b16 %v597
  %v3002 = vunpack.c.l.b16 %v598
  %v3003 = vunpack.c.l.b16 %v599
  %v3004 = vunpack.c.l.b16 %v600
  %v3005 = vunpack.c.l.b16 %v601
  %v3006 = vunpack.c.l.b16 %v602
  %v3007 = vunpack.c.l.b16 %v603
  %v3008 = vunpack.c.l.b16 %v604
  %v3009 = vunpack.c.l.b16 %v605
  %v3010 = vunpack.c.l.b16 %v606
  %v3011 = vunpack.c.l.b16 %v607
  %v3012 = vunpack.c.l.b16 %v608
  %v3013 = vunpack.c.l.b16 %v609
  %v3014 = vunpack.c.l.b16 %v610
  %v3015 = vunpack.c.l.b16 %v611
  %v3016 = vunpack.c.l.b16 %v612
  %v3017 = vunpack.c.l.b16 %v613
  %v3018 = vunpack.c.l.b16 %v614
  %v3019 = vunpack.c.l.b16 %v615
  %v3020 = vunpack.c.l.b16 %v616
  %v3021 = vunpack.c.l.b16 %v617
  %v3022 = vunpack.c.l.b16 %v618
  %v3023 = vunpack.c.l.b16 %v619
  %v3024 = vunpack.c.l.b16 %v620
  %v3025 = vunpack.c.l.b16 %v621
  %v3026 = vunpack.c.l.b16 %v622
  %v3027 = vunpack.c.l.b16 %v623
  %v3028 = vunpack.c.l.b16 %v624
  %v3029 = vunpack.c.l.b16 %v625
  %v3030 = vunpack.c.l.b16 %v626
  %v3031 = vunpack.c.l.b16 %v627
  %v3032 = vunpack.c.l.b16 %v628
  %v3033 = vunpack.c.l.b16 %v629
  %v3034 = vunpack.c.l.b16 %v630
  %v3035 = vunpack.c.l.b16 %v631
  %v3036 = vunpack.c.l.b16 %v632
  %v3037 = vunpack.c.l.b16 %v633
  %v3038 = vunpack.c.l.b16 %v634
  %v3039 = vunpack.c.l.b16 %v635
  %v3040 = vunpack.c.l.b16 %v636
  %v3041 = vunpack.c.l.b16 %v637
  %v3042 = vunpack.c.l.b16 %v638
  %v3043 = vunpack.c.l.b16 %v639
  %v3044 = vunpack.c.l.b16 %v640
  %v3045 = vunpack.c.l.b16 %v641
  %v3046 = vunpack.c.l.b16 %v642
  %v3047 = vunpack.c.l.b16 %v643
  %v3048 = vunpack.c.l.b16 %v644
  %v3049 = vunpack.c.l.b16 %v645
  %v3050 = vunpack.c.l.b16 %v646
  %v3051 = vunpack.c.l.b16 %v647
  %v3052 = vunpack.c.l.b16 %v648
  %v3053 = vunpack.c.l.b16 %v649
  %v3054 = vunpack.c.l.b16 %v650
  %v3055 = vunpack.c.l.b16 %v651
  %v3056 = vunpack.c.l.b16 %v652
  %v3057 = vunpack.c.l.b16 %v653
  %v3058 = vunpack.c.l.b16 %v654
  %v3059 = vunpack.c.l.b16 %v655
  %v3060 = vunpack.c.l.b16 %v656
  %v3061 = vunpack.c.l.b16 %v657
  %v3062 = vunpack.c.l.b16 %v658
  %v3063 = vunpack.c.l.b16 %v659
  %v3064 = vunpack.c.l.b16 %v660
  %v3065 = vunpack.c.l.b16 %v661
  %v3066 = vunpack.c.l.b16 %v662
  %v3067 = vunpack.c.l.b16 %v663
  %v3068 = vunpack.c.l.b16 %v664
  %v3069 = vunpack.c.l.b16 %v665
  %v3070 = vunpack.c.l.b16 %v666
  %v3071 = vunpack.c.l.b16 %v667
  %v3072 = vunpack.c.l.b16 %v668
  %v3073 = vunpack.c.l.b16 %v669
  %v3074 = vunpack.c.l.b16 %v670
  %v3075 = vunpack.c.l.b16 %v671
  %v3076 = vunpack.c.l.b16 %v672
  %v3077 = vunpack.c.l.b16 %v673
  %v3078 = vunpack.c.l.b16 %v674
  %v3079 = vunpack.c.l.b16 %v675
  %v3080 = vunpack.c.l.b16 %v676
  %v3081 = vunpack.c.l.b16 %v677
  %v3082 = vunpack.c.l.b16 %v678
  %v3083 = vunpack.c.l.b16 %v679
  %v3084 = vunpack.c.l.b16 %v680
  %v3085 = vunpack.c.l.b16 %v681
  %v3086 = vunpack.c.l.b16 %v682
  %v3087 = vunpack.c.l.b16 %v683
  %v3088 = vunpack.c.l.b16 %v684
  %v3089 = vunpack.c.l.b16 %v685
  %v3090 = vunpack.c.l.b16 %v686
  %v3091 = vunpack.c.l.b16 %v687
  %v3092 = vunpack.c.l.b16 %v688
  %v3093 = vunpack.c.l.b16 %v689
  %v3094 = vunpack.c.l.b16 %v690
  %v3095 = vunpack.c.l.b16 %v691
  %v3096 = vunpack.c.l.b16 %v692
  %v3097 = vunpack.c.l.b16 %v693
  %v3098 = vunpack.c.l.b16 %v694
  %v3099 = vunpack.c.l.b16 %v695
  %v3100 = vunpack.c.l.b16 %v696
  %v3101 = vunpack.c.l.b16 %v697
  %v3102 = vunpack.c.l.b16 %v698
  %v3103 = vunpack.c.l.b16 %v699
  %v3104 = vunpack.c.l.b16 %v700
  %v3105 = vunpack.c.l.b16 %v701
  %v3106 = vunpack.c.l.b16 %v702
  %v3107 = vunpack.c.l.b16 %v703
  %v3108 = vunpack.c.l.b16 %v704
  %v3109 = vunpack.c.l.b16 %v705
  %v3110 = vunpack.c.l.b16 %v706
  %v3111 = vunpack.c.l.b16 %v707
  %v3112 = vunpack.c.l.b16 %v708
  %v3113 = vunpack.c.l.b16 %v709
  %v3114 = vunpack.c.l.b16 %v710
  %v3115 = vunpack.c.l.b16 %v711
  %v3116 = vunpack.c.l.b16 %v712
  %v3117 = vunpack.c.l.b16 %v713
  %v3118 = vunpack.c.l.b16 %v714
  %v3119 = vunpack.c.l.b16 %v715
  %v3120 = vunpack.c.l.b16 %v716
  %v3121 = vunpack.c.l.b16 %v717
  %v3122 = vunpack.c.l.b16 %v718
  %v3123 = vunpack.c.l.b16 %v719
  %v3124 = vunpack.c.l.b16 %v720
  %v3125 = vunpack.c.l.b16 %v721
  %v3126 = vunpack.c.l.b16 %v722
  %v3127 = vunpack.c.l.b16 %v723
  %v3128 = vunpack.c.l.b16 %v724
  %v3129 = vunpack.c.l.b16 %v725
  %v3130 = vunpack.c.l.b16 %v726
  %v3131 = vunpack.c.l.b16 %v727
  %v3132 = vunpack.c.l.b16 %v728
  %v3133 = vunpack.c.l.b16 %v729
  %v3134 = vunpack.c.l.b16 %v730
  %v3135 = vunpack.c.l.b16 %v731
  %v3136 = vunpack.c.l.b16 %v732
  %v3137 = vunpack.c.l.b16 %v733
  %v3138 = vunpack.c.l.b16 %v734
  %v3139 = vunpack.c.l.b16 %v735
  %v3140 = vunpack.c.l.b16 %v736
  %v3141 = vunpack.c.l.b16 %v737
  %v3142 = vunpack.c.l.b16 %v738
  %v3143 = vpack.c.b16 %v2744, %v2743
  %v3144 = vpack.c.b16 %v2746, %v2745
  %v3145 = vpack.c.b16 %v2748, %v2747
  %v3146 = vpack.c.b16 %v2750, %v2749
  %v3147 = vpack.c.b16 %v2752, %v2751
  %v3148 = vpack.c.b16 %v2754, %v2753
  %v3149 = vpack.c.b16 %v2756, %v2755
  %v3150 = vpack.c.b16 %v2758, %v2757
  %v3151 = vpack.c.b16 %v2760, %v2759
  %v3152 = vpack.c.b16 %v2762, %v2761
  %v3153 = vpack.c.b16 %v2764, %v2763
  %v3154 = vpack.c.b16 %v2766, %v2765
  %v3155 = vpack.c.b16 %v2768, %v2767
  %v3156 = vpack.c.b16 %v2770, %v2769
  %v3157 = vpack.c.b16 %v2772, %v2771
  %v3158 = vpack.c.b16 %v2774, %v2773
  %v3159 = vpack.c.b16 %v2776, %v2775
  %v3160 = vpack.c.b16 %v2778, %v2777
  %v3161 = vpack.c.b16 %v2780, %v2779
  %v3162 = vpack.c.b16 %v2782, %v2781
  %v3163 = vpack.c.b16 %v2784, %v2783
  %v3164 = vpack.c.b16 %v2786, %v2785
  %v3165 = vpack.c.b16 %v2788, %v2787
  %v3166 = vpack.c.b16 %v2790, %v2789
  %v3167 = vpack.c.b16 %v2792, %v2791
  %v3168 = vpack.c.b16 %v2794, %v2793
  %v3169 = vpack.c.b16 %v2796, %v2795
  %v3170 = vpack.c.b16 %v2798, %v2797
  %v3171 = vpack.c.b16 %v2800, %v2799
  %v3172 = vpack.c.b16 %v2802, %v2801
  %v3173 = vpack.c.b16 %v2804, %v2803
  %v3174 = vpack.c.b16 %v2806, %v2805
  %v3175 = vpack.c.b16 %v2808, %v2807
  %v3176 = vpack.c.b16 %v2810, %v2809
  %v3177 = vpack.c.b16 %v2812, %v2811
  %v3178 = vpack.c.b16 %v2814, %v2813
  %v3179 = vpack.c.b16 %v2816, %v2815
  %v3180 = vpack.c.b16 %v2818, %v2817
  %v3181 = vpack.c.b16 %v2820, %v2819
  %v3182 = vpack.c.b16 %v2822, %v2821
  %v3183 = vpack.c.b16 %v2824, %v2823
  %v3184 = vpack.c.b16 %v2826, %v2825
  %v3185 = vpack.c.b16 %v2828, %v2827
  %v3186 = vpack.c.b16 %v2830, %v2829
  %v3187 = vpack.c.b16 %v2832, %v2831
  %v3188 = vpack.c.b16 %v2834, %v2833
  %v3189 = vpack.c.b16 %v2836, %v2835
  %v3190 = vpack.c.b16 %v2838, %v2837
  %v3191 = vpack.c.b16 %v2840, %v2839
  %v3192 = vpack.c.b16 %v2842, %v2841
  %v3193 = vpack.c.b16 %v2844, %v2843
  %v3194 = vpack.c.b16 %v2846, %v2845
  %v3195 = vpack.c.b16 %v2848, %v2847
  %v3196 = vpack.c.b16 %v2850, %v2849
  %v3197 = vpack.c.b16 %v2852, %v2851
  %v3198 = vpack.c.b16 %v2854, %v2853
  %v3199 = vpack.c.b16 %v2856, %v2855
  %v3200 = vpack.c.b16 %v2858, %v2857
  %v3201 = vpack.c.b16 %v2860, %v2859
  %v3202 = vpack.c.b16 %v2862, %v2861
  %v3203 = vpack.c.b16 %v2864, %v2863
  %v3204 = vpack.c.b16 %v2866, %v2865
  %v3205 = vpack.c.b16 %v2868, %v2867
  %v3206 = vpack.c.b16 %v2870, %v2869
  %v3207 = vpack.c.b16 %v2872, %v2871
  %v3208 = vpack.c.b16 %v2874, %v2873
  %v3209 = vpack.c.b16 %v2876, %v2875
  %v3210 = vpack.c.b16 %v2878, %v2877
  %v3211 = vpack.c.b16 %v2880, %v2879
  %v3212 = vpack.c.b16 %v2882, %v2881
  %v3213 = vpack.c.b16 %v2884, %v2883
  %v3214 = vpack.c.b16 %v2886, %v2885
  %v3215 = vpack.c.b16 %v2888, %v2887
  %v3216 = vpack.c.b16 %v2890, %v2889
  %v3217 = vpack.c.b16 %v2892, %v2891
  %v3218 = vpack.c.b16 %v2894, %v2893
  %v3219 = vpack.c.b16 %v2896, %v2895
  %v3220 = vpack.c.b16 %v2898, %v2897
  %v3221 = vpack.c.b16 %v2900, %v2899
  %v3222 = vpack.c.b16 %v2902, %v2901
  %v3223 = vpack.c.b16 %v2904, %v2903
  %v3224 = vpack.c.b16 %v2906, %v2905
  %v3225 = vpack.c.b16 %v2908, %v2907
  %v3226 = vpack.c.b16 %v2910, %v2909
  %v3227 = vpack.c.b16 %v2912, %v2911
  %v3228 = vpack.c.b16 %v2914, %v2913
  %v3229 = vpack.c.b16 %v2916, %v2915
  %v3230 = vpack.c.b16 %v2918, %v2917
  %v3231 = vpack.c.b16 %v2920, %v2919
  %v3232 = vpack.c.b16 %v2922, %v2921
  %v3233 = vpack.c.b16 %v2924, %v2923
  %v3234 = vpack.c.b16 %v2926, %v2925
  %v3235 = vpack.c.b16 %v2928, %v2927
  %v3236 = vpack.c.b16 %v2930, %v2929
  %v3237 = vpack.c.b16 %v2932, %v2931
  %v3238 = vpack.c.b16 %v2934, %v2933
  %v3239 = vpack.c.b16 %v2936, %v2935
  %v3240 = vpack.c.b16 %v2938, %v2937
  %v3241 = vpack.c.b16 %v2940, %v2939
  %v3242 = vpack.c.b16 %v2942, %v2941
  %v3243 = vpack.c.b16 %v2944, %v2943
  %v3244 = vpack.c.b16 %v2946, %v2945
  %v3245 = vpack.c.b16 %v2948, %v2947
  %v3246 = vpack.c.b16 %v2950, %v2949
  %v3247 = vpack.c.b16 %v2952, %v2951
  %v3248 = vpack.c.b16 %v2954, %v2953
  %v3249 = vpack.c.b16 %v2956, %v2955
  %v3250 = vpack.c.b16 %v2958, %v2957
  %v3251 = vpack.c.b16 %v2960, %v2959
  %v3252 = vpack.c.b16 %v2962, %v2961
  %v3253 = vpack.c.b16 %v2964, %v2963
  %v3254 = vpack.c.b16 %v2966, %v2965
  %v3255 = vpack.c.b16 %v2968, %v2967
  %v3256 = vpack.c.b16 %v2970, %v2969
  %v3257 = vpack.c.b16 %v2972, %v2971
  %v3258 = vpack.c.b16 %v2974, %v2973
  %v3259 = vpack.c.b16 %v2976, %v2975
  %v3260 = vpack.c.b16 %v2978, %v2977
  %v3261 = vpack.c.b16 %v2980, %v2979
  %v3262 = vpack.c.b16 %v2982, %v2981
  %v3263 = vpack.c.b16 %v2984, %v2983
  %v3264 = vpack.c.b16 %v2986, %v2985
  %v3265 = vpack.c.b16 %v2988, %v2987
  %v3266 = vpack.c.b16 %v2990, %v2989
  %v3267 = vpack.c.b16 %v2992, %v2991
  %v3268 = vpack.c.b16 %v2994, %v2993
  %v3269 = vpack.c.b16 %v2996, %v2995
  %v3270 = vpack.c.b16 %v2998, %v2997
  %v3271 = vpack.c.b16 %v3000, %v2999
  %v3272 = vpack.c.b16 %v3002, %v3001
  %v3273 = vpack.c.b16 %v3004, %v3003
  %v3274 = vpack.c.b16 %v3006, %v3005
  %v3275 = vpack.c.b16 %v3008, %v3007
  %v3276 = vpack.c.b16 %v3010, %v3009
  %v3277 = vpack.c.b16 %v3012, %v3011
  %v3278 = vpack.c.b16 %v3014, %v3013
  %v3279 = vpack.c.b16 %v3016, %v3015
  %v3280 = vpack.c.b16 %v3018, %v3017
  %v3281 = vpack.c.b16 %v3020, %v3019
  %v3282 = vpack.c.b16 %v3022, %v3021
  %v3283 = vpack.c.b16 %v3024, %v3023
  %v3284 = vpack.c.b16 %v3026, %v3025
  %v3285 = vpack.c.b16 %v3028, %v3027
  %v3286 = vpack.c.b16 %v3030, %v3029
  %v3287 = vpack.c.b16 %v3032, %v3031
  %v3288 = vpack.c.b16 %v3034, %v3033
  %v3289 = vpack.c.b16 %v3036, %v3035
  %v3290 = vpack.c.b16 %v3038, %v3037
  %v3291 = vpack.c.b16 %v3040, %v3039
  %v3292 = vpack.c.b16 %v3042, %v3041
  %v3293 = vpack.c.b16 %v3044, %v3043
  %v3294 = vpack.c.b16 %v3046, %v3045
  %v3295 = vpack.c.b16 %v3048, %v3047
  %v3296 = vpack.c.b16 %v3050, %v3049
  %v3297 = vpack.c.b16 %v3052, %v3051
  %v3298 = vpack.c.b16 %v3054, %v3053
  %v3299 = vpack.c.b16 %v3056, %v3055
  %v3300 = vpack.c.b16 %v3058, %v3057
  %v3301 = vpack.c.b16 %v3060, %v3059
  %v3302 = vpack.c.b16 %v3062, %v3061
  %v3303 = vpack.c.b16 %v3064, %v3063
  %v3304 = vpack.c.b16 %v3066, %v3065
  %v3305 = vpack.c.b16 %v3068, %v3067
  %v3306 = vpack.c.b16 %v3070, %v3069
  %v3307 = vpack.c.b16 %v3072, %v3071
  %v3308 = vpack.c.b16 %v3074, %v3073
  %v3309 = vpack.c.b16 %v3076, %v3075
  %v3310 = vpack.c.b16 %v3078, %v3077
  %v3311 = vpack.c.b16 %v3080, %v3079
  %v3312 = vpack.c.b16 %v3082, %v3081
  %v3313 = vpack.c.b16 %v3084, %v3083
  %v3314 = vpack.c.b16 %v3086, %v3085
  %v3315 = vpack.c.b16 %v3088, %v3087
  %v3316 = vpack.c.b16 %v3090, %v3089
  %v3317 = vpack.c.b16 %v3092, %v3091
  %v3318 = vpack.c.b16 %v3094, %v3093
  %v3319 = vpack.c.b16 %v3096, %v3095
  %v3320 = vpack.c.b16 %v3098, %v3097
  %v3321 = vpack.c.b16 %v3100, %v3099
  %v3322 = vpack.c.b16 %v3102, %v3101
  %v3323 = vpack.c.b16 %v3104, %v3103
  %v3324 = vpack.c.b16 %v3106, %v3105
  %v3325 = vpack.c.b16 %v3108, %v3107
  %v3326 = vpack.c.b16 %v3110, %v3109
  %v3327 = vpack.c.b16 %v3112, %v3111
  %v3328 = vpack.c.b16 %v3114, %v3113
  %v3329 = vpack.c.b16 %v3116, %v3115
  %v3330 = vpack.c.b16 %v3118, %v3117
  %v3331 = vpack.c.b16 %v3120, %v3119
  %v3332 = vpack.c.b16 %v3122, %v3121
  %v3333 = vpack.c.b16 %v3124, %v3123
  %v3334 = vpack.c.b16 %v3126, %v3125
  %v3335 = vpack.c.b16 %v3128, %v3127
  %v3336 = vpack.c.b16 %v3130, %v3129
  %v3337 = vpack.c.b16 %v3132, %v3131
  %v3338 = vpack.c.b16 %v3134, %v3133
  %v3339 = vpack.c.b16 %v3136, %v3135
  %v3340 = vpack.c.b16 %v3138, %v3137
  %v3341 = vpack.c.b16 %v3140, %v3139
  %v3342 = vpack.c.b16 %v3142, %v3141
  %3543 = vmatpush.bf16.msra.mxu0 %v3150
  %3544 = vmatpush.bf16.msra.mxu0 %v3149
  %3545 = vmatpush.bf16.msra.mxu0 %v3148
  %3546 = vmatpush.bf16.msra.mxu0 %v3147
  %3547 = vmatpush.bf16.msra.mxu0 %v3146
  %3548 = vmatpush.bf16.msra.mxu0 %v3145
  %3549 = vmatpush.bf16.msra.mxu0 %v3144
  %3550 = vmatpush.bf16.msra.mxu0 %v3143
  %3551 = vmatmul.bf16.gmra.mxu0 %v1693
  %v3552 = vpop.f32.mrf.mxu0
  %v3553 = vadd.f32 %v741, %v3552
  %v3554 = vpop.f32.mrf.mxu0
  %v3555 = vadd.f32 %v741, %v3554
  %3556 = vmatmul.bf16.gmra.mxu0 %v1718
  %v3557 = vpop.f32.mrf.mxu0
  %v3558 = vadd.f32 %v741, %v3557
  %v3559 = vpop.f32.mrf.mxu0
  %v3560 = vadd.f32 %v741, %v3559
  %3561 = vmatmul.bf16.gmra.mxu0 %v1743
  %v3562 = vpop.f32.mrf.mxu0
  %v3563 = vadd.f32 %v741, %v3562
  %v3564 = vpop.f32.mrf.mxu0
  %v3565 = vadd.f32 %v741, %v3564
  %3566 = vmatmul.bf16.gmra.mxu0 %v1768
  %v3567 = vpop.f32.mrf.mxu0
  %v3568 = vadd.f32 %v741, %v3567
  %v3569 = vpop.f32.mrf.mxu0
  %v3570 = vadd.f32 %v741, %v3569
  %3571 = vmatmul.bf16.gmra.mxu0 %v1793
  %v3572 = vpop.f32.mrf.mxu0
  %v3573 = vadd.f32 %v741, %v3572
  %v3574 = vpop.f32.mrf.mxu0
  %v3575 = vadd.f32 %v741, %v3574
  %3576 = vmatmul.bf16.gmra.mxu0 %v1818
  %v3577 = vpop.f32.mrf.mxu0
  %v3578 = vadd.f32 %v741, %v3577
  %v3579 = vpop.f32.mrf.mxu0
  %v3580 = vadd.f32 %v741, %v3579
  %3581 = vmatmul.bf16.gmra.mxu0 %v1843
  %v3582 = vpop.f32.mrf.mxu0
  %v3583 = vadd.f32 %v741, %v3582
  %v3584 = vpop.f32.mrf.mxu0
  %v3585 = vadd.f32 %v741, %v3584
  %3586 = vmatmul.bf16.gmra.mxu0 %v1868
  %v3587 = vpop.f32.mrf.mxu0
  %v3588 = vadd.f32 %v741, %v3587
  %v3589 = vpop.f32.mrf.mxu0
  %v3590 = vadd.f32 %v741, %v3589
  %3591 = vmatmul.bf16.gmra.mxu0 %v1893
  %v3592 = vpop.f32.mrf.mxu0
  %v3593 = vadd.f32 %v741, %v3592
  %v3594 = vpop.f32.mrf.mxu0
  %v3595 = vadd.f32 %v741, %v3594
  %3596 = vmatmul.bf16.gmra.mxu0 %v1918
  %v3597 = vpop.f32.mrf.mxu0
  %v3598 = vadd.f32 %v741, %v3597
  %v3599 = vpop.f32.mrf.mxu0
  %v3600 = vadd.f32 %v741, %v3599
  %3601 = vmatmul.bf16.gmra.mxu0 %v1943
  %v3602 = vpop.f32.mrf.mxu0
  %v3603 = vadd.f32 %v741, %v3602
  %v3604 = vpop.f32.mrf.mxu0
  %v3605 = vadd.f32 %v741, %v3604
  %3606 = vmatmul.bf16.gmra.mxu0 %v1968
  %v3607 = vpop.f32.mrf.mxu0
  %v3608 = vadd.f32 %v741, %v3607
  %v3609 = vpop.f32.mrf.mxu0
  %v3610 = vadd.f32 %v741, %v3609
  %3611 = vmatmul.bf16.gmra.mxu0 %v1993
  %v3612 = vpop.f32.mrf.mxu0
  %v3613 = vadd.f32 %v741, %v3612
  %v3614 = vpop.f32.mrf.mxu0
  %3615 = vdwg.mxu0
  %3616 = vmatpush.bf16.msra.mxu0 %v3158
  %3617 = vmatpush.bf16.msra.mxu0 %v3157
  %3618 = vmatpush.bf16.msra.mxu0 %v3156
  %3619 = vmatpush.bf16.msra.mxu0 %v3155
  %3620 = vmatpush.bf16.msra.mxu0 %v3154
  %3621 = vmatpush.bf16.msra.mxu0 %v3153
  %3622 = vmatpush.bf16.msra.mxu0 %v3152
  %3623 = vmatpush.bf16.msra.mxu0 %v3151
  %3624 = vmatmul.bf16.gmra.mxu0 %v1694
  %v3625 = vpop.f32.mrf.mxu0
  %v3626 = vadd.f32 %v3553, %v3625
  %v3627 = vpop.f32.mrf.mxu0
  %v3628 = vadd.f32 %v3555, %v3627
  %3629 = vmatmul.bf16.gmra.mxu0 %v1719
  %v3630 = vpop.f32.mrf.mxu0
  %v3631 = vadd.f32 %v3558, %v3630
  %v3632 = vpop.f32.mrf.mxu0
  %v3633 = vadd.f32 %v3560, %v3632
  %3634 = vmatmul.bf16.gmra.mxu0 %v1744
  %v3635 = vpop.f32.mrf.mxu0
  %v3636 = vadd.f32 %v3563, %v3635
  %v3637 = vpop.f32.mrf.mxu0
  %v3638 = vadd.f32 %v3565, %v3637
  %3639 = vmatmul.bf16.gmra.mxu0 %v1769
  %v3640 = vpop.f32.mrf.mxu0
  %v3641 = vadd.f32 %v3568, %v3640
  %v3642 = vpop.f32.mrf.mxu0
  %v3643 = vadd.f32 %v3570, %v3642
  %3644 = vmatmul.bf16.gmra.mxu0 %v1794
  %v3645 = vpop.f32.mrf.mxu0
  %v3646 = vadd.f32 %v3573, %v3645
  %v3647 = vpop.f32.mrf.mxu0
  %v3648 = vadd.f32 %v3575, %v3647
  %3649 = vmatmul.bf16.gmra.mxu0 %v1819
  %v3650 = vpop.f32.mrf.mxu0
  %v3651 = vadd.f32 %v3578, %v3650
  %v3652 = vpop.f32.mrf.mxu0
  %v3653 = vadd.f32 %v3580, %v3652
  %3654 = vmatmul.bf16.gmra.mxu0 %v1844
  %v3655 = vpop.f32.mrf.mxu0
  %v3656 = vadd.f32 %v3583, %v3655
  %v3657 = vpop.f32.mrf.mxu0
  %v3658 = vadd.f32 %v3585, %v3657
  %3659 = vmatmul.bf16.gmra.mxu0 %v1869
  %v3660 = vpop.f32.mrf.mxu0
  %v3661 = vadd.f32 %v3588, %v3660
  %v3662 = vpop.f32.mrf.mxu0
  %v3663 = vadd.f32 %v3590, %v3662
  %3664 = vmatmul.bf16.gmra.mxu0 %v1894
  %v3665 = vpop.f32.mrf.mxu0
  %v3666 = vadd.f32 %v3593, %v3665
  %v3667 = vpop.f32.mrf.mxu0
  %v3668 = vadd.f32 %v3595, %v3667
  %3669 = vmatmul.bf16.gmra.mxu0 %v1919
  %v3670 = vpop.f32.mrf.mxu0
  %v3671 = vadd.f32 %v3598, %v3670
  %v3672 = vpop.f32.mrf.mxu0
  %v3673 = vadd.f32 %v3600, %v3672
  %3674 = vmatmul.bf16.gmra.mxu0 %v1944
  %v3675 = vpop.f32.mrf.mxu0
  %v3676 = vadd.f32 %v3603, %v3675
  %v3677 = vpop.f32.mrf.mxu0
  %v3678 = vadd.f32 %v3605, %v3677
  %3679 = vmatmul.bf16.gmra.mxu0 %v1969
  %v3680 = vpop.f32.mrf.mxu0
  %v3681 = vadd.f32 %v3608, %v3680
  %v3682 = vpop.f32.mrf.mxu0
  %v3683 = vadd.f32 %v3610, %v3682
  %3684 = vmatmul.bf16.gmra.mxu0 %v1994
  %v3685 = vpop.f32.mrf.mxu0
  %v3686 = vadd.f32 %v3613, %v3685
  %v3687 = vpop.f32.mrf.mxu0
  %3688 = vdwg.mxu0
  %3689 = vmatpush.bf16.msra.mxu0 %v3166
  %3690 = vmatpush.bf16.msra.mxu0 %v3165
  %3691 = vmatpush.bf16.msra.mxu0 %v3164
  %3692 = vmatpush.bf16.msra.mxu0 %v3163
  %3693 = vmatpush.bf16.msra.mxu0 %v3162
  %3694 = vmatpush.bf16.msra.mxu0 %v3161
  %3695 = vmatpush.bf16.msra.mxu0 %v3160
  %3696 = vmatpush.bf16.msra.mxu0 %v3159
  %3697 = vmatmul.bf16.gmra.mxu0 %v1695
  %v3698 = vpop.f32.mrf.mxu0
  %v3699 = vadd.f32 %v3626, %v3698
  %v3700 = vpop.f32.mrf.mxu0
  %v3701 = vadd.f32 %v3628, %v3700
  %3702 = vmatmul.bf16.gmra.mxu0 %v1720
  %v3703 = vpop.f32.mrf.mxu0
  %v3704 = vadd.f32 %v3631, %v3703
  %v3705 = vpop.f32.mrf.mxu0
  %v3706 = vadd.f32 %v3633, %v3705
  %3707 = vmatmul.bf16.gmra.mxu0 %v1745
  %v3708 = vpop.f32.mrf.mxu0
  %v3709 = vadd.f32 %v3636, %v3708
  %v3710 = vpop.f32.mrf.mxu0
  %v3711 = vadd.f32 %v3638, %v3710
  %3712 = vmatmul.bf16.gmra.mxu0 %v1770
  %v3713 = vpop.f32.mrf.mxu0
  %v3714 = vadd.f32 %v3641, %v3713
  %v3715 = vpop.f32.mrf.mxu0
  %v3716 = vadd.f32 %v3643, %v3715
  %3717 = vmatmul.bf16.gmra.mxu0 %v1795
  %v3718 = vpop.f32.mrf.mxu0
  %v3719 = vadd.f32 %v3646, %v3718
  %v3720 = vpop.f32.mrf.mxu0
  %v3721 = vadd.f32 %v3648, %v3720
  %3722 = vmatmul.bf16.gmra.mxu0 %v1820
  %v3723 = vpop.f32.mrf.mxu0
  %v3724 = vadd.f32 %v3651, %v3723
  %v3725 = vpop.f32.mrf.mxu0
  %v3726 = vadd.f32 %v3653, %v3725
  %3727 = vmatmul.bf16.gmra.mxu0 %v1845
  %v3728 = vpop.f32.mrf.mxu0
  %v3729 = vadd.f32 %v3656, %v3728
  %v3730 = vpop.f32.mrf.mxu0
  %v3731 = vadd.f32 %v3658, %v3730
  %3732 = vmatmul.bf16.gmra.mxu0 %v1870
  %v3733 = vpop.f32.mrf.mxu0
  %v3734 = vadd.f32 %v3661, %v3733
  %v3735 = vpop.f32.mrf.mxu0
  %v3736 = vadd.f32 %v3663, %v3735
  %3737 = vmatmul.bf16.gmra.mxu0 %v1895
  %v3738 = vpop.f32.mrf.mxu0
  %v3739 = vadd.f32 %v3666, %v3738
  %v3740 = vpop.f32.mrf.mxu0
  %v3741 = vadd.f32 %v3668, %v3740
  %3742 = vmatmul.bf16.gmra.mxu0 %v1920
  %v3743 = vpop.f32.mrf.mxu0
  %v3744 = vadd.f32 %v3671, %v3743
  %v3745 = vpop.f32.mrf.mxu0
  %v3746 = vadd.f32 %v3673, %v3745
  %3747 = vmatmul.bf16.gmra.mxu0 %v1945
  %v3748 = vpop.f32.mrf.mxu0
  %v3749 = vadd.f32 %v3676, %v3748
  %v3750 = vpop.f32.mrf.mxu0
  %v3751 = vadd.f32 %v3678, %v3750
  %3752 = vmatmul.bf16.gmra.mxu0 %v1970
  %v3753 = vpop.f32.mrf.mxu0
  %v3754 = vadd.f32 %v3681, %v3753
  %v3755 = vpop.f32.mrf.mxu0
  %v3756 = vadd.f32 %v3683, %v3755
  %3757 = vmatmul.bf16.gmra.mxu0 %v1995
  %v3758 = vpop.f32.mrf.mxu0
  %v3759 = vadd.f32 %v3686, %v3758
  %v3760 = vpop.f32.mrf.mxu0
  %3761 = vdwg.mxu0
  %3762 = vmatpush.bf16.msra.mxu0 %v3174
  %3763 = vmatpush.bf16.msra.mxu0 %v3173
  %3764 = vmatpush.bf16.msra.mxu0 %v3172
  %3765 = vmatpush.bf16.msra.mxu0 %v3171
  %3766 = vmatpush.bf16.msra.mxu0 %v3170
  %3767 = vmatpush.bf16.msra.mxu0 %v3169
  %3768 = vmatpush.bf16.msra.mxu0 %v3168
  %3769 = vmatpush.bf16.msra.mxu0 %v3167
  %3770 = vmatmul.bf16.gmra.mxu0 %v1696
  %v3771 = vpop.f32.mrf.mxu0
  %v3772 = vadd.f32 %v3699, %v3771
  %v3773 = vpop.f32.mrf.mxu0
  %v3774 = vadd.f32 %v3701, %v3773
  %3775 = vmatmul.bf16.gmra.mxu0 %v1721
  %v3776 = vpop.f32.mrf.mxu0
  %v3777 = vadd.f32 %v3704, %v3776
  %v3778 = vpop.f32.mrf.mxu0
  %v3779 = vadd.f32 %v3706, %v3778
  %3780 = vmatmul.bf16.gmra.mxu0 %v1746
  %v3781 = vpop.f32.mrf.mxu0
  %v3782 = vadd.f32 %v3709, %v3781
  %v3783 = vpop.f32.mrf.mxu0
  %v3784 = vadd.f32 %v3711, %v3783
  %3785 = vmatmul.bf16.gmra.mxu0 %v1771
  %v3786 = vpop.f32.mrf.mxu0
  %v3787 = vadd.f32 %v3714, %v3786
  %v3788 = vpop.f32.mrf.mxu0
  %v3789 = vadd.f32 %v3716, %v3788
  %3790 = vmatmul.bf16.gmra.mxu0 %v1796
  %v3791 = vpop.f32.mrf.mxu0
  %v3792 = vadd.f32 %v3719, %v3791
  %v3793 = vpop.f32.mrf.mxu0
  %v3794 = vadd.f32 %v3721, %v3793
  %3795 = vmatmul.bf16.gmra.mxu0 %v1821
  %v3796 = vpop.f32.mrf.mxu0
  %v3797 = vadd.f32 %v3724, %v3796
  %v3798 = vpop.f32.mrf.mxu0
  %v3799 = vadd.f32 %v3726, %v3798
  %3800 = vmatmul.bf16.gmra.mxu0 %v1846
  %v3801 = vpop.f32.mrf.mxu0
  %v3802 = vadd.f32 %v3729, %v3801
  %v3803 = vpop.f32.mrf.mxu0
  %v3804 = vadd.f32 %v3731, %v3803
  %3805 = vmatmul.bf16.gmra.mxu0 %v1871
  %v3806 = vpop.f32.mrf.mxu0
  %v3807 = vadd.f32 %v3734, %v3806
  %v3808 = vpop.f32.mrf.mxu0
  %v3809 = vadd.f32 %v3736, %v3808
  %3810 = vmatmul.bf16.gmra.mxu0 %v1896
  %v3811 = vpop.f32.mrf.mxu0
  %v3812 = vadd.f32 %v3739, %v3811
  %v3813 = vpop.f32.mrf.mxu0
  %v3814 = vadd.f32 %v3741, %v3813
  %3815 = vmatmul.bf16.gmra.mxu0 %v1921
  %v3816 = vpop.f32.mrf.mxu0
  %v3817 = vadd.f32 %v3744, %v3816
  %v3818 = vpop.f32.mrf.mxu0
  %v3819 = vadd.f32 %v3746, %v3818
  %3820 = vmatmul.bf16.gmra.mxu0 %v1946
  %v3821 = vpop.f32.mrf.mxu0
  %v3822 = vadd.f32 %v3749, %v3821
  %v3823 = vpop.f32.mrf.mxu0
  %v3824 = vadd.f32 %v3751, %v3823
  %3825 = vmatmul.bf16.gmra.mxu0 %v1971
  %v3826 = vpop.f32.mrf.mxu0
  %v3827 = vadd.f32 %v3754, %v3826
  %v3828 = vpop.f32.mrf.mxu0
  %v3829 = vadd.f32 %v3756, %v3828
  %3830 = vmatmul.bf16.gmra.mxu0 %v1996
  %v3831 = vpop.f32.mrf.mxu0
  %v3832 = vadd.f32 %v3759, %v3831
  %v3833 = vpop.f32.mrf.mxu0
  %3834 = vdwg.mxu0
  %3835 = vmatpush.bf16.msra.mxu0 %v3182
  %3836 = vmatpush.bf16.msra.mxu0 %v3181
  %3837 = vmatpush.bf16.msra.mxu0 %v3180
  %3838 = vmatpush.bf16.msra.mxu0 %v3179
  %3839 = vmatpush.bf16.msra.mxu0 %v3178
  %3840 = vmatpush.bf16.msra.mxu0 %v3177
  %3841 = vmatpush.bf16.msra.mxu0 %v3176
  %3842 = vmatpush.bf16.msra.mxu0 %v3175
  %3843 = vmatmul.bf16.gmra.mxu0 %v1697
  %v3844 = vpop.f32.mrf.mxu0
  %v3845 = vadd.f32 %v3772, %v3844
  %v3846 = vpop.f32.mrf.mxu0
  %v3847 = vadd.f32 %v3774, %v3846
  %3848 = vmatmul.bf16.gmra.mxu0 %v1722
  %v3849 = vpop.f32.mrf.mxu0
  %v3850 = vadd.f32 %v3777, %v3849
  %v3851 = vpop.f32.mrf.mxu0
  %v3852 = vadd.f32 %v3779, %v3851
  %3853 = vmatmul.bf16.gmra.mxu0 %v1747
  %v3854 = vpop.f32.mrf.mxu0
  %v3855 = vadd.f32 %v3782, %v3854
  %v3856 = vpop.f32.mrf.mxu0
  %v3857 = vadd.f32 %v3784, %v3856
  %3858 = vmatmul.bf16.gmra.mxu0 %v1772
  %v3859 = vpop.f32.mrf.mxu0
  %v3860 = vadd.f32 %v3787, %v3859
  %v3861 = vpop.f32.mrf.mxu0
  %v3862 = vadd.f32 %v3789, %v3861
  %3863 = vmatmul.bf16.gmra.mxu0 %v1797
  %v3864 = vpop.f32.mrf.mxu0
  %v3865 = vadd.f32 %v3792, %v3864
  %v3866 = vpop.f32.mrf.mxu0
  %v3867 = vadd.f32 %v3794, %v3866
  %3868 = vmatmul.bf16.gmra.mxu0 %v1822
  %v3869 = vpop.f32.mrf.mxu0
  %v3870 = vadd.f32 %v3797, %v3869
  %v3871 = vpop.f32.mrf.mxu0
  %v3872 = vadd.f32 %v3799, %v3871
  %3873 = vmatmul.bf16.gmra.mxu0 %v1847
  %v3874 = vpop.f32.mrf.mxu0
  %v3875 = vadd.f32 %v3802, %v3874
  %v3876 = vpop.f32.mrf.mxu0
  %v3877 = vadd.f32 %v3804, %v3876
  %3878 = vmatmul.bf16.gmra.mxu0 %v1872
  %v3879 = vpop.f32.mrf.mxu0
  %v3880 = vadd.f32 %v3807, %v3879
  %v3881 = vpop.f32.mrf.mxu0
  %v3882 = vadd.f32 %v3809, %v3881
  %3883 = vmatmul.bf16.gmra.mxu0 %v1897
  %v3884 = vpop.f32.mrf.mxu0
  %v3885 = vadd.f32 %v3812, %v3884
  %v3886 = vpop.f32.mrf.mxu0
  %v3887 = vadd.f32 %v3814, %v3886
  %3888 = vmatmul.bf16.gmra.mxu0 %v1922
  %v3889 = vpop.f32.mrf.mxu0
  %v3890 = vadd.f32 %v3817, %v3889
  %v3891 = vpop.f32.mrf.mxu0
  %v3892 = vadd.f32 %v3819, %v3891
  %3893 = vmatmul.bf16.gmra.mxu0 %v1947
  %v3894 = vpop.f32.mrf.mxu0
  %v3895 = vadd.f32 %v3822, %v3894
  %v3896 = vpop.f32.mrf.mxu0
  %v3897 = vadd.f32 %v3824, %v3896
  %3898 = vmatmul.bf16.gmra.mxu0 %v1972
  %v3899 = vpop.f32.mrf.mxu0
  %v3900 = vadd.f32 %v3827, %v3899
  %v3901 = vpop.f32.mrf.mxu0
  %v3902 = vadd.f32 %v3829, %v3901
  %3903 = vmatmul.bf16.gmra.mxu0 %v1997
  %v3904 = vpop.f32.mrf.mxu0
  %v3905 = vadd.f32 %v3832, %v3904
  %v3906 = vpop.f32.mrf.mxu0
  %3907 = vdwg.mxu0
  %3908 = vmatpush.bf16.msra.mxu0 %v3190
  %3909 = vmatpush.bf16.msra.mxu0 %v3189
  %3910 = vmatpush.bf16.msra.mxu0 %v3188
  %3911 = vmatpush.bf16.msra.mxu0 %v3187
  %3912 = vmatpush.bf16.msra.mxu0 %v3186
  %3913 = vmatpush.bf16.msra.mxu0 %v3185
  %3914 = vmatpush.bf16.msra.mxu0 %v3184
  %3915 = vmatpush.bf16.msra.mxu0 %v3183
  %3916 = vmatmul.bf16.gmra.mxu0 %v1698
  %v3917 = vpop.f32.mrf.mxu0
  %v3918 = vadd.f32 %v3845, %v3917
  %v3919 = vpop.f32.mrf.mxu0
  %v3920 = vadd.f32 %v3847, %v3919
  %3921 = vmatmul.bf16.gmra.mxu0 %v1723
  %v3922 = vpop.f32.mrf.mxu0
  %v3923 = vadd.f32 %v3850, %v3922
  %v3924 = vpop.f32.mrf.mxu0
  %v3925 = vadd.f32 %v3852, %v3924
  %3926 = vmatmul.bf16.gmra.mxu0 %v1748
  %v3927 = vpop.f32.mrf.mxu0
  %v3928 = vadd.f32 %v3855, %v3927
  %v3929 = vpop.f32.mrf.mxu0
  %v3930 = vadd.f32 %v3857, %v3929
  %3931 = vmatmul.bf16.gmra.mxu0 %v1773
  %v3932 = vpop.f32.mrf.mxu0
  %v3933 = vadd.f32 %v3860, %v3932
  %v3934 = vpop.f32.mrf.mxu0
  %v3935 = vadd.f32 %v3862, %v3934
  %3936 = vmatmul.bf16.gmra.mxu0 %v1798
  %v3937 = vpop.f32.mrf.mxu0
  %v3938 = vadd.f32 %v3865, %v3937
  %v3939 = vpop.f32.mrf.mxu0
  %v3940 = vadd.f32 %v3867, %v3939
  %3941 = vmatmul.bf16.gmra.mxu0 %v1823
  %v3942 = vpop.f32.mrf.mxu0
  %v3943 = vadd.f32 %v3870, %v3942
  %v3944 = vpop.f32.mrf.mxu0
  %v3945 = vadd.f32 %v3872, %v3944
  %3946 = vmatmul.bf16.gmra.mxu0 %v1848
  %v3947 = vpop.f32.mrf.mxu0
  %v3948 = vadd.f32 %v3875, %v3947
  %v3949 = vpop.f32.mrf.mxu0
  %v3950 = vadd.f32 %v3877, %v3949
  %3951 = vmatmul.bf16.gmra.mxu0 %v1873
  %v3952 = vpop.f32.mrf.mxu0
  %v3953 = vadd.f32 %v3880, %v3952
  %v3954 = vpop.f32.mrf.mxu0
  %v3955 = vadd.f32 %v3882, %v3954
  %3956 = vmatmul.bf16.gmra.mxu0 %v1898
  %v3957 = vpop.f32.mrf.mxu0
  %v3958 = vadd.f32 %v3885, %v3957
  %v3959 = vpop.f32.mrf.mxu0
  %v3960 = vadd.f32 %v3887, %v3959
  %3961 = vmatmul.bf16.gmra.mxu0 %v1923
  %v3962 = vpop.f32.mrf.mxu0
  %v3963 = vadd.f32 %v3890, %v3962
  %v3964 = vpop.f32.mrf.mxu0
  %v3965 = vadd.f32 %v3892, %v3964
  %3966 = vmatmul.bf16.gmra.mxu0 %v1948
  %v3967 = vpop.f32.mrf.mxu0
  %v3968 = vadd.f32 %v3895, %v3967
  %v3969 = vpop.f32.mrf.mxu0
  %v3970 = vadd.f32 %v3897, %v3969
  %3971 = vmatmul.bf16.gmra.mxu0 %v1973
  %v3972 = vpop.f32.mrf.mxu0
  %v3973 = vadd.f32 %v3900, %v3972
  %v3974 = vpop.f32.mrf.mxu0
  %v3975 = vadd.f32 %v3902, %v3974
  %3976 = vmatmul.bf16.gmra.mxu0 %v1998
  %v3977 = vpop.f32.mrf.mxu0
  %v3978 = vadd.f32 %v3905, %v3977
  %v3979 = vpop.f32.mrf.mxu0
  %3980 = vdwg.mxu0
  %3981 = vmatpush.bf16.msra.mxu0 %v3198
  %3982 = vmatpush.bf16.msra.mxu0 %v3197
  %3983 = vmatpush.bf16.msra.mxu0 %v3196
  %3984 = vmatpush.bf16.msra.mxu0 %v3195
  %3985 = vmatpush.bf16.msra.mxu0 %v3194
  %3986 = vmatpush.bf16.msra.mxu0 %v3193
  %3987 = vmatpush.bf16.msra.mxu0 %v3192
  %3988 = vmatpush.bf16.msra.mxu0 %v3191
  %3989 = vmatmul.bf16.gmra.mxu0 %v1699
  %v3990 = vpop.f32.mrf.mxu0
  %v3991 = vadd.f32 %v3918, %v3990
  %v3992 = vpop.f32.mrf.mxu0
  %v3993 = vadd.f32 %v3920, %v3992
  %3994 = vmatmul.bf16.gmra.mxu0 %v1724
  %v3995 = vpop.f32.mrf.mxu0
  %v3996 = vadd.f32 %v3923, %v3995
  %v3997 = vpop.f32.mrf.mxu0
  %v3998 = vadd.f32 %v3925, %v3997
  %3999 = vmatmul.bf16.gmra.mxu0 %v1749
  %v4000 = vpop.f32.mrf.mxu0
  %v4001 = vadd.f32 %v3928, %v4000
  %v4002 = vpop.f32.mrf.mxu0
  %v4003 = vadd.f32 %v3930, %v4002
  %4004 = vmatmul.bf16.gmra.mxu0 %v1774
  %v4005 = vpop.f32.mrf.mxu0
  %v4006 = vadd.f32 %v3933, %v4005
  %v4007 = vpop.f32.mrf.mxu0
  %v4008 = vadd.f32 %v3935, %v4007
  %4009 = vmatmul.bf16.gmra.mxu0 %v1799
  %v4010 = vpop.f32.mrf.mxu0
  %v4011 = vadd.f32 %v3938, %v4010
  %v4012 = vpop.f32.mrf.mxu0
  %v4013 = vadd.f32 %v3940, %v4012
  %4014 = vmatmul.bf16.gmra.mxu0 %v1824
  %v4015 = vpop.f32.mrf.mxu0
  %v4016 = vadd.f32 %v3943, %v4015
  %v4017 = vpop.f32.mrf.mxu0
  %v4018 = vadd.f32 %v3945, %v4017
  %4019 = vmatmul.bf16.gmra.mxu0 %v1849
  %v4020 = vpop.f32.mrf.mxu0
  %v4021 = vadd.f32 %v3948, %v4020
  %v4022 = vpop.f32.mrf.mxu0
  %v4023 = vadd.f32 %v3950, %v4022
  %4024 = vmatmul.bf16.gmra.mxu0 %v1874
  %v4025 = vpop.f32.mrf.mxu0
  %v4026 = vadd.f32 %v3953, %v4025
  %v4027 = vpop.f32.mrf.mxu0
  %v4028 = vadd.f32 %v3955, %v4027
  %4029 = vmatmul.bf16.gmra.mxu0 %v1899
  %v4030 = vpop.f32.mrf.mxu0
  %v4031 = vadd.f32 %v3958, %v4030
  %v4032 = vpop.f32.mrf.mxu0
  %v4033 = vadd.f32 %v3960, %v4032
  %4034 = vmatmul.bf16.gmra.mxu0 %v1924
  %v4035 = vpop.f32.mrf.mxu0
  %v4036 = vadd.f32 %v3963, %v4035
  %v4037 = vpop.f32.mrf.mxu0
  %v4038 = vadd.f32 %v3965, %v4037
  %4039 = vmatmul.bf16.gmra.mxu0 %v1949
  %v4040 = vpop.f32.mrf.mxu0
  %v4041 = vadd.f32 %v3968, %v4040
  %v4042 = vpop.f32.mrf.mxu0
  %v4043 = vadd.f32 %v3970, %v4042
  %4044 = vmatmul.bf16.gmra.mxu0 %v1974
  %v4045 = vpop.f32.mrf.mxu0
  %v4046 = vadd.f32 %v3973, %v4045
  %v4047 = vpop.f32.mrf.mxu0
  %v4048 = vadd.f32 %v3975, %v4047
  %4049 = vmatmul.bf16.gmra.mxu0 %v1999
  %v4050 = vpop.f32.mrf.mxu0
  %v4051 = vadd.f32 %v3978, %v4050
  %v4052 = vpop.f32.mrf.mxu0
  %4053 = vdwg.mxu0
  %4054 = vmatpush.bf16.msra.mxu0 %v3206
  %4055 = vmatpush.bf16.msra.mxu0 %v3205
  %4056 = vmatpush.bf16.msra.mxu0 %v3204
  %4057 = vmatpush.bf16.msra.mxu0 %v3203
  %4058 = vmatpush.bf16.msra.mxu0 %v3202
  %4059 = vmatpush.bf16.msra.mxu0 %v3201
  %4060 = vmatpush.bf16.msra.mxu0 %v3200
  %4061 = vmatpush.bf16.msra.mxu0 %v3199
  %4062 = vmatmul.bf16.gmra.mxu0 %v1700
  %v4063 = vpop.f32.mrf.mxu0
  %v4064 = vadd.f32 %v3991, %v4063
  %v4065 = vpop.f32.mrf.mxu0
  %v4066 = vadd.f32 %v3993, %v4065
  %4067 = vmatmul.bf16.gmra.mxu0 %v1725
  %v4068 = vpop.f32.mrf.mxu0
  %v4069 = vadd.f32 %v3996, %v4068
  %v4070 = vpop.f32.mrf.mxu0
  %v4071 = vadd.f32 %v3998, %v4070
  %4072 = vmatmul.bf16.gmra.mxu0 %v1750
  %v4073 = vpop.f32.mrf.mxu0
  %v4074 = vadd.f32 %v4001, %v4073
  %v4075 = vpop.f32.mrf.mxu0
  %v4076 = vadd.f32 %v4003, %v4075
  %4077 = vmatmul.bf16.gmra.mxu0 %v1775
  %v4078 = vpop.f32.mrf.mxu0
  %v4079 = vadd.f32 %v4006, %v4078
  %v4080 = vpop.f32.mrf.mxu0
  %v4081 = vadd.f32 %v4008, %v4080
  %4082 = vmatmul.bf16.gmra.mxu0 %v1800
  %v4083 = vpop.f32.mrf.mxu0
  %v4084 = vadd.f32 %v4011, %v4083
  %v4085 = vpop.f32.mrf.mxu0
  %v4086 = vadd.f32 %v4013, %v4085
  %4087 = vmatmul.bf16.gmra.mxu0 %v1825
  %v4088 = vpop.f32.mrf.mxu0
  %v4089 = vadd.f32 %v4016, %v4088
  %v4090 = vpop.f32.mrf.mxu0
  %v4091 = vadd.f32 %v4018, %v4090
  %4092 = vmatmul.bf16.gmra.mxu0 %v1850
  %v4093 = vpop.f32.mrf.mxu0
  %v4094 = vadd.f32 %v4021, %v4093
  %v4095 = vpop.f32.mrf.mxu0
  %v4096 = vadd.f32 %v4023, %v4095
  %4097 = vmatmul.bf16.gmra.mxu0 %v1875
  %v4098 = vpop.f32.mrf.mxu0
  %v4099 = vadd.f32 %v4026, %v4098
  %v4100 = vpop.f32.mrf.mxu0
  %v4101 = vadd.f32 %v4028, %v4100
  %4102 = vmatmul.bf16.gmra.mxu0 %v1900
  %v4103 = vpop.f32.mrf.mxu0
  %v4104 = vadd.f32 %v4031, %v4103
  %v4105 = vpop.f32.mrf.mxu0
  %v4106 = vadd.f32 %v4033, %v4105
  %4107 = vmatmul.bf16.gmra.mxu0 %v1925
  %v4108 = vpop.f32.mrf.mxu0
  %v4109 = vadd.f32 %v4036, %v4108
  %v4110 = vpop.f32.mrf.mxu0
  %v4111 = vadd.f32 %v4038, %v4110
  %4112 = vmatmul.bf16.gmra.mxu0 %v1950
  %v4113 = vpop.f32.mrf.mxu0
  %v4114 = vadd.f32 %v4041, %v4113
  %v4115 = vpop.f32.mrf.mxu0
  %v4116 = vadd.f32 %v4043, %v4115
  %4117 = vmatmul.bf16.gmra.mxu0 %v1975
  %v4118 = vpop.f32.mrf.mxu0
  %v4119 = vadd.f32 %v4046, %v4118
  %v4120 = vpop.f32.mrf.mxu0
  %v4121 = vadd.f32 %v4048, %v4120
  %4122 = vmatmul.bf16.gmra.mxu0 %v2000
  %v4123 = vpop.f32.mrf.mxu0
  %v4124 = vadd.f32 %v4051, %v4123
  %v4125 = vpop.f32.mrf.mxu0
  %4126 = vdwg.mxu0
  %4127 = vmatpush.bf16.msra.mxu0 %v3214
  %4128 = vmatpush.bf16.msra.mxu0 %v3213
  %4129 = vmatpush.bf16.msra.mxu0 %v3212
  %4130 = vmatpush.bf16.msra.mxu0 %v3211
  %4131 = vmatpush.bf16.msra.mxu0 %v3210
  %4132 = vmatpush.bf16.msra.mxu0 %v3209
  %4133 = vmatpush.bf16.msra.mxu0 %v3208
  %4134 = vmatpush.bf16.msra.mxu0 %v3207
  %4135 = vmatmul.bf16.gmra.mxu0 %v1701
  %v4136 = vpop.f32.mrf.mxu0
  %v4137 = vadd.f32 %v4064, %v4136
  %v4138 = vpop.f32.mrf.mxu0
  %v4139 = vadd.f32 %v4066, %v4138
  %4140 = vmatmul.bf16.gmra.mxu0 %v1726
  %v4141 = vpop.f32.mrf.mxu0
  %v4142 = vadd.f32 %v4069, %v4141
  %v4143 = vpop.f32.mrf.mxu0
  %v4144 = vadd.f32 %v4071, %v4143
  %4145 = vmatmul.bf16.gmra.mxu0 %v1751
  %v4146 = vpop.f32.mrf.mxu0
  %v4147 = vadd.f32 %v4074, %v4146
  %v4148 = vpop.f32.mrf.mxu0
  %v4149 = vadd.f32 %v4076, %v4148
  %4150 = vmatmul.bf16.gmra.mxu0 %v1776
  %v4151 = vpop.f32.mrf.mxu0
  %v4152 = vadd.f32 %v4079, %v4151
  %v4153 = vpop.f32.mrf.mxu0
  %v4154 = vadd.f32 %v4081, %v4153
  %4155 = vmatmul.bf16.gmra.mxu0 %v1801
  %v4156 = vpop.f32.mrf.mxu0
  %v4157 = vadd.f32 %v4084, %v4156
  %v4158 = vpop.f32.mrf.mxu0
  %v4159 = vadd.f32 %v4086, %v4158
  %4160 = vmatmul.bf16.gmra.mxu0 %v1826
  %v4161 = vpop.f32.mrf.mxu0
  %v4162 = vadd.f32 %v4089, %v4161
  %v4163 = vpop.f32.mrf.mxu0
  %v4164 = vadd.f32 %v4091, %v4163
  %4165 = vmatmul.bf16.gmra.mxu0 %v1851
  %v4166 = vpop.f32.mrf.mxu0
  %v4167 = vadd.f32 %v4094, %v4166
  %v4168 = vpop.f32.mrf.mxu0
  %v4169 = vadd.f32 %v4096, %v4168
  %4170 = vmatmul.bf16.gmra.mxu0 %v1876
  %v4171 = vpop.f32.mrf.mxu0
  %v4172 = vadd.f32 %v4099, %v4171
  %v4173 = vpop.f32.mrf.mxu0
  %v4174 = vadd.f32 %v4101, %v4173
  %4175 = vmatmul.bf16.gmra.mxu0 %v1901
  %v4176 = vpop.f32.mrf.mxu0
  %v4177 = vadd.f32 %v4104, %v4176
  %v4178 = vpop.f32.mrf.mxu0
  %v4179 = vadd.f32 %v4106, %v4178
  %4180 = vmatmul.bf16.gmra.mxu0 %v1926
  %v4181 = vpop.f32.mrf.mxu0
  %v4182 = vadd.f32 %v4109, %v4181
  %v4183 = vpop.f32.mrf.mxu0
  %v4184 = vadd.f32 %v4111, %v4183
  %4185 = vmatmul.bf16.gmra.mxu0 %v1951
  %v4186 = vpop.f32.mrf.mxu0
  %v4187 = vadd.f32 %v4114, %v4186
  %v4188 = vpop.f32.mrf.mxu0
  %v4189 = vadd.f32 %v4116, %v4188
  %4190 = vmatmul.bf16.gmra.mxu0 %v1976
  %v4191 = vpop.f32.mrf.mxu0
  %v4192 = vadd.f32 %v4119, %v4191
  %v4193 = vpop.f32.mrf.mxu0
  %v4194 = vadd.f32 %v4121, %v4193
  %4195 = vmatmul.bf16.gmra.mxu0 %v2001
  %v4196 = vpop.f32.mrf.mxu0
  %v4197 = vadd.f32 %v4124, %v4196
  %v4198 = vpop.f32.mrf.mxu0
  %4199 = vdwg.mxu0
  %4200 = vmatpush.bf16.msra.mxu0 %v3222
  %4201 = vmatpush.bf16.msra.mxu0 %v3221
  %4202 = vmatpush.bf16.msra.mxu0 %v3220
  %4203 = vmatpush.bf16.msra.mxu0 %v3219
  %4204 = vmatpush.bf16.msra.mxu0 %v3218
  %4205 = vmatpush.bf16.msra.mxu0 %v3217
  %4206 = vmatpush.bf16.msra.mxu0 %v3216
  %4207 = vmatpush.bf16.msra.mxu0 %v3215
  %4208 = vmatmul.bf16.gmra.mxu0 %v1702
  %v4209 = vpop.f32.mrf.mxu0
  %v4210 = vadd.f32 %v4137, %v4209
  %v4211 = vpop.f32.mrf.mxu0
  %v4212 = vadd.f32 %v4139, %v4211
  %4213 = vmatmul.bf16.gmra.mxu0 %v1727
  %v4214 = vpop.f32.mrf.mxu0
  %v4215 = vadd.f32 %v4142, %v4214
  %v4216 = vpop.f32.mrf.mxu0
  %v4217 = vadd.f32 %v4144, %v4216
  %4218 = vmatmul.bf16.gmra.mxu0 %v1752
  %v4219 = vpop.f32.mrf.mxu0
  %v4220 = vadd.f32 %v4147, %v4219
  %v4221 = vpop.f32.mrf.mxu0
  %v4222 = vadd.f32 %v4149, %v4221
  %4223 = vmatmul.bf16.gmra.mxu0 %v1777
  %v4224 = vpop.f32.mrf.mxu0
  %v4225 = vadd.f32 %v4152, %v4224
  %v4226 = vpop.f32.mrf.mxu0
  %v4227 = vadd.f32 %v4154, %v4226
  %4228 = vmatmul.bf16.gmra.mxu0 %v1802
  %v4229 = vpop.f32.mrf.mxu0
  %v4230 = vadd.f32 %v4157, %v4229
  %v4231 = vpop.f32.mrf.mxu0
  %v4232 = vadd.f32 %v4159, %v4231
  %4233 = vmatmul.bf16.gmra.mxu0 %v1827
  %v4234 = vpop.f32.mrf.mxu0
  %v4235 = vadd.f32 %v4162, %v4234
  %v4236 = vpop.f32.mrf.mxu0
  %v4237 = vadd.f32 %v4164, %v4236
  %4238 = vmatmul.bf16.gmra.mxu0 %v1852
  %v4239 = vpop.f32.mrf.mxu0
  %v4240 = vadd.f32 %v4167, %v4239
  %v4241 = vpop.f32.mrf.mxu0
  %v4242 = vadd.f32 %v4169, %v4241
  %4243 = vmatmul.bf16.gmra.mxu0 %v1877
  %v4244 = vpop.f32.mrf.mxu0
  %v4245 = vadd.f32 %v4172, %v4244
  %v4246 = vpop.f32.mrf.mxu0
  %v4247 = vadd.f32 %v4174, %v4246
  %4248 = vmatmul.bf16.gmra.mxu0 %v1902
  %v4249 = vpop.f32.mrf.mxu0
  %v4250 = vadd.f32 %v4177, %v4249
  %v4251 = vpop.f32.mrf.mxu0
  %v4252 = vadd.f32 %v4179, %v4251
  %4253 = vmatmul.bf16.gmra.mxu0 %v1927
  %v4254 = vpop.f32.mrf.mxu0
  %v4255 = vadd.f32 %v4182, %v4254
  %v4256 = vpop.f32.mrf.mxu0
  %v4257 = vadd.f32 %v4184, %v4256
  %4258 = vmatmul.bf16.gmra.mxu0 %v1952
  %v4259 = vpop.f32.mrf.mxu0
  %v4260 = vadd.f32 %v4187, %v4259
  %v4261 = vpop.f32.mrf.mxu0
  %v4262 = vadd.f32 %v4189, %v4261
  %4263 = vmatmul.bf16.gmra.mxu0 %v1977
  %v4264 = vpop.f32.mrf.mxu0
  %v4265 = vadd.f32 %v4192, %v4264
  %v4266 = vpop.f32.mrf.mxu0
  %v4267 = vadd.f32 %v4194, %v4266
  %4268 = vmatmul.bf16.gmra.mxu0 %v2002
  %v4269 = vpop.f32.mrf.mxu0
  %v4270 = vadd.f32 %v4197, %v4269
  %v4271 = vpop.f32.mrf.mxu0
  %4272 = vdwg.mxu0
  %4273 = vmatpush.bf16.msra.mxu0 %v3230
  %4274 = vmatpush.bf16.msra.mxu0 %v3229
  %4275 = vmatpush.bf16.msra.mxu0 %v3228
  %4276 = vmatpush.bf16.msra.mxu0 %v3227
  %4277 = vmatpush.bf16.msra.mxu0 %v3226
  %4278 = vmatpush.bf16.msra.mxu0 %v3225
  %4279 = vmatpush.bf16.msra.mxu0 %v3224
  %4280 = vmatpush.bf16.msra.mxu0 %v3223
  %4281 = vmatmul.bf16.gmra.mxu0 %v1703
  %v4282 = vpop.f32.mrf.mxu0
  %v4283 = vadd.f32 %v4210, %v4282
  %v4284 = vpop.f32.mrf.mxu0
  %v4285 = vadd.f32 %v4212, %v4284
  %4286 = vmatmul.bf16.gmra.mxu0 %v1728
  %v4287 = vpop.f32.mrf.mxu0
  %v4288 = vadd.f32 %v4215, %v4287
  %v4289 = vpop.f32.mrf.mxu0
  %v4290 = vadd.f32 %v4217, %v4289
  %4291 = vmatmul.bf16.gmra.mxu0 %v1753
  %v4292 = vpop.f32.mrf.mxu0
  %v4293 = vadd.f32 %v4220, %v4292
  %v4294 = vpop.f32.mrf.mxu0
  %v4295 = vadd.f32 %v4222, %v4294
  %4296 = vmatmul.bf16.gmra.mxu0 %v1778
  %v4297 = vpop.f32.mrf.mxu0
  %v4298 = vadd.f32 %v4225, %v4297
  %v4299 = vpop.f32.mrf.mxu0
  %v4300 = vadd.f32 %v4227, %v4299
  %4301 = vmatmul.bf16.gmra.mxu0 %v1803
  %v4302 = vpop.f32.mrf.mxu0
  %v4303 = vadd.f32 %v4230, %v4302
  %v4304 = vpop.f32.mrf.mxu0
  %v4305 = vadd.f32 %v4232, %v4304
  %4306 = vmatmul.bf16.gmra.mxu0 %v1828
  %v4307 = vpop.f32.mrf.mxu0
  %v4308 = vadd.f32 %v4235, %v4307
  %v4309 = vpop.f32.mrf.mxu0
  %v4310 = vadd.f32 %v4237, %v4309
  %4311 = vmatmul.bf16.gmra.mxu0 %v1853
  %v4312 = vpop.f32.mrf.mxu0
  %v4313 = vadd.f32 %v4240, %v4312
  %v4314 = vpop.f32.mrf.mxu0
  %v4315 = vadd.f32 %v4242, %v4314
  %4316 = vmatmul.bf16.gmra.mxu0 %v1878
  %v4317 = vpop.f32.mrf.mxu0
  %v4318 = vadd.f32 %v4245, %v4317
  %v4319 = vpop.f32.mrf.mxu0
  %v4320 = vadd.f32 %v4247, %v4319
  %4321 = vmatmul.bf16.gmra.mxu0 %v1903
  %v4322 = vpop.f32.mrf.mxu0
  %v4323 = vadd.f32 %v4250, %v4322
  %v4324 = vpop.f32.mrf.mxu0
  %v4325 = vadd.f32 %v4252, %v4324
  %4326 = vmatmul.bf16.gmra.mxu0 %v1928
  %v4327 = vpop.f32.mrf.mxu0
  %v4328 = vadd.f32 %v4255, %v4327
  %v4329 = vpop.f32.mrf.mxu0
  %v4330 = vadd.f32 %v4257, %v4329
  %4331 = vmatmul.bf16.gmra.mxu0 %v1953
  %v4332 = vpop.f32.mrf.mxu0
  %v4333 = vadd.f32 %v4260, %v4332
  %v4334 = vpop.f32.mrf.mxu0
  %v4335 = vadd.f32 %v4262, %v4334
  %4336 = vmatmul.bf16.gmra.mxu0 %v1978
  %v4337 = vpop.f32.mrf.mxu0
  %v4338 = vadd.f32 %v4265, %v4337
  %v4339 = vpop.f32.mrf.mxu0
  %v4340 = vadd.f32 %v4267, %v4339
  %4341 = vmatmul.bf16.gmra.mxu0 %v2003
  %v4342 = vpop.f32.mrf.mxu0
  %v4343 = vadd.f32 %v4270, %v4342
  %v4344 = vpop.f32.mrf.mxu0
  %4345 = vdwg.mxu0
  %4346 = vmatpush.bf16.msra.mxu0 %v3238
  %4347 = vmatpush.bf16.msra.mxu0 %v3237
  %4348 = vmatpush.bf16.msra.mxu0 %v3236
  %4349 = vmatpush.bf16.msra.mxu0 %v3235
  %4350 = vmatpush.bf16.msra.mxu0 %v3234
  %4351 = vmatpush.bf16.msra.mxu0 %v3233
  %4352 = vmatpush.bf16.msra.mxu0 %v3232
  %4353 = vmatpush.bf16.msra.mxu0 %v3231
  %4354 = vmatmul.bf16.gmra.mxu0 %v1704
  %v4355 = vpop.f32.mrf.mxu0
  %v4356 = vadd.f32 %v4283, %v4355
  %v4357 = vpop.f32.mrf.mxu0
  %v4358 = vadd.f32 %v4285, %v4357
  %4359 = vmatmul.bf16.gmra.mxu0 %v1729
  %v4360 = vpop.f32.mrf.mxu0
  %v4361 = vadd.f32 %v4288, %v4360
  %v4362 = vpop.f32.mrf.mxu0
  %v4363 = vadd.f32 %v4290, %v4362
  %4364 = vmatmul.bf16.gmra.mxu0 %v1754
  %v4365 = vpop.f32.mrf.mxu0
  %v4366 = vadd.f32 %v4293, %v4365
  %v4367 = vpop.f32.mrf.mxu0
  %v4368 = vadd.f32 %v4295, %v4367
  %4369 = vmatmul.bf16.gmra.mxu0 %v1779
  %v4370 = vpop.f32.mrf.mxu0
  %v4371 = vadd.f32 %v4298, %v4370
  %v4372 = vpop.f32.mrf.mxu0
  %v4373 = vadd.f32 %v4300, %v4372
  %4374 = vmatmul.bf16.gmra.mxu0 %v1804
  %v4375 = vpop.f32.mrf.mxu0
  %v4376 = vadd.f32 %v4303, %v4375
  %v4377 = vpop.f32.mrf.mxu0
  %v4378 = vadd.f32 %v4305, %v4377
  %4379 = vmatmul.bf16.gmra.mxu0 %v1829
  %v4380 = vpop.f32.mrf.mxu0
  %v4381 = vadd.f32 %v4308, %v4380
  %v4382 = vpop.f32.mrf.mxu0
  %v4383 = vadd.f32 %v4310, %v4382
  %4384 = vmatmul.bf16.gmra.mxu0 %v1854
  %v4385 = vpop.f32.mrf.mxu0
  %v4386 = vadd.f32 %v4313, %v4385
  %v4387 = vpop.f32.mrf.mxu0
  %v4388 = vadd.f32 %v4315, %v4387
  %4389 = vmatmul.bf16.gmra.mxu0 %v1879
  %v4390 = vpop.f32.mrf.mxu0
  %v4391 = vadd.f32 %v4318, %v4390
  %v4392 = vpop.f32.mrf.mxu0
  %v4393 = vadd.f32 %v4320, %v4392
  %4394 = vmatmul.bf16.gmra.mxu0 %v1904
  %v4395 = vpop.f32.mrf.mxu0
  %v4396 = vadd.f32 %v4323, %v4395
  %v4397 = vpop.f32.mrf.mxu0
  %v4398 = vadd.f32 %v4325, %v4397
  %4399 = vmatmul.bf16.gmra.mxu0 %v1929
  %v4400 = vpop.f32.mrf.mxu0
  %v4401 = vadd.f32 %v4328, %v4400
  %v4402 = vpop.f32.mrf.mxu0
  %v4403 = vadd.f32 %v4330, %v4402
  %4404 = vmatmul.bf16.gmra.mxu0 %v1954
  %v4405 = vpop.f32.mrf.mxu0
  %v4406 = vadd.f32 %v4333, %v4405
  %v4407 = vpop.f32.mrf.mxu0
  %v4408 = vadd.f32 %v4335, %v4407
  %4409 = vmatmul.bf16.gmra.mxu0 %v1979
  %v4410 = vpop.f32.mrf.mxu0
  %v4411 = vadd.f32 %v4338, %v4410
  %v4412 = vpop.f32.mrf.mxu0
  %v4413 = vadd.f32 %v4340, %v4412
  %4414 = vmatmul.bf16.gmra.mxu0 %v2004
  %v4415 = vpop.f32.mrf.mxu0
  %v4416 = vadd.f32 %v4343, %v4415
  %v4417 = vpop.f32.mrf.mxu0
  %4418 = vdwg.mxu0
  %4419 = vmatpush.bf16.msra.mxu0 %v3246
  %4420 = vmatpush.bf16.msra.mxu0 %v3245
  %4421 = vmatpush.bf16.msra.mxu0 %v3244
  %4422 = vmatpush.bf16.msra.mxu0 %v3243
  %4423 = vmatpush.bf16.msra.mxu0 %v3242
  %4424 = vmatpush.bf16.msra.mxu0 %v3241
  %4425 = vmatpush.bf16.msra.mxu0 %v3240
  %4426 = vmatpush.bf16.msra.mxu0 %v3239
  %4427 = vmatmul.bf16.gmra.mxu0 %v1705
  %v4428 = vpop.f32.mrf.mxu0
  %v4429 = vadd.f32 %v4356, %v4428
  %v4430 = vpop.f32.mrf.mxu0
  %v4431 = vadd.f32 %v4358, %v4430
  %4432 = vmatmul.bf16.gmra.mxu0 %v1730
  %v4433 = vpop.f32.mrf.mxu0
  %v4434 = vadd.f32 %v4361, %v4433
  %v4435 = vpop.f32.mrf.mxu0
  %v4436 = vadd.f32 %v4363, %v4435
  %4437 = vmatmul.bf16.gmra.mxu0 %v1755
  %v4438 = vpop.f32.mrf.mxu0
  %v4439 = vadd.f32 %v4366, %v4438
  %v4440 = vpop.f32.mrf.mxu0
  %v4441 = vadd.f32 %v4368, %v4440
  %4442 = vmatmul.bf16.gmra.mxu0 %v1780
  %v4443 = vpop.f32.mrf.mxu0
  %v4444 = vadd.f32 %v4371, %v4443
  %v4445 = vpop.f32.mrf.mxu0
  %v4446 = vadd.f32 %v4373, %v4445
  %4447 = vmatmul.bf16.gmra.mxu0 %v1805
  %v4448 = vpop.f32.mrf.mxu0
  %v4449 = vadd.f32 %v4376, %v4448
  %v4450 = vpop.f32.mrf.mxu0
  %v4451 = vadd.f32 %v4378, %v4450
  %4452 = vmatmul.bf16.gmra.mxu0 %v1830
  %v4453 = vpop.f32.mrf.mxu0
  %v4454 = vadd.f32 %v4381, %v4453
  %v4455 = vpop.f32.mrf.mxu0
  %v4456 = vadd.f32 %v4383, %v4455
  %4457 = vmatmul.bf16.gmra.mxu0 %v1855
  %v4458 = vpop.f32.mrf.mxu0
  %v4459 = vadd.f32 %v4386, %v4458
  %v4460 = vpop.f32.mrf.mxu0
  %v4461 = vadd.f32 %v4388, %v4460
  %4462 = vmatmul.bf16.gmra.mxu0 %v1880
  %v4463 = vpop.f32.mrf.mxu0
  %v4464 = vadd.f32 %v4391, %v4463
  %v4465 = vpop.f32.mrf.mxu0
  %v4466 = vadd.f32 %v4393, %v4465
  %4467 = vmatmul.bf16.gmra.mxu0 %v1905
  %v4468 = vpop.f32.mrf.mxu0
  %v4469 = vadd.f32 %v4396, %v4468
  %v4470 = vpop.f32.mrf.mxu0
  %v4471 = vadd.f32 %v4398, %v4470
  %4472 = vmatmul.bf16.gmra.mxu0 %v1930
  %v4473 = vpop.f32.mrf.mxu0
  %v4474 = vadd.f32 %v4401, %v4473
  %v4475 = vpop.f32.mrf.mxu0
  %v4476 = vadd.f32 %v4403, %v4475
  %4477 = vmatmul.bf16.gmra.mxu0 %v1955
  %v4478 = vpop.f32.mrf.mxu0
  %v4479 = vadd.f32 %v4406, %v4478
  %v4480 = vpop.f32.mrf.mxu0
  %v4481 = vadd.f32 %v4408, %v4480
  %4482 = vmatmul.bf16.gmra.mxu0 %v1980
  %v4483 = vpop.f32.mrf.mxu0
  %v4484 = vadd.f32 %v4411, %v4483
  %v4485 = vpop.f32.mrf.mxu0
  %v4486 = vadd.f32 %v4413, %v4485
  %4487 = vmatmul.bf16.gmra.mxu0 %v2005
  %v4488 = vpop.f32.mrf.mxu0
  %v4489 = vadd.f32 %v4416, %v4488
  %v4490 = vpop.f32.mrf.mxu0
  %4491 = vdwg.mxu0
  %4492 = vmatpush.bf16.msra.mxu0 %v3254
  %4493 = vmatpush.bf16.msra.mxu0 %v3253
  %4494 = vmatpush.bf16.msra.mxu0 %v3252
  %4495 = vmatpush.bf16.msra.mxu0 %v3251
  %4496 = vmatpush.bf16.msra.mxu0 %v3250
  %4497 = vmatpush.bf16.msra.mxu0 %v3249
  %4498 = vmatpush.bf16.msra.mxu0 %v3248
  %4499 = vmatpush.bf16.msra.mxu0 %v3247
  %4500 = vmatmul.bf16.gmra.mxu0 %v1706
  %v4501 = vpop.f32.mrf.mxu0
  %v4502 = vadd.f32 %v4429, %v4501
  %v4503 = vpop.f32.mrf.mxu0
  %v4504 = vadd.f32 %v4431, %v4503
  %4505 = vmatmul.bf16.gmra.mxu0 %v1731
  %v4506 = vpop.f32.mrf.mxu0
  %v4507 = vadd.f32 %v4434, %v4506
  %v4508 = vpop.f32.mrf.mxu0
  %v4509 = vadd.f32 %v4436, %v4508
  %4510 = vmatmul.bf16.gmra.mxu0 %v1756
  %v4511 = vpop.f32.mrf.mxu0
  %v4512 = vadd.f32 %v4439, %v4511
  %v4513 = vpop.f32.mrf.mxu0
  %v4514 = vadd.f32 %v4441, %v4513
  %4515 = vmatmul.bf16.gmra.mxu0 %v1781
  %v4516 = vpop.f32.mrf.mxu0
  %v4517 = vadd.f32 %v4444, %v4516
  %v4518 = vpop.f32.mrf.mxu0
  %v4519 = vadd.f32 %v4446, %v4518
  %4520 = vmatmul.bf16.gmra.mxu0 %v1806
  %v4521 = vpop.f32.mrf.mxu0
  %v4522 = vadd.f32 %v4449, %v4521
  %v4523 = vpop.f32.mrf.mxu0
  %v4524 = vadd.f32 %v4451, %v4523
  %4525 = vmatmul.bf16.gmra.mxu0 %v1831
  %v4526 = vpop.f32.mrf.mxu0
  %v4527 = vadd.f32 %v4454, %v4526
  %v4528 = vpop.f32.mrf.mxu0
  %v4529 = vadd.f32 %v4456, %v4528
  %4530 = vmatmul.bf16.gmra.mxu0 %v1856
  %v4531 = vpop.f32.mrf.mxu0
  %v4532 = vadd.f32 %v4459, %v4531
  %v4533 = vpop.f32.mrf.mxu0
  %v4534 = vadd.f32 %v4461, %v4533
  %4535 = vmatmul.bf16.gmra.mxu0 %v1881
  %v4536 = vpop.f32.mrf.mxu0
  %v4537 = vadd.f32 %v4464, %v4536
  %v4538 = vpop.f32.mrf.mxu0
  %v4539 = vadd.f32 %v4466, %v4538
  %4540 = vmatmul.bf16.gmra.mxu0 %v1906
  %v4541 = vpop.f32.mrf.mxu0
  %v4542 = vadd.f32 %v4469, %v4541
  %v4543 = vpop.f32.mrf.mxu0
  %v4544 = vadd.f32 %v4471, %v4543
  %4545 = vmatmul.bf16.gmra.mxu0 %v1931
  %v4546 = vpop.f32.mrf.mxu0
  %v4547 = vadd.f32 %v4474, %v4546
  %v4548 = vpop.f32.mrf.mxu0
  %v4549 = vadd.f32 %v4476, %v4548
  %4550 = vmatmul.bf16.gmra.mxu0 %v1956
  %v4551 = vpop.f32.mrf.mxu0
  %v4552 = vadd.f32 %v4479, %v4551
  %v4553 = vpop.f32.mrf.mxu0
  %v4554 = vadd.f32 %v4481, %v4553
  %4555 = vmatmul.bf16.gmra.mxu0 %v1981
  %v4556 = vpop.f32.mrf.mxu0
  %v4557 = vadd.f32 %v4484, %v4556
  %v4558 = vpop.f32.mrf.mxu0
  %v4559 = vadd.f32 %v4486, %v4558
  %4560 = vmatmul.bf16.gmra.mxu0 %v2006
  %v4561 = vpop.f32.mrf.mxu0
  %v4562 = vadd.f32 %v4489, %v4561
  %v4563 = vpop.f32.mrf.mxu0
  %4564 = vdwg.mxu0
  %4565 = vmatpush.bf16.msra.mxu0 %v3262
  %4566 = vmatpush.bf16.msra.mxu0 %v3261
  %4567 = vmatpush.bf16.msra.mxu0 %v3260
  %4568 = vmatpush.bf16.msra.mxu0 %v3259
  %4569 = vmatpush.bf16.msra.mxu0 %v3258
  %4570 = vmatpush.bf16.msra.mxu0 %v3257
  %4571 = vmatpush.bf16.msra.mxu0 %v3256
  %4572 = vmatpush.bf16.msra.mxu0 %v3255
  %4573 = vmatmul.bf16.gmra.mxu0 %v1707
  %v4574 = vpop.f32.mrf.mxu0
  %v4575 = vadd.f32 %v4502, %v4574
  %v4576 = vpop.f32.mrf.mxu0
  %v4577 = vadd.f32 %v4504, %v4576
  %4578 = vmatmul.bf16.gmra.mxu0 %v1732
  %v4579 = vpop.f32.mrf.mxu0
  %v4580 = vadd.f32 %v4507, %v4579
  %v4581 = vpop.f32.mrf.mxu0
  %v4582 = vadd.f32 %v4509, %v4581
  %4583 = vmatmul.bf16.gmra.mxu0 %v1757
  %v4584 = vpop.f32.mrf.mxu0
  %v4585 = vadd.f32 %v4512, %v4584
  %v4586 = vpop.f32.mrf.mxu0
  %v4587 = vadd.f32 %v4514, %v4586
  %4588 = vmatmul.bf16.gmra.mxu0 %v1782
  %v4589 = vpop.f32.mrf.mxu0
  %v4590 = vadd.f32 %v4517, %v4589
  %v4591 = vpop.f32.mrf.mxu0
  %v4592 = vadd.f32 %v4519, %v4591
  %4593 = vmatmul.bf16.gmra.mxu0 %v1807
  %v4594 = vpop.f32.mrf.mxu0
  %v4595 = vadd.f32 %v4522, %v4594
  %v4596 = vpop.f32.mrf.mxu0
  %v4597 = vadd.f32 %v4524, %v4596
  %4598 = vmatmul.bf16.gmra.mxu0 %v1832
  %v4599 = vpop.f32.mrf.mxu0
  %v4600 = vadd.f32 %v4527, %v4599
  %v4601 = vpop.f32.mrf.mxu0
  %v4602 = vadd.f32 %v4529, %v4601
  %4603 = vmatmul.bf16.gmra.mxu0 %v1857
  %v4604 = vpop.f32.mrf.mxu0
  %v4605 = vadd.f32 %v4532, %v4604
  %v4606 = vpop.f32.mrf.mxu0
  %v4607 = vadd.f32 %v4534, %v4606
  %4608 = vmatmul.bf16.gmra.mxu0 %v1882
  %v4609 = vpop.f32.mrf.mxu0
  %v4610 = vadd.f32 %v4537, %v4609
  %v4611 = vpop.f32.mrf.mxu0
  %v4612 = vadd.f32 %v4539, %v4611
  %4613 = vmatmul.bf16.gmra.mxu0 %v1907
  %v4614 = vpop.f32.mrf.mxu0
  %v4615 = vadd.f32 %v4542, %v4614
  %v4616 = vpop.f32.mrf.mxu0
  %v4617 = vadd.f32 %v4544, %v4616
  %4618 = vmatmul.bf16.gmra.mxu0 %v1932
  %v4619 = vpop.f32.mrf.mxu0
  %v4620 = vadd.f32 %v4547, %v4619
  %v4621 = vpop.f32.mrf.mxu0
  %v4622 = vadd.f32 %v4549, %v4621
  %4623 = vmatmul.bf16.gmra.mxu0 %v1957
  %v4624 = vpop.f32.mrf.mxu0
  %v4625 = vadd.f32 %v4552, %v4624
  %v4626 = vpop.f32.mrf.mxu0
  %v4627 = vadd.f32 %v4554, %v4626
  %4628 = vmatmul.bf16.gmra.mxu0 %v1982
  %v4629 = vpop.f32.mrf.mxu0
  %v4630 = vadd.f32 %v4557, %v4629
  %v4631 = vpop.f32.mrf.mxu0
  %v4632 = vadd.f32 %v4559, %v4631
  %4633 = vmatmul.bf16.gmra.mxu0 %v2007
  %v4634 = vpop.f32.mrf.mxu0
  %v4635 = vadd.f32 %v4562, %v4634
  %v4636 = vpop.f32.mrf.mxu0
  %4637 = vdwg.mxu0
  %4638 = vmatpush.bf16.msra.mxu0 %v3270
  %4639 = vmatpush.bf16.msra.mxu0 %v3269
  %4640 = vmatpush.bf16.msra.mxu0 %v3268
  %4641 = vmatpush.bf16.msra.mxu0 %v3267
  %4642 = vmatpush.bf16.msra.mxu0 %v3266
  %4643 = vmatpush.bf16.msra.mxu0 %v3265
  %4644 = vmatpush.bf16.msra.mxu0 %v3264
  %4645 = vmatpush.bf16.msra.mxu0 %v3263
  %4646 = vmatmul.bf16.gmra.mxu0 %v1708
  %v4647 = vpop.f32.mrf.mxu0
  %v4648 = vadd.f32 %v4575, %v4647
  %v4649 = vpop.f32.mrf.mxu0
  %v4650 = vadd.f32 %v4577, %v4649
  %4651 = vmatmul.bf16.gmra.mxu0 %v1733
  %v4652 = vpop.f32.mrf.mxu0
  %v4653 = vadd.f32 %v4580, %v4652
  %v4654 = vpop.f32.mrf.mxu0
  %v4655 = vadd.f32 %v4582, %v4654
  %4656 = vmatmul.bf16.gmra.mxu0 %v1758
  %v4657 = vpop.f32.mrf.mxu0
  %v4658 = vadd.f32 %v4585, %v4657
  %v4659 = vpop.f32.mrf.mxu0
  %v4660 = vadd.f32 %v4587, %v4659
  %4661 = vmatmul.bf16.gmra.mxu0 %v1783
  %v4662 = vpop.f32.mrf.mxu0
  %v4663 = vadd.f32 %v4590, %v4662
  %v4664 = vpop.f32.mrf.mxu0
  %v4665 = vadd.f32 %v4592, %v4664
  %4666 = vmatmul.bf16.gmra.mxu0 %v1808
  %v4667 = vpop.f32.mrf.mxu0
  %v4668 = vadd.f32 %v4595, %v4667
  %v4669 = vpop.f32.mrf.mxu0
  %v4670 = vadd.f32 %v4597, %v4669
  %4671 = vmatmul.bf16.gmra.mxu0 %v1833
  %v4672 = vpop.f32.mrf.mxu0
  %v4673 = vadd.f32 %v4600, %v4672
  %v4674 = vpop.f32.mrf.mxu0
  %v4675 = vadd.f32 %v4602, %v4674
  %4676 = vmatmul.bf16.gmra.mxu0 %v1858
  %v4677 = vpop.f32.mrf.mxu0
  %v4678 = vadd.f32 %v4605, %v4677
  %v4679 = vpop.f32.mrf.mxu0
  %v4680 = vadd.f32 %v4607, %v4679
  %4681 = vmatmul.bf16.gmra.mxu0 %v1883
  %v4682 = vpop.f32.mrf.mxu0
  %v4683 = vadd.f32 %v4610, %v4682
  %v4684 = vpop.f32.mrf.mxu0
  %v4685 = vadd.f32 %v4612, %v4684
  %4686 = vmatmul.bf16.gmra.mxu0 %v1908
  %v4687 = vpop.f32.mrf.mxu0
  %v4688 = vadd.f32 %v4615, %v4687
  %v4689 = vpop.f32.mrf.mxu0
  %v4690 = vadd.f32 %v4617, %v4689
  %4691 = vmatmul.bf16.gmra.mxu0 %v1933
  %v4692 = vpop.f32.mrf.mxu0
  %v4693 = vadd.f32 %v4620, %v4692
  %v4694 = vpop.f32.mrf.mxu0
  %v4695 = vadd.f32 %v4622, %v4694
  %4696 = vmatmul.bf16.gmra.mxu0 %v1958
  %v4697 = vpop.f32.mrf.mxu0
  %v4698 = vadd.f32 %v4625, %v4697
  %v4699 = vpop.f32.mrf.mxu0
  %v4700 = vadd.f32 %v4627, %v4699
  %4701 = vmatmul.bf16.gmra.mxu0 %v1983
  %v4702 = vpop.f32.mrf.mxu0
  %v4703 = vadd.f32 %v4630, %v4702
  %v4704 = vpop.f32.mrf.mxu0
  %v4705 = vadd.f32 %v4632, %v4704
  %4706 = vmatmul.bf16.gmra.mxu0 %v2008
  %v4707 = vpop.f32.mrf.mxu0
  %v4708 = vadd.f32 %v4635, %v4707
  %v4709 = vpop.f32.mrf.mxu0
  %4710 = vdwg.mxu0
  %4711 = vmatpush.bf16.msra.mxu0 %v3278
  %4712 = vmatpush.bf16.msra.mxu0 %v3277
  %4713 = vmatpush.bf16.msra.mxu0 %v3276
  %4714 = vmatpush.bf16.msra.mxu0 %v3275
  %4715 = vmatpush.bf16.msra.mxu0 %v3274
  %4716 = vmatpush.bf16.msra.mxu0 %v3273
  %4717 = vmatpush.bf16.msra.mxu0 %v3272
  %4718 = vmatpush.bf16.msra.mxu0 %v3271
  %4719 = vmatmul.bf16.gmra.mxu0 %v1709
  %v4720 = vpop.f32.mrf.mxu0
  %v4721 = vadd.f32 %v4648, %v4720
  %v4722 = vpop.f32.mrf.mxu0
  %v4723 = vadd.f32 %v4650, %v4722
  %4724 = vmatmul.bf16.gmra.mxu0 %v1734
  %v4725 = vpop.f32.mrf.mxu0
  %v4726 = vadd.f32 %v4653, %v4725
  %v4727 = vpop.f32.mrf.mxu0
  %v4728 = vadd.f32 %v4655, %v4727
  %4729 = vmatmul.bf16.gmra.mxu0 %v1759
  %v4730 = vpop.f32.mrf.mxu0
  %v4731 = vadd.f32 %v4658, %v4730
  %v4732 = vpop.f32.mrf.mxu0
  %v4733 = vadd.f32 %v4660, %v4732
  %4734 = vmatmul.bf16.gmra.mxu0 %v1784
  %v4735 = vpop.f32.mrf.mxu0
  %v4736 = vadd.f32 %v4663, %v4735
  %v4737 = vpop.f32.mrf.mxu0
  %v4738 = vadd.f32 %v4665, %v4737
  %4739 = vmatmul.bf16.gmra.mxu0 %v1809
  %v4740 = vpop.f32.mrf.mxu0
  %v4741 = vadd.f32 %v4668, %v4740
  %v4742 = vpop.f32.mrf.mxu0
  %v4743 = vadd.f32 %v4670, %v4742
  %4744 = vmatmul.bf16.gmra.mxu0 %v1834
  %v4745 = vpop.f32.mrf.mxu0
  %v4746 = vadd.f32 %v4673, %v4745
  %v4747 = vpop.f32.mrf.mxu0
  %v4748 = vadd.f32 %v4675, %v4747
  %4749 = vmatmul.bf16.gmra.mxu0 %v1859
  %v4750 = vpop.f32.mrf.mxu0
  %v4751 = vadd.f32 %v4678, %v4750
  %v4752 = vpop.f32.mrf.mxu0
  %v4753 = vadd.f32 %v4680, %v4752
  %4754 = vmatmul.bf16.gmra.mxu0 %v1884
  %v4755 = vpop.f32.mrf.mxu0
  %v4756 = vadd.f32 %v4683, %v4755
  %v4757 = vpop.f32.mrf.mxu0
  %v4758 = vadd.f32 %v4685, %v4757
  %4759 = vmatmul.bf16.gmra.mxu0 %v1909
  %v4760 = vpop.f32.mrf.mxu0
  %v4761 = vadd.f32 %v4688, %v4760
  %v4762 = vpop.f32.mrf.mxu0
  %v4763 = vadd.f32 %v4690, %v4762
  %4764 = vmatmul.bf16.gmra.mxu0 %v1934
  %v4765 = vpop.f32.mrf.mxu0
  %v4766 = vadd.f32 %v4693, %v4765
  %v4767 = vpop.f32.mrf.mxu0
  %v4768 = vadd.f32 %v4695, %v4767
  %4769 = vmatmul.bf16.gmra.mxu0 %v1959
  %v4770 = vpop.f32.mrf.mxu0
  %v4771 = vadd.f32 %v4698, %v4770
  %v4772 = vpop.f32.mrf.mxu0
  %v4773 = vadd.f32 %v4700, %v4772
  %4774 = vmatmul.bf16.gmra.mxu0 %v1984
  %v4775 = vpop.f32.mrf.mxu0
  %v4776 = vadd.f32 %v4703, %v4775
  %v4777 = vpop.f32.mrf.mxu0
  %v4778 = vadd.f32 %v4705, %v4777
  %4779 = vmatmul.bf16.gmra.mxu0 %v2009
  %v4780 = vpop.f32.mrf.mxu0
  %v4781 = vadd.f32 %v4708, %v4780
  %v4782 = vpop.f32.mrf.mxu0
  %4783 = vdwg.mxu0
  %4784 = vmatpush.bf16.msra.mxu0 %v3286
  %4785 = vmatpush.bf16.msra.mxu0 %v3285
  %4786 = vmatpush.bf16.msra.mxu0 %v3284
  %4787 = vmatpush.bf16.msra.mxu0 %v3283
  %4788 = vmatpush.bf16.msra.mxu0 %v3282
  %4789 = vmatpush.bf16.msra.mxu0 %v3281
  %4790 = vmatpush.bf16.msra.mxu0 %v3280
  %4791 = vmatpush.bf16.msra.mxu0 %v3279
  %4792 = vmatmul.bf16.gmra.mxu0 %v1710
  %v4793 = vpop.f32.mrf.mxu0
  %v4794 = vadd.f32 %v4721, %v4793
  %v4795 = vpop.f32.mrf.mxu0
  %v4796 = vadd.f32 %v4723, %v4795
  %4797 = vmatmul.bf16.gmra.mxu0 %v1735
  %v4798 = vpop.f32.mrf.mxu0
  %v4799 = vadd.f32 %v4726, %v4798
  %v4800 = vpop.f32.mrf.mxu0
  %v4801 = vadd.f32 %v4728, %v4800
  %4802 = vmatmul.bf16.gmra.mxu0 %v1760
  %v4803 = vpop.f32.mrf.mxu0
  %v4804 = vadd.f32 %v4731, %v4803
  %v4805 = vpop.f32.mrf.mxu0
  %v4806 = vadd.f32 %v4733, %v4805
  %4807 = vmatmul.bf16.gmra.mxu0 %v1785
  %v4808 = vpop.f32.mrf.mxu0
  %v4809 = vadd.f32 %v4736, %v4808
  %v4810 = vpop.f32.mrf.mxu0
  %v4811 = vadd.f32 %v4738, %v4810
  %4812 = vmatmul.bf16.gmra.mxu0 %v1810
  %v4813 = vpop.f32.mrf.mxu0
  %v4814 = vadd.f32 %v4741, %v4813
  %v4815 = vpop.f32.mrf.mxu0
  %v4816 = vadd.f32 %v4743, %v4815
  %4817 = vmatmul.bf16.gmra.mxu0 %v1835
  %v4818 = vpop.f32.mrf.mxu0
  %v4819 = vadd.f32 %v4746, %v4818
  %v4820 = vpop.f32.mrf.mxu0
  %v4821 = vadd.f32 %v4748, %v4820
  %4822 = vmatmul.bf16.gmra.mxu0 %v1860
  %v4823 = vpop.f32.mrf.mxu0
  %v4824 = vadd.f32 %v4751, %v4823
  %v4825 = vpop.f32.mrf.mxu0
  %v4826 = vadd.f32 %v4753, %v4825
  %4827 = vmatmul.bf16.gmra.mxu0 %v1885
  %v4828 = vpop.f32.mrf.mxu0
  %v4829 = vadd.f32 %v4756, %v4828
  %v4830 = vpop.f32.mrf.mxu0
  %v4831 = vadd.f32 %v4758, %v4830
  %4832 = vmatmul.bf16.gmra.mxu0 %v1910
  %v4833 = vpop.f32.mrf.mxu0
  %v4834 = vadd.f32 %v4761, %v4833
  %v4835 = vpop.f32.mrf.mxu0
  %v4836 = vadd.f32 %v4763, %v4835
  %4837 = vmatmul.bf16.gmra.mxu0 %v1935
  %v4838 = vpop.f32.mrf.mxu0
  %v4839 = vadd.f32 %v4766, %v4838
  %v4840 = vpop.f32.mrf.mxu0
  %v4841 = vadd.f32 %v4768, %v4840
  %4842 = vmatmul.bf16.gmra.mxu0 %v1960
  %v4843 = vpop.f32.mrf.mxu0
  %v4844 = vadd.f32 %v4771, %v4843
  %v4845 = vpop.f32.mrf.mxu0
  %v4846 = vadd.f32 %v4773, %v4845
  %4847 = vmatmul.bf16.gmra.mxu0 %v1985
  %v4848 = vpop.f32.mrf.mxu0
  %v4849 = vadd.f32 %v4776, %v4848
  %v4850 = vpop.f32.mrf.mxu0
  %v4851 = vadd.f32 %v4778, %v4850
  %4852 = vmatmul.bf16.gmra.mxu0 %v2010
  %v4853 = vpop.f32.mrf.mxu0
  %v4854 = vadd.f32 %v4781, %v4853
  %v4855 = vpop.f32.mrf.mxu0
  %4856 = vdwg.mxu0
  %4857 = vmatpush.bf16.msra.mxu0 %v3294
  %4858 = vmatpush.bf16.msra.mxu0 %v3293
  %4859 = vmatpush.bf16.msra.mxu0 %v3292
  %4860 = vmatpush.bf16.msra.mxu0 %v3291
  %4861 = vmatpush.bf16.msra.mxu0 %v3290
  %4862 = vmatpush.bf16.msra.mxu0 %v3289
  %4863 = vmatpush.bf16.msra.mxu0 %v3288
  %4864 = vmatpush.bf16.msra.mxu0 %v3287
  %4865 = vmatmul.bf16.gmra.mxu0 %v1711
  %v4866 = vpop.f32.mrf.mxu0
  %v4867 = vadd.f32 %v4794, %v4866
  %v4868 = vpop.f32.mrf.mxu0
  %v4869 = vadd.f32 %v4796, %v4868
  %4870 = vmatmul.bf16.gmra.mxu0 %v1736
  %v4871 = vpop.f32.mrf.mxu0
  %v4872 = vadd.f32 %v4799, %v4871
  %v4873 = vpop.f32.mrf.mxu0
  %v4874 = vadd.f32 %v4801, %v4873
  %4875 = vmatmul.bf16.gmra.mxu0 %v1761
  %v4876 = vpop.f32.mrf.mxu0
  %v4877 = vadd.f32 %v4804, %v4876
  %v4878 = vpop.f32.mrf.mxu0
  %v4879 = vadd.f32 %v4806, %v4878
  %4880 = vmatmul.bf16.gmra.mxu0 %v1786
  %v4881 = vpop.f32.mrf.mxu0
  %v4882 = vadd.f32 %v4809, %v4881
  %v4883 = vpop.f32.mrf.mxu0
  %v4884 = vadd.f32 %v4811, %v4883
  %4885 = vmatmul.bf16.gmra.mxu0 %v1811
  %v4886 = vpop.f32.mrf.mxu0
  %v4887 = vadd.f32 %v4814, %v4886
  %v4888 = vpop.f32.mrf.mxu0
  %v4889 = vadd.f32 %v4816, %v4888
  %4890 = vmatmul.bf16.gmra.mxu0 %v1836
  %v4891 = vpop.f32.mrf.mxu0
  %v4892 = vadd.f32 %v4819, %v4891
  %v4893 = vpop.f32.mrf.mxu0
  %v4894 = vadd.f32 %v4821, %v4893
  %4895 = vmatmul.bf16.gmra.mxu0 %v1861
  %v4896 = vpop.f32.mrf.mxu0
  %v4897 = vadd.f32 %v4824, %v4896
  %v4898 = vpop.f32.mrf.mxu0
  %v4899 = vadd.f32 %v4826, %v4898
  %4900 = vmatmul.bf16.gmra.mxu0 %v1886
  %v4901 = vpop.f32.mrf.mxu0
  %v4902 = vadd.f32 %v4829, %v4901
  %v4903 = vpop.f32.mrf.mxu0
  %v4904 = vadd.f32 %v4831, %v4903
  %4905 = vmatmul.bf16.gmra.mxu0 %v1911
  %v4906 = vpop.f32.mrf.mxu0
  %v4907 = vadd.f32 %v4834, %v4906
  %v4908 = vpop.f32.mrf.mxu0
  %v4909 = vadd.f32 %v4836, %v4908
  %4910 = vmatmul.bf16.gmra.mxu0 %v1936
  %v4911 = vpop.f32.mrf.mxu0
  %v4912 = vadd.f32 %v4839, %v4911
  %v4913 = vpop.f32.mrf.mxu0
  %v4914 = vadd.f32 %v4841, %v4913
  %4915 = vmatmul.bf16.gmra.mxu0 %v1961
  %v4916 = vpop.f32.mrf.mxu0
  %v4917 = vadd.f32 %v4844, %v4916
  %v4918 = vpop.f32.mrf.mxu0
  %v4919 = vadd.f32 %v4846, %v4918
  %4920 = vmatmul.bf16.gmra.mxu0 %v1986
  %v4921 = vpop.f32.mrf.mxu0
  %v4922 = vadd.f32 %v4849, %v4921
  %v4923 = vpop.f32.mrf.mxu0
  %v4924 = vadd.f32 %v4851, %v4923
  %4925 = vmatmul.bf16.gmra.mxu0 %v2011
  %v4926 = vpop.f32.mrf.mxu0
  %v4927 = vadd.f32 %v4854, %v4926
  %v4928 = vpop.f32.mrf.mxu0
  %4929 = vdwg.mxu0
  %4930 = vmatpush.bf16.msra.mxu0 %v3302
  %4931 = vmatpush.bf16.msra.mxu0 %v3301
  %4932 = vmatpush.bf16.msra.mxu0 %v3300
  %4933 = vmatpush.bf16.msra.mxu0 %v3299
  %4934 = vmatpush.bf16.msra.mxu0 %v3298
  %4935 = vmatpush.bf16.msra.mxu0 %v3297
  %4936 = vmatpush.bf16.msra.mxu0 %v3296
  %4937 = vmatpush.bf16.msra.mxu0 %v3295
  %4938 = vmatmul.bf16.gmra.mxu0 %v1712
  %v4939 = vpop.f32.mrf.mxu0
  %v4940 = vadd.f32 %v4867, %v4939
  %v4941 = vpop.f32.mrf.mxu0
  %v4942 = vadd.f32 %v4869, %v4941
  %4943 = vmatmul.bf16.gmra.mxu0 %v1737
  %v4944 = vpop.f32.mrf.mxu0
  %v4945 = vadd.f32 %v4872, %v4944
  %v4946 = vpop.f32.mrf.mxu0
  %v4947 = vadd.f32 %v4874, %v4946
  %4948 = vmatmul.bf16.gmra.mxu0 %v1762
  %v4949 = vpop.f32.mrf.mxu0
  %v4950 = vadd.f32 %v4877, %v4949
  %v4951 = vpop.f32.mrf.mxu0
  %v4952 = vadd.f32 %v4879, %v4951
  %4953 = vmatmul.bf16.gmra.mxu0 %v1787
  %v4954 = vpop.f32.mrf.mxu0
  %v4955 = vadd.f32 %v4882, %v4954
  %v4956 = vpop.f32.mrf.mxu0
  %v4957 = vadd.f32 %v4884, %v4956
  %4958 = vmatmul.bf16.gmra.mxu0 %v1812
  %v4959 = vpop.f32.mrf.mxu0
  %v4960 = vadd.f32 %v4887, %v4959
  %v4961 = vpop.f32.mrf.mxu0
  %v4962 = vadd.f32 %v4889, %v4961
  %4963 = vmatmul.bf16.gmra.mxu0 %v1837
  %v4964 = vpop.f32.mrf.mxu0
  %v4965 = vadd.f32 %v4892, %v4964
  %v4966 = vpop.f32.mrf.mxu0
  %v4967 = vadd.f32 %v4894, %v4966
  %4968 = vmatmul.bf16.gmra.mxu0 %v1862
  %v4969 = vpop.f32.mrf.mxu0
  %v4970 = vadd.f32 %v4897, %v4969
  %v4971 = vpop.f32.mrf.mxu0
  %v4972 = vadd.f32 %v4899, %v4971
  %4973 = vmatmul.bf16.gmra.mxu0 %v1887
  %v4974 = vpop.f32.mrf.mxu0
  %v4975 = vadd.f32 %v4902, %v4974
  %v4976 = vpop.f32.mrf.mxu0
  %v4977 = vadd.f32 %v4904, %v4976
  %4978 = vmatmul.bf16.gmra.mxu0 %v1912
  %v4979 = vpop.f32.mrf.mxu0
  %v4980 = vadd.f32 %v4907, %v4979
  %v4981 = vpop.f32.mrf.mxu0
  %v4982 = vadd.f32 %v4909, %v4981
  %4983 = vmatmul.bf16.gmra.mxu0 %v1937
  %v4984 = vpop.f32.mrf.mxu0
  %v4985 = vadd.f32 %v4912, %v4984
  %v4986 = vpop.f32.mrf.mxu0
  %v4987 = vadd.f32 %v4914, %v4986
  %4988 = vmatmul.bf16.gmra.mxu0 %v1962
  %v4989 = vpop.f32.mrf.mxu0
  %v4990 = vadd.f32 %v4917, %v4989
  %v4991 = vpop.f32.mrf.mxu0
  %v4992 = vadd.f32 %v4919, %v4991
  %4993 = vmatmul.bf16.gmra.mxu0 %v1987
  %v4994 = vpop.f32.mrf.mxu0
  %v4995 = vadd.f32 %v4922, %v4994
  %v4996 = vpop.f32.mrf.mxu0
  %v4997 = vadd.f32 %v4924, %v4996
  %4998 = vmatmul.bf16.gmra.mxu0 %v2012
  %v4999 = vpop.f32.mrf.mxu0
  %v5000 = vadd.f32 %v4927, %v4999
  %v5001 = vpop.f32.mrf.mxu0
  %5002 = vdwg.mxu0
  %5003 = vmatpush.bf16.msra.mxu0 %v3310
  %5004 = vmatpush.bf16.msra.mxu0 %v3309
  %5005 = vmatpush.bf16.msra.mxu0 %v3308
  %5006 = vmatpush.bf16.msra.mxu0 %v3307
  %5007 = vmatpush.bf16.msra.mxu0 %v3306
  %5008 = vmatpush.bf16.msra.mxu0 %v3305
  %5009 = vmatpush.bf16.msra.mxu0 %v3304
  %5010 = vmatpush.bf16.msra.mxu0 %v3303
  %5011 = vmatmul.bf16.gmra.mxu0 %v1713
  %v5012 = vpop.f32.mrf.mxu0
  %v5013 = vadd.f32 %v4940, %v5012
  %v5014 = vpop.f32.mrf.mxu0
  %v5015 = vadd.f32 %v4942, %v5014
  %5016 = vmatmul.bf16.gmra.mxu0 %v1738
  %v5017 = vpop.f32.mrf.mxu0
  %v5018 = vadd.f32 %v4945, %v5017
  %v5019 = vpop.f32.mrf.mxu0
  %v5020 = vadd.f32 %v4947, %v5019
  %5021 = vmatmul.bf16.gmra.mxu0 %v1763
  %v5022 = vpop.f32.mrf.mxu0
  %v5023 = vadd.f32 %v4950, %v5022
  %v5024 = vpop.f32.mrf.mxu0
  %v5025 = vadd.f32 %v4952, %v5024
  %5026 = vmatmul.bf16.gmra.mxu0 %v1788
  %v5027 = vpop.f32.mrf.mxu0
  %v5028 = vadd.f32 %v4955, %v5027
  %v5029 = vpop.f32.mrf.mxu0
  %v5030 = vadd.f32 %v4957, %v5029
  %5031 = vmatmul.bf16.gmra.mxu0 %v1813
  %v5032 = vpop.f32.mrf.mxu0
  %v5033 = vadd.f32 %v4960, %v5032
  %v5034 = vpop.f32.mrf.mxu0
  %v5035 = vadd.f32 %v4962, %v5034
  %5036 = vmatmul.bf16.gmra.mxu0 %v1838
  %v5037 = vpop.f32.mrf.mxu0
  %v5038 = vadd.f32 %v4965, %v5037
  %v5039 = vpop.f32.mrf.mxu0
  %v5040 = vadd.f32 %v4967, %v5039
  %5041 = vmatmul.bf16.gmra.mxu0 %v1863
  %v5042 = vpop.f32.mrf.mxu0
  %v5043 = vadd.f32 %v4970, %v5042
  %v5044 = vpop.f32.mrf.mxu0
  %v5045 = vadd.f32 %v4972, %v5044
  %5046 = vmatmul.bf16.gmra.mxu0 %v1888
  %v5047 = vpop.f32.mrf.mxu0
  %v5048 = vadd.f32 %v4975, %v5047
  %v5049 = vpop.f32.mrf.mxu0
  %v5050 = vadd.f32 %v4977, %v5049
  %5051 = vmatmul.bf16.gmra.mxu0 %v1913
  %v5052 = vpop.f32.mrf.mxu0
  %v5053 = vadd.f32 %v4980, %v5052
  %v5054 = vpop.f32.mrf.mxu0
  %v5055 = vadd.f32 %v4982, %v5054
  %5056 = vmatmul.bf16.gmra.mxu0 %v1938
  %v5057 = vpop.f32.mrf.mxu0
  %v5058 = vadd.f32 %v4985, %v5057
  %v5059 = vpop.f32.mrf.mxu0
  %v5060 = vadd.f32 %v4987, %v5059
  %5061 = vmatmul.bf16.gmra.mxu0 %v1963
  %v5062 = vpop.f32.mrf.mxu0
  %v5063 = vadd.f32 %v4990, %v5062
  %v5064 = vpop.f32.mrf.mxu0
  %v5065 = vadd.f32 %v4992, %v5064
  %5066 = vmatmul.bf16.gmra.mxu0 %v1988
  %v5067 = vpop.f32.mrf.mxu0
  %v5068 = vadd.f32 %v4995, %v5067
  %v5069 = vpop.f32.mrf.mxu0
  %v5070 = vadd.f32 %v4997, %v5069
  %5071 = vmatmul.bf16.gmra.mxu0 %v2013
  %v5072 = vpop.f32.mrf.mxu0
  %v5073 = vadd.f32 %v5000, %v5072
  %v5074 = vpop.f32.mrf.mxu0
  %5075 = vdwg.mxu0
  %5076 = vmatpush.bf16.msra.mxu0 %v3318
  %5077 = vmatpush.bf16.msra.mxu0 %v3317
  %5078 = vmatpush.bf16.msra.mxu0 %v3316
  %5079 = vmatpush.bf16.msra.mxu0 %v3315
  %5080 = vmatpush.bf16.msra.mxu0 %v3314
  %5081 = vmatpush.bf16.msra.mxu0 %v3313
  %5082 = vmatpush.bf16.msra.mxu0 %v3312
  %5083 = vmatpush.bf16.msra.mxu0 %v3311
  %5084 = vmatmul.bf16.gmra.mxu0 %v1714
  %v5085 = vpop.f32.mrf.mxu0
  %v5086 = vadd.f32 %v5013, %v5085
  %v5087 = vpop.f32.mrf.mxu0
  %v5088 = vadd.f32 %v5015, %v5087
  %5089 = vmatmul.bf16.gmra.mxu0 %v1739
  %v5090 = vpop.f32.mrf.mxu0
  %v5091 = vadd.f32 %v5018, %v5090
  %v5092 = vpop.f32.mrf.mxu0
  %v5093 = vadd.f32 %v5020, %v5092
  %5094 = vmatmul.bf16.gmra.mxu0 %v1764
  %v5095 = vpop.f32.mrf.mxu0
  %v5096 = vadd.f32 %v5023, %v5095
  %v5097 = vpop.f32.mrf.mxu0
  %v5098 = vadd.f32 %v5025, %v5097
  %5099 = vmatmul.bf16.gmra.mxu0 %v1789
  %v5100 = vpop.f32.mrf.mxu0
  %v5101 = vadd.f32 %v5028, %v5100
  %v5102 = vpop.f32.mrf.mxu0
  %v5103 = vadd.f32 %v5030, %v5102
  %5104 = vmatmul.bf16.gmra.mxu0 %v1814
  %v5105 = vpop.f32.mrf.mxu0
  %v5106 = vadd.f32 %v5033, %v5105
  %v5107 = vpop.f32.mrf.mxu0
  %v5108 = vadd.f32 %v5035, %v5107
  %5109 = vmatmul.bf16.gmra.mxu0 %v1839
  %v5110 = vpop.f32.mrf.mxu0
  %v5111 = vadd.f32 %v5038, %v5110
  %v5112 = vpop.f32.mrf.mxu0
  %v5113 = vadd.f32 %v5040, %v5112
  %5114 = vmatmul.bf16.gmra.mxu0 %v1864
  %v5115 = vpop.f32.mrf.mxu0
  %v5116 = vadd.f32 %v5043, %v5115
  %v5117 = vpop.f32.mrf.mxu0
  %v5118 = vadd.f32 %v5045, %v5117
  %5119 = vmatmul.bf16.gmra.mxu0 %v1889
  %v5120 = vpop.f32.mrf.mxu0
  %v5121 = vadd.f32 %v5048, %v5120
  %v5122 = vpop.f32.mrf.mxu0
  %v5123 = vadd.f32 %v5050, %v5122
  %5124 = vmatmul.bf16.gmra.mxu0 %v1914
  %v5125 = vpop.f32.mrf.mxu0
  %v5126 = vadd.f32 %v5053, %v5125
  %v5127 = vpop.f32.mrf.mxu0
  %v5128 = vadd.f32 %v5055, %v5127
  %5129 = vmatmul.bf16.gmra.mxu0 %v1939
  %v5130 = vpop.f32.mrf.mxu0
  %v5131 = vadd.f32 %v5058, %v5130
  %v5132 = vpop.f32.mrf.mxu0
  %v5133 = vadd.f32 %v5060, %v5132
  %5134 = vmatmul.bf16.gmra.mxu0 %v1964
  %v5135 = vpop.f32.mrf.mxu0
  %v5136 = vadd.f32 %v5063, %v5135
  %v5137 = vpop.f32.mrf.mxu0
  %v5138 = vadd.f32 %v5065, %v5137
  %5139 = vmatmul.bf16.gmra.mxu0 %v1989
  %v5140 = vpop.f32.mrf.mxu0
  %v5141 = vadd.f32 %v5068, %v5140
  %v5142 = vpop.f32.mrf.mxu0
  %v5143 = vadd.f32 %v5070, %v5142
  %5144 = vmatmul.bf16.gmra.mxu0 %v2014
  %v5145 = vpop.f32.mrf.mxu0
  %v5146 = vadd.f32 %v5073, %v5145
  %v5147 = vpop.f32.mrf.mxu0
  %5148 = vdwg.mxu0
  %5149 = vmatpush.bf16.msra.mxu0 %v3326
  %5150 = vmatpush.bf16.msra.mxu0 %v3325
  %5151 = vmatpush.bf16.msra.mxu0 %v3324
  %5152 = vmatpush.bf16.msra.mxu0 %v3323
  %5153 = vmatpush.bf16.msra.mxu0 %v3322
  %5154 = vmatpush.bf16.msra.mxu0 %v3321
  %5155 = vmatpush.bf16.msra.mxu0 %v3320
  %5156 = vmatpush.bf16.msra.mxu0 %v3319
  %5157 = vmatmul.bf16.gmra.mxu0 %v1715
  %v5158 = vpop.f32.mrf.mxu0
  %v5159 = vadd.f32 %v5086, %v5158
  %v5160 = vpop.f32.mrf.mxu0
  %v5161 = vadd.f32 %v5088, %v5160
  %5162 = vmatmul.bf16.gmra.mxu0 %v1740
  %v5163 = vpop.f32.mrf.mxu0
  %v5164 = vadd.f32 %v5091, %v5163
  %v5165 = vpop.f32.mrf.mxu0
  %v5166 = vadd.f32 %v5093, %v5165
  %5167 = vmatmul.bf16.gmra.mxu0 %v1765
  %v5168 = vpop.f32.mrf.mxu0
  %v5169 = vadd.f32 %v5096, %v5168
  %v5170 = vpop.f32.mrf.mxu0
  %v5171 = vadd.f32 %v5098, %v5170
  %5172 = vmatmul.bf16.gmra.mxu0 %v1790
  %v5173 = vpop.f32.mrf.mxu0
  %v5174 = vadd.f32 %v5101, %v5173
  %v5175 = vpop.f32.mrf.mxu0
  %v5176 = vadd.f32 %v5103, %v5175
  %5177 = vmatmul.bf16.gmra.mxu0 %v1815
  %v5178 = vpop.f32.mrf.mxu0
  %v5179 = vadd.f32 %v5106, %v5178
  %v5180 = vpop.f32.mrf.mxu0
  %v5181 = vadd.f32 %v5108, %v5180
  %5182 = vmatmul.bf16.gmra.mxu0 %v1840
  %v5183 = vpop.f32.mrf.mxu0
  %v5184 = vadd.f32 %v5111, %v5183
  %v5185 = vpop.f32.mrf.mxu0
  %v5186 = vadd.f32 %v5113, %v5185
  %5187 = vmatmul.bf16.gmra.mxu0 %v1865
  %v5188 = vpop.f32.mrf.mxu0
  %v5189 = vadd.f32 %v5116, %v5188
  %v5190 = vpop.f32.mrf.mxu0
  %v5191 = vadd.f32 %v5118, %v5190
  %5192 = vmatmul.bf16.gmra.mxu0 %v1890
  %v5193 = vpop.f32.mrf.mxu0
  %v5194 = vadd.f32 %v5121, %v5193
  %v5195 = vpop.f32.mrf.mxu0
  %v5196 = vadd.f32 %v5123, %v5195
  %5197 = vmatmul.bf16.gmra.mxu0 %v1915
  %v5198 = vpop.f32.mrf.mxu0
  %v5199 = vadd.f32 %v5126, %v5198
  %v5200 = vpop.f32.mrf.mxu0
  %v5201 = vadd.f32 %v5128, %v5200
  %5202 = vmatmul.bf16.gmra.mxu0 %v1940
  %v5203 = vpop.f32.mrf.mxu0
  %v5204 = vadd.f32 %v5131, %v5203
  %v5205 = vpop.f32.mrf.mxu0
  %v5206 = vadd.f32 %v5133, %v5205
  %5207 = vmatmul.bf16.gmra.mxu0 %v1965
  %v5208 = vpop.f32.mrf.mxu0
  %v5209 = vadd.f32 %v5136, %v5208
  %v5210 = vpop.f32.mrf.mxu0
  %v5211 = vadd.f32 %v5138, %v5210
  %5212 = vmatmul.bf16.gmra.mxu0 %v1990
  %v5213 = vpop.f32.mrf.mxu0
  %v5214 = vadd.f32 %v5141, %v5213
  %v5215 = vpop.f32.mrf.mxu0
  %v5216 = vadd.f32 %v5143, %v5215
  %5217 = vmatmul.bf16.gmra.mxu0 %v2015
  %v5218 = vpop.f32.mrf.mxu0
  %v5219 = vadd.f32 %v5146, %v5218
  %v5220 = vpop.f32.mrf.mxu0
  %5221 = vdwg.mxu0
  %5222 = vmatpush.bf16.msra.mxu0 %v3334
  %5223 = vmatpush.bf16.msra.mxu0 %v3333
  %5224 = vmatpush.bf16.msra.mxu0 %v3332
  %5225 = vmatpush.bf16.msra.mxu0 %v3331
  %5226 = vmatpush.bf16.msra.mxu0 %v3330
  %5227 = vmatpush.bf16.msra.mxu0 %v3329
  %5228 = vmatpush.bf16.msra.mxu0 %v3328
  %5229 = vmatpush.bf16.msra.mxu0 %v3327
  %5230 = vmatmul.bf16.gmra.mxu0 %v1716
  %v5231 = vpop.f32.mrf.mxu0
  %v5232 = vadd.f32 %v5159, %v5231
  %v5233 = vpop.f32.mrf.mxu0
  %v5234 = vadd.f32 %v5161, %v5233
  %5235 = vmatmul.bf16.gmra.mxu0 %v1741
  %v5236 = vpop.f32.mrf.mxu0
  %v5237 = vadd.f32 %v5164, %v5236
  %v5238 = vpop.f32.mrf.mxu0
  %v5239 = vadd.f32 %v5166, %v5238
  %5240 = vmatmul.bf16.gmra.mxu0 %v1766
  %v5241 = vpop.f32.mrf.mxu0
  %v5242 = vadd.f32 %v5169, %v5241
  %v5243 = vpop.f32.mrf.mxu0
  %v5244 = vadd.f32 %v5171, %v5243
  %5245 = vmatmul.bf16.gmra.mxu0 %v1791
  %v5246 = vpop.f32.mrf.mxu0
  %v5247 = vadd.f32 %v5174, %v5246
  %v5248 = vpop.f32.mrf.mxu0
  %v5249 = vadd.f32 %v5176, %v5248
  %5250 = vmatmul.bf16.gmra.mxu0 %v1816
  %v5251 = vpop.f32.mrf.mxu0
  %v5252 = vadd.f32 %v5179, %v5251
  %v5253 = vpop.f32.mrf.mxu0
  %v5254 = vadd.f32 %v5181, %v5253
  %5255 = vmatmul.bf16.gmra.mxu0 %v1841
  %v5256 = vpop.f32.mrf.mxu0
  %v5257 = vadd.f32 %v5184, %v5256
  %v5258 = vpop.f32.mrf.mxu0
  %v5259 = vadd.f32 %v5186, %v5258
  %5260 = vmatmul.bf16.gmra.mxu0 %v1866
  %v5261 = vpop.f32.mrf.mxu0
  %v5262 = vadd.f32 %v5189, %v5261
  %v5263 = vpop.f32.mrf.mxu0
  %v5264 = vadd.f32 %v5191, %v5263
  %5265 = vmatmul.bf16.gmra.mxu0 %v1891
  %v5266 = vpop.f32.mrf.mxu0
  %v5267 = vadd.f32 %v5194, %v5266
  %v5268 = vpop.f32.mrf.mxu0
  %v5269 = vadd.f32 %v5196, %v5268
  %5270 = vmatmul.bf16.gmra.mxu0 %v1916
  %v5271 = vpop.f32.mrf.mxu0
  %v5272 = vadd.f32 %v5199, %v5271
  %v5273 = vpop.f32.mrf.mxu0
  %v5274 = vadd.f32 %v5201, %v5273
  %5275 = vmatmul.bf16.gmra.mxu0 %v1941
  %v5276 = vpop.f32.mrf.mxu0
  %v5277 = vadd.f32 %v5204, %v5276
  %v5278 = vpop.f32.mrf.mxu0
  %v5279 = vadd.f32 %v5206, %v5278
  %5280 = vmatmul.bf16.gmra.mxu0 %v1966
  %v5281 = vpop.f32.mrf.mxu0
  %v5282 = vadd.f32 %v5209, %v5281
  %v5283 = vpop.f32.mrf.mxu0
  %v5284 = vadd.f32 %v5211, %v5283
  %5285 = vmatmul.bf16.gmra.mxu0 %v1991
  %v5286 = vpop.f32.mrf.mxu0
  %v5287 = vadd.f32 %v5214, %v5286
  %v5288 = vpop.f32.mrf.mxu0
  %v5289 = vadd.f32 %v5216, %v5288
  %5290 = vmatmul.bf16.gmra.mxu0 %v2016
  %v5291 = vpop.f32.mrf.mxu0
  %v5292 = vadd.f32 %v5219, %v5291
  %v5293 = vpop.f32.mrf.mxu0
  %5294 = vdwg.mxu0
  %5295 = vmatpush.bf16.msra.mxu0 %v3342
  %5296 = vmatpush.bf16.msra.mxu0 %v3341
  %5297 = vmatpush.bf16.msra.mxu0 %v3340
  %5298 = vmatpush.bf16.msra.mxu0 %v3339
  %5299 = vmatpush.bf16.msra.mxu0 %v3338
  %5300 = vmatpush.bf16.msra.mxu0 %v3337
  %5301 = vmatpush.bf16.msra.mxu0 %v3336
  %5302 = vmatpush.bf16.msra.mxu0 %v3335
  %5303 = vmatmul.bf16.gmra.mxu0 %v1717
  %v5304 = vpop.f32.mrf.mxu0
  %v5305 = vadd.f32 %v5232, %v5304
  %v5306 = vpop.f32.mrf.mxu0
  %v5307 = vadd.f32 %v5234, %v5306
  %5308 = vmatmul.bf16.gmra.mxu0 %v1742
  %v5309 = vpop.f32.mrf.mxu0
  %v5310 = vadd.f32 %v5237, %v5309
  %v5311 = vpop.f32.mrf.mxu0
  %v5312 = vadd.f32 %v5239, %v5311
  %5313 = vmatmul.bf16.gmra.mxu0 %v1767
  %v5314 = vpop.f32.mrf.mxu0
  %v5315 = vadd.f32 %v5242, %v5314
  %v5316 = vpop.f32.mrf.mxu0
  %v5317 = vadd.f32 %v5244, %v5316
  %5318 = vmatmul.bf16.gmra.mxu0 %v1792
  %v5319 = vpop.f32.mrf.mxu0
  %v5320 = vadd.f32 %v5247, %v5319
  %v5321 = vpop.f32.mrf.mxu0
  %v5322 = vadd.f32 %v5249, %v5321
  %5323 = vmatmul.bf16.gmra.mxu0 %v1817
  %v5324 = vpop.f32.mrf.mxu0
  %v5325 = vadd.f32 %v5252, %v5324
  %v5326 = vpop.f32.mrf.mxu0
  %v5327 = vadd.f32 %v5254, %v5326
  %5328 = vmatmul.bf16.gmra.mxu0 %v1842
  %v5329 = vpop.f32.mrf.mxu0
  %v5330 = vadd.f32 %v5257, %v5329
  %v5331 = vpop.f32.mrf.mxu0
  %v5332 = vadd.f32 %v5259, %v5331
  %5333 = vmatmul.bf16.gmra.mxu0 %v1867
  %v5334 = vpop.f32.mrf.mxu0
  %v5335 = vadd.f32 %v5262, %v5334
  %v5336 = vpop.f32.mrf.mxu0
  %v5337 = vadd.f32 %v5264, %v5336
  %5338 = vmatmul.bf16.gmra.mxu0 %v1892
  %v5339 = vpop.f32.mrf.mxu0
  %v5340 = vadd.f32 %v5267, %v5339
  %v5341 = vpop.f32.mrf.mxu0
  %v5342 = vadd.f32 %v5269, %v5341
  %5343 = vmatmul.bf16.gmra.mxu0 %v1917
  %v5344 = vpop.f32.mrf.mxu0
  %v5345 = vadd.f32 %v5272, %v5344
  %v5346 = vpop.f32.mrf.mxu0
  %v5347 = vadd.f32 %v5274, %v5346
  %5348 = vmatmul.bf16.gmra.mxu0 %v1942
  %v5349 = vpop.f32.mrf.mxu0
  %v5350 = vadd.f32 %v5277, %v5349
  %v5351 = vpop.f32.mrf.mxu0
  %v5352 = vadd.f32 %v5279, %v5351
  %5353 = vmatmul.bf16.gmra.mxu0 %v1967
  %v5354 = vpop.f32.mrf.mxu0
  %v5355 = vadd.f32 %v5282, %v5354
  %v5356 = vpop.f32.mrf.mxu0
  %v5357 = vadd.f32 %v5284, %v5356
  %5358 = vmatmul.bf16.gmra.mxu0 %v1992
  %v5359 = vpop.f32.mrf.mxu0
  %v5360 = vadd.f32 %v5287, %v5359
  %v5361 = vpop.f32.mrf.mxu0
  %v5362 = vadd.f32 %v5289, %v5361
  %5363 = vmatmul.bf16.gmra.mxu0 %v2017
  %v5364 = vpop.f32.mrf.mxu0
  %v5365 = vadd.f32 %v5292, %v5364
  %v5366 = vpop.f32.mrf.mxu0
  %5367 = vdwg.mxu0
  %v5368 = vmax.f32 %v5305, 0.0
  %v5369 = vmax.f32 %v5307, 0.0
  %v5370 = vmax.f32 %v5310, 0.0
  %v5371 = vmax.f32 %v5312, 0.0
  %v5372 = vmax.f32 %v5315, 0.0
  %v5373 = vmax.f32 %v5317, 0.0
  %v5374 = vmax.f32 %v5320, 0.0
  %v5375 = vmax.f32 %v5322, 0.0
  %v5376 = vmax.f32 %v5325, 0.0
  %v5377 = vmax.f32 %v5327, 0.0
  %v5378 = vmax.f32 %v5330, 0.0
  %v5379 = vmax.f32 %v5332, 0.0
  %v5380 = vmax.f32 %v5335, 0.0
  %v5381 = vmax.f32 %v5337, 0.0
  %v5382 = vmax.f32 %v5340, 0.0
  %v5383 = vmax.f32 %v5342, 0.0
  %v5384 = vmax.f32 %v5345, 0.0
  %v5385 = vmax.f32 %v5347, 0.0
  %v5386 = vmax.f32 %v5350, 0.0
  %v5387 = vmax.f32 %v5352, 0.0
  %v5388 = vmax.f32 %v5355, 0.0
  %v5389 = vmax.f32 %v5357, 0.0
  %v5390 = vmax.f32 %v5360, 0.0
  %v5391 = vmax.f32 %v5362, 0.0
  %v5392 = vmax.f32 %v5365, 0.0
  %v5393 = vpack.c.bf16 %v5368, %v5368
  %v5394 = vpack.c.bf16 %v5369, %v5369
  %v5395 = vpack.c.bf16 %v5370, %v5370
  %v5396 = vpack.c.bf16 %v5371, %v5371
  %v5397 = vpack.c.bf16 %v5372, %v5372
  %v5398 = vpack.c.bf16 %v5373, %v5373
  %v5399 = vpack.c.bf16 %v5374, %v5374
  %v5400 = vpack.c.bf16 %v5375, %v5375
  %v5401 = vpack.c.bf16 %v5376, %v5376
  %v5402 = vpack.c.bf16 %v5377, %v5377
  %v5403 = vpack.c.bf16 %v5378, %v5378
  %v5404 = vpack.c.bf16 %v5379, %v5379
  %v5405 = vpack.c.bf16 %v5380, %v5380
  %v5406 = vpack.c.bf16 %v5381, %v5381
  %v5407 = vpack.c.bf16 %v5382, %v5382
  %v5408 = vpack.c.bf16 %v5383, %v5383
  %v5409 = vpack.c.bf16 %v5384, %v5384
  %v5410 = vpack.c.bf16 %v5385, %v5385
  %v5411 = vpack.c.bf16 %v5386, %v5386
  %v5412 = vpack.c.bf16 %v5387, %v5387
  %v5413 = vpack.c.bf16 %v5388, %v5388
  %v5414 = vpack.c.bf16 %v5389, %v5389
  %v5415 = vpack.c.bf16 %v5390, %v5390
  %v5416 = vpack.c.bf16 %v5391, %v5391
  %v5417 = vpack.c.bf16 %v5392, %v5392
  %5418 = vst [vmem:[%s3] sm:$0xf] %v5393
  %5419 = vst [vmem:[%s3 + $0x4] sm:$0xf] %v5394
  %5420 = vst [vmem:[%s3 + $0x8] sm:$0xf] %v5395
  %5421 = vst [vmem:[%s3 + $0xc] sm:$0xf] %v5396
  %5422 = vst [vmem:[%s3 + $0x10] sm:$0xf] %v5397
  %5423 = vst [vmem:[%s3 + $0x14] sm:$0xf] %v5398
  %5424 = vst [vmem:[%s3 + $0x18] sm:$0xf] %v5399
  %5425 = vst [vmem:[%s3 + $0x1c] sm:$0xf] %v5400
  %5426 = vst [vmem:[%s3 + $0x20] sm:$0xf] %v5401
  %5427 = vst [vmem:[%s3 + $0x24] sm:$0xf] %v5402
  %5428 = vst [vmem:[%s3 + $0x28] sm:$0xf] %v5403
  %5429 = vst [vmem:[%s3 + $0x2c] sm:$0xf] %v5404
  %5430 = vst [vmem:[%s3 + $0x30] sm:$0xf] %v5405
  %5431 = vst [vmem:[%s3 + $0x34] sm:$0xf] %v5406
  %5432 = vst [vmem:[%s3 + $0x38] sm:$0xf] %v5407
  %5433 = vst [vmem:[%s3 + $0x3c] sm:$0xf] %v5408
  %5434 = vst [vmem:[%s3 + $0x40] sm:$0xf] %v5409
  %5435 = vst [vmem:[%s3 + $0x44] sm:$0xf] %v5410
  %5436 = vst [vmem:[%s3 + $0x48] sm:$0xf] %v5411
  %5437 = vst [vmem:[%s3 + $0x4c] sm:$0xf] %v5412
  %5438 = vst [vmem:[%s3 + $0x50] sm:$0xf] %v5413
  %5439 = vst [vmem:[%s3 + $0x54] sm:$0xf] %v5414
  %5440 = vst [vmem:[%s3 + $0x58] sm:$0xf] %v5415
  %5441 = vst [vmem:[%s3 + $0x5c] sm:$0xf] %v5416
  %5442 = vst [vmem:[%s3 + $0x60] sm:$0xf] %v5417
  // Predicated region
  $region14: #{my_cnn_forward.7} parent=0 // pred_check
    _
  $region15: #{my_cnn_forward.7} parent=0 // pred_check_branch
    %5444 = sbr.rel (0) target = $region17
  $region16: #{my_cnn_forward.7} parent=0 // pred_region
    _
  $region17: #{my_cnn_forward.7} parent=0 // pred_fallthru
    _
  // Predicated region
  $region18: #{my_cnn_forward.7} parent=0 // pred_check
    _
  $region19: #{my_cnn_forward.7} parent=0 // pred_check_branch
    %5446 = sbr.rel (0) target = $region21
  $region20: #{my_cnn_forward.7} parent=0 // pred_region
    _
  $region21: #{my_cnn_forward.7} parent=0 // pred_fallthru
    _

// kernel: squeeze.15
$region0: #{squeeze.15}
  %s0 = inlined_call_operand.vmem [shape: bf16[2,5,1,5,1,128], index: 0, kind: input, shape index: {}]
  %s1 = inlined_call_operand.vmem [shape: bf16[50,128], index: 1, kind: output, shape index: {}]
  $region1: #{squeeze.15} parent=0
    #allocation0 [shape = 'u8[28672]{0}', space=vmem, size = 0x7000, scoped, tag = 'scoped mem for output reshape']
    #allocation1 [shape = 'u8[40960]{0}', space=vmem, size = 0xa000, scoped, tag = 'scoped mem for input reshape']
    %s3 = ssub.s32 256, 1
    %s4 = scalar_lea.vmem %s0, 36
    %s5 = sshrl.u32 %s3, 1
    %s6 = sor.u32 %s3, %s5
    %s7 = sand.u32 %s6, 85
    %s8 = sshrl.u32 %s7, 1
    %s9 = sor.u32 %s7, %s8
    %s10 = sand.u32 51, %s9
    %s11 = sshrl.u32 %s10, 2
    %s12 = sor.u32 %s10, %s11
    %s13 = sand.u32 15, %s12
    %v14 = vld [vmem:[%s4] sm:%s13]
    %v15 = vunpack.c.l.bf16 %v14
    %v16 = vunpack.c.h.bf16 %v14
    %s17 = scalar_lea.vmem [#allocation1], 72
    %18 = vst [vmem:[%s17] sm:%s3] %v15
    %s19 = scalar_lea.vmem %s0, 32
    %s20 = sshrl.u32 %s3, 1
    %s21 = sor.u32 %s3, %s20
    %s22 = sand.u32 %s21, 85
    %s23 = sshrl.u32 %s22, 1
    %s24 = sor.u32 %s22, %s23
    %s25 = sand.u32 51, %s24
    %s26 = sshrl.u32 %s25, 2
    %s27 = sor.u32 %s25, %s26
    %s28 = sand.u32 15, %s27
    %v29 = vld [vmem:[%s19] sm:%s28]
    %v30 = vunpack.c.l.bf16 %v29
    %v31 = vunpack.c.h.bf16 %v29
    %s32 = scalar_lea.vmem [#allocation1], 64
    %33 = vst [vmem:[%s32] sm:%s3] %v30
    %s34 = scalar_lea.vmem %s0, 28
    %s35 = sshrl.u32 %s3, 1
    %s36 = sor.u32 %s3, %s35
    %s37 = sand.u32 %s36, 85
    %s38 = sshrl.u32 %s37, 1
    %s39 = sor.u32 %s37, %s38
    %s40 = sand.u32 51, %s39
    %s41 = sshrl.u32 %s40, 2
    %s42 = sor.u32 %s40, %s41
    %s43 = sand.u32 15, %s42
    %v44 = vld [vmem:[%s34] sm:%s43]
    %v45 = vunpack.c.l.bf16 %v44
    %v46 = vunpack.c.h.bf16 %v44
    %s47 = scalar_lea.vmem [#allocation1], 56
    %48 = vst [vmem:[%s47] sm:%s3] %v45
    %s49 = scalar_lea.vmem %s0, 24
    %s50 = sshrl.u32 %s3, 1
    %s51 = sor.u32 %s3, %s50
    %s52 = sand.u32 %s51, 85
    %s53 = sshrl.u32 %s52, 1
    %s54 = sor.u32 %s52, %s53
    %s55 = sand.u32 51, %s54
    %s56 = sshrl.u32 %s55, 2
    %s57 = sor.u32 %s55, %s56
    %s58 = sand.u32 15, %s57
    %v59 = vld [vmem:[%s49] sm:%s58]
    %v60 = vunpack.c.l.bf16 %v59
    %v61 = vunpack.c.h.bf16 %v59
    %s62 = scalar_lea.vmem [#allocation1], 48
    %63 = vst [vmem:[%s62] sm:%s3] %v60
    %s64 = scalar_lea.vmem %s0, 20
    %s65 = sshrl.u32 %s3, 1
    %s66 = sor.u32 %s3, %s65
    %s67 = sand.u32 %s66, 85
    %s68 = sshrl.u32 %s67, 1
    %s69 = sor.u32 %s67, %s68
    %s70 = sand.u32 51, %s69
    %s71 = sshrl.u32 %s70, 2
    %s72 = sor.u32 %s70, %s71
    %s73 = sand.u32 15, %s72
    %v74 = vld [vmem:[%s64] sm:%s73]
    %v75 = vunpack.c.l.bf16 %v74
    %v76 = vunpack.c.h.bf16 %v74
    %s77 = scalar_lea.vmem [#allocation1], 40
    %78 = vst [vmem:[%s77] sm:%s3] %v75
    %s79 = scalar_lea.vmem %s0, 16
    %s80 = sshrl.u32 %s3, 1
    %s81 = sor.u32 %s3, %s80
    %s82 = sand.u32 %s81, 85
    %s83 = sshrl.u32 %s82, 1
    %s84 = sor.u32 %s82, %s83
    %s85 = sand.u32 51, %s84
    %s86 = sshrl.u32 %s85, 2
    %s87 = sor.u32 %s85, %s86
    %s88 = sand.u32 15, %s87
    %v89 = vld [vmem:[%s79] sm:%s88]
    %v90 = vunpack.c.l.bf16 %v89
    %v91 = vunpack.c.h.bf16 %v89
    %s92 = scalar_lea.vmem [#allocation1], 32
    %93 = vst [vmem:[%s92] sm:%s3] %v90
    %s94 = scalar_lea.vmem %s0, 12
    %s95 = sshrl.u32 %s3, 1
    %s96 = sor.u32 %s3, %s95
    %s97 = sand.u32 %s96, 85
    %s98 = sshrl.u32 %s97, 1
    %s99 = sor.u32 %s97, %s98
    %s100 = sand.u32 51, %s99
    %s101 = sshrl.u32 %s100, 2
    %s102 = sor.u32 %s100, %s101
    %s103 = sand.u32 15, %s102
    %v104 = vld [vmem:[%s94] sm:%s103]
    %v105 = vunpack.c.l.bf16 %v104
    %v106 = vunpack.c.h.bf16 %v104
    %s107 = scalar_lea.vmem [#allocation1], 24
    %108 = vst [vmem:[%s107] sm:%s3] %v105
    %s109 = scalar_lea.vmem %s0, 8
    %s110 = sshrl.u32 %s3, 1
    %s111 = sor.u32 %s3, %s110
    %s112 = sand.u32 %s111, 85
    %s113 = sshrl.u32 %s112, 1
    %s114 = sor.u32 %s112, %s113
    %s115 = sand.u32 51, %s114
    %s116 = sshrl.u32 %s115, 2
    %s117 = sor.u32 %s115, %s116
    %s118 = sand.u32 15, %s117
    %v119 = vld [vmem:[%s109] sm:%s118]
    %v120 = vunpack.c.l.bf16 %v119
    %v121 = vunpack.c.h.bf16 %v119
    %s122 = scalar_lea.vmem [#allocation1], 16
    %123 = vst [vmem:[%s122] sm:%s3] %v120
    %s124 = scalar_lea.vmem %s0, 4
    %s125 = sshrl.u32 %s3, 1
    %s126 = sor.u32 %s3, %s125
    %s127 = sand.u32 %s126, 85
    %s128 = sshrl.u32 %s127, 1
    %s129 = sor.u32 %s127, %s128
    %s130 = sand.u32 51, %s129
    %s131 = sshrl.u32 %s130, 2
    %s132 = sor.u32 %s130, %s131
    %s133 = sand.u32 15, %s132
    %v134 = vld [vmem:[%s124] sm:%s133]
    %v135 = vunpack.c.l.bf16 %v134
    %v136 = vunpack.c.h.bf16 %v134
    %s137 = scalar_lea.vmem [#allocation1], 8
    %138 = vst [vmem:[%s137] sm:%s3] %v135
    %s139 = sshrl.u32 %s3, 1
    %s140 = sor.u32 %s3, %s139
    %s141 = sand.u32 %s140, 85
    %s142 = sshrl.u32 %s141, 1
    %s143 = sor.u32 %s141, %s142
    %s144 = sand.u32 51, %s143
    %s145 = sshrl.u32 %s144, 2
    %s146 = sor.u32 %s144, %s145
    %s147 = sand.u32 15, %s146
    %v148 = vld [vmem:[%s0] sm:%s147]
    %v149 = vunpack.c.l.bf16 %v148
    %v150 = vunpack.c.h.bf16 %v148
    %151 = vst [vmem:[#allocation1] sm:%s3] %v149
    %v152 = vld [vmem:[#allocation1] sm:$0x1f]
    %153 = vst [vmem:[#allocation0] sm:$0x1f] %v152
    %s154 = scalar_lea.vmem [#allocation1], 8
    %v155 = vld [vmem:[%s154] sm:$0x1f]
    %s156 = scalar_lea.vmem [#allocation0], 5
    %157 = vst [vmem:[%s156] sm:$0x1f] %v155
    %s158 = scalar_lea.vmem [#allocation1], 16
    %v159 = vld [vmem:[%s158] sm:$0x1f]
    %s160 = scalar_lea.vmem [#allocation0], 10
    %161 = vst [vmem:[%s160] sm:$0x1f] %v159
    %s162 = scalar_lea.vmem [#allocation1], 24
    %v163 = vld [vmem:[%s162] sm:$0x1f]
    %s164 = scalar_lea.vmem [#allocation0], 15
    %165 = vst [vmem:[%s164] sm:$0x1f] %v163
    %s166 = scalar_lea.vmem [#allocation1], 32
    %v167 = vld [vmem:[%s166] sm:$0x1f]
    %s168 = scalar_lea.vmem [#allocation0], 20
    %169 = vst [vmem:[%s168] sm:$0x1f] %v167
    %s170 = scalar_lea.vmem [#allocation1], 40
    %v171 = vld [vmem:[%s170] sm:$0x1f]
    %s172 = scalar_lea.vmem [#allocation0], 25
    %173 = vst [vmem:[%s172] sm:$0x1f] %v171
    %s174 = scalar_lea.vmem [#allocation1], 48
    %v175 = vld [vmem:[%s174] sm:$0x1f]
    %s176 = scalar_lea.vmem [#allocation0], 30
    %177 = vst [vmem:[%s176] sm:$0x1f] %v175
    %s178 = scalar_lea.vmem [#allocation1], 56
    %v179 = vld [vmem:[%s178] sm:$0x1f]
    %s180 = scalar_lea.vmem [#allocation0], 35
    %181 = vst [vmem:[%s180] sm:$0x1f] %v179
    %s182 = scalar_lea.vmem [#allocation1], 64
    %v183 = vld [vmem:[%s182] sm:$0x1f]
    %s184 = scalar_lea.vmem [#allocation0], 40
    %185 = vst [vmem:[%s184] sm:$0x1f] %v183
    %s186 = scalar_lea.vmem [#allocation1], 72
    %v187 = vld [vmem:[%s186] sm:$0x1f]
    %s188 = scalar_lea.vmem [#allocation0], 45
    %189 = vst [vmem:[%s188] sm:$0x1f] %v187
    %s191 = ssub.s32 256, 1
    %v192 = vld [vmem:[#allocation0] sm:%s191]
    %v193 = vpack.c.bf16 0.0, %v192
    %s195 = ssub.s32 16, 1
    %196 = vst [vmem:[%s1] sm:%s195] %v193
    %s197 = scalar_lea.vmem [#allocation0], 8
    %v198 = vld [vmem:[%s197] sm:%s191]
    %v199 = vpack.c.bf16 0.0, %v198
    %s201 = ssub.s32 16, 1
    %s202 = scalar_lea.vmem %s1, 4
    %203 = vst [vmem:[%s202] sm:%s201] %v199
    %s204 = scalar_lea.vmem [#allocation0], 16
    %v205 = vld [vmem:[%s204] sm:%s191]
    %v206 = vpack.c.bf16 0.0, %v205
    %s208 = ssub.s32 16, 1
    %s209 = scalar_lea.vmem %s1, 8
    %210 = vst [vmem:[%s209] sm:%s208] %v206
    %s211 = scalar_lea.vmem [#allocation0], 24
    %v212 = vld [vmem:[%s211] sm:%s191]
    %v213 = vpack.c.bf16 0.0, %v212
    %s215 = ssub.s32 16, 1
    %s216 = scalar_lea.vmem %s1, 12
    %217 = vst [vmem:[%s216] sm:%s215] %v213
    %s218 = scalar_lea.vmem [#allocation0], 32
    %v219 = vld [vmem:[%s218] sm:%s191]
    %v220 = vpack.c.bf16 0.0, %v219
    %s222 = ssub.s32 16, 1
    %s223 = scalar_lea.vmem %s1, 16
    %224 = vst [vmem:[%s223] sm:%s222] %v220
    %s225 = scalar_lea.vmem [#allocation0], 40
    %v226 = vld [vmem:[%s225] sm:%s191]
    %v227 = vpack.c.bf16 0.0, %v226
    %s229 = ssub.s32 16, 1
    %s230 = scalar_lea.vmem %s1, 20
    %231 = vst [vmem:[%s230] sm:%s229] %v227
    %s232 = scalar_lea.vmem [#allocation0], 48
    %v233 = vld [vmem:[%s232] sm:%s191]
    %v234 = vpack.c.bf16 0.0, %v233
    %s236 = ssub.s32 16, 1
    %s237 = scalar_lea.vmem %s1, 24
    %238 = vst [vmem:[%s237] sm:%s236] %v234

// kernel: my_cnn_forward.8
$region0: #{my_cnn_forward.8}
  #allocation0 [shape = 'u32[]', space=smem, size = 0x4, offset = 0x4, fixed_abs, tag = 'smem constant byte address 0x4 - core index']
  #allocation1 [shape = 'u32[72,128]{1,0:T(1,128)}', space=vmem, size = 0x9000, scoped, tag = 'internal scratch']
  %s0 = inlined_call_operand.vmem [shape: bf16[50,128], index: 0, kind: input, shape index: {}]
  %s1 = inlined_call_operand.vmem [shape: bf16[50,128], index: 1, kind: input, shape index: {}]
  %s2 = inlined_call_operand.vmem [shape: bf16[50,128], index: 2, kind: input, shape index: {}]
  %s3 = inlined_call_operand.vmem [shape: bf16[50,128], index: 3, kind: input, shape index: {}]
  %s4 = inlined_call_operand.vmem [shape: bf16[50,128], index: 4, kind: output, shape index: {}]
  %s5 = sld [smem:[#allocation0]]
  $region26: #{my_cnn_forward.8} parent=0
    _
  %s7 = ssub.s32 1, %s5
  %s8 = scalar_select 0, %s7, %s5
  // Predicated region
  $region2: #{my_cnn_forward.8} parent=0 // pred_check
    _
  $region3: #{my_cnn_forward.8} parent=0 // pred_check_branch
    %10 = sbr.rel (0) target = $region5
  $region4: #{my_cnn_forward.8} parent=0 // pred_region
    _
  $region5: #{my_cnn_forward.8} parent=0 // pred_fallthru
    _
  // Predicated region
  $region6: #{my_cnn_forward.8} parent=0 // pred_check
    _
  $region7: #{my_cnn_forward.8} parent=0 // pred_check_branch
    %12 = sbr.rel (0) target = $region9
  $region8: #{my_cnn_forward.8} parent=0 // pred_region
    _
  $region9: #{my_cnn_forward.8} parent=0 // pred_fallthru
    _
  // Predicated region
  $region10: #{my_cnn_forward.8} parent=0 // pred_check
    _
  $region11: #{my_cnn_forward.8} parent=0 // pred_check_branch
    %14 = sbr.rel (0) target = $region13
  $region12: #{my_cnn_forward.8} parent=0 // pred_region
    _
  $region13: #{my_cnn_forward.8} parent=0 // pred_fallthru
    _
  // Predicated region
  $region14: #{my_cnn_forward.8} parent=0 // pred_check
    _
  $region15: #{my_cnn_forward.8} parent=0 // pred_check_branch
    %16 = sbr.rel (0) target = $region17
  $region16: #{my_cnn_forward.8} parent=0 // pred_region
    _
  $region17: #{my_cnn_forward.8} parent=0 // pred_fallthru
    _
  %v17 = vld [vmem:[%s0] sm:$0xf]
  %v18 = vld [vmem:[%s0 + $0x4] sm:$0xf]
  %v19 = vld [vmem:[%s0 + $0x8] sm:$0xf]
  %v20 = vld [vmem:[%s0 + $0xc] sm:$0xf]
  %v21 = vld [vmem:[%s0 + $0x10] sm:$0xf]
  %v22 = vld [vmem:[%s0 + $0x14] sm:$0xf]
  %v23 = vld [vmem:[%s0 + $0x18] sm:$0x1]
  %v24 = vld [vmem:[%s1] sm:$0xf]
  %v25 = vld [vmem:[%s1 + $0x4] sm:$0xf]
  %v26 = vld [vmem:[%s1 + $0x8] sm:$0xf]
  %v27 = vld [vmem:[%s1 + $0xc] sm:$0xf]
  %v28 = vld [vmem:[%s1 + $0x10] sm:$0xf]
  %v29 = vld [vmem:[%s1 + $0x14] sm:$0xf]
  %v30 = vld [vmem:[%s1 + $0x18] sm:$0x1]
  %v31 = vunpack.c.l.bf16 %v17
  %v32 = vunpack.c.l.bf16 %v18
  %v33 = vunpack.c.l.bf16 %v19
  %v34 = vunpack.c.l.bf16 %v20
  %v35 = vunpack.c.l.bf16 %v21
  %v36 = vunpack.c.l.bf16 %v22
  %v37 = vunpack.c.l.bf16 %v23
  %v38 = vunpack.c.l.bf16 %v24
  %v39 = vunpack.c.l.bf16 %v25
  %v40 = vunpack.c.l.bf16 %v26
  %v41 = vunpack.c.l.bf16 %v27
  %v42 = vunpack.c.l.bf16 %v28
  %v43 = vunpack.c.l.bf16 %v29
  %v44 = vunpack.c.l.bf16 %v30
  %v45 = vmax.f32 %v31, %v38
  %v46 = vmax.f32 %v32, %v39
  %v47 = vmax.f32 %v33, %v40
  %v48 = vmax.f32 %v34, %v41
  %v49 = vmax.f32 %v35, %v42
  %v50 = vmax.f32 %v36, %v43
  %v51 = vmax.f32 %v37, %v44
  %v52 = vpack.c.bf16 %v45, %v45
  %v53 = vpack.c.bf16 %v46, %v46
  %v54 = vpack.c.bf16 %v47, %v47
  %v55 = vpack.c.bf16 %v48, %v48
  %v56 = vpack.c.bf16 %v49, %v49
  %v57 = vpack.c.bf16 %v50, %v50
  %v58 = vpack.c.bf16 %v51, %v51
  %v59 = vld [vmem:[%s2] sm:$0xf]
  %v60 = vld [vmem:[%s2 + $0x4] sm:$0xf]
  %v61 = vld [vmem:[%s2 + $0x8] sm:$0xf]
  %v62 = vld [vmem:[%s2 + $0xc] sm:$0xf]
  %v63 = vld [vmem:[%s2 + $0x10] sm:$0xf]
  %v64 = vld [vmem:[%s2 + $0x14] sm:$0xf]
  %v65 = vld [vmem:[%s2 + $0x18] sm:$0x1]
  %v66 = vld [vmem:[%s3] sm:$0xf]
  %v67 = vld [vmem:[%s3 + $0x4] sm:$0xf]
  %v68 = vld [vmem:[%s3 + $0x8] sm:$0xf]
  %v69 = vld [vmem:[%s3 + $0xc] sm:$0xf]
  %v70 = vld [vmem:[%s3 + $0x10] sm:$0xf]
  %v71 = vld [vmem:[%s3 + $0x14] sm:$0xf]
  %v72 = vld [vmem:[%s3 + $0x18] sm:$0x1]
  %v73 = vunpack.c.l.bf16 %v59
  %v74 = vunpack.c.l.bf16 %v60
  %v75 = vunpack.c.l.bf16 %v61
  %v76 = vunpack.c.l.bf16 %v62
  %v77 = vunpack.c.l.bf16 %v63
  %v78 = vunpack.c.l.bf16 %v64
  %v79 = vunpack.c.l.bf16 %v65
  %v80 = vunpack.c.l.bf16 %v66
  %v81 = vunpack.c.l.bf16 %v67
  %v82 = vunpack.c.l.bf16 %v68
  %v83 = vunpack.c.l.bf16 %v69
  %v84 = vunpack.c.l.bf16 %v70
  %v85 = vunpack.c.l.bf16 %v71
  %v86 = vunpack.c.l.bf16 %v72
  %v87 = vmax.f32 %v73, %v80
  %v88 = vmax.f32 %v74, %v81
  %v89 = vmax.f32 %v75, %v82
  %v90 = vmax.f32 %v76, %v83
  %v91 = vmax.f32 %v77, %v84
  %v92 = vmax.f32 %v78, %v85
  %v93 = vmax.f32 %v79, %v86
  %v94 = vpack.c.bf16 %v87, %v87
  %v95 = vpack.c.bf16 %v88, %v88
  %v96 = vpack.c.bf16 %v89, %v89
  %v97 = vpack.c.bf16 %v90, %v90
  %v98 = vpack.c.bf16 %v91, %v91
  %v99 = vpack.c.bf16 %v92, %v92
  %v100 = vpack.c.bf16 %v93, %v93
  %v101 = vunpack.c.l.bf16 %v52
  %v102 = vunpack.c.l.bf16 %v53
  %v103 = vunpack.c.l.bf16 %v54
  %v104 = vunpack.c.l.bf16 %v55
  %v105 = vunpack.c.l.bf16 %v56
  %v106 = vunpack.c.l.bf16 %v57
  %v107 = vunpack.c.l.bf16 %v58
  %v108 = vunpack.c.l.bf16 %v94
  %v109 = vunpack.c.l.bf16 %v95
  %v110 = vunpack.c.l.bf16 %v96
  %v111 = vunpack.c.l.bf16 %v97
  %v112 = vunpack.c.l.bf16 %v98
  %v113 = vunpack.c.l.bf16 %v99
  %v114 = vunpack.c.l.bf16 %v100
  %v115 = vmax.f32 %v101, %v108
  %v116 = vmax.f32 %v102, %v109
  %v117 = vmax.f32 %v103, %v110
  %v118 = vmax.f32 %v104, %v111
  %v119 = vmax.f32 %v105, %v112
  %v120 = vmax.f32 %v106, %v113
  %v121 = vmax.f32 %v107, %v114
  %v122 = vpack.c.bf16 %v115, %v115
  %v123 = vpack.c.bf16 %v116, %v116
  %v124 = vpack.c.bf16 %v117, %v117
  %v125 = vpack.c.bf16 %v118, %v118
  %v126 = vpack.c.bf16 %v119, %v119
  %v127 = vpack.c.bf16 %v120, %v120
  %v128 = vpack.c.bf16 %v121, %v121
  %129 = vst [vmem:[%s4] sm:$0xf] %v122
  %130 = vst [vmem:[%s4 + $0x4] sm:$0xf] %v123
  %131 = vst [vmem:[%s4 + $0x8] sm:$0xf] %v124
  %132 = vst [vmem:[%s4 + $0xc] sm:$0xf] %v125
  %133 = vst [vmem:[%s4 + $0x10] sm:$0xf] %v126
  %134 = vst [vmem:[%s4 + $0x14] sm:$0xf] %v127
  %135 = vst [vmem:[%s4 + $0x18] sm:$0x1] %v128
  // Predicated region
  $region18: #{my_cnn_forward.8} parent=0 // pred_check
    _
  $region19: #{my_cnn_forward.8} parent=0 // pred_check_branch
    %137 = sbr.rel (0) target = $region21
  $region20: #{my_cnn_forward.8} parent=0 // pred_region
    _
  $region21: #{my_cnn_forward.8} parent=0 // pred_fallthru
    _
  // Predicated region
  $region22: #{my_cnn_forward.8} parent=0 // pred_check
    _
  $region23: #{my_cnn_forward.8} parent=0 // pred_check_branch
    %139 = sbr.rel (0) target = $region25
  $region24: #{my_cnn_forward.8} parent=0 // pred_region
    _
  $region25: #{my_cnn_forward.8} parent=0 // pred_fallthru
    _

// kernel: my_cnn_forward.9
$region0: #{my_cnn_forward.9}
  #allocation0 [shape = 'u32[]', space=smem, size = 0x4, offset = 0x4, fixed_abs, tag = 'smem constant byte address 0x4 - core index']
  #allocation1 [shape = 'u32[72,128]{1,0:T(1,128)}', space=vmem, size = 0x9000, scoped, tag = 'internal scratch']
  %s0 = inlined_call_operand.vmem [shape: bf16[2,3200], index: 0, kind: input, shape index: {}]
  %s1 = inlined_call_operand.vmem [shape: bf16[3200,128], index: 1, kind: input, shape index: {}]
  %s2 = inlined_call_operand.vmem [shape: f32[1,128], index: 2, kind: input, shape index: {}]
  %s3 = inlined_call_operand.vmem [shape: bf16[128,128], index: 3, kind: input, shape index: {}]
  %s4 = inlined_call_operand.vmem [shape: f32[1,128], index: 4, kind: input, shape index: {}]
  %s5 = inlined_call_operand.hbm [shape: f32[2,128], index: 5, kind: output, shape index: {}]
  %s6 = sld [smem:[#allocation0]]
  $region30: #{my_cnn_forward.9} parent=0
    _
  %s8 = ssub.s32 1, %s6
  %s9 = scalar_select 0, %s8, %s6
  $region1: #{my_cnn_forward.9} parent=0
    #allocation2 [shape = 'u8[1024]{0}', space=vmem, size = 0x400, scoped, tag = 'output window, operand 0, single buffered']
    #allocation3 [shape = 's32[1]{0}', space=sflag, size = 0x4, scoped, tag = 'scoped memory for my_cnn_forward.9']
    %10 = vsyncpa [#allocation3], 0
    // Predicated region
    $region2: #{my_cnn_forward.9} parent=1 // pred_check
      _
    $region3: #{my_cnn_forward.9} parent=1 // pred_check_branch
      %12 = sbr.rel (0) target = $region5
    $region4: #{my_cnn_forward.9} parent=1 // pred_region
      _
    $region5: #{my_cnn_forward.9} parent=1 // pred_fallthru
      _
    // Predicated region
    $region6: #{my_cnn_forward.9} parent=1 // pred_check
      _
    $region7: #{my_cnn_forward.9} parent=1 // pred_check_branch
      %14 = sbr.rel (0) target = $region9
    $region8: #{my_cnn_forward.9} parent=1 // pred_region
      _
    $region9: #{my_cnn_forward.9} parent=1 // pred_fallthru
      _
    // Predicated region
    $region10: #{my_cnn_forward.9} parent=1 // pred_check
      _
    $region11: #{my_cnn_forward.9} parent=1 // pred_check_branch
      %16 = sbr.rel (0) target = $region13
    $region12: #{my_cnn_forward.9} parent=1 // pred_region
      _
    $region13: #{my_cnn_forward.9} parent=1 // pred_fallthru
      _
    // Predicated region
    $region14: #{my_cnn_forward.9} parent=1 // pred_check
      _
    $region15: #{my_cnn_forward.9} parent=1 // pred_check_branch
      %18 = sbr.rel (0) target = $region17
    $region16: #{my_cnn_forward.9} parent=1 // pred_region
      _
    $region17: #{my_cnn_forward.9} parent=1 // pred_fallthru
      _
    // Predicated region
    $region18: #{my_cnn_forward.9} parent=1 // pred_check
      _
    $region19: #{my_cnn_forward.9} parent=1 // pred_check_branch
      %20 = sbr.rel (0) target = $region21
    $region20: #{my_cnn_forward.9} parent=1 // pred_region
      _
    $region21: #{my_cnn_forward.9} parent=1 // pred_fallthru
      _
    %v21 = vld [vmem:[%s0] sm:$0xff]
    %v22 = vld [vmem:[%s0 + $0x8] sm:$0xff]
    %v23 = vld [vmem:[%s0 + $0x10] sm:$0xff]
    %v24 = vld [vmem:[%s0 + $0x18] sm:$0x1]
    %v25 = vld [vmem:[%s1] sm:$0xf]
    %v26 = vld [vmem:[%s1 + $0x4] sm:$0xf]
    %v27 = vld [vmem:[%s1 + $0x8] sm:$0xf]
    %v28 = vld [vmem:[%s1 + $0xc] sm:$0xf]
    %v29 = vld [vmem:[%s1 + $0x10] sm:$0xf]
    %v30 = vld [vmem:[%s1 + $0x14] sm:$0xf]
    %v31 = vld [vmem:[%s1 + $0x18] sm:$0xf]
    %v32 = vld [vmem:[%s1 + $0x1c] sm:$0xf]
    %v33 = vld [vmem:[%s1 + $0x20] sm:$0xf]
    %v34 = vld [vmem:[%s1 + $0x24] sm:$0xf]
    %v35 = vld [vmem:[%s1 + $0x28] sm:$0xf]
    %v36 = vld [vmem:[%s1 + $0x2c] sm:$0xf]
    %v37 = vld [vmem:[%s1 + $0x30] sm:$0xf]
    %v38 = vld [vmem:[%s1 + $0x34] sm:$0xf]
    %v39 = vld [vmem:[%s1 + $0x38] sm:$0xf]
    %v40 = vld [vmem:[%s1 + $0x3c] sm:$0xf]
    %v41 = vld [vmem:[%s1 + $0x40] sm:$0xf]
    %v42 = vld [vmem:[%s1 + $0x44] sm:$0xf]
    %v43 = vld [vmem:[%s1 + $0x48] sm:$0xf]
    %v44 = vld [vmem:[%s1 + $0x4c] sm:$0xf]
    %v45 = vld [vmem:[%s1 + $0x50] sm:$0xf]
    %v46 = vld [vmem:[%s1 + $0x54] sm:$0xf]
    %v47 = vld [vmem:[%s1 + $0x58] sm:$0xf]
    %v48 = vld [vmem:[%s1 + $0x5c] sm:$0xf]
    %v49 = vld [vmem:[%s1 + $0x60] sm:$0xf]
    %v50 = vld [vmem:[%s1 + $0x64] sm:$0xf]
    %v51 = vld [vmem:[%s1 + $0x68] sm:$0xf]
    %v52 = vld [vmem:[%s1 + $0x6c] sm:$0xf]
    %v53 = vld [vmem:[%s1 + $0x70] sm:$0xf]
    %v54 = vld [vmem:[%s1 + $0x74] sm:$0xf]
    %v55 = vld [vmem:[%s1 + $0x78] sm:$0xf]
    %v56 = vld [vmem:[%s1 + $0x7c] sm:$0xf]
    %v57 = vld [vmem:[%s1 + $0x80] sm:$0xf]
    %v58 = vld [vmem:[%s1 + $0x84] sm:$0xf]
    %v59 = vld [vmem:[%s1 + $0x88] sm:$0xf]
    %v60 = vld [vmem:[%s1 + $0x8c] sm:$0xf]
    %v61 = vld [vmem:[%s1 + $0x90] sm:$0xf]
    %v62 = vld [vmem:[%s1 + $0x94] sm:$0xf]
    %v63 = vld [vmem:[%s1 + $0x98] sm:$0xf]
    %v64 = vld [vmem:[%s1 + $0x9c] sm:$0xf]
    %v65 = vld [vmem:[%s1 + $0xa0] sm:$0xf]
    %v66 = vld [vmem:[%s1 + $0xa4] sm:$0xf]
    %v67 = vld [vmem:[%s1 + $0xa8] sm:$0xf]
    %v68 = vld [vmem:[%s1 + $0xac] sm:$0xf]
    %v69 = vld [vmem:[%s1 + $0xb0] sm:$0xf]
    %v70 = vld [vmem:[%s1 + $0xb4] sm:$0xf]
    %v71 = vld [vmem:[%s1 + $0xb8] sm:$0xf]
    %v72 = vld [vmem:[%s1 + $0xbc] sm:$0xf]
    %v73 = vld [vmem:[%s1 + $0xc0] sm:$0xf]
    %v74 = vld [vmem:[%s1 + $0xc4] sm:$0xf]
    %v75 = vld [vmem:[%s1 + $0xc8] sm:$0xf]
    %v76 = vld [vmem:[%s1 + $0xcc] sm:$0xf]
    %v77 = vld [vmem:[%s1 + $0xd0] sm:$0xf]
    %v78 = vld [vmem:[%s1 + $0xd4] sm:$0xf]
    %v79 = vld [vmem:[%s1 + $0xd8] sm:$0xf]
    %v80 = vld [vmem:[%s1 + $0xdc] sm:$0xf]
    %v81 = vld [vmem:[%s1 + $0xe0] sm:$0xf]
    %v82 = vld [vmem:[%s1 + $0xe4] sm:$0xf]
    %v83 = vld [vmem:[%s1 + $0xe8] sm:$0xf]
    %v84 = vld [vmem:[%s1 + $0xec] sm:$0xf]
    %v85 = vld [vmem:[%s1 + $0xf0] sm:$0xf]
    %v86 = vld [vmem:[%s1 + $0xf4] sm:$0xf]
    %v87 = vld [vmem:[%s1 + $0xf8] sm:$0xf]
    %v88 = vld [vmem:[%s1 + $0xfc] sm:$0xf]
    %v89 = vld [vmem:[%s1 + $0x100] sm:$0xf]
    %v90 = vld [vmem:[%s1 + $0x104] sm:$0xf]
    %v91 = vld [vmem:[%s1 + $0x108] sm:$0xf]
    %v92 = vld [vmem:[%s1 + $0x10c] sm:$0xf]
    %v93 = vld [vmem:[%s1 + $0x110] sm:$0xf]
    %v94 = vld [vmem:[%s1 + $0x114] sm:$0xf]
    %v95 = vld [vmem:[%s1 + $0x118] sm:$0xf]
    %v96 = vld [vmem:[%s1 + $0x11c] sm:$0xf]
    %v97 = vld [vmem:[%s1 + $0x120] sm:$0xf]
    %v98 = vld [vmem:[%s1 + $0x124] sm:$0xf]
    %v99 = vld [vmem:[%s1 + $0x128] sm:$0xf]
    %v100 = vld [vmem:[%s1 + $0x12c] sm:$0xf]
    %v101 = vld [vmem:[%s1 + $0x130] sm:$0xf]
    %v102 = vld [vmem:[%s1 + $0x134] sm:$0xf]
    %v103 = vld [vmem:[%s1 + $0x138] sm:$0xf]
    %v104 = vld [vmem:[%s1 + $0x13c] sm:$0xf]
    %v105 = vld [vmem:[%s1 + $0x140] sm:$0xf]
    %v106 = vld [vmem:[%s1 + $0x144] sm:$0xf]
    %v107 = vld [vmem:[%s1 + $0x148] sm:$0xf]
    %v108 = vld [vmem:[%s1 + $0x14c] sm:$0xf]
    %v109 = vld [vmem:[%s1 + $0x150] sm:$0xf]
    %v110 = vld [vmem:[%s1 + $0x154] sm:$0xf]
    %v111 = vld [vmem:[%s1 + $0x158] sm:$0xf]
    %v112 = vld [vmem:[%s1 + $0x15c] sm:$0xf]
    %v113 = vld [vmem:[%s1 + $0x160] sm:$0xf]
    %v114 = vld [vmem:[%s1 + $0x164] sm:$0xf]
    %v115 = vld [vmem:[%s1 + $0x168] sm:$0xf]
    %v116 = vld [vmem:[%s1 + $0x16c] sm:$0xf]
    %v117 = vld [vmem:[%s1 + $0x170] sm:$0xf]
    %v118 = vld [vmem:[%s1 + $0x174] sm:$0xf]
    %v119 = vld [vmem:[%s1 + $0x178] sm:$0xf]
    %v120 = vld [vmem:[%s1 + $0x17c] sm:$0xf]
    %v121 = vld [vmem:[%s1 + $0x180] sm:$0xf]
    %v122 = vld [vmem:[%s1 + $0x184] sm:$0xf]
    %v123 = vld [vmem:[%s1 + $0x188] sm:$0xf]
    %v124 = vld [vmem:[%s1 + $0x18c] sm:$0xf]
    %v125 = vld [vmem:[%s1 + $0x190] sm:$0xf]
    %v126 = vld [vmem:[%s1 + $0x194] sm:$0xf]
    %v127 = vld [vmem:[%s1 + $0x198] sm:$0xf]
    %v128 = vld [vmem:[%s1 + $0x19c] sm:$0xf]
    %v129 = vld [vmem:[%s1 + $0x1a0] sm:$0xf]
    %v130 = vld [vmem:[%s1 + $0x1a4] sm:$0xf]
    %v131 = vld [vmem:[%s1 + $0x1a8] sm:$0xf]
    %v132 = vld [vmem:[%s1 + $0x1ac] sm:$0xf]
    %v133 = vld [vmem:[%s1 + $0x1b0] sm:$0xf]
    %v134 = vld [vmem:[%s1 + $0x1b4] sm:$0xf]
    %v135 = vld [vmem:[%s1 + $0x1b8] sm:$0xf]
    %v136 = vld [vmem:[%s1 + $0x1bc] sm:$0xf]
    %v137 = vld [vmem:[%s1 + $0x1c0] sm:$0xf]
    %v138 = vld [vmem:[%s1 + $0x1c4] sm:$0xf]
    %v139 = vld [vmem:[%s1 + $0x1c8] sm:$0xf]
    %v140 = vld [vmem:[%s1 + $0x1cc] sm:$0xf]
    %v141 = vld [vmem:[%s1 + $0x1d0] sm:$0xf]
    %v142 = vld [vmem:[%s1 + $0x1d4] sm:$0xf]
    %v143 = vld [vmem:[%s1 + $0x1d8] sm:$0xf]
    %v144 = vld [vmem:[%s1 + $0x1dc] sm:$0xf]
    %v145 = vld [vmem:[%s1 + $0x1e0] sm:$0xf]
    %v146 = vld [vmem:[%s1 + $0x1e4] sm:$0xf]
    %v147 = vld [vmem:[%s1 + $0x1e8] sm:$0xf]
    %v148 = vld [vmem:[%s1 + $0x1ec] sm:$0xf]
    %v149 = vld [vmem:[%s1 + $0x1f0] sm:$0xf]
    %v150 = vld [vmem:[%s1 + $0x1f4] sm:$0xf]
    %v151 = vld [vmem:[%s1 + $0x1f8] sm:$0xf]
    %v152 = vld [vmem:[%s1 + $0x1fc] sm:$0xf]
    %v153 = vld [vmem:[%s1 + $0x200] sm:$0xf]
    %v154 = vld [vmem:[%s1 + $0x204] sm:$0xf]
    %v155 = vld [vmem:[%s1 + $0x208] sm:$0xf]
    %v156 = vld [vmem:[%s1 + $0x20c] sm:$0xf]
    %v157 = vld [vmem:[%s1 + $0x210] sm:$0xf]
    %v158 = vld [vmem:[%s1 + $0x214] sm:$0xf]
    %v159 = vld [vmem:[%s1 + $0x218] sm:$0xf]
    %v160 = vld [vmem:[%s1 + $0x21c] sm:$0xf]
    %v161 = vld [vmem:[%s1 + $0x220] sm:$0xf]
    %v162 = vld [vmem:[%s1 + $0x224] sm:$0xf]
    %v163 = vld [vmem:[%s1 + $0x228] sm:$0xf]
    %v164 = vld [vmem:[%s1 + $0x22c] sm:$0xf]
    %v165 = vld [vmem:[%s1 + $0x230] sm:$0xf]
    %v166 = vld [vmem:[%s1 + $0x234] sm:$0xf]
    %v167 = vld [vmem:[%s1 + $0x238] sm:$0xf]
    %v168 = vld [vmem:[%s1 + $0x23c] sm:$0xf]
    %v169 = vld [vmem:[%s1 + $0x240] sm:$0xf]
    %v170 = vld [vmem:[%s1 + $0x244] sm:$0xf]
    %v171 = vld [vmem:[%s1 + $0x248] sm:$0xf]
    %v172 = vld [vmem:[%s1 + $0x24c] sm:$0xf]
    %v173 = vld [vmem:[%s1 + $0x250] sm:$0xf]
    %v174 = vld [vmem:[%s1 + $0x254] sm:$0xf]
    %v175 = vld [vmem:[%s1 + $0x258] sm:$0xf]
    %v176 = vld [vmem:[%s1 + $0x25c] sm:$0xf]
    %v177 = vld [vmem:[%s1 + $0x260] sm:$0xf]
    %v178 = vld [vmem:[%s1 + $0x264] sm:$0xf]
    %v179 = vld [vmem:[%s1 + $0x268] sm:$0xf]
    %v180 = vld [vmem:[%s1 + $0x26c] sm:$0xf]
    %v181 = vld [vmem:[%s1 + $0x270] sm:$0xf]
    %v182 = vld [vmem:[%s1 + $0x274] sm:$0xf]
    %v183 = vld [vmem:[%s1 + $0x278] sm:$0xf]
    %v184 = vld [vmem:[%s1 + $0x27c] sm:$0xf]
    %v185 = vld [vmem:[%s1 + $0x280] sm:$0xf]
    %v186 = vld [vmem:[%s1 + $0x284] sm:$0xf]
    %v187 = vld [vmem:[%s1 + $0x288] sm:$0xf]
    %v188 = vld [vmem:[%s1 + $0x28c] sm:$0xf]
    %v189 = vld [vmem:[%s1 + $0x290] sm:$0xf]
    %v190 = vld [vmem:[%s1 + $0x294] sm:$0xf]
    %v191 = vld [vmem:[%s1 + $0x298] sm:$0xf]
    %v192 = vld [vmem:[%s1 + $0x29c] sm:$0xf]
    %v193 = vld [vmem:[%s1 + $0x2a0] sm:$0xf]
    %v194 = vld [vmem:[%s1 + $0x2a4] sm:$0xf]
    %v195 = vld [vmem:[%s1 + $0x2a8] sm:$0xf]
    %v196 = vld [vmem:[%s1 + $0x2ac] sm:$0xf]
    %v197 = vld [vmem:[%s1 + $0x2b0] sm:$0xf]
    %v198 = vld [vmem:[%s1 + $0x2b4] sm:$0xf]
    %v199 = vld [vmem:[%s1 + $0x2b8] sm:$0xf]
    %v200 = vld [vmem:[%s1 + $0x2bc] sm:$0xf]
    %v201 = vld [vmem:[%s1 + $0x2c0] sm:$0xf]
    %v202 = vld [vmem:[%s1 + $0x2c4] sm:$0xf]
    %v203 = vld [vmem:[%s1 + $0x2c8] sm:$0xf]
    %v204 = vld [vmem:[%s1 + $0x2cc] sm:$0xf]
    %v205 = vld [vmem:[%s1 + $0x2d0] sm:$0xf]
    %v206 = vld [vmem:[%s1 + $0x2d4] sm:$0xf]
    %v207 = vld [vmem:[%s1 + $0x2d8] sm:$0xf]
    %v208 = vld [vmem:[%s1 + $0x2dc] sm:$0xf]
    %v209 = vld [vmem:[%s1 + $0x2e0] sm:$0xf]
    %v210 = vld [vmem:[%s1 + $0x2e4] sm:$0xf]
    %v211 = vld [vmem:[%s1 + $0x2e8] sm:$0xf]
    %v212 = vld [vmem:[%s1 + $0x2ec] sm:$0xf]
    %v213 = vld [vmem:[%s1 + $0x2f0] sm:$0xf]
    %v214 = vld [vmem:[%s1 + $0x2f4] sm:$0xf]
    %v215 = vld [vmem:[%s1 + $0x2f8] sm:$0xf]
    %v216 = vld [vmem:[%s1 + $0x2fc] sm:$0xf]
    %v217 = vld [vmem:[%s1 + $0x300] sm:$0xf]
    %v218 = vld [vmem:[%s1 + $0x304] sm:$0xf]
    %v219 = vld [vmem:[%s1 + $0x308] sm:$0xf]
    %v220 = vld [vmem:[%s1 + $0x30c] sm:$0xf]
    %v221 = vld [vmem:[%s1 + $0x310] sm:$0xf]
    %v222 = vld [vmem:[%s1 + $0x314] sm:$0xf]
    %v223 = vld [vmem:[%s1 + $0x318] sm:$0xf]
    %v224 = vld [vmem:[%s1 + $0x31c] sm:$0xf]
    %v225 = vld [vmem:[%s1 + $0x320] sm:$0xf]
    %v226 = vld [vmem:[%s1 + $0x324] sm:$0xf]
    %v227 = vld [vmem:[%s1 + $0x328] sm:$0xf]
    %v228 = vld [vmem:[%s1 + $0x32c] sm:$0xf]
    %v229 = vld [vmem:[%s1 + $0x330] sm:$0xf]
    %v230 = vld [vmem:[%s1 + $0x334] sm:$0xf]
    %v231 = vld [vmem:[%s1 + $0x338] sm:$0xf]
    %v232 = vld [vmem:[%s1 + $0x33c] sm:$0xf]
    %v233 = vld [vmem:[%s1 + $0x340] sm:$0xf]
    %v234 = vld [vmem:[%s1 + $0x344] sm:$0xf]
    %v235 = vld [vmem:[%s1 + $0x348] sm:$0xf]
    %v236 = vld [vmem:[%s1 + $0x34c] sm:$0xf]
    %v237 = vld [vmem:[%s1 + $0x350] sm:$0xf]
    %v238 = vld [vmem:[%s1 + $0x354] sm:$0xf]
    %v239 = vld [vmem:[%s1 + $0x358] sm:$0xf]
    %v240 = vld [vmem:[%s1 + $0x35c] sm:$0xf]
    %v241 = vld [vmem:[%s1 + $0x360] sm:$0xf]
    %v242 = vld [vmem:[%s1 + $0x364] sm:$0xf]
    %v243 = vld [vmem:[%s1 + $0x368] sm:$0xf]
    %v244 = vld [vmem:[%s1 + $0x36c] sm:$0xf]
    %v245 = vld [vmem:[%s1 + $0x370] sm:$0xf]
    %v246 = vld [vmem:[%s1 + $0x374] sm:$0xf]
    %v247 = vld [vmem:[%s1 + $0x378] sm:$0xf]
    %v248 = vld [vmem:[%s1 + $0x37c] sm:$0xf]
    %v249 = vld [vmem:[%s1 + $0x380] sm:$0xf]
    %v250 = vld [vmem:[%s1 + $0x384] sm:$0xf]
    %v251 = vld [vmem:[%s1 + $0x388] sm:$0xf]
    %v252 = vld [vmem:[%s1 + $0x38c] sm:$0xf]
    %v253 = vld [vmem:[%s1 + $0x390] sm:$0xf]
    %v254 = vld [vmem:[%s1 + $0x394] sm:$0xf]
    %v255 = vld [vmem:[%s1 + $0x398] sm:$0xf]
    %v256 = vld [vmem:[%s1 + $0x39c] sm:$0xf]
    %v257 = vld [vmem:[%s1 + $0x3a0] sm:$0xf]
    %v258 = vld [vmem:[%s1 + $0x3a4] sm:$0xf]
    %v259 = vld [vmem:[%s1 + $0x3a8] sm:$0xf]
    %v260 = vld [vmem:[%s1 + $0x3ac] sm:$0xf]
    %v261 = vld [vmem:[%s1 + $0x3b0] sm:$0xf]
    %v262 = vld [vmem:[%s1 + $0x3b4] sm:$0xf]
    %v263 = vld [vmem:[%s1 + $0x3b8] sm:$0xf]
    %v264 = vld [vmem:[%s1 + $0x3bc] sm:$0xf]
    %v265 = vld [vmem:[%s1 + $0x3c0] sm:$0xf]
    %v266 = vld [vmem:[%s1 + $0x3c4] sm:$0xf]
    %v267 = vld [vmem:[%s1 + $0x3c8] sm:$0xf]
    %v268 = vld [vmem:[%s1 + $0x3cc] sm:$0xf]
    %v269 = vld [vmem:[%s1 + $0x3d0] sm:$0xf]
    %v270 = vld [vmem:[%s1 + $0x3d4] sm:$0xf]
    %v271 = vld [vmem:[%s1 + $0x3d8] sm:$0xf]
    %v272 = vld [vmem:[%s1 + $0x3dc] sm:$0xf]
    %v273 = vld [vmem:[%s1 + $0x3e0] sm:$0xf]
    %v274 = vld [vmem:[%s1 + $0x3e4] sm:$0xf]
    %v275 = vld [vmem:[%s1 + $0x3e8] sm:$0xf]
    %v276 = vld [vmem:[%s1 + $0x3ec] sm:$0xf]
    %v277 = vld [vmem:[%s1 + $0x3f0] sm:$0xf]
    %v278 = vld [vmem:[%s1 + $0x3f4] sm:$0xf]
    %v279 = vld [vmem:[%s1 + $0x3f8] sm:$0xf]
    %v280 = vld [vmem:[%s1 + $0x3fc] sm:$0xf]
    %v281 = vld [vmem:[%s1 + $0x400] sm:$0xf]
    %v282 = vld [vmem:[%s1 + $0x404] sm:$0xf]
    %v283 = vld [vmem:[%s1 + $0x408] sm:$0xf]
    %v284 = vld [vmem:[%s1 + $0x40c] sm:$0xf]
    %v285 = vld [vmem:[%s1 + $0x410] sm:$0xf]
    %v286 = vld [vmem:[%s1 + $0x414] sm:$0xf]
    %v287 = vld [vmem:[%s1 + $0x418] sm:$0xf]
    %v288 = vld [vmem:[%s1 + $0x41c] sm:$0xf]
    %v289 = vld [vmem:[%s1 + $0x420] sm:$0xf]
    %v290 = vld [vmem:[%s1 + $0x424] sm:$0xf]
    %v291 = vld [vmem:[%s1 + $0x428] sm:$0xf]
    %v292 = vld [vmem:[%s1 + $0x42c] sm:$0xf]
    %v293 = vld [vmem:[%s1 + $0x430] sm:$0xf]
    %v294 = vld [vmem:[%s1 + $0x434] sm:$0xf]
    %v295 = vld [vmem:[%s1 + $0x438] sm:$0xf]
    %v296 = vld [vmem:[%s1 + $0x43c] sm:$0xf]
    %v297 = vld [vmem:[%s1 + $0x440] sm:$0xf]
    %v298 = vld [vmem:[%s1 + $0x444] sm:$0xf]
    %v299 = vld [vmem:[%s1 + $0x448] sm:$0xf]
    %v300 = vld [vmem:[%s1 + $0x44c] sm:$0xf]
    %v301 = vld [vmem:[%s1 + $0x450] sm:$0xf]
    %v302 = vld [vmem:[%s1 + $0x454] sm:$0xf]
    %v303 = vld [vmem:[%s1 + $0x458] sm:$0xf]
    %v304 = vld [vmem:[%s1 + $0x45c] sm:$0xf]
    %v305 = vld [vmem:[%s1 + $0x460] sm:$0xf]
    %v306 = vld [vmem:[%s1 + $0x464] sm:$0xf]
    %v307 = vld [vmem:[%s1 + $0x468] sm:$0xf]
    %v308 = vld [vmem:[%s1 + $0x46c] sm:$0xf]
    %v309 = vld [vmem:[%s1 + $0x470] sm:$0xf]
    %v310 = vld [vmem:[%s1 + $0x474] sm:$0xf]
    %v311 = vld [vmem:[%s1 + $0x478] sm:$0xf]
    %v312 = vld [vmem:[%s1 + $0x47c] sm:$0xf]
    %v313 = vld [vmem:[%s1 + $0x480] sm:$0xf]
    %v314 = vld [vmem:[%s1 + $0x484] sm:$0xf]
    %v315 = vld [vmem:[%s1 + $0x488] sm:$0xf]
    %v316 = vld [vmem:[%s1 + $0x48c] sm:$0xf]
    %v317 = vld [vmem:[%s1 + $0x490] sm:$0xf]
    %v318 = vld [vmem:[%s1 + $0x494] sm:$0xf]
    %v319 = vld [vmem:[%s1 + $0x498] sm:$0xf]
    %v320 = vld [vmem:[%s1 + $0x49c] sm:$0xf]
    %v321 = vld [vmem:[%s1 + $0x4a0] sm:$0xf]
    %v322 = vld [vmem:[%s1 + $0x4a4] sm:$0xf]
    %v323 = vld [vmem:[%s1 + $0x4a8] sm:$0xf]
    %v324 = vld [vmem:[%s1 + $0x4ac] sm:$0xf]
    %v325 = vld [vmem:[%s1 + $0x4b0] sm:$0xf]
    %v326 = vld [vmem:[%s1 + $0x4b4] sm:$0xf]
    %v327 = vld [vmem:[%s1 + $0x4b8] sm:$0xf]
    %v328 = vld [vmem:[%s1 + $0x4bc] sm:$0xf]
    %v329 = vld [vmem:[%s1 + $0x4c0] sm:$0xf]
    %v330 = vld [vmem:[%s1 + $0x4c4] sm:$0xf]
    %v331 = vld [vmem:[%s1 + $0x4c8] sm:$0xf]
    %v332 = vld [vmem:[%s1 + $0x4cc] sm:$0xf]
    %v333 = vld [vmem:[%s1 + $0x4d0] sm:$0xf]
    %v334 = vld [vmem:[%s1 + $0x4d4] sm:$0xf]
    %v335 = vld [vmem:[%s1 + $0x4d8] sm:$0xf]
    %v336 = vld [vmem:[%s1 + $0x4dc] sm:$0xf]
    %v337 = vld [vmem:[%s1 + $0x4e0] sm:$0xf]
    %v338 = vld [vmem:[%s1 + $0x4e4] sm:$0xf]
    %v339 = vld [vmem:[%s1 + $0x4e8] sm:$0xf]
    %v340 = vld [vmem:[%s1 + $0x4ec] sm:$0xf]
    %v341 = vld [vmem:[%s1 + $0x4f0] sm:$0xf]
    %v342 = vld [vmem:[%s1 + $0x4f4] sm:$0xf]
    %v343 = vld [vmem:[%s1 + $0x4f8] sm:$0xf]
    %v344 = vld [vmem:[%s1 + $0x4fc] sm:$0xf]
    %v345 = vld [vmem:[%s1 + $0x500] sm:$0xf]
    %v346 = vld [vmem:[%s1 + $0x504] sm:$0xf]
    %v347 = vld [vmem:[%s1 + $0x508] sm:$0xf]
    %v348 = vld [vmem:[%s1 + $0x50c] sm:$0xf]
    %v349 = vld [vmem:[%s1 + $0x510] sm:$0xf]
    %v350 = vld [vmem:[%s1 + $0x514] sm:$0xf]
    %v351 = vld [vmem:[%s1 + $0x518] sm:$0xf]
    %v352 = vld [vmem:[%s1 + $0x51c] sm:$0xf]
    %v353 = vld [vmem:[%s1 + $0x520] sm:$0xf]
    %v354 = vld [vmem:[%s1 + $0x524] sm:$0xf]
    %v355 = vld [vmem:[%s1 + $0x528] sm:$0xf]
    %v356 = vld [vmem:[%s1 + $0x52c] sm:$0xf]
    %v357 = vld [vmem:[%s1 + $0x530] sm:$0xf]
    %v358 = vld [vmem:[%s1 + $0x534] sm:$0xf]
    %v359 = vld [vmem:[%s1 + $0x538] sm:$0xf]
    %v360 = vld [vmem:[%s1 + $0x53c] sm:$0xf]
    %v361 = vld [vmem:[%s1 + $0x540] sm:$0xf]
    %v362 = vld [vmem:[%s1 + $0x544] sm:$0xf]
    %v363 = vld [vmem:[%s1 + $0x548] sm:$0xf]
    %v364 = vld [vmem:[%s1 + $0x54c] sm:$0xf]
    %v365 = vld [vmem:[%s1 + $0x550] sm:$0xf]
    %v366 = vld [vmem:[%s1 + $0x554] sm:$0xf]
    %v367 = vld [vmem:[%s1 + $0x558] sm:$0xf]
    %v368 = vld [vmem:[%s1 + $0x55c] sm:$0xf]
    %v369 = vld [vmem:[%s1 + $0x560] sm:$0xf]
    %v370 = vld [vmem:[%s1 + $0x564] sm:$0xf]
    %v371 = vld [vmem:[%s1 + $0x568] sm:$0xf]
    %v372 = vld [vmem:[%s1 + $0x56c] sm:$0xf]
    %v373 = vld [vmem:[%s1 + $0x570] sm:$0xf]
    %v374 = vld [vmem:[%s1 + $0x574] sm:$0xf]
    %v375 = vld [vmem:[%s1 + $0x578] sm:$0xf]
    %v376 = vld [vmem:[%s1 + $0x57c] sm:$0xf]
    %v377 = vld [vmem:[%s1 + $0x580] sm:$0xf]
    %v378 = vld [vmem:[%s1 + $0x584] sm:$0xf]
    %v379 = vld [vmem:[%s1 + $0x588] sm:$0xf]
    %v380 = vld [vmem:[%s1 + $0x58c] sm:$0xf]
    %v381 = vld [vmem:[%s1 + $0x590] sm:$0xf]
    %v382 = vld [vmem:[%s1 + $0x594] sm:$0xf]
    %v383 = vld [vmem:[%s1 + $0x598] sm:$0xf]
    %v384 = vld [vmem:[%s1 + $0x59c] sm:$0xf]
    %v385 = vld [vmem:[%s1 + $0x5a0] sm:$0xf]
    %v386 = vld [vmem:[%s1 + $0x5a4] sm:$0xf]
    %v387 = vld [vmem:[%s1 + $0x5a8] sm:$0xf]
    %v388 = vld [vmem:[%s1 + $0x5ac] sm:$0xf]
    %v389 = vld [vmem:[%s1 + $0x5b0] sm:$0xf]
    %v390 = vld [vmem:[%s1 + $0x5b4] sm:$0xf]
    %v391 = vld [vmem:[%s1 + $0x5b8] sm:$0xf]
    %v392 = vld [vmem:[%s1 + $0x5bc] sm:$0xf]
    %v393 = vld [vmem:[%s1 + $0x5c0] sm:$0xf]
    %v394 = vld [vmem:[%s1 + $0x5c4] sm:$0xf]
    %v395 = vld [vmem:[%s1 + $0x5c8] sm:$0xf]
    %v396 = vld [vmem:[%s1 + $0x5cc] sm:$0xf]
    %v397 = vld [vmem:[%s1 + $0x5d0] sm:$0xf]
    %v398 = vld [vmem:[%s1 + $0x5d4] sm:$0xf]
    %v399 = vld [vmem:[%s1 + $0x5d8] sm:$0xf]
    %v400 = vld [vmem:[%s1 + $0x5dc] sm:$0xf]
    %v401 = vld [vmem:[%s1 + $0x5e0] sm:$0xf]
    %v402 = vld [vmem:[%s1 + $0x5e4] sm:$0xf]
    %v403 = vld [vmem:[%s1 + $0x5e8] sm:$0xf]
    %v404 = vld [vmem:[%s1 + $0x5ec] sm:$0xf]
    %v405 = vld [vmem:[%s1 + $0x5f0] sm:$0xf]
    %v406 = vld [vmem:[%s1 + $0x5f4] sm:$0xf]
    %v407 = vld [vmem:[%s1 + $0x5f8] sm:$0xf]
    %v408 = vld [vmem:[%s1 + $0x5fc] sm:$0xf]
    %v409 = vld [vmem:[%s1 + $0x600] sm:$0xf]
    %v410 = vld [vmem:[%s1 + $0x604] sm:$0xf]
    %v411 = vld [vmem:[%s1 + $0x608] sm:$0xf]
    %v412 = vld [vmem:[%s1 + $0x60c] sm:$0xf]
    %v413 = vld [vmem:[%s1 + $0x610] sm:$0xf]
    %v414 = vld [vmem:[%s1 + $0x614] sm:$0xf]
    %v415 = vld [vmem:[%s1 + $0x618] sm:$0xf]
    %v416 = vld [vmem:[%s1 + $0x61c] sm:$0xf]
    %v417 = vld [vmem:[%s1 + $0x620] sm:$0xf]
    %v418 = vld [vmem:[%s1 + $0x624] sm:$0xf]
    %v419 = vld [vmem:[%s1 + $0x628] sm:$0xf]
    %v420 = vld [vmem:[%s1 + $0x62c] sm:$0xf]
    %v421 = vld [vmem:[%s1 + $0x630] sm:$0xf]
    %v422 = vld [vmem:[%s1 + $0x634] sm:$0xf]
    %v423 = vld [vmem:[%s1 + $0x638] sm:$0xf]
    %v424 = vld [vmem:[%s1 + $0x63c] sm:$0xf]
    %v425 = vld [vmem:[%s2] sm:$0x1]
    %v427 = vperm.slane %v425, 0
    %430 = vst [vmem:[#allocation1] ss:$9 sm:$0xff] %v21
    %v431 = vld [vmem:[#allocation1] sm:$0xff]
    %v432 = vld [vmem:[#allocation1 + $0x9] sm:$0xff]
    %v433 = vld [vmem:[#allocation1 + $0x12] sm:$0xff]
    %v434 = vld [vmem:[#allocation1 + $0x1b] sm:$0xff]
    %v435 = vld [vmem:[#allocation1 + $0x24] sm:$0xff]
    %v436 = vld [vmem:[#allocation1 + $0x2d] sm:$0xff]
    %v437 = vld [vmem:[#allocation1 + $0x36] sm:$0xff]
    %v438 = vld [vmem:[#allocation1 + $0x3f] sm:$0xff]
    %440 = vst [vmem:[#allocation1] ss:$9 sm:$0xff] %v22
    %v441 = vld [vmem:[#allocation1] sm:$0xff]
    %v442 = vld [vmem:[#allocation1 + $0x9] sm:$0xff]
    %v443 = vld [vmem:[#allocation1 + $0x12] sm:$0xff]
    %v444 = vld [vmem:[#allocation1 + $0x1b] sm:$0xff]
    %v445 = vld [vmem:[#allocation1 + $0x24] sm:$0xff]
    %v446 = vld [vmem:[#allocation1 + $0x2d] sm:$0xff]
    %v447 = vld [vmem:[#allocation1 + $0x36] sm:$0xff]
    %v448 = vld [vmem:[#allocation1 + $0x3f] sm:$0xff]
    %450 = vst [vmem:[#allocation1] ss:$9 sm:$0xff] %v23
    %v451 = vld [vmem:[#allocation1] sm:$0xff]
    %v452 = vld [vmem:[#allocation1 + $0x9] sm:$0xff]
    %v453 = vld [vmem:[#allocation1 + $0x12] sm:$0xff]
    %v454 = vld [vmem:[#allocation1 + $0x1b] sm:$0xff]
    %v455 = vld [vmem:[#allocation1 + $0x24] sm:$0xff]
    %v456 = vld [vmem:[#allocation1 + $0x2d] sm:$0xff]
    %v457 = vld [vmem:[#allocation1 + $0x36] sm:$0xff]
    %v458 = vld [vmem:[#allocation1 + $0x3f] sm:$0xff]
    %460 = vst [vmem:[#allocation1] ss:$9 sm:$0xff] %v24
    %v461 = vld [vmem:[#allocation1] sm:$0xff]
    %v887 = vunpack.c.l.b16 %v25
    %v888 = vunpack.c.l.b16 %v26
    %v889 = vunpack.c.l.b16 %v27
    %v890 = vunpack.c.l.b16 %v28
    %v891 = vunpack.c.l.b16 %v29
    %v892 = vunpack.c.l.b16 %v30
    %v893 = vunpack.c.l.b16 %v31
    %v894 = vunpack.c.l.b16 %v32
    %v895 = vunpack.c.l.b16 %v33
    %v896 = vunpack.c.l.b16 %v34
    %v897 = vunpack.c.l.b16 %v35
    %v898 = vunpack.c.l.b16 %v36
    %v899 = vunpack.c.l.b16 %v37
    %v900 = vunpack.c.l.b16 %v38
    %v901 = vunpack.c.l.b16 %v39
    %v902 = vunpack.c.l.b16 %v40
    %v903 = vunpack.c.l.b16 %v41
    %v904 = vunpack.c.l.b16 %v42
    %v905 = vunpack.c.l.b16 %v43
    %v906 = vunpack.c.l.b16 %v44
    %v907 = vunpack.c.l.b16 %v45
    %v908 = vunpack.c.l.b16 %v46
    %v909 = vunpack.c.l.b16 %v47
    %v910 = vunpack.c.l.b16 %v48
    %v911 = vunpack.c.l.b16 %v49
    %v912 = vunpack.c.l.b16 %v50
    %v913 = vunpack.c.l.b16 %v51
    %v914 = vunpack.c.l.b16 %v52
    %v915 = vunpack.c.l.b16 %v53
    %v916 = vunpack.c.l.b16 %v54
    %v917 = vunpack.c.l.b16 %v55
    %v918 = vunpack.c.l.b16 %v56
    %v919 = vunpack.c.l.b16 %v57
    %v920 = vunpack.c.l.b16 %v58
    %v921 = vunpack.c.l.b16 %v59
    %v922 = vunpack.c.l.b16 %v60
    %v923 = vunpack.c.l.b16 %v61
    %v924 = vunpack.c.l.b16 %v62
    %v925 = vunpack.c.l.b16 %v63
    %v926 = vunpack.c.l.b16 %v64
    %v927 = vunpack.c.l.b16 %v65
    %v928 = vunpack.c.l.b16 %v66
    %v929 = vunpack.c.l.b16 %v67
    %v930 = vunpack.c.l.b16 %v68
    %v931 = vunpack.c.l.b16 %v69
    %v932 = vunpack.c.l.b16 %v70
    %v933 = vunpack.c.l.b16 %v71
    %v934 = vunpack.c.l.b16 %v72
    %v935 = vunpack.c.l.b16 %v73
    %v936 = vunpack.c.l.b16 %v74
    %v937 = vunpack.c.l.b16 %v75
    %v938 = vunpack.c.l.b16 %v76
    %v939 = vunpack.c.l.b16 %v77
    %v940 = vunpack.c.l.b16 %v78
    %v941 = vunpack.c.l.b16 %v79
    %v942 = vunpack.c.l.b16 %v80
    %v943 = vunpack.c.l.b16 %v81
    %v944 = vunpack.c.l.b16 %v82
    %v945 = vunpack.c.l.b16 %v83
    %v946 = vunpack.c.l.b16 %v84
    %v947 = vunpack.c.l.b16 %v85
    %v948 = vunpack.c.l.b16 %v86
    %v949 = vunpack.c.l.b16 %v87
    %v950 = vunpack.c.l.b16 %v88
    %v951 = vunpack.c.l.b16 %v89
    %v952 = vunpack.c.l.b16 %v90
    %v953 = vunpack.c.l.b16 %v91
    %v954 = vunpack.c.l.b16 %v92
    %v955 = vunpack.c.l.b16 %v93
    %v956 = vunpack.c.l.b16 %v94
    %v957 = vunpack.c.l.b16 %v95
    %v958 = vunpack.c.l.b16 %v96
    %v959 = vunpack.c.l.b16 %v97
    %v960 = vunpack.c.l.b16 %v98
    %v961 = vunpack.c.l.b16 %v99
    %v962 = vunpack.c.l.b16 %v100
    %v963 = vunpack.c.l.b16 %v101
    %v964 = vunpack.c.l.b16 %v102
    %v965 = vunpack.c.l.b16 %v103
    %v966 = vunpack.c.l.b16 %v104
    %v967 = vunpack.c.l.b16 %v105
    %v968 = vunpack.c.l.b16 %v106
    %v969 = vunpack.c.l.b16 %v107
    %v970 = vunpack.c.l.b16 %v108
    %v971 = vunpack.c.l.b16 %v109
    %v972 = vunpack.c.l.b16 %v110
    %v973 = vunpack.c.l.b16 %v111
    %v974 = vunpack.c.l.b16 %v112
    %v975 = vunpack.c.l.b16 %v113
    %v976 = vunpack.c.l.b16 %v114
    %v977 = vunpack.c.l.b16 %v115
    %v978 = vunpack.c.l.b16 %v116
    %v979 = vunpack.c.l.b16 %v117
    %v980 = vunpack.c.l.b16 %v118
    %v981 = vunpack.c.l.b16 %v119
    %v982 = vunpack.c.l.b16 %v120
    %v983 = vunpack.c.l.b16 %v121
    %v984 = vunpack.c.l.b16 %v122
    %v985 = vunpack.c.l.b16 %v123
    %v986 = vunpack.c.l.b16 %v124
    %v987 = vunpack.c.l.b16 %v125
    %v988 = vunpack.c.l.b16 %v126
    %v989 = vunpack.c.l.b16 %v127
    %v990 = vunpack.c.l.b16 %v128
    %v991 = vunpack.c.l.b16 %v129
    %v992 = vunpack.c.l.b16 %v130
    %v993 = vunpack.c.l.b16 %v131
    %v994 = vunpack.c.l.b16 %v132
    %v995 = vunpack.c.l.b16 %v133
    %v996 = vunpack.c.l.b16 %v134
    %v997 = vunpack.c.l.b16 %v135
    %v998 = vunpack.c.l.b16 %v136
    %v999 = vunpack.c.l.b16 %v137
    %v1000 = vunpack.c.l.b16 %v138
    %v1001 = vunpack.c.l.b16 %v139
    %v1002 = vunpack.c.l.b16 %v140
    %v1003 = vunpack.c.l.b16 %v141
    %v1004 = vunpack.c.l.b16 %v142
    %v1005 = vunpack.c.l.b16 %v143
    %v1006 = vunpack.c.l.b16 %v144
    %v1007 = vunpack.c.l.b16 %v145
    %v1008 = vunpack.c.l.b16 %v146
    %v1009 = vunpack.c.l.b16 %v147
    %v1010 = vunpack.c.l.b16 %v148
    %v1011 = vunpack.c.l.b16 %v149
    %v1012 = vunpack.c.l.b16 %v150
    %v1013 = vunpack.c.l.b16 %v151
    %v1014 = vunpack.c.l.b16 %v152
    %v1015 = vunpack.c.l.b16 %v153
    %v1016 = vunpack.c.l.b16 %v154
    %v1017 = vunpack.c.l.b16 %v155
    %v1018 = vunpack.c.l.b16 %v156
    %v1019 = vunpack.c.l.b16 %v157
    %v1020 = vunpack.c.l.b16 %v158
    %v1021 = vunpack.c.l.b16 %v159
    %v1022 = vunpack.c.l.b16 %v160
    %v1023 = vunpack.c.l.b16 %v161
    %v1024 = vunpack.c.l.b16 %v162
    %v1025 = vunpack.c.l.b16 %v163
    %v1026 = vunpack.c.l.b16 %v164
    %v1027 = vunpack.c.l.b16 %v165
    %v1028 = vunpack.c.l.b16 %v166
    %v1029 = vunpack.c.l.b16 %v167
    %v1030 = vunpack.c.l.b16 %v168
    %v1031 = vunpack.c.l.b16 %v169
    %v1032 = vunpack.c.l.b16 %v170
    %v1033 = vunpack.c.l.b16 %v171
    %v1034 = vunpack.c.l.b16 %v172
    %v1035 = vunpack.c.l.b16 %v173
    %v1036 = vunpack.c.l.b16 %v174
    %v1037 = vunpack.c.l.b16 %v175
    %v1038 = vunpack.c.l.b16 %v176
    %v1039 = vunpack.c.l.b16 %v177
    %v1040 = vunpack.c.l.b16 %v178
    %v1041 = vunpack.c.l.b16 %v179
    %v1042 = vunpack.c.l.b16 %v180
    %v1043 = vunpack.c.l.b16 %v181
    %v1044 = vunpack.c.l.b16 %v182
    %v1045 = vunpack.c.l.b16 %v183
    %v1046 = vunpack.c.l.b16 %v184
    %v1047 = vunpack.c.l.b16 %v185
    %v1048 = vunpack.c.l.b16 %v186
    %v1049 = vunpack.c.l.b16 %v187
    %v1050 = vunpack.c.l.b16 %v188
    %v1051 = vunpack.c.l.b16 %v189
    %v1052 = vunpack.c.l.b16 %v190
    %v1053 = vunpack.c.l.b16 %v191
    %v1054 = vunpack.c.l.b16 %v192
    %v1055 = vunpack.c.l.b16 %v193
    %v1056 = vunpack.c.l.b16 %v194
    %v1057 = vunpack.c.l.b16 %v195
    %v1058 = vunpack.c.l.b16 %v196
    %v1059 = vunpack.c.l.b16 %v197
    %v1060 = vunpack.c.l.b16 %v198
    %v1061 = vunpack.c.l.b16 %v199
    %v1062 = vunpack.c.l.b16 %v200
    %v1063 = vunpack.c.l.b16 %v201
    %v1064 = vunpack.c.l.b16 %v202
    %v1065 = vunpack.c.l.b16 %v203
    %v1066 = vunpack.c.l.b16 %v204
    %v1067 = vunpack.c.l.b16 %v205
    %v1068 = vunpack.c.l.b16 %v206
    %v1069 = vunpack.c.l.b16 %v207
    %v1070 = vunpack.c.l.b16 %v208
    %v1071 = vunpack.c.l.b16 %v209
    %v1072 = vunpack.c.l.b16 %v210
    %v1073 = vunpack.c.l.b16 %v211
    %v1074 = vunpack.c.l.b16 %v212
    %v1075 = vunpack.c.l.b16 %v213
    %v1076 = vunpack.c.l.b16 %v214
    %v1077 = vunpack.c.l.b16 %v215
    %v1078 = vunpack.c.l.b16 %v216
    %v1079 = vunpack.c.l.b16 %v217
    %v1080 = vunpack.c.l.b16 %v218
    %v1081 = vunpack.c.l.b16 %v219
    %v1082 = vunpack.c.l.b16 %v220
    %v1083 = vunpack.c.l.b16 %v221
    %v1084 = vunpack.c.l.b16 %v222
    %v1085 = vunpack.c.l.b16 %v223
    %v1086 = vunpack.c.l.b16 %v224
    %v1087 = vunpack.c.l.b16 %v225
    %v1088 = vunpack.c.l.b16 %v226
    %v1089 = vunpack.c.l.b16 %v227
    %v1090 = vunpack.c.l.b16 %v228
    %v1091 = vunpack.c.l.b16 %v229
    %v1092 = vunpack.c.l.b16 %v230
    %v1093 = vunpack.c.l.b16 %v231
    %v1094 = vunpack.c.l.b16 %v232
    %v1095 = vunpack.c.l.b16 %v233
    %v1096 = vunpack.c.l.b16 %v234
    %v1097 = vunpack.c.l.b16 %v235
    %v1098 = vunpack.c.l.b16 %v236
    %v1099 = vunpack.c.l.b16 %v237
    %v1100 = vunpack.c.l.b16 %v238
    %v1101 = vunpack.c.l.b16 %v239
    %v1102 = vunpack.c.l.b16 %v240
    %v1103 = vunpack.c.l.b16 %v241
    %v1104 = vunpack.c.l.b16 %v242
    %v1105 = vunpack.c.l.b16 %v243
    %v1106 = vunpack.c.l.b16 %v244
    %v1107 = vunpack.c.l.b16 %v245
    %v1108 = vunpack.c.l.b16 %v246
    %v1109 = vunpack.c.l.b16 %v247
    %v1110 = vunpack.c.l.b16 %v248
    %v1111 = vunpack.c.l.b16 %v249
    %v1112 = vunpack.c.l.b16 %v250
    %v1113 = vunpack.c.l.b16 %v251
    %v1114 = vunpack.c.l.b16 %v252
    %v1115 = vunpack.c.l.b16 %v253
    %v1116 = vunpack.c.l.b16 %v254
    %v1117 = vunpack.c.l.b16 %v255
    %v1118 = vunpack.c.l.b16 %v256
    %v1119 = vunpack.c.l.b16 %v257
    %v1120 = vunpack.c.l.b16 %v258
    %v1121 = vunpack.c.l.b16 %v259
    %v1122 = vunpack.c.l.b16 %v260
    %v1123 = vunpack.c.l.b16 %v261
    %v1124 = vunpack.c.l.b16 %v262
    %v1125 = vunpack.c.l.b16 %v263
    %v1126 = vunpack.c.l.b16 %v264
    %v1127 = vunpack.c.l.b16 %v265
    %v1128 = vunpack.c.l.b16 %v266
    %v1129 = vunpack.c.l.b16 %v267
    %v1130 = vunpack.c.l.b16 %v268
    %v1131 = vunpack.c.l.b16 %v269
    %v1132 = vunpack.c.l.b16 %v270
    %v1133 = vunpack.c.l.b16 %v271
    %v1134 = vunpack.c.l.b16 %v272
    %v1135 = vunpack.c.l.b16 %v273
    %v1136 = vunpack.c.l.b16 %v274
    %v1137 = vunpack.c.l.b16 %v275
    %v1138 = vunpack.c.l.b16 %v276
    %v1139 = vunpack.c.l.b16 %v277
    %v1140 = vunpack.c.l.b16 %v278
    %v1141 = vunpack.c.l.b16 %v279
    %v1142 = vunpack.c.l.b16 %v280
    %v1143 = vunpack.c.l.b16 %v281
    %v1144 = vunpack.c.l.b16 %v282
    %v1145 = vunpack.c.l.b16 %v283
    %v1146 = vunpack.c.l.b16 %v284
    %v1147 = vunpack.c.l.b16 %v285
    %v1148 = vunpack.c.l.b16 %v286
    %v1149 = vunpack.c.l.b16 %v287
    %v1150 = vunpack.c.l.b16 %v288
    %v1151 = vunpack.c.l.b16 %v289
    %v1152 = vunpack.c.l.b16 %v290
    %v1153 = vunpack.c.l.b16 %v291
    %v1154 = vunpack.c.l.b16 %v292
    %v1155 = vunpack.c.l.b16 %v293
    %v1156 = vunpack.c.l.b16 %v294
    %v1157 = vunpack.c.l.b16 %v295
    %v1158 = vunpack.c.l.b16 %v296
    %v1159 = vunpack.c.l.b16 %v297
    %v1160 = vunpack.c.l.b16 %v298
    %v1161 = vunpack.c.l.b16 %v299
    %v1162 = vunpack.c.l.b16 %v300
    %v1163 = vunpack.c.l.b16 %v301
    %v1164 = vunpack.c.l.b16 %v302
    %v1165 = vunpack.c.l.b16 %v303
    %v1166 = vunpack.c.l.b16 %v304
    %v1167 = vunpack.c.l.b16 %v305
    %v1168 = vunpack.c.l.b16 %v306
    %v1169 = vunpack.c.l.b16 %v307
    %v1170 = vunpack.c.l.b16 %v308
    %v1171 = vunpack.c.l.b16 %v309
    %v1172 = vunpack.c.l.b16 %v310
    %v1173 = vunpack.c.l.b16 %v311
    %v1174 = vunpack.c.l.b16 %v312
    %v1175 = vunpack.c.l.b16 %v313
    %v1176 = vunpack.c.l.b16 %v314
    %v1177 = vunpack.c.l.b16 %v315
    %v1178 = vunpack.c.l.b16 %v316
    %v1179 = vunpack.c.l.b16 %v317
    %v1180 = vunpack.c.l.b16 %v318
    %v1181 = vunpack.c.l.b16 %v319
    %v1182 = vunpack.c.l.b16 %v320
    %v1183 = vunpack.c.l.b16 %v321
    %v1184 = vunpack.c.l.b16 %v322
    %v1185 = vunpack.c.l.b16 %v323
    %v1186 = vunpack.c.l.b16 %v324
    %v1187 = vunpack.c.l.b16 %v325
    %v1188 = vunpack.c.l.b16 %v326
    %v1189 = vunpack.c.l.b16 %v327
    %v1190 = vunpack.c.l.b16 %v328
    %v1191 = vunpack.c.l.b16 %v329
    %v1192 = vunpack.c.l.b16 %v330
    %v1193 = vunpack.c.l.b16 %v331
    %v1194 = vunpack.c.l.b16 %v332
    %v1195 = vunpack.c.l.b16 %v333
    %v1196 = vunpack.c.l.b16 %v334
    %v1197 = vunpack.c.l.b16 %v335
    %v1198 = vunpack.c.l.b16 %v336
    %v1199 = vunpack.c.l.b16 %v337
    %v1200 = vunpack.c.l.b16 %v338
    %v1201 = vunpack.c.l.b16 %v339
    %v1202 = vunpack.c.l.b16 %v340
    %v1203 = vunpack.c.l.b16 %v341
    %v1204 = vunpack.c.l.b16 %v342
    %v1205 = vunpack.c.l.b16 %v343
    %v1206 = vunpack.c.l.b16 %v344
    %v1207 = vunpack.c.l.b16 %v345
    %v1208 = vunpack.c.l.b16 %v346
    %v1209 = vunpack.c.l.b16 %v347
    %v1210 = vunpack.c.l.b16 %v348
    %v1211 = vunpack.c.l.b16 %v349
    %v1212 = vunpack.c.l.b16 %v350
    %v1213 = vunpack.c.l.b16 %v351
    %v1214 = vunpack.c.l.b16 %v352
    %v1215 = vunpack.c.l.b16 %v353
    %v1216 = vunpack.c.l.b16 %v354
    %v1217 = vunpack.c.l.b16 %v355
    %v1218 = vunpack.c.l.b16 %v356
    %v1219 = vunpack.c.l.b16 %v357
    %v1220 = vunpack.c.l.b16 %v358
    %v1221 = vunpack.c.l.b16 %v359
    %v1222 = vunpack.c.l.b16 %v360
    %v1223 = vunpack.c.l.b16 %v361
    %v1224 = vunpack.c.l.b16 %v362
    %v1225 = vunpack.c.l.b16 %v363
    %v1226 = vunpack.c.l.b16 %v364
    %v1227 = vunpack.c.l.b16 %v365
    %v1228 = vunpack.c.l.b16 %v366
    %v1229 = vunpack.c.l.b16 %v367
    %v1230 = vunpack.c.l.b16 %v368
    %v1231 = vunpack.c.l.b16 %v369
    %v1232 = vunpack.c.l.b16 %v370
    %v1233 = vunpack.c.l.b16 %v371
    %v1234 = vunpack.c.l.b16 %v372
    %v1235 = vunpack.c.l.b16 %v373
    %v1236 = vunpack.c.l.b16 %v374
    %v1237 = vunpack.c.l.b16 %v375
    %v1238 = vunpack.c.l.b16 %v376
    %v1239 = vunpack.c.l.b16 %v377
    %v1240 = vunpack.c.l.b16 %v378
    %v1241 = vunpack.c.l.b16 %v379
    %v1242 = vunpack.c.l.b16 %v380
    %v1243 = vunpack.c.l.b16 %v381
    %v1244 = vunpack.c.l.b16 %v382
    %v1245 = vunpack.c.l.b16 %v383
    %v1246 = vunpack.c.l.b16 %v384
    %v1247 = vunpack.c.l.b16 %v385
    %v1248 = vunpack.c.l.b16 %v386
    %v1249 = vunpack.c.l.b16 %v387
    %v1250 = vunpack.c.l.b16 %v388
    %v1251 = vunpack.c.l.b16 %v389
    %v1252 = vunpack.c.l.b16 %v390
    %v1253 = vunpack.c.l.b16 %v391
    %v1254 = vunpack.c.l.b16 %v392
    %v1255 = vunpack.c.l.b16 %v393
    %v1256 = vunpack.c.l.b16 %v394
    %v1257 = vunpack.c.l.b16 %v395
    %v1258 = vunpack.c.l.b16 %v396
    %v1259 = vunpack.c.l.b16 %v397
    %v1260 = vunpack.c.l.b16 %v398
    %v1261 = vunpack.c.l.b16 %v399
    %v1262 = vunpack.c.l.b16 %v400
    %v1263 = vunpack.c.l.b16 %v401
    %v1264 = vunpack.c.l.b16 %v402
    %v1265 = vunpack.c.l.b16 %v403
    %v1266 = vunpack.c.l.b16 %v404
    %v1267 = vunpack.c.l.b16 %v405
    %v1268 = vunpack.c.l.b16 %v406
    %v1269 = vunpack.c.l.b16 %v407
    %v1270 = vunpack.c.l.b16 %v408
    %v1271 = vunpack.c.l.b16 %v409
    %v1272 = vunpack.c.l.b16 %v410
    %v1273 = vunpack.c.l.b16 %v411
    %v1274 = vunpack.c.l.b16 %v412
    %v1275 = vunpack.c.l.b16 %v413
    %v1276 = vunpack.c.l.b16 %v414
    %v1277 = vunpack.c.l.b16 %v415
    %v1278 = vunpack.c.l.b16 %v416
    %v1279 = vunpack.c.l.b16 %v417
    %v1280 = vunpack.c.l.b16 %v418
    %v1281 = vunpack.c.l.b16 %v419
    %v1282 = vunpack.c.l.b16 %v420
    %v1283 = vunpack.c.l.b16 %v421
    %v1284 = vunpack.c.l.b16 %v422
    %v1285 = vunpack.c.l.b16 %v423
    %v1286 = vunpack.c.l.b16 %v424
    %v1287 = vpack.c.b16 %v888, %v887
    %v1288 = vpack.c.b16 %v890, %v889
    %v1289 = vpack.c.b16 %v892, %v891
    %v1290 = vpack.c.b16 %v894, %v893
    %v1291 = vpack.c.b16 %v896, %v895
    %v1292 = vpack.c.b16 %v898, %v897
    %v1293 = vpack.c.b16 %v900, %v899
    %v1294 = vpack.c.b16 %v902, %v901
    %v1295 = vpack.c.b16 %v904, %v903
    %v1296 = vpack.c.b16 %v906, %v905
    %v1297 = vpack.c.b16 %v908, %v907
    %v1298 = vpack.c.b16 %v910, %v909
    %v1299 = vpack.c.b16 %v912, %v911
    %v1300 = vpack.c.b16 %v914, %v913
    %v1301 = vpack.c.b16 %v916, %v915
    %v1302 = vpack.c.b16 %v918, %v917
    %v1303 = vpack.c.b16 %v920, %v919
    %v1304 = vpack.c.b16 %v922, %v921
    %v1305 = vpack.c.b16 %v924, %v923
    %v1306 = vpack.c.b16 %v926, %v925
    %v1307 = vpack.c.b16 %v928, %v927
    %v1308 = vpack.c.b16 %v930, %v929
    %v1309 = vpack.c.b16 %v932, %v931
    %v1310 = vpack.c.b16 %v934, %v933
    %v1311 = vpack.c.b16 %v936, %v935
    %v1312 = vpack.c.b16 %v938, %v937
    %v1313 = vpack.c.b16 %v940, %v939
    %v1314 = vpack.c.b16 %v942, %v941
    %v1315 = vpack.c.b16 %v944, %v943
    %v1316 = vpack.c.b16 %v946, %v945
    %v1317 = vpack.c.b16 %v948, %v947
    %v1318 = vpack.c.b16 %v950, %v949
    %v1319 = vpack.c.b16 %v952, %v951
    %v1320 = vpack.c.b16 %v954, %v953
    %v1321 = vpack.c.b16 %v956, %v955
    %v1322 = vpack.c.b16 %v958, %v957
    %v1323 = vpack.c.b16 %v960, %v959
    %v1324 = vpack.c.b16 %v962, %v961
    %v1325 = vpack.c.b16 %v964, %v963
    %v1326 = vpack.c.b16 %v966, %v965
    %v1327 = vpack.c.b16 %v968, %v967
    %v1328 = vpack.c.b16 %v970, %v969
    %v1329 = vpack.c.b16 %v972, %v971
    %v1330 = vpack.c.b16 %v974, %v973
    %v1331 = vpack.c.b16 %v976, %v975
    %v1332 = vpack.c.b16 %v978, %v977
    %v1333 = vpack.c.b16 %v980, %v979
    %v1334 = vpack.c.b16 %v982, %v981
    %v1335 = vpack.c.b16 %v984, %v983
    %v1336 = vpack.c.b16 %v986, %v985
    %v1337 = vpack.c.b16 %v988, %v987
    %v1338 = vpack.c.b16 %v990, %v989
    %v1339 = vpack.c.b16 %v992, %v991
    %v1340 = vpack.c.b16 %v994, %v993
    %v1341 = vpack.c.b16 %v996, %v995
    %v1342 = vpack.c.b16 %v998, %v997
    %v1343 = vpack.c.b16 %v1000, %v999
    %v1344 = vpack.c.b16 %v1002, %v1001
    %v1345 = vpack.c.b16 %v1004, %v1003
    %v1346 = vpack.c.b16 %v1006, %v1005
    %v1347 = vpack.c.b16 %v1008, %v1007
    %v1348 = vpack.c.b16 %v1010, %v1009
    %v1349 = vpack.c.b16 %v1012, %v1011
    %v1350 = vpack.c.b16 %v1014, %v1013
    %v1351 = vpack.c.b16 %v1016, %v1015
    %v1352 = vpack.c.b16 %v1018, %v1017
    %v1353 = vpack.c.b16 %v1020, %v1019
    %v1354 = vpack.c.b16 %v1022, %v1021
    %v1355 = vpack.c.b16 %v1024, %v1023
    %v1356 = vpack.c.b16 %v1026, %v1025
    %v1357 = vpack.c.b16 %v1028, %v1027
    %v1358 = vpack.c.b16 %v1030, %v1029
    %v1359 = vpack.c.b16 %v1032, %v1031
    %v1360 = vpack.c.b16 %v1034, %v1033
    %v1361 = vpack.c.b16 %v1036, %v1035
    %v1362 = vpack.c.b16 %v1038, %v1037
    %v1363 = vpack.c.b16 %v1040, %v1039
    %v1364 = vpack.c.b16 %v1042, %v1041
    %v1365 = vpack.c.b16 %v1044, %v1043
    %v1366 = vpack.c.b16 %v1046, %v1045
    %v1367 = vpack.c.b16 %v1048, %v1047
    %v1368 = vpack.c.b16 %v1050, %v1049
    %v1369 = vpack.c.b16 %v1052, %v1051
    %v1370 = vpack.c.b16 %v1054, %v1053
    %v1371 = vpack.c.b16 %v1056, %v1055
    %v1372 = vpack.c.b16 %v1058, %v1057
    %v1373 = vpack.c.b16 %v1060, %v1059
    %v1374 = vpack.c.b16 %v1062, %v1061
    %v1375 = vpack.c.b16 %v1064, %v1063
    %v1376 = vpack.c.b16 %v1066, %v1065
    %v1377 = vpack.c.b16 %v1068, %v1067
    %v1378 = vpack.c.b16 %v1070, %v1069
    %v1379 = vpack.c.b16 %v1072, %v1071
    %v1380 = vpack.c.b16 %v1074, %v1073
    %v1381 = vpack.c.b16 %v1076, %v1075
    %v1382 = vpack.c.b16 %v1078, %v1077
    %v1383 = vpack.c.b16 %v1080, %v1079
    %v1384 = vpack.c.b16 %v1082, %v1081
    %v1385 = vpack.c.b16 %v1084, %v1083
    %v1386 = vpack.c.b16 %v1086, %v1085
    %v1387 = vpack.c.b16 %v1088, %v1087
    %v1388 = vpack.c.b16 %v1090, %v1089
    %v1389 = vpack.c.b16 %v1092, %v1091
    %v1390 = vpack.c.b16 %v1094, %v1093
    %v1391 = vpack.c.b16 %v1096, %v1095
    %v1392 = vpack.c.b16 %v1098, %v1097
    %v1393 = vpack.c.b16 %v1100, %v1099
    %v1394 = vpack.c.b16 %v1102, %v1101
    %v1395 = vpack.c.b16 %v1104, %v1103
    %v1396 = vpack.c.b16 %v1106, %v1105
    %v1397 = vpack.c.b16 %v1108, %v1107
    %v1398 = vpack.c.b16 %v1110, %v1109
    %v1399 = vpack.c.b16 %v1112, %v1111
    %v1400 = vpack.c.b16 %v1114, %v1113
    %v1401 = vpack.c.b16 %v1116, %v1115
    %v1402 = vpack.c.b16 %v1118, %v1117
    %v1403 = vpack.c.b16 %v1120, %v1119
    %v1404 = vpack.c.b16 %v1122, %v1121
    %v1405 = vpack.c.b16 %v1124, %v1123
    %v1406 = vpack.c.b16 %v1126, %v1125
    %v1407 = vpack.c.b16 %v1128, %v1127
    %v1408 = vpack.c.b16 %v1130, %v1129
    %v1409 = vpack.c.b16 %v1132, %v1131
    %v1410 = vpack.c.b16 %v1134, %v1133
    %v1411 = vpack.c.b16 %v1136, %v1135
    %v1412 = vpack.c.b16 %v1138, %v1137
    %v1413 = vpack.c.b16 %v1140, %v1139
    %v1414 = vpack.c.b16 %v1142, %v1141
    %v1415 = vpack.c.b16 %v1144, %v1143
    %v1416 = vpack.c.b16 %v1146, %v1145
    %v1417 = vpack.c.b16 %v1148, %v1147
    %v1418 = vpack.c.b16 %v1150, %v1149
    %v1419 = vpack.c.b16 %v1152, %v1151
    %v1420 = vpack.c.b16 %v1154, %v1153
    %v1421 = vpack.c.b16 %v1156, %v1155
    %v1422 = vpack.c.b16 %v1158, %v1157
    %v1423 = vpack.c.b16 %v1160, %v1159
    %v1424 = vpack.c.b16 %v1162, %v1161
    %v1425 = vpack.c.b16 %v1164, %v1163
    %v1426 = vpack.c.b16 %v1166, %v1165
    %v1427 = vpack.c.b16 %v1168, %v1167
    %v1428 = vpack.c.b16 %v1170, %v1169
    %v1429 = vpack.c.b16 %v1172, %v1171
    %v1430 = vpack.c.b16 %v1174, %v1173
    %v1431 = vpack.c.b16 %v1176, %v1175
    %v1432 = vpack.c.b16 %v1178, %v1177
    %v1433 = vpack.c.b16 %v1180, %v1179
    %v1434 = vpack.c.b16 %v1182, %v1181
    %v1435 = vpack.c.b16 %v1184, %v1183
    %v1436 = vpack.c.b16 %v1186, %v1185
    %v1437 = vpack.c.b16 %v1188, %v1187
    %v1438 = vpack.c.b16 %v1190, %v1189
    %v1439 = vpack.c.b16 %v1192, %v1191
    %v1440 = vpack.c.b16 %v1194, %v1193
    %v1441 = vpack.c.b16 %v1196, %v1195
    %v1442 = vpack.c.b16 %v1198, %v1197
    %v1443 = vpack.c.b16 %v1200, %v1199
    %v1444 = vpack.c.b16 %v1202, %v1201
    %v1445 = vpack.c.b16 %v1204, %v1203
    %v1446 = vpack.c.b16 %v1206, %v1205
    %v1447 = vpack.c.b16 %v1208, %v1207
    %v1448 = vpack.c.b16 %v1210, %v1209
    %v1449 = vpack.c.b16 %v1212, %v1211
    %v1450 = vpack.c.b16 %v1214, %v1213
    %v1451 = vpack.c.b16 %v1216, %v1215
    %v1452 = vpack.c.b16 %v1218, %v1217
    %v1453 = vpack.c.b16 %v1220, %v1219
    %v1454 = vpack.c.b16 %v1222, %v1221
    %v1455 = vpack.c.b16 %v1224, %v1223
    %v1456 = vpack.c.b16 %v1226, %v1225
    %v1457 = vpack.c.b16 %v1228, %v1227
    %v1458 = vpack.c.b16 %v1230, %v1229
    %v1459 = vpack.c.b16 %v1232, %v1231
    %v1460 = vpack.c.b16 %v1234, %v1233
    %v1461 = vpack.c.b16 %v1236, %v1235
    %v1462 = vpack.c.b16 %v1238, %v1237
    %v1463 = vpack.c.b16 %v1240, %v1239
    %v1464 = vpack.c.b16 %v1242, %v1241
    %v1465 = vpack.c.b16 %v1244, %v1243
    %v1466 = vpack.c.b16 %v1246, %v1245
    %v1467 = vpack.c.b16 %v1248, %v1247
    %v1468 = vpack.c.b16 %v1250, %v1249
    %v1469 = vpack.c.b16 %v1252, %v1251
    %v1470 = vpack.c.b16 %v1254, %v1253
    %v1471 = vpack.c.b16 %v1256, %v1255
    %v1472 = vpack.c.b16 %v1258, %v1257
    %v1473 = vpack.c.b16 %v1260, %v1259
    %v1474 = vpack.c.b16 %v1262, %v1261
    %v1475 = vpack.c.b16 %v1264, %v1263
    %v1476 = vpack.c.b16 %v1266, %v1265
    %v1477 = vpack.c.b16 %v1268, %v1267
    %v1478 = vpack.c.b16 %v1270, %v1269
    %v1479 = vpack.c.b16 %v1272, %v1271
    %v1480 = vpack.c.b16 %v1274, %v1273
    %v1481 = vpack.c.b16 %v1276, %v1275
    %v1482 = vpack.c.b16 %v1278, %v1277
    %v1483 = vpack.c.b16 %v1280, %v1279
    %v1484 = vpack.c.b16 %v1282, %v1281
    %v1485 = vpack.c.b16 %v1284, %v1283
    %v1486 = vpack.c.b16 %v1286, %v1285
    %1687 = vmatpush.bf16.msra.mxu0 %v1294
    %1688 = vmatpush.bf16.msra.mxu0 %v1293
    %1689 = vmatpush.bf16.msra.mxu0 %v1292
    %1690 = vmatpush.bf16.msra.mxu0 %v1291
    %1691 = vmatpush.bf16.msra.mxu0 %v1290
    %1692 = vmatpush.bf16.msra.mxu0 %v1289
    %1693 = vmatpush.bf16.msra.mxu0 %v1288
    %1694 = vmatpush.bf16.msra.mxu0 %v1287
    %1695 = vmatmul.bf16.gmra.mxu0 %v431
    %v1696 = vpop.f32.mrf.mxu0
    %v1697 = vadd.f32 %v427, %v1696
    %v1698 = vpop.f32.mrf.mxu0
    %1699 = vdwg.mxu0
    %1700 = vmatpush.bf16.msra.mxu0 %v1302
    %1701 = vmatpush.bf16.msra.mxu0 %v1301
    %1702 = vmatpush.bf16.msra.mxu0 %v1300
    %1703 = vmatpush.bf16.msra.mxu0 %v1299
    %1704 = vmatpush.bf16.msra.mxu0 %v1298
    %1705 = vmatpush.bf16.msra.mxu0 %v1297
    %1706 = vmatpush.bf16.msra.mxu0 %v1296
    %1707 = vmatpush.bf16.msra.mxu0 %v1295
    %1708 = vmatmul.bf16.gmra.mxu0 %v432
    %v1709 = vpop.f32.mrf.mxu0
    %v1710 = vadd.f32 %v1697, %v1709
    %v1711 = vpop.f32.mrf.mxu0
    %1712 = vdwg.mxu0
    %1713 = vmatpush.bf16.msra.mxu0 %v1310
    %1714 = vmatpush.bf16.msra.mxu0 %v1309
    %1715 = vmatpush.bf16.msra.mxu0 %v1308
    %1716 = vmatpush.bf16.msra.mxu0 %v1307
    %1717 = vmatpush.bf16.msra.mxu0 %v1306
    %1718 = vmatpush.bf16.msra.mxu0 %v1305
    %1719 = vmatpush.bf16.msra.mxu0 %v1304
    %1720 = vmatpush.bf16.msra.mxu0 %v1303
    %1721 = vmatmul.bf16.gmra.mxu0 %v433
    %v1722 = vpop.f32.mrf.mxu0
    %v1723 = vadd.f32 %v1710, %v1722
    %v1724 = vpop.f32.mrf.mxu0
    %1725 = vdwg.mxu0
    %1726 = vmatpush.bf16.msra.mxu0 %v1318
    %1727 = vmatpush.bf16.msra.mxu0 %v1317
    %1728 = vmatpush.bf16.msra.mxu0 %v1316
    %1729 = vmatpush.bf16.msra.mxu0 %v1315
    %1730 = vmatpush.bf16.msra.mxu0 %v1314
    %1731 = vmatpush.bf16.msra.mxu0 %v1313
    %1732 = vmatpush.bf16.msra.mxu0 %v1312
    %1733 = vmatpush.bf16.msra.mxu0 %v1311
    %1734 = vmatmul.bf16.gmra.mxu0 %v434
    %v1735 = vpop.f32.mrf.mxu0
    %v1736 = vadd.f32 %v1723, %v1735
    %v1737 = vpop.f32.mrf.mxu0
    %1738 = vdwg.mxu0
    %1739 = vmatpush.bf16.msra.mxu0 %v1326
    %1740 = vmatpush.bf16.msra.mxu0 %v1325
    %1741 = vmatpush.bf16.msra.mxu0 %v1324
    %1742 = vmatpush.bf16.msra.mxu0 %v1323
    %1743 = vmatpush.bf16.msra.mxu0 %v1322
    %1744 = vmatpush.bf16.msra.mxu0 %v1321
    %1745 = vmatpush.bf16.msra.mxu0 %v1320
    %1746 = vmatpush.bf16.msra.mxu0 %v1319
    %1747 = vmatmul.bf16.gmra.mxu0 %v435
    %v1748 = vpop.f32.mrf.mxu0
    %v1749 = vadd.f32 %v1736, %v1748
    %v1750 = vpop.f32.mrf.mxu0
    %1751 = vdwg.mxu0
    %1752 = vmatpush.bf16.msra.mxu0 %v1334
    %1753 = vmatpush.bf16.msra.mxu0 %v1333
    %1754 = vmatpush.bf16.msra.mxu0 %v1332
    %1755 = vmatpush.bf16.msra.mxu0 %v1331
    %1756 = vmatpush.bf16.msra.mxu0 %v1330
    %1757 = vmatpush.bf16.msra.mxu0 %v1329
    %1758 = vmatpush.bf16.msra.mxu0 %v1328
    %1759 = vmatpush.bf16.msra.mxu0 %v1327
    %1760 = vmatmul.bf16.gmra.mxu0 %v436
    %v1761 = vpop.f32.mrf.mxu0
    %v1762 = vadd.f32 %v1749, %v1761
    %v1763 = vpop.f32.mrf.mxu0
    %1764 = vdwg.mxu0
    %1765 = vmatpush.bf16.msra.mxu0 %v1342
    %1766 = vmatpush.bf16.msra.mxu0 %v1341
    %1767 = vmatpush.bf16.msra.mxu0 %v1340
    %1768 = vmatpush.bf16.msra.mxu0 %v1339
    %1769 = vmatpush.bf16.msra.mxu0 %v1338
    %1770 = vmatpush.bf16.msra.mxu0 %v1337
    %1771 = vmatpush.bf16.msra.mxu0 %v1336
    %1772 = vmatpush.bf16.msra.mxu0 %v1335
    %1773 = vmatmul.bf16.gmra.mxu0 %v437
    %v1774 = vpop.f32.mrf.mxu0
    %v1775 = vadd.f32 %v1762, %v1774
    %v1776 = vpop.f32.mrf.mxu0
    %1777 = vdwg.mxu0
    %1778 = vmatpush.bf16.msra.mxu0 %v1350
    %1779 = vmatpush.bf16.msra.mxu0 %v1349
    %1780 = vmatpush.bf16.msra.mxu0 %v1348
    %1781 = vmatpush.bf16.msra.mxu0 %v1347
    %1782 = vmatpush.bf16.msra.mxu0 %v1346
    %1783 = vmatpush.bf16.msra.mxu0 %v1345
    %1784 = vmatpush.bf16.msra.mxu0 %v1344
    %1785 = vmatpush.bf16.msra.mxu0 %v1343
    %1786 = vmatmul.bf16.gmra.mxu0 %v438
    %v1787 = vpop.f32.mrf.mxu0
    %v1788 = vadd.f32 %v1775, %v1787
    %v1789 = vpop.f32.mrf.mxu0
    %1790 = vdwg.mxu0
    %1791 = vmatpush.bf16.msra.mxu0 %v1358
    %1792 = vmatpush.bf16.msra.mxu0 %v1357
    %1793 = vmatpush.bf16.msra.mxu0 %v1356
    %1794 = vmatpush.bf16.msra.mxu0 %v1355
    %1795 = vmatpush.bf16.msra.mxu0 %v1354
    %1796 = vmatpush.bf16.msra.mxu0 %v1353
    %1797 = vmatpush.bf16.msra.mxu0 %v1352
    %1798 = vmatpush.bf16.msra.mxu0 %v1351
    %1799 = vmatmul.bf16.gmra.mxu0 %v441
    %v1800 = vpop.f32.mrf.mxu0
    %v1801 = vadd.f32 %v1788, %v1800
    %v1802 = vpop.f32.mrf.mxu0
    %1803 = vdwg.mxu0
    %1804 = vmatpush.bf16.msra.mxu0 %v1366
    %1805 = vmatpush.bf16.msra.mxu0 %v1365
    %1806 = vmatpush.bf16.msra.mxu0 %v1364
    %1807 = vmatpush.bf16.msra.mxu0 %v1363
    %1808 = vmatpush.bf16.msra.mxu0 %v1362
    %1809 = vmatpush.bf16.msra.mxu0 %v1361
    %1810 = vmatpush.bf16.msra.mxu0 %v1360
    %1811 = vmatpush.bf16.msra.mxu0 %v1359
    %1812 = vmatmul.bf16.gmra.mxu0 %v442
    %v1813 = vpop.f32.mrf.mxu0
    %v1814 = vadd.f32 %v1801, %v1813
    %v1815 = vpop.f32.mrf.mxu0
    %1816 = vdwg.mxu0
    %1817 = vmatpush.bf16.msra.mxu0 %v1374
    %1818 = vmatpush.bf16.msra.mxu0 %v1373
    %1819 = vmatpush.bf16.msra.mxu0 %v1372
    %1820 = vmatpush.bf16.msra.mxu0 %v1371
    %1821 = vmatpush.bf16.msra.mxu0 %v1370
    %1822 = vmatpush.bf16.msra.mxu0 %v1369
    %1823 = vmatpush.bf16.msra.mxu0 %v1368
    %1824 = vmatpush.bf16.msra.mxu0 %v1367
    %1825 = vmatmul.bf16.gmra.mxu0 %v443
    %v1826 = vpop.f32.mrf.mxu0
    %v1827 = vadd.f32 %v1814, %v1826
    %v1828 = vpop.f32.mrf.mxu0
    %1829 = vdwg.mxu0
    %1830 = vmatpush.bf16.msra.mxu0 %v1382
    %1831 = vmatpush.bf16.msra.mxu0 %v1381
    %1832 = vmatpush.bf16.msra.mxu0 %v1380
    %1833 = vmatpush.bf16.msra.mxu0 %v1379
    %1834 = vmatpush.bf16.msra.mxu0 %v1378
    %1835 = vmatpush.bf16.msra.mxu0 %v1377
    %1836 = vmatpush.bf16.msra.mxu0 %v1376
    %1837 = vmatpush.bf16.msra.mxu0 %v1375
    %1838 = vmatmul.bf16.gmra.mxu0 %v444
    %v1839 = vpop.f32.mrf.mxu0
    %v1840 = vadd.f32 %v1827, %v1839
    %v1841 = vpop.f32.mrf.mxu0
    %1842 = vdwg.mxu0
    %1843 = vmatpush.bf16.msra.mxu0 %v1390
    %1844 = vmatpush.bf16.msra.mxu0 %v1389
    %1845 = vmatpush.bf16.msra.mxu0 %v1388
    %1846 = vmatpush.bf16.msra.mxu0 %v1387
    %1847 = vmatpush.bf16.msra.mxu0 %v1386
    %1848 = vmatpush.bf16.msra.mxu0 %v1385
    %1849 = vmatpush.bf16.msra.mxu0 %v1384
    %1850 = vmatpush.bf16.msra.mxu0 %v1383
    %1851 = vmatmul.bf16.gmra.mxu0 %v445
    %v1852 = vpop.f32.mrf.mxu0
    %v1853 = vadd.f32 %v1840, %v1852
    %v1854 = vpop.f32.mrf.mxu0
    %1855 = vdwg.mxu0
    %1856 = vmatpush.bf16.msra.mxu0 %v1398
    %1857 = vmatpush.bf16.msra.mxu0 %v1397
    %1858 = vmatpush.bf16.msra.mxu0 %v1396
    %1859 = vmatpush.bf16.msra.mxu0 %v1395
    %1860 = vmatpush.bf16.msra.mxu0 %v1394
    %1861 = vmatpush.bf16.msra.mxu0 %v1393
    %1862 = vmatpush.bf16.msra.mxu0 %v1392
    %1863 = vmatpush.bf16.msra.mxu0 %v1391
    %1864 = vmatmul.bf16.gmra.mxu0 %v446
    %v1865 = vpop.f32.mrf.mxu0
    %v1866 = vadd.f32 %v1853, %v1865
    %v1867 = vpop.f32.mrf.mxu0
    %1868 = vdwg.mxu0
    %1869 = vmatpush.bf16.msra.mxu0 %v1406
    %1870 = vmatpush.bf16.msra.mxu0 %v1405
    %1871 = vmatpush.bf16.msra.mxu0 %v1404
    %1872 = vmatpush.bf16.msra.mxu0 %v1403
    %1873 = vmatpush.bf16.msra.mxu0 %v1402
    %1874 = vmatpush.bf16.msra.mxu0 %v1401
    %1875 = vmatpush.bf16.msra.mxu0 %v1400
    %1876 = vmatpush.bf16.msra.mxu0 %v1399
    %1877 = vmatmul.bf16.gmra.mxu0 %v447
    %v1878 = vpop.f32.mrf.mxu0
    %v1879 = vadd.f32 %v1866, %v1878
    %v1880 = vpop.f32.mrf.mxu0
    %1881 = vdwg.mxu0
    %1882 = vmatpush.bf16.msra.mxu0 %v1414
    %1883 = vmatpush.bf16.msra.mxu0 %v1413
    %1884 = vmatpush.bf16.msra.mxu0 %v1412
    %1885 = vmatpush.bf16.msra.mxu0 %v1411
    %1886 = vmatpush.bf16.msra.mxu0 %v1410
    %1887 = vmatpush.bf16.msra.mxu0 %v1409
    %1888 = vmatpush.bf16.msra.mxu0 %v1408
    %1889 = vmatpush.bf16.msra.mxu0 %v1407
    %1890 = vmatmul.bf16.gmra.mxu0 %v448
    %v1891 = vpop.f32.mrf.mxu0
    %v1892 = vadd.f32 %v1879, %v1891
    %v1893 = vpop.f32.mrf.mxu0
    %1894 = vdwg.mxu0
    %1895 = vmatpush.bf16.msra.mxu0 %v1422
    %1896 = vmatpush.bf16.msra.mxu0 %v1421
    %1897 = vmatpush.bf16.msra.mxu0 %v1420
    %1898 = vmatpush.bf16.msra.mxu0 %v1419
    %1899 = vmatpush.bf16.msra.mxu0 %v1418
    %1900 = vmatpush.bf16.msra.mxu0 %v1417
    %1901 = vmatpush.bf16.msra.mxu0 %v1416
    %1902 = vmatpush.bf16.msra.mxu0 %v1415
    %1903 = vmatmul.bf16.gmra.mxu0 %v451
    %v1904 = vpop.f32.mrf.mxu0
    %v1905 = vadd.f32 %v1892, %v1904
    %v1906 = vpop.f32.mrf.mxu0
    %1907 = vdwg.mxu0
    %1908 = vmatpush.bf16.msra.mxu0 %v1430
    %1909 = vmatpush.bf16.msra.mxu0 %v1429
    %1910 = vmatpush.bf16.msra.mxu0 %v1428
    %1911 = vmatpush.bf16.msra.mxu0 %v1427
    %1912 = vmatpush.bf16.msra.mxu0 %v1426
    %1913 = vmatpush.bf16.msra.mxu0 %v1425
    %1914 = vmatpush.bf16.msra.mxu0 %v1424
    %1915 = vmatpush.bf16.msra.mxu0 %v1423
    %1916 = vmatmul.bf16.gmra.mxu0 %v452
    %v1917 = vpop.f32.mrf.mxu0
    %v1918 = vadd.f32 %v1905, %v1917
    %v1919 = vpop.f32.mrf.mxu0
    %1920 = vdwg.mxu0
    %1921 = vmatpush.bf16.msra.mxu0 %v1438
    %1922 = vmatpush.bf16.msra.mxu0 %v1437
    %1923 = vmatpush.bf16.msra.mxu0 %v1436
    %1924 = vmatpush.bf16.msra.mxu0 %v1435
    %1925 = vmatpush.bf16.msra.mxu0 %v1434
    %1926 = vmatpush.bf16.msra.mxu0 %v1433
    %1927 = vmatpush.bf16.msra.mxu0 %v1432
    %1928 = vmatpush.bf16.msra.mxu0 %v1431
    %1929 = vmatmul.bf16.gmra.mxu0 %v453
    %v1930 = vpop.f32.mrf.mxu0
    %v1931 = vadd.f32 %v1918, %v1930
    %v1932 = vpop.f32.mrf.mxu0
    %1933 = vdwg.mxu0
    %1934 = vmatpush.bf16.msra.mxu0 %v1446
    %1935 = vmatpush.bf16.msra.mxu0 %v1445
    %1936 = vmatpush.bf16.msra.mxu0 %v1444
    %1937 = vmatpush.bf16.msra.mxu0 %v1443
    %1938 = vmatpush.bf16.msra.mxu0 %v1442
    %1939 = vmatpush.bf16.msra.mxu0 %v1441
    %1940 = vmatpush.bf16.msra.mxu0 %v1440
    %1941 = vmatpush.bf16.msra.mxu0 %v1439
    %1942 = vmatmul.bf16.gmra.mxu0 %v454
    %v1943 = vpop.f32.mrf.mxu0
    %v1944 = vadd.f32 %v1931, %v1943
    %v1945 = vpop.f32.mrf.mxu0
    %1946 = vdwg.mxu0
    %1947 = vmatpush.bf16.msra.mxu0 %v1454
    %1948 = vmatpush.bf16.msra.mxu0 %v1453
    %1949 = vmatpush.bf16.msra.mxu0 %v1452
    %1950 = vmatpush.bf16.msra.mxu0 %v1451
    %1951 = vmatpush.bf16.msra.mxu0 %v1450
    %1952 = vmatpush.bf16.msra.mxu0 %v1449
    %1953 = vmatpush.bf16.msra.mxu0 %v1448
    %1954 = vmatpush.bf16.msra.mxu0 %v1447
    %1955 = vmatmul.bf16.gmra.mxu0 %v455
    %v1956 = vpop.f32.mrf.mxu0
    %v1957 = vadd.f32 %v1944, %v1956
    %v1958 = vpop.f32.mrf.mxu0
    %1959 = vdwg.mxu0
    %1960 = vmatpush.bf16.msra.mxu0 %v1462
    %1961 = vmatpush.bf16.msra.mxu0 %v1461
    %1962 = vmatpush.bf16.msra.mxu0 %v1460
    %1963 = vmatpush.bf16.msra.mxu0 %v1459
    %1964 = vmatpush.bf16.msra.mxu0 %v1458
    %1965 = vmatpush.bf16.msra.mxu0 %v1457
    %1966 = vmatpush.bf16.msra.mxu0 %v1456
    %1967 = vmatpush.bf16.msra.mxu0 %v1455
    %1968 = vmatmul.bf16.gmra.mxu0 %v456
    %v1969 = vpop.f32.mrf.mxu0
    %v1970 = vadd.f32 %v1957, %v1969
    %v1971 = vpop.f32.mrf.mxu0
    %1972 = vdwg.mxu0
    %1973 = vmatpush.bf16.msra.mxu0 %v1470
    %1974 = vmatpush.bf16.msra.mxu0 %v1469
    %1975 = vmatpush.bf16.msra.mxu0 %v1468
    %1976 = vmatpush.bf16.msra.mxu0 %v1467
    %1977 = vmatpush.bf16.msra.mxu0 %v1466
    %1978 = vmatpush.bf16.msra.mxu0 %v1465
    %1979 = vmatpush.bf16.msra.mxu0 %v1464
    %1980 = vmatpush.bf16.msra.mxu0 %v1463
    %1981 = vmatmul.bf16.gmra.mxu0 %v457
    %v1982 = vpop.f32.mrf.mxu0
    %v1983 = vadd.f32 %v1970, %v1982
    %v1984 = vpop.f32.mrf.mxu0
    %1985 = vdwg.mxu0
    %1986 = vmatpush.bf16.msra.mxu0 %v1478
    %1987 = vmatpush.bf16.msra.mxu0 %v1477
    %1988 = vmatpush.bf16.msra.mxu0 %v1476
    %1989 = vmatpush.bf16.msra.mxu0 %v1475
    %1990 = vmatpush.bf16.msra.mxu0 %v1474
    %1991 = vmatpush.bf16.msra.mxu0 %v1473
    %1992 = vmatpush.bf16.msra.mxu0 %v1472
    %1993 = vmatpush.bf16.msra.mxu0 %v1471
    %1994 = vmatmul.bf16.gmra.mxu0 %v458
    %v1995 = vpop.f32.mrf.mxu0
    %v1996 = vadd.f32 %v1983, %v1995
    %v1997 = vpop.f32.mrf.mxu0
    %1998 = vdwg.mxu0
    %1999 = vmatpush.bf16.msra.mxu0 %v1486
    %2000 = vmatpush.bf16.msra.mxu0 %v1485
    %2001 = vmatpush.bf16.msra.mxu0 %v1484
    %2002 = vmatpush.bf16.msra.mxu0 %v1483
    %2003 = vmatpush.bf16.msra.mxu0 %v1482
    %2004 = vmatpush.bf16.msra.mxu0 %v1481
    %2005 = vmatpush.bf16.msra.mxu0 %v1480
    %2006 = vmatpush.bf16.msra.mxu0 %v1479
    %2007 = vmatmul.bf16.gmra.mxu0 %v461
    %v2008 = vpop.f32.mrf.mxu0
    %v2009 = vadd.f32 %v1996, %v2008
    %v2010 = vpop.f32.mrf.mxu0
    %2011 = vdwg.mxu0
    %v2012 = vmax.f32 %v2009, 0.0
    %v2013 = vpack.c.bf16 %v2012, %v2012
    %v2014 = vld [vmem:[%s3] sm:$0xf]
    %v2015 = vld [vmem:[%s3 + $0x4] sm:$0xf]
    %v2016 = vld [vmem:[%s3 + $0x8] sm:$0xf]
    %v2017 = vld [vmem:[%s3 + $0xc] sm:$0xf]
    %v2018 = vld [vmem:[%s3 + $0x10] sm:$0xf]
    %v2019 = vld [vmem:[%s3 + $0x14] sm:$0xf]
    %v2020 = vld [vmem:[%s3 + $0x18] sm:$0xf]
    %v2021 = vld [vmem:[%s3 + $0x1c] sm:$0xf]
    %v2022 = vld [vmem:[%s3 + $0x20] sm:$0xf]
    %v2023 = vld [vmem:[%s3 + $0x24] sm:$0xf]
    %v2024 = vld [vmem:[%s3 + $0x28] sm:$0xf]
    %v2025 = vld [vmem:[%s3 + $0x2c] sm:$0xf]
    %v2026 = vld [vmem:[%s3 + $0x30] sm:$0xf]
    %v2027 = vld [vmem:[%s3 + $0x34] sm:$0xf]
    %v2028 = vld [vmem:[%s3 + $0x38] sm:$0xf]
    %v2029 = vld [vmem:[%s3 + $0x3c] sm:$0xf]
    %v2030 = vld [vmem:[%s4] sm:$0x1]
    %v2032 = vperm.slane %v2030, 0
    %v2050 = vunpack.c.l.b16 %v2014
    %v2051 = vunpack.c.l.b16 %v2015
    %v2052 = vunpack.c.l.b16 %v2016
    %v2053 = vunpack.c.l.b16 %v2017
    %v2054 = vunpack.c.l.b16 %v2018
    %v2055 = vunpack.c.l.b16 %v2019
    %v2056 = vunpack.c.l.b16 %v2020
    %v2057 = vunpack.c.l.b16 %v2021
    %v2058 = vunpack.c.l.b16 %v2022
    %v2059 = vunpack.c.l.b16 %v2023
    %v2060 = vunpack.c.l.b16 %v2024
    %v2061 = vunpack.c.l.b16 %v2025
    %v2062 = vunpack.c.l.b16 %v2026
    %v2063 = vunpack.c.l.b16 %v2027
    %v2064 = vunpack.c.l.b16 %v2028
    %v2065 = vunpack.c.l.b16 %v2029
    %v2066 = vpack.c.b16 %v2051, %v2050
    %v2067 = vpack.c.b16 %v2053, %v2052
    %v2068 = vpack.c.b16 %v2055, %v2054
    %v2069 = vpack.c.b16 %v2057, %v2056
    %v2070 = vpack.c.b16 %v2059, %v2058
    %v2071 = vpack.c.b16 %v2061, %v2060
    %v2072 = vpack.c.b16 %v2063, %v2062
    %v2073 = vpack.c.b16 %v2065, %v2064
    %2082 = vmatpush.bf16.msra.mxu0 %v2073
    %2083 = vmatpush.bf16.msra.mxu0 %v2072
    %2084 = vmatpush.bf16.msra.mxu0 %v2071
    %2085 = vmatpush.bf16.msra.mxu0 %v2070
    %2086 = vmatpush.bf16.msra.mxu0 %v2069
    %2087 = vmatpush.bf16.msra.mxu0 %v2068
    %2088 = vmatpush.bf16.msra.mxu0 %v2067
    %2089 = vmatpush.bf16.msra.mxu0 %v2066
    %2090 = vmatmul.bf16.gmra.mxu0 %v2013
    %v2091 = vpop.f32.mrf.mxu0
    %v2092 = vadd.f32 %v2032, %v2091
    %v2093 = vpop.f32.mrf.mxu0
    %2094 = vdwg.mxu0
    %v2095 = vmax.f32 %v2092, 0.0
    %2096 = vst [vmem:[#allocation2] sm:$0x3] %v2095
    // Predicated region
    $region22: #{my_cnn_forward.9} parent=1 // pred_check
      _
    $region23: #{my_cnn_forward.9} parent=1 // pred_check_branch
      %2098 = sbr.rel (0) target = $region25
    $region24: #{my_cnn_forward.9} parent=1 // pred_region
      %2100 = vsyncadd [#allocation3], 0
      %s2102 = sshll.u32 [#allocation2], 4
      %s2103 = int_to_ptr.vmem [resolvable:$true] %s2102
      %s2104 = sshll.u32 %s5, 4
      %s2105 = int_to_ptr.hbm [resolvable:$true] %s2104
      %2107 = dma.vmem_to_hbm [thread:$0]  %s2103, 32, %s2105, [#allocation3]
    $region25: #{my_cnn_forward.9} parent=1 // pred_fallthru
      _
    // Predicated region
    $region26: #{my_cnn_forward.9} parent=1 // pred_check
      _
    $region27: #{my_cnn_forward.9} parent=1 // pred_check_branch
      %2109 = sbr.rel (0) target = $region29
    $region28: #{my_cnn_forward.9} parent=1 // pred_region
      %2111 = dma.done [#allocation3], 32
    $region29: #{my_cnn_forward.9} parent=1 // pred_fallthru
      _
    %2112 = vsyncpa [#allocation3], 1

</llo_original>
